<compile_context>
chip_gen: v7x
topology: tpu7x:2x2x1
jax: 0.10.0
libtpu: 0.0.40
codegen_flags: <defaults>
</compile_context>

<pallas_src>
import math

import jax
import jax.numpy as jnp
from jax.experimental import pallas as pl
from jax.experimental.pallas import tpu as pltpu  # noqa: F401  (imported per template)


# ----------------------------- model config (small) -----------------------------
N_FEATURES = 8
D_MODEL    = 32
N_HEADS    = 4
N_HIDDEN   = 64
N_LAYERS   = 2
SEQ_LEN    = 8
BATCH      = 2
HEAD_DIM   = D_MODEL // N_HEADS
N_TOK      = SEQ_LEN * BATCH          # flattened (seq, batch) token dim
LN_EPS     = 1e-5
_SQRT_D      = math.sqrt(D_MODEL)
_HEAD_SCALE  = 1.0 / math.sqrt(HEAD_DIM)
_NEG_BIG     = -1e9                   # finite "minus infinity" (matches module's -1e6 style)


# ----------------------------- in-kernel helpers -----------------------------
def _layernorm(x, gamma, beta):
    mean = jnp.mean(x, axis=-1, keepdims=True)
    cent = x - mean
    var = jnp.mean(cent * cent, axis=-1, keepdims=True)
    return cent * jax.lax.rsqrt(var + LN_EPS) * gamma + beta


# ----------------------------- fused forward kernel -----------------------------
def fused_transformer_kernel(
        src_ref, bias_ref, pe_ref,
        in_w_ref, in_b_ref,
        wq_ref, bq_ref, wk_ref, bk_ref, wv_ref, bv_ref,
        wo_ref, bo_ref, ln1g_ref, ln1b_ref,
        w1_ref, b1_ref, w2_ref, b2_ref, ln2g_ref, ln2b_ref,
        out_w_ref, out_b_ref,
        o_ref):
    N = N_TOK

    # --- InputLinear(src) * sqrt(d_model) + positional encoding (dropout p=0) ---
    x = src_ref[...].reshape(N, N_FEATURES)                       # (N, F), lane dim kept
    x = jnp.dot(x, in_w_ref[...], preferred_element_type=jnp.float32) + in_b_ref[...]
    x = x * _SQRT_D + pe_ref[...]                                 # (N, D)

    bias = bias_ref[...]                                          # (N, N) additive:
                                                                  # causal + key-padding +
                                                                  # cross-batch block mask

    for l in range(N_LAYERS):                                     # static unroll (2 layers)
        # ----- multi-head self attention (post-norm encoder layer) -----
        attn = jnp.zeros((N, D_MODEL), jnp.float32)
        for h in range(N_HEADS):                                  # static unroll (4 heads)
            q = jnp.dot(x, wq_ref[l, h], preferred_element_type=jnp.float32) + bq_ref[l, h]
            k = jnp.dot(x, wk_ref[l, h], preferred_element_type=jnp.float32) + bk_ref[l, h]
            v = jnp.dot(x, wv_ref[l, h], preferred_element_type=jnp.float32) + bv_ref[l, h]

            s = jnp.dot(q, k.T, preferred_element_type=jnp.float32) * _HEAD_SCALE + bias
            s = s - jnp.max(s, axis=-1, keepdims=True)
            p = jnp.exp(s)
            p = p * pl.reciprocal(jnp.sum(p, axis=-1, keepdims=True), approx=True)

            oh = jnp.dot(p, v, preferred_element_type=jnp.float32)           # (N, Dh)
            attn = attn + jnp.dot(oh, wo_ref[l, h],                           # per-head Wo
                                  preferred_element_type=jnp.float32)         # (N, D)
        attn = attn + bo_ref[l]

        x = _layernorm(x + attn, ln1g_ref[l], ln1b_ref[l])        # residual + LN1

        # ----- feed forward (Linear -> ReLU -> Linear) -----
        h1 = jnp.dot(x, w1_ref[l], preferred_element_type=jnp.float32) + b1_ref[l]
        h1 = jnp.maximum(h1, 0.0)
        ffn = jnp.dot(h1, w2_ref[l], preferred_element_type=jnp.float32) + b2_ref[l]

        x = _layernorm(x + ffn, ln2g_ref[l], ln2b_ref[l])         # residual + LN2

    # --- OutputLinear + Sigmoid ---
    y = jnp.dot(x, out_w_ref[...], preferred_element_type=jnp.float32) + out_b_ref[...]
    y = 1.0 / (1.0 + jnp.exp(-y))
    o_ref[...] = y.reshape(SEQ_LEN, BATCH, N_FEATURES)


# ----------------------------- buffers / parameters -----------------------------
def make_positional_encoding(seq_len, d_model):
    pos = jnp.arange(seq_len, dtype=jnp.float32)[:, None]
    div = jnp.exp(jnp.arange(0, d_model, 2, dtype=jnp.float32)
                  * (-math.log(10000.0) / d_model))
    pe = jnp.zeros((seq_len, d_model), jnp.float32)
    pe = pe.at[:, 0::2].set(jnp.sin(pos * div))
    pe = pe.at[:, 1::2].set(jnp.cos(pos * div))
    return pe


def generate_square_subsequent_mask(sz):
    # 0 on/below diagonal, -1e6 above (matches the PyTorch module)
    i = jnp.arange(sz)[:, None]
    j = jnp.arange(sz)[None, :]
    return jnp.where(j <= i, 0.0, -1e6).astype(jnp.float32)


def make_params(key):
    """Weights are stored pre-transposed ((in, out) orientation) and attention
    projections pre-split per head so the kernel only does plain 2-D matmuls."""
    L, H, D, Dh, HID, F = N_LAYERS, N_HEADS, D_MODEL, HEAD_DIM, N_HIDDEN, N_FEATURES

    def unif(k, shape, r=0.1):
        return jax.random.uniform(k, shape, jnp.float32, -r, r)

    keys = iter(jax.random.split(key, 12))
    params = {
        # InputLinear: weight uniform(-0.1, 0.1) per init_weights; bias small uniform
        "in_w_t": unif(next(keys), (F, D)),
        "in_b":   unif(next(keys), (1, D)),
        # OutputLinear: weight uniform(-0.1, 0.1), bias zero per init_weights
        "out_w_t": unif(next(keys), (D, F)),
        "out_b":   jnp.zeros((1, F), jnp.float32),
        # per-layer, per-head self-attention projections (stacked over layers)
        "wq": unif(next(keys), (L, H, D, Dh)),
        "wk": unif(next(keys), (L, H, D, Dh)),
        "wv": unif(next(keys), (L, H, D, Dh)),
        "wo": unif(next(keys), (L, H, Dh, D)),
        "bq": jnp.zeros((L, H, 1, Dh), jnp.float32),
        "bk": jnp.zeros((L, H, 1, Dh), jnp.float32),
        "bv": jnp.zeros((L, H, 1, Dh), jnp.float32),
        "bo": jnp.zeros((L, 1, D), jnp.float32),
        # layer norms
        "ln1g": jnp.ones((L, 1, D), jnp.float32),
        "ln1b": jnp.zeros((L, 1, D), jnp.float32),
        "ln2g": jnp.ones((L, 1, D), jnp.float32),
        "ln2b": jnp.zeros((L, 1, D), jnp.float32),
        # feed-forward
        "w1": unif(next(keys), (L, D, HID)),
        "b1": unif(next(keys), (L, 1, HID)),
        "w2": unif(next(keys), (L, HID, D)),
        "b2": unif(next(keys), (L, 1, D)),
    }
    return params


# ----------------------------- full forward -----------------------------
def time_series_transformer_forward(src_sbf, src_mask, padding_mask_bool, params):
    """src_sbf: (S, B, F) float32; src_mask: (S, S) additive float;
    padding_mask_bool: (B, S) bool (True = ignore key position). Returns (S, B, F)."""
    S, B = SEQ_LEN, BATCH

    # Positional encoding replicated to the flat token layout (row n = s*B + b).
    pe_flat = jnp.repeat(make_positional_encoding(S, D_MODEL), B, axis=0)     # (N, D)

    # Combined additive attention bias over the flattened (seq, batch) token dim:
    # causal mask (on seq) + key padding + block mask killing cross-batch attention.
    kpad = jnp.where(padding_mask_bool, _NEG_BIG, 0.0).astype(jnp.float32)    # (B, S)
    same_b = jnp.arange(B)[:, None] == jnp.arange(B)[None, :]
    cross = jnp.where(same_b, 0.0, _NEG_BIG).astype(jnp.float32)              # (B, B)
    bias = (src_mask[:, None, :, None]          # (S,1,S,1)  causal(s_q, s_k)
            + kpad.T[None, None, :, :]          # (1,1,S,B)  padding(s_k, b_k)
            + cross[None, :, None, :])          # (1,B,1,B)  same-batch(b_q, b_k)
    bias = bias.reshape(S * B, S * B).astype(jnp.float32)                     # (N, N)

    ins = [src_sbf.astype(jnp.float32), bias, pe_flat,
           params["in_w_t"], params["in_b"],
           params["wq"], params["bq"], params["wk"], params["bk"],
           params["wv"], params["bv"], params["wo"], params["bo"],
           params["ln1g"], params["ln1b"],
           params["w1"], params["b1"], params["w2"], params["b2"],
           params["ln2g"], params["ln2b"],
           params["out_w_t"], params["out_b"]]

    # Single fused invocation: no grid, all operands resident in VMEM (< 100 KB total).
    return pl.pallas_call(
        fused_transformer_kernel,
        out_shape=jax.ShapeDtypeStruct((S, B, N_FEATURES), jnp.float32),
    )(*ins)


# ----------------------------- main -----------------------------
if __name__ == "__main__":
    key = jax.random.PRNGKey(0)
    k_src, k_par = jax.random.split(key)

    src = jax.random.normal(k_src, (SEQ_LEN, BATCH, N_FEATURES), jnp.float32)
    src_mask = generate_square_subsequent_mask(SEQ_LEN)
    padding_mask = jnp.zeros((BATCH, SEQ_LEN), dtype=bool)  # no padding

    params = make_params(k_par)

    fwd = jax.jit(time_series_transformer_forward)
    out = fwd(src, src_mask, padding_mask, params)
    out = jax.block_until_ready(out)

    assert out.shape == (SEQ_LEN, BATCH, N_FEATURES)
    assert bool(jnp.all(jnp.isfinite(out)))
    assert bool(jnp.all((out >= 0.0) & (out <= 1.0)))  # sigmoid range
    print("KERNEL_OK")
</pallas_src>

<mosaic_0001>
module attributes {stable_mosaic.version = 11 : i64} {
  func.func @fused_transformer_kernel(%arg0: memref<8x2x8xf32, #tpu.memory_space<vmem>>, %arg1: memref<16x16xf32, #tpu.memory_space<vmem>>, %arg2: memref<16x32xf32, #tpu.memory_space<vmem>>, %arg3: memref<8x32xf32, #tpu.memory_space<vmem>>, %arg4: memref<1x32xf32, #tpu.memory_space<vmem>>, %arg5: memref<2x4x32x8xf32, #tpu.memory_space<vmem>>, %arg6: memref<2x4x1x8xf32, #tpu.memory_space<vmem>>, %arg7: memref<2x4x32x8xf32, #tpu.memory_space<vmem>>, %arg8: memref<2x4x1x8xf32, #tpu.memory_space<vmem>>, %arg9: memref<2x4x32x8xf32, #tpu.memory_space<vmem>>, %arg10: memref<2x4x1x8xf32, #tpu.memory_space<vmem>>, %arg11: memref<2x4x8x32xf32, #tpu.memory_space<vmem>>, %arg12: memref<2x1x32xf32, #tpu.memory_space<vmem>>, %arg13: memref<2x1x32xf32, #tpu.memory_space<vmem>>, %arg14: memref<2x1x32xf32, #tpu.memory_space<vmem>>, %arg15: memref<2x32x64xf32, #tpu.memory_space<vmem>>, %arg16: memref<2x1x64xf32, #tpu.memory_space<vmem>>, %arg17: memref<2x64x32xf32, #tpu.memory_space<vmem>>, %arg18: memref<2x1x32xf32, #tpu.memory_space<vmem>>, %arg19: memref<2x1x32xf32, #tpu.memory_space<vmem>>, %arg20: memref<2x1x32xf32, #tpu.memory_space<vmem>>, %arg21: memref<32x8xf32, #tpu.memory_space<vmem>>, %arg22: memref<1x8xf32, #tpu.memory_space<vmem>>, %arg23: memref<8x2x8xf32, #tpu.memory_space<vmem>>) attributes {dimension_semantics = [], scalar_prefetch = 0 : i64, scratch_operands = 0 : i64, tpu.core_type = #tpu.core_type<tc>} {
    %c0 = arith.constant 0 : index
    %c0_0 = arith.constant 0 : index
    %c0_1 = arith.constant 0 : index
    %0 = vector.load %arg0[%c0, %c0_0, %c0_1] : memref<8x2x8xf32, #tpu.memory_space<vmem>>, vector<8x2x8xf32>
    %1 = vector.shape_cast %0 : vector<8x2x8xf32> to vector<16x8xf32>
    %c0_2 = arith.constant 0 : index
    %c0_3 = arith.constant 0 : index
    %2 = vector.load %arg3[%c0_2, %c0_3] : memref<8x32xf32, #tpu.memory_space<vmem>>, vector<8x32xf32>
    %cst = arith.constant dense<0.000000e+00> : vector<16x32xf32>
    %3 = tpu.matmul %1, %2, %cst {dimension_numbers = #tpu.dot_dimension_numbers<[1], [0], [0], [1], [0, 0, 1, 1], [], []>} : vector<16x8xf32>, vector<8x32xf32>, vector<16x32xf32> -> vector<16x32xf32>
    %c0_4 = arith.constant 0 : index
    %c0_5 = arith.constant 0 : index
    %4 = vector.load %arg4[%c0_4, %c0_5] : memref<1x32xf32, #tpu.memory_space<vmem>>, vector<1x32xf32>
    %5 = vector.broadcast %4 : vector<1x32xf32> to vector<16x32xf32>
    %6 = arith.addf %3, %5 : vector<16x32xf32>
    %cst_6 = arith.constant 5.65685415 : f32
    %7 = vector.broadcast %cst_6 : f32 to vector<16x32xf32>
    %8 = arith.mulf %6, %7 : vector<16x32xf32>
    %c0_7 = arith.constant 0 : index
    %c0_8 = arith.constant 0 : index
    %9 = vector.load %arg2[%c0_7, %c0_8] : memref<16x32xf32, #tpu.memory_space<vmem>>, vector<16x32xf32>
    %10 = arith.addf %8, %9 : vector<16x32xf32>
    %c0_9 = arith.constant 0 : index
    %c0_10 = arith.constant 0 : index
    %11 = vector.load %arg1[%c0_9, %c0_10] : memref<16x16xf32, #tpu.memory_space<vmem>>, vector<16x16xf32>
    %cst_11 = arith.constant 0.000000e+00 : f32
    %12 = vector.broadcast %cst_11 : f32 to vector<16x32xf32>
    %c0_12 = arith.constant 0 : index
    %c0_13 = arith.constant 0 : index
    %c0_14 = arith.constant 0 : index
    %c0_15 = arith.constant 0 : index
    %13 = vector.load %arg5[%c0_12, %c0_13, %c0_14, %c0_15] : memref<2x4x32x8xf32, #tpu.memory_space<vmem>>, vector<1x1x32x8xf32>
    %14 = vector.shape_cast %13 : vector<1x1x32x8xf32> to vector<32x8xf32>
    %cst_16 = arith.constant dense<0.000000e+00> : vector<16x8xf32>
    %15 = tpu.matmul %10, %14, %cst_16 {dimension_numbers = #tpu.dot_dimension_numbers<[1], [0], [0], [1], [0, 0, 1, 1], [], []>} : vector<16x32xf32>, vector<32x8xf32>, vector<16x8xf32> -> vector<16x8xf32>
    %c0_17 = arith.constant 0 : index
    %c0_18 = arith.constant 0 : index
    %c0_19 = arith.constant 0 : index
    %c0_20 = arith.constant 0 : index
    %16 = vector.load %arg6[%c0_17, %c0_18, %c0_19, %c0_20] : memref<2x4x1x8xf32, #tpu.memory_space<vmem>>, vector<1x1x1x8xf32>
    %17 = vector.shape_cast %16 : vector<1x1x1x8xf32> to vector<1x8xf32>
    %18 = vector.broadcast %17 : vector<1x8xf32> to vector<16x8xf32>
    %19 = arith.addf %15, %18 : vector<16x8xf32>
    %c0_21 = arith.constant 0 : index
    %c0_22 = arith.constant 0 : index
    %c0_23 = arith.constant 0 : index
    %c0_24 = arith.constant 0 : index
    %20 = vector.load %arg7[%c0_21, %c0_22, %c0_23, %c0_24] : memref<2x4x32x8xf32, #tpu.memory_space<vmem>>, vector<1x1x32x8xf32>
    %21 = vector.shape_cast %20 : vector<1x1x32x8xf32> to vector<32x8xf32>
    %cst_25 = arith.constant dense<0.000000e+00> : vector<16x8xf32>
    %22 = tpu.matmul %10, %21, %cst_25 {dimension_numbers = #tpu.dot_dimension_numbers<[1], [0], [0], [1], [0, 0, 1, 1], [], []>} : vector<16x32xf32>, vector<32x8xf32>, vector<16x8xf32> -> vector<16x8xf32>
    %c0_26 = arith.constant 0 : index
    %c0_27 = arith.constant 0 : index
    %c0_28 = arith.constant 0 : index
    %c0_29 = arith.constant 0 : index
    %23 = vector.load %arg8[%c0_26, %c0_27, %c0_28, %c0_29] : memref<2x4x1x8xf32, #tpu.memory_space<vmem>>, vector<1x1x1x8xf32>
    %24 = vector.shape_cast %23 : vector<1x1x1x8xf32> to vector<1x8xf32>
    %25 = vector.broadcast %24 : vector<1x8xf32> to vector<16x8xf32>
    %26 = arith.addf %22, %25 : vector<16x8xf32>
    %c0_30 = arith.constant 0 : index
    %c0_31 = arith.constant 0 : index
    %c0_32 = arith.constant 0 : index
    %c0_33 = arith.constant 0 : index
    %27 = vector.load %arg9[%c0_30, %c0_31, %c0_32, %c0_33] : memref<2x4x32x8xf32, #tpu.memory_space<vmem>>, vector<1x1x32x8xf32>
    %28 = vector.shape_cast %27 : vector<1x1x32x8xf32> to vector<32x8xf32>
    %cst_34 = arith.constant dense<0.000000e+00> : vector<16x8xf32>
    %29 = tpu.matmul %10, %28, %cst_34 {dimension_numbers = #tpu.dot_dimension_numbers<[1], [0], [0], [1], [0, 0, 1, 1], [], []>} : vector<16x32xf32>, vector<32x8xf32>, vector<16x8xf32> -> vector<16x8xf32>
    %c0_35 = arith.constant 0 : index
    %c0_36 = arith.constant 0 : index
    %c0_37 = arith.constant 0 : index
    %c0_38 = arith.constant 0 : index
    %30 = vector.load %arg10[%c0_35, %c0_36, %c0_37, %c0_38] : memref<2x4x1x8xf32, #tpu.memory_space<vmem>>, vector<1x1x1x8xf32>
    %31 = vector.shape_cast %30 : vector<1x1x1x8xf32> to vector<1x8xf32>
    %32 = vector.broadcast %31 : vector<1x8xf32> to vector<16x8xf32>
    %33 = arith.addf %29, %32 : vector<16x8xf32>
    %34 = tpu.transpose %26, [1, 0] : vector<16x8xf32> -> vector<8x16xf32>
    %cst_39 = arith.constant dense<0.000000e+00> : vector<16x16xf32>
    %35 = tpu.matmul %19, %34, %cst_39 {dimension_numbers = #tpu.dot_dimension_numbers<[1], [0], [0], [1], [0, 0, 1, 1], [], []>} : vector<16x8xf32>, vector<8x16xf32>, vector<16x16xf32> -> vector<16x16xf32>
    %cst_40 = arith.constant 0.353553385 : f32
    %36 = vector.broadcast %cst_40 : f32 to vector<16x16xf32>
    %37 = arith.mulf %35, %36 : vector<16x16xf32>
    %38 = arith.addf %37, %11 : vector<16x16xf32>
    %cst_41 = arith.constant dense<0xFF800000> : vector<16xf32>
    %39 = vector.multi_reduction <maximumf>, %38, %cst_41 [1] : vector<16x16xf32> to vector<16xf32>
    %40 = vector.shape_cast %39 : vector<16xf32> to vector<16x1xf32>
    %41 = vector.broadcast %40 : vector<16x1xf32> to vector<16x16xf32>
    %42 = arith.subf %38, %41 : vector<16x16xf32>
    %43 = math.exp %42 : vector<16x16xf32>
    %cst_42 = arith.constant dense<0.000000e+00> : vector<16xf32>
    %44 = vector.multi_reduction <add>, %43, %cst_42 [1] : vector<16x16xf32> to vector<16xf32>
    %45 = vector.shape_cast %44 : vector<16xf32> to vector<16x1xf32>
    %46 = tpu.reciprocal %45 {approx = true} : vector<16x1xf32> -> vector<16x1xf32>
    %47 = vector.broadcast %46 : vector<16x1xf32> to vector<16x16xf32>
    %48 = arith.mulf %43, %47 : vector<16x16xf32>
    %cst_43 = arith.constant dense<0.000000e+00> : vector<16x8xf32>
    %49 = tpu.matmul %48, %33, %cst_43 {dimension_numbers = #tpu.dot_dimension_numbers<[1], [0], [0], [1], [0, 0, 1, 1], [], []>} : vector<16x16xf32>, vector<16x8xf32>, vector<16x8xf32> -> vector<16x8xf32>
    %c0_44 = arith.constant 0 : index
    %c0_45 = arith.constant 0 : index
    %c0_46 = arith.constant 0 : index
    %c0_47 = arith.constant 0 : index
    %50 = vector.load %arg11[%c0_44, %c0_45, %c0_46, %c0_47] : memref<2x4x8x32xf32, #tpu.memory_space<vmem>>, vector<1x1x8x32xf32>
    %51 = vector.shape_cast %50 : vector<1x1x8x32xf32> to vector<8x32xf32>
    %cst_48 = arith.constant dense<0.000000e+00> : vector<16x32xf32>
    %52 = tpu.matmul %49, %51, %cst_48 {dimension_numbers = #tpu.dot_dimension_numbers<[1], [0], [0], [1], [0, 0, 1, 1], [], []>} : vector<16x8xf32>, vector<8x32xf32>, vector<16x32xf32> -> vector<16x32xf32>
    %53 = arith.addf %12, %52 : vector<16x32xf32>
    %c0_49 = arith.constant 0 : index
    %c1 = arith.constant 1 : index
    %c0_50 = arith.constant 0 : index
    %c0_51 = arith.constant 0 : index
    %54 = vector.load %arg5[%c0_49, %c1, %c0_50, %c0_51] : memref<2x4x32x8xf32, #tpu.memory_space<vmem>>, vector<1x1x32x8xf32>
    %55 = vector.shape_cast %54 : vector<1x1x32x8xf32> to vector<32x8xf32>
    %cst_52 = arith.constant dense<0.000000e+00> : vector<16x8xf32>
    %56 = tpu.matmul %10, %55, %cst_52 {dimension_numbers = #tpu.dot_dimension_numbers<[1], [0], [0], [1], [0, 0, 1, 1], [], []>} : vector<16x32xf32>, vector<32x8xf32>, vector<16x8xf32> -> vector<16x8xf32>
    %c0_53 = arith.constant 0 : index
    %c1_54 = arith.constant 1 : index
    %c0_55 = arith.constant 0 : index
    %c0_56 = arith.constant 0 : index
    %57 = vector.load %arg6[%c0_53, %c1_54, %c0_55, %c0_56] : memref<2x4x1x8xf32, #tpu.memory_space<vmem>>, vector<1x1x1x8xf32>
    %58 = vector.shape_cast %57 : vector<1x1x1x8xf32> to vector<1x8xf32>
    %59 = vector.broadcast %58 : vector<1x8xf32> to vector<16x8xf32>
    %60 = arith.addf %56, %59 : vector<16x8xf32>
    %c0_57 = arith.constant 0 : index
    %c1_58 = arith.constant 1 : index
    %c0_59 = arith.constant 0 : index
    %c0_60 = arith.constant 0 : index
    %61 = vector.load %arg7[%c0_57, %c1_58, %c0_59, %c0_60] : memref<2x4x32x8xf32, #tpu.memory_space<vmem>>, vector<1x1x32x8xf32>
    %62 = vector.shape_cast %61 : vector<1x1x32x8xf32> to vector<32x8xf32>
    %cst_61 = arith.constant dense<0.000000e+00> : vector<16x8xf32>
    %63 = tpu.matmul %10, %62, %cst_61 {dimension_numbers = #tpu.dot_dimension_numbers<[1], [0], [0], [1], [0, 0, 1, 1], [], []>} : vector<16x32xf32>, vector<32x8xf32>, vector<16x8xf32> -> vector<16x8xf32>
    %c0_62 = arith.constant 0 : index
    %c1_63 = arith.constant 1 : index
    %c0_64 = arith.constant 0 : index
    %c0_65 = arith.constant 0 : index
    %64 = vector.load %arg8[%c0_62, %c1_63, %c0_64, %c0_65] : memref<2x4x1x8xf32, #tpu.memory_space<vmem>>, vector<1x1x1x8xf32>
    %65 = vector.shape_cast %64 : vector<1x1x1x8xf32> to vector<1x8xf32>
    %66 = vector.broadcast %65 : vector<1x8xf32> to vector<16x8xf32>
    %67 = arith.addf %63, %66 : vector<16x8xf32>
    %c0_66 = arith.constant 0 : index
    %c1_67 = arith.constant 1 : index
    %c0_68 = arith.constant 0 : index
    %c0_69 = arith.constant 0 : index
    %68 = vector.load %arg9[%c0_66, %c1_67, %c0_68, %c0_69] : memref<2x4x32x8xf32, #tpu.memory_space<vmem>>, vector<1x1x32x8xf32>
    %69 = vector.shape_cast %68 : vector<1x1x32x8xf32> to vector<32x8xf32>
    %cst_70 = arith.constant dense<0.000000e+00> : vector<16x8xf32>
    %70 = tpu.matmul %10, %69, %cst_70 {dimension_numbers = #tpu.dot_dimension_numbers<[1], [0], [0], [1], [0, 0, 1, 1], [], []>} : vector<16x32xf32>, vector<32x8xf32>, vector<16x8xf32> -> vector<16x8xf32>
    %c0_71 = arith.constant 0 : index
    %c1_72 = arith.constant 1 : index
    %c0_73 = arith.constant 0 : index
    %c0_74 = arith.constant 0 : index
    %71 = vector.load %arg10[%c0_71, %c1_72, %c0_73, %c0_74] : memref<2x4x1x8xf32, #tpu.memory_space<vmem>>, vector<1x1x1x8xf32>
    %72 = vector.shape_cast %71 : vector<1x1x1x8xf32> to vector<1x8xf32>
    %73 = vector.broadcast %72 : vector<1x8xf32> to vector<16x8xf32>
    %74 = arith.addf %70, %73 : vector<16x8xf32>
    %75 = tpu.transpose %67, [1, 0] : vector<16x8xf32> -> vector<8x16xf32>
    %cst_75 = arith.constant dense<0.000000e+00> : vector<16x16xf32>
    %76 = tpu.matmul %60, %75, %cst_75 {dimension_numbers = #tpu.dot_dimension_numbers<[1], [0], [0], [1], [0, 0, 1, 1], [], []>} : vector<16x8xf32>, vector<8x16xf32>, vector<16x16xf32> -> vector<16x16xf32>
    %cst_76 = arith.constant 0.353553385 : f32
    %77 = vector.broadcast %cst_76 : f32 to vector<16x16xf32>
    %78 = arith.mulf %76, %77 : vector<16x16xf32>
    %79 = arith.addf %78, %11 : vector<16x16xf32>
    %cst_77 = arith.constant dense<0xFF800000> : vector<16xf32>
    %80 = vector.multi_reduction <maximumf>, %79, %cst_77 [1] : vector<16x16xf32> to vector<16xf32>
    %81 = vector.shape_cast %80 : vector<16xf32> to vector<16x1xf32>
    %82 = vector.broadcast %81 : vector<16x1xf32> to vector<16x16xf32>
    %83 = arith.subf %79, %82 : vector<16x16xf32>
    %84 = math.exp %83 : vector<16x16xf32>
    %cst_78 = arith.constant dense<0.000000e+00> : vector<16xf32>
    %85 = vector.multi_reduction <add>, %84, %cst_78 [1] : vector<16x16xf32> to vector<16xf32>
    %86 = vector.shape_cast %85 : vector<16xf32> to vector<16x1xf32>
    %87 = tpu.reciprocal %86 {approx = true} : vector<16x1xf32> -> vector<16x1xf32>
    %88 = vector.broadcast %87 : vector<16x1xf32> to vector<16x16xf32>
    %89 = arith.mulf %84, %88 : vector<16x16xf32>
    %cst_79 = arith.constant dense<0.000000e+00> : vector<16x8xf32>
    %90 = tpu.matmul %89, %74, %cst_79 {dimension_numbers = #tpu.dot_dimension_numbers<[1], [0], [0], [1], [0, 0, 1, 1], [], []>} : vector<16x16xf32>, vector<16x8xf32>, vector<16x8xf32> -> vector<16x8xf32>
    %c0_80 = arith.constant 0 : index
    %c1_81 = arith.constant 1 : index
    %c0_82 = arith.constant 0 : index
    %c0_83 = arith.constant 0 : index
    %91 = vector.load %arg11[%c0_80, %c1_81, %c0_82, %c0_83] : memref<2x4x8x32xf32, #tpu.memory_space<vmem>>, vector<1x1x8x32xf32>
    %92 = vector.shape_cast %91 : vector<1x1x8x32xf32> to vector<8x32xf32>
    %cst_84 = arith.constant dense<0.000000e+00> : vector<16x32xf32>
    %93 = tpu.matmul %90, %92, %cst_84 {dimension_numbers = #tpu.dot_dimension_numbers<[1], [0], [0], [1], [0, 0, 1, 1], [], []>} : vector<16x8xf32>, vector<8x32xf32>, vector<16x32xf32> -> vector<16x32xf32>
    %94 = arith.addf %53, %93 : vector<16x32xf32>
    %c0_85 = arith.constant 0 : index
    %c2 = arith.constant 2 : index
    %c0_86 = arith.constant 0 : index
    %c0_87 = arith.constant 0 : index
    %95 = vector.load %arg5[%c0_85, %c2, %c0_86, %c0_87] : memref<2x4x32x8xf32, #tpu.memory_space<vmem>>, vector<1x1x32x8xf32>
    %96 = vector.shape_cast %95 : vector<1x1x32x8xf32> to vector<32x8xf32>
    %cst_88 = arith.constant dense<0.000000e+00> : vector<16x8xf32>
    %97 = tpu.matmul %10, %96, %cst_88 {dimension_numbers = #tpu.dot_dimension_numbers<[1], [0], [0], [1], [0, 0, 1, 1], [], []>} : vector<16x32xf32>, vector<32x8xf32>, vector<16x8xf32> -> vector<16x8xf32>
    %c0_89 = arith.constant 0 : index
    %c2_90 = arith.constant 2 : index
    %c0_91 = arith.constant 0 : index
    %c0_92 = arith.constant 0 : index
    %98 = vector.load %arg6[%c0_89, %c2_90, %c0_91, %c0_92] : memref<2x4x1x8xf32, #tpu.memory_space<vmem>>, vector<1x1x1x8xf32>
    %99 = vector.shape_cast %98 : vector<1x1x1x8xf32> to vector<1x8xf32>
    %100 = vector.broadcast %99 : vector<1x8xf32> to vector<16x8xf32>
    %101 = arith.addf %97, %100 : vector<16x8xf32>
    %c0_93 = arith.constant 0 : index
    %c2_94 = arith.constant 2 : index
    %c0_95 = arith.constant 0 : index
    %c0_96 = arith.constant 0 : index
    %102 = vector.load %arg7[%c0_93, %c2_94, %c0_95, %c0_96] : memref<2x4x32x8xf32, #tpu.memory_space<vmem>>, vector<1x1x32x8xf32>
    %103 = vector.shape_cast %102 : vector<1x1x32x8xf32> to vector<32x8xf32>
    %cst_97 = arith.constant dense<0.000000e+00> : vector<16x8xf32>
    %104 = tpu.matmul %10, %103, %cst_97 {dimension_numbers = #tpu.dot_dimension_numbers<[1], [0], [0], [1], [0, 0, 1, 1], [], []>} : vector<16x32xf32>, vector<32x8xf32>, vector<16x8xf32> -> vector<16x8xf32>
    %c0_98 = arith.constant 0 : index
    %c2_99 = arith.constant 2 : index
    %c0_100 = arith.constant 0 : index
    %c0_101 = arith.constant 0 : index
    %105 = vector.load %arg8[%c0_98, %c2_99, %c0_100, %c0_101] : memref<2x4x1x8xf32, #tpu.memory_space<vmem>>, vector<1x1x1x8xf32>
    %106 = vector.shape_cast %105 : vector<1x1x1x8xf32> to vector<1x8xf32>
    %107 = vector.broadcast %106 : vector<1x8xf32> to vector<16x8xf32>
    %108 = arith.addf %104, %107 : vector<16x8xf32>
    %c0_102 = arith.constant 0 : index
    %c2_103 = arith.constant 2 : index
    %c0_104 = arith.constant 0 : index
    %c0_105 = arith.constant 0 : index
    %109 = vector.load %arg9[%c0_102, %c2_103, %c0_104, %c0_105] : memref<2x4x32x8xf32, #tpu.memory_space<vmem>>, vector<1x1x32x8xf32>
    %110 = vector.shape_cast %109 : vector<1x1x32x8xf32> to vector<32x8xf32>
    %cst_106 = arith.constant dense<0.000000e+00> : vector<16x8xf32>
    %111 = tpu.matmul %10, %110, %cst_106 {dimension_numbers = #tpu.dot_dimension_numbers<[1], [0], [0], [1], [0, 0, 1, 1], [], []>} : vector<16x32xf32>, vector<32x8xf32>, vector<16x8xf32> -> vector<16x8xf32>
    %c0_107 = arith.constant 0 : index
    %c2_108 = arith.constant 2 : index
    %c0_109 = arith.constant 0 : index
    %c0_110 = arith.constant 0 : index
    %112 = vector.load %arg10[%c0_107, %c2_108, %c0_109, %c0_110] : memref<2x4x1x8xf32, #tpu.memory_space<vmem>>, vector<1x1x1x8xf32>
    %113 = vector.shape_cast %112 : vector<1x1x1x8xf32> to vector<1x8xf32>
    %114 = vector.broadcast %113 : vector<1x8xf32> to vector<16x8xf32>
    %115 = arith.addf %111, %114 : vector<16x8xf32>
    %116 = tpu.transpose %108, [1, 0] : vector<16x8xf32> -> vector<8x16xf32>
    %cst_111 = arith.constant dense<0.000000e+00> : vector<16x16xf32>
    %117 = tpu.matmul %101, %116, %cst_111 {dimension_numbers = #tpu.dot_dimension_numbers<[1], [0], [0], [1], [0, 0, 1, 1], [], []>} : vector<16x8xf32>, vector<8x16xf32>, vector<16x16xf32> -> vector<16x16xf32>
    %cst_112 = arith.constant 0.353553385 : f32
    %118 = vector.broadcast %cst_112 : f32 to vector<16x16xf32>
    %119 = arith.mulf %117, %118 : vector<16x16xf32>
    %120 = arith.addf %119, %11 : vector<16x16xf32>
    %cst_113 = arith.constant dense<0xFF800000> : vector<16xf32>
    %121 = vector.multi_reduction <maximumf>, %120, %cst_113 [1] : vector<16x16xf32> to vector<16xf32>
    %122 = vector.shape_cast %121 : vector<16xf32> to vector<16x1xf32>
    %123 = vector.broadcast %122 : vector<16x1xf32> to vector<16x16xf32>
    %124 = arith.subf %120, %123 : vector<16x16xf32>
    %125 = math.exp %124 : vector<16x16xf32>
    %cst_114 = arith.constant dense<0.000000e+00> : vector<16xf32>
    %126 = vector.multi_reduction <add>, %125, %cst_114 [1] : vector<16x16xf32> to vector<16xf32>
    %127 = vector.shape_cast %126 : vector<16xf32> to vector<16x1xf32>
    %128 = tpu.reciprocal %127 {approx = true} : vector<16x1xf32> -> vector<16x1xf32>
    %129 = vector.broadcast %128 : vector<16x1xf32> to vector<16x16xf32>
    %130 = arith.mulf %125, %129 : vector<16x16xf32>
    %cst_115 = arith.constant dense<0.000000e+00> : vector<16x8xf32>
    %131 = tpu.matmul %130, %115, %cst_115 {dimension_numbers = #tpu.dot_dimension_numbers<[1], [0], [0], [1], [0, 0, 1, 1], [], []>} : vector<16x16xf32>, vector<16x8xf32>, vector<16x8xf32> -> vector<16x8xf32>
    %c0_116 = arith.constant 0 : index
    %c2_117 = arith.constant 2 : index
    %c0_118 = arith.constant 0 : index
    %c0_119 = arith.constant 0 : index
    %132 = vector.load %arg11[%c0_116, %c2_117, %c0_118, %c0_119] : memref<2x4x8x32xf32, #tpu.memory_space<vmem>>, vector<1x1x8x32xf32>
    %133 = vector.shape_cast %132 : vector<1x1x8x32xf32> to vector<8x32xf32>
    %cst_120 = arith.constant dense<0.000000e+00> : vector<16x32xf32>
    %134 = tpu.matmul %131, %133, %cst_120 {dimension_numbers = #tpu.dot_dimension_numbers<[1], [0], [0], [1], [0, 0, 1, 1], [], []>} : vector<16x8xf32>, vector<8x32xf32>, vector<16x32xf32> -> vector<16x32xf32>
    %135 = arith.addf %94, %134 : vector<16x32xf32>
    %c0_121 = arith.constant 0 : index
    %c3 = arith.constant 3 : index
    %c0_122 = arith.constant 0 : index
    %c0_123 = arith.constant 0 : index
    %136 = vector.load %arg5[%c0_121, %c3, %c0_122, %c0_123] : memref<2x4x32x8xf32, #tpu.memory_space<vmem>>, vector<1x1x32x8xf32>
    %137 = vector.shape_cast %136 : vector<1x1x32x8xf32> to vector<32x8xf32>
    %cst_124 = arith.constant dense<0.000000e+00> : vector<16x8xf32>
    %138 = tpu.matmul %10, %137, %cst_124 {dimension_numbers = #tpu.dot_dimension_numbers<[1], [0], [0], [1], [0, 0, 1, 1], [], []>} : vector<16x32xf32>, vector<32x8xf32>, vector<16x8xf32> -> vector<16x8xf32>
    %c0_125 = arith.constant 0 : index
    %c3_126 = arith.constant 3 : index
    %c0_127 = arith.constant 0 : index
    %c0_128 = arith.constant 0 : index
    %139 = vector.load %arg6[%c0_125, %c3_126, %c0_127, %c0_128] : memref<2x4x1x8xf32, #tpu.memory_space<vmem>>, vector<1x1x1x8xf32>
    %140 = vector.shape_cast %139 : vector<1x1x1x8xf32> to vector<1x8xf32>
    %141 = vector.broadcast %140 : vector<1x8xf32> to vector<16x8xf32>
    %142 = arith.addf %138, %141 : vector<16x8xf32>
    %c0_129 = arith.constant 0 : index
    %c3_130 = arith.constant 3 : index
    %c0_131 = arith.constant 0 : index
    %c0_132 = arith.constant 0 : index
    %143 = vector.load %arg7[%c0_129, %c3_130, %c0_131, %c0_132] : memref<2x4x32x8xf32, #tpu.memory_space<vmem>>, vector<1x1x32x8xf32>
    %144 = vector.shape_cast %143 : vector<1x1x32x8xf32> to vector<32x8xf32>
    %cst_133 = arith.constant dense<0.000000e+00> : vector<16x8xf32>
    %145 = tpu.matmul %10, %144, %cst_133 {dimension_numbers = #tpu.dot_dimension_numbers<[1], [0], [0], [1], [0, 0, 1, 1], [], []>} : vector<16x32xf32>, vector<32x8xf32>, vector<16x8xf32> -> vector<16x8xf32>
    %c0_134 = arith.constant 0 : index
    %c3_135 = arith.constant 3 : index
    %c0_136 = arith.constant 0 : index
    %c0_137 = arith.constant 0 : index
    %146 = vector.load %arg8[%c0_134, %c3_135, %c0_136, %c0_137] : memref<2x4x1x8xf32, #tpu.memory_space<vmem>>, vector<1x1x1x8xf32>
    %147 = vector.shape_cast %146 : vector<1x1x1x8xf32> to vector<1x8xf32>
    %148 = vector.broadcast %147 : vector<1x8xf32> to vector<16x8xf32>
    %149 = arith.addf %145, %148 : vector<16x8xf32>
    %c0_138 = arith.constant 0 : index
    %c3_139 = arith.constant 3 : index
    %c0_140 = arith.constant 0 : index
    %c0_141 = arith.constant 0 : index
    %150 = vector.load %arg9[%c0_138, %c3_139, %c0_140, %c0_141] : memref<2x4x32x8xf32, #tpu.memory_space<vmem>>, vector<1x1x32x8xf32>
    %151 = vector.shape_cast %150 : vector<1x1x32x8xf32> to vector<32x8xf32>
    %cst_142 = arith.constant dense<0.000000e+00> : vector<16x8xf32>
    %152 = tpu.matmul %10, %151, %cst_142 {dimension_numbers = #tpu.dot_dimension_numbers<[1], [0], [0], [1], [0, 0, 1, 1], [], []>} : vector<16x32xf32>, vector<32x8xf32>, vector<16x8xf32> -> vector<16x8xf32>
    %c0_143 = arith.constant 0 : index
    %c3_144 = arith.constant 3 : index
    %c0_145 = arith.constant 0 : index
    %c0_146 = arith.constant 0 : index
    %153 = vector.load %arg10[%c0_143, %c3_144, %c0_145, %c0_146] : memref<2x4x1x8xf32, #tpu.memory_space<vmem>>, vector<1x1x1x8xf32>
    %154 = vector.shape_cast %153 : vector<1x1x1x8xf32> to vector<1x8xf32>
    %155 = vector.broadcast %154 : vector<1x8xf32> to vector<16x8xf32>
    %156 = arith.addf %152, %155 : vector<16x8xf32>
    %157 = tpu.transpose %149, [1, 0] : vector<16x8xf32> -> vector<8x16xf32>
    %cst_147 = arith.constant dense<0.000000e+00> : vector<16x16xf32>
    %158 = tpu.matmul %142, %157, %cst_147 {dimension_numbers = #tpu.dot_dimension_numbers<[1], [0], [0], [1], [0, 0, 1, 1], [], []>} : vector<16x8xf32>, vector<8x16xf32>, vector<16x16xf32> -> vector<16x16xf32>
    %cst_148 = arith.constant 0.353553385 : f32
    %159 = vector.broadcast %cst_148 : f32 to vector<16x16xf32>
    %160 = arith.mulf %158, %159 : vector<16x16xf32>
    %161 = arith.addf %160, %11 : vector<16x16xf32>
    %cst_149 = arith.constant dense<0xFF800000> : vector<16xf32>
    %162 = vector.multi_reduction <maximumf>, %161, %cst_149 [1] : vector<16x16xf32> to vector<16xf32>
    %163 = vector.shape_cast %162 : vector<16xf32> to vector<16x1xf32>
    %164 = vector.broadcast %163 : vector<16x1xf32> to vector<16x16xf32>
    %165 = arith.subf %161, %164 : vector<16x16xf32>
    %166 = math.exp %165 : vector<16x16xf32>
    %cst_150 = arith.constant dense<0.000000e+00> : vector<16xf32>
    %167 = vector.multi_reduction <add>, %166, %cst_150 [1] : vector<16x16xf32> to vector<16xf32>
    %168 = vector.shape_cast %167 : vector<16xf32> to vector<16x1xf32>
    %169 = tpu.reciprocal %168 {approx = true} : vector<16x1xf32> -> vector<16x1xf32>
    %170 = vector.broadcast %169 : vector<16x1xf32> to vector<16x16xf32>
    %171 = arith.mulf %166, %170 : vector<16x16xf32>
    %cst_151 = arith.constant dense<0.000000e+00> : vector<16x8xf32>
    %172 = tpu.matmul %171, %156, %cst_151 {dimension_numbers = #tpu.dot_dimension_numbers<[1], [0], [0], [1], [0, 0, 1, 1], [], []>} : vector<16x16xf32>, vector<16x8xf32>, vector<16x8xf32> -> vector<16x8xf32>
    %c0_152 = arith.constant 0 : index
    %c3_153 = arith.constant 3 : index
    %c0_154 = arith.constant 0 : index
    %c0_155 = arith.constant 0 : index
    %173 = vector.load %arg11[%c0_152, %c3_153, %c0_154, %c0_155] : memref<2x4x8x32xf32, #tpu.memory_space<vmem>>, vector<1x1x8x32xf32>
    %174 = vector.shape_cast %173 : vector<1x1x8x32xf32> to vector<8x32xf32>
    %cst_156 = arith.constant dense<0.000000e+00> : vector<16x32xf32>
    %175 = tpu.matmul %172, %174, %cst_156 {dimension_numbers = #tpu.dot_dimension_numbers<[1], [0], [0], [1], [0, 0, 1, 1], [], []>} : vector<16x8xf32>, vector<8x32xf32>, vector<16x32xf32> -> vector<16x32xf32>
    %176 = arith.addf %135, %175 : vector<16x32xf32>
    %c0_157 = arith.constant 0 : index
    %c0_158 = arith.constant 0 : index
    %c0_159 = arith.constant 0 : index
    %177 = vector.load %arg12[%c0_157, %c0_158, %c0_159] : memref<2x1x32xf32, #tpu.memory_space<vmem>>, vector<1x1x32xf32>
    %178 = vector.shape_cast %177 : vector<1x1x32xf32> to vector<1x32xf32>
    %179 = vector.broadcast %178 : vector<1x32xf32> to vector<16x32xf32>
    %180 = arith.addf %176, %179 : vector<16x32xf32>
    %181 = arith.addf %10, %180 : vector<16x32xf32>
    %c0_160 = arith.constant 0 : index
    %c0_161 = arith.constant 0 : index
    %c0_162 = arith.constant 0 : index
    %182 = vector.load %arg13[%c0_160, %c0_161, %c0_162] : memref<2x1x32xf32, #tpu.memory_space<vmem>>, vector<1x1x32xf32>
    %183 = vector.shape_cast %182 : vector<1x1x32xf32> to vector<1x32xf32>
    %c0_163 = arith.constant 0 : index
    %c0_164 = arith.constant 0 : index
    %c0_165 = arith.constant 0 : index
    %184 = vector.load %arg14[%c0_163, %c0_164, %c0_165] : memref<2x1x32xf32, #tpu.memory_space<vmem>>, vector<1x1x32xf32>
    %185 = vector.shape_cast %184 : vector<1x1x32xf32> to vector<1x32xf32>
    %cst_166 = arith.constant dense<0.000000e+00> : vector<16xf32>
    %186 = vector.multi_reduction <add>, %181, %cst_166 [1] : vector<16x32xf32> to vector<16xf32>
    %187 = vector.shape_cast %186 : vector<16xf32> to vector<16x1xf32>
    %cst_167 = arith.constant 3.200000e+01 : f32
    %188 = vector.broadcast %cst_167 : f32 to vector<16x1xf32>
    %189 = arith.divf %187, %188 : vector<16x1xf32>
    %190 = vector.broadcast %189 : vector<16x1xf32> to vector<16x32xf32>
    %191 = arith.subf %181, %190 : vector<16x32xf32>
    %192 = arith.mulf %191, %191 : vector<16x32xf32>
    %cst_168 = arith.constant dense<0.000000e+00> : vector<16xf32>
    %193 = vector.multi_reduction <add>, %192, %cst_168 [1] : vector<16x32xf32> to vector<16xf32>
    %194 = vector.shape_cast %193 : vector<16xf32> to vector<16x1xf32>
    %cst_169 = arith.constant 3.200000e+01 : f32
    %195 = vector.broadcast %cst_169 : f32 to vector<16x1xf32>
    %196 = arith.divf %194, %195 : vector<16x1xf32>
    %cst_170 = arith.constant 9.99999974E-6 : f32
    %197 = vector.broadcast %cst_170 : f32 to vector<16x1xf32>
    %198 = arith.addf %196, %197 : vector<16x1xf32>
    %199 = math.rsqrt %198 : vector<16x1xf32>
    %200 = vector.broadcast %199 : vector<16x1xf32> to vector<16x32xf32>
    %201 = arith.mulf %191, %200 : vector<16x32xf32>
    %202 = vector.broadcast %183 : vector<1x32xf32> to vector<16x32xf32>
    %203 = arith.mulf %201, %202 : vector<16x32xf32>
    %204 = vector.broadcast %185 : vector<1x32xf32> to vector<16x32xf32>
    %205 = arith.addf %203, %204 : vector<16x32xf32>
    %c0_171 = arith.constant 0 : index
    %c0_172 = arith.constant 0 : index
    %c0_173 = arith.constant 0 : index
    %206 = vector.load %arg15[%c0_171, %c0_172, %c0_173] : memref<2x32x64xf32, #tpu.memory_space<vmem>>, vector<1x32x64xf32>
    %207 = vector.shape_cast %206 : vector<1x32x64xf32> to vector<32x64xf32>
    %cst_174 = arith.constant dense<0.000000e+00> : vector<16x64xf32>
    %208 = tpu.matmul %205, %207, %cst_174 {dimension_numbers = #tpu.dot_dimension_numbers<[1], [0], [0], [1], [0, 0, 1, 1], [], []>} : vector<16x32xf32>, vector<32x64xf32>, vector<16x64xf32> -> vector<16x64xf32>
    %c0_175 = arith.constant 0 : index
    %c0_176 = arith.constant 0 : index
    %c0_177 = arith.constant 0 : index
    %209 = vector.load %arg16[%c0_175, %c0_176, %c0_177] : memref<2x1x64xf32, #tpu.memory_space<vmem>>, vector<1x1x64xf32>
    %210 = vector.shape_cast %209 : vector<1x1x64xf32> to vector<1x64xf32>
    %211 = vector.broadcast %210 : vector<1x64xf32> to vector<16x64xf32>
    %212 = arith.addf %208, %211 : vector<16x64xf32>
    %cst_178 = arith.constant 0.000000e+00 : f32
    %213 = vector.broadcast %cst_178 : f32 to vector<16x64xf32>
    %214 = arith.maximumf %212, %213 : vector<16x64xf32>
    %c0_179 = arith.constant 0 : index
    %c0_180 = arith.constant 0 : index
    %c0_181 = arith.constant 0 : index
    %215 = vector.load %arg17[%c0_179, %c0_180, %c0_181] : memref<2x64x32xf32, #tpu.memory_space<vmem>>, vector<1x64x32xf32>
    %216 = vector.shape_cast %215 : vector<1x64x32xf32> to vector<64x32xf32>
    %cst_182 = arith.constant dense<0.000000e+00> : vector<16x32xf32>
    %217 = tpu.matmul %214, %216, %cst_182 {dimension_numbers = #tpu.dot_dimension_numbers<[1], [0], [0], [1], [0, 0, 1, 1], [], []>} : vector<16x64xf32>, vector<64x32xf32>, vector<16x32xf32> -> vector<16x32xf32>
    %c0_183 = arith.constant 0 : index
    %c0_184 = arith.constant 0 : index
    %c0_185 = arith.constant 0 : index
    %218 = vector.load %arg18[%c0_183, %c0_184, %c0_185] : memref<2x1x32xf32, #tpu.memory_space<vmem>>, vector<1x1x32xf32>
    %219 = vector.shape_cast %218 : vector<1x1x32xf32> to vector<1x32xf32>
    %220 = vector.broadcast %219 : vector<1x32xf32> to vector<16x32xf32>
    %221 = arith.addf %217, %220 : vector<16x32xf32>
    %222 = arith.addf %205, %221 : vector<16x32xf32>
    %c0_186 = arith.constant 0 : index
    %c0_187 = arith.constant 0 : index
    %c0_188 = arith.constant 0 : index
    %223 = vector.load %arg19[%c0_186, %c0_187, %c0_188] : memref<2x1x32xf32, #tpu.memory_space<vmem>>, vector<1x1x32xf32>
    %224 = vector.shape_cast %223 : vector<1x1x32xf32> to vector<1x32xf32>
    %c0_189 = arith.constant 0 : index
    %c0_190 = arith.constant 0 : index
    %c0_191 = arith.constant 0 : index
    %225 = vector.load %arg20[%c0_189, %c0_190, %c0_191] : memref<2x1x32xf32, #tpu.memory_space<vmem>>, vector<1x1x32xf32>
    %226 = vector.shape_cast %225 : vector<1x1x32xf32> to vector<1x32xf32>
    %cst_192 = arith.constant dense<0.000000e+00> : vector<16xf32>
    %227 = vector.multi_reduction <add>, %222, %cst_192 [1] : vector<16x32xf32> to vector<16xf32>
    %228 = vector.shape_cast %227 : vector<16xf32> to vector<16x1xf32>
    %cst_193 = arith.constant 3.200000e+01 : f32
    %229 = vector.broadcast %cst_193 : f32 to vector<16x1xf32>
    %230 = arith.divf %228, %229 : vector<16x1xf32>
    %231 = vector.broadcast %230 : vector<16x1xf32> to vector<16x32xf32>
    %232 = arith.subf %222, %231 : vector<16x32xf32>
    %233 = arith.mulf %232, %232 : vector<16x32xf32>
    %cst_194 = arith.constant dense<0.000000e+00> : vector<16xf32>
    %234 = vector.multi_reduction <add>, %233, %cst_194 [1] : vector<16x32xf32> to vector<16xf32>
    %235 = vector.shape_cast %234 : vector<16xf32> to vector<16x1xf32>
    %cst_195 = arith.constant 3.200000e+01 : f32
    %236 = vector.broadcast %cst_195 : f32 to vector<16x1xf32>
    %237 = arith.divf %235, %236 : vector<16x1xf32>
    %cst_196 = arith.constant 9.99999974E-6 : f32
    %238 = vector.broadcast %cst_196 : f32 to vector<16x1xf32>
    %239 = arith.addf %237, %238 : vector<16x1xf32>
    %240 = math.rsqrt %239 : vector<16x1xf32>
    %241 = vector.broadcast %240 : vector<16x1xf32> to vector<16x32xf32>
    %242 = arith.mulf %232, %241 : vector<16x32xf32>
    %243 = vector.broadcast %224 : vector<1x32xf32> to vector<16x32xf32>
    %244 = arith.mulf %242, %243 : vector<16x32xf32>
    %245 = vector.broadcast %226 : vector<1x32xf32> to vector<16x32xf32>
    %246 = arith.addf %244, %245 : vector<16x32xf32>
    %cst_197 = arith.constant 0.000000e+00 : f32
    %247 = vector.broadcast %cst_197 : f32 to vector<16x32xf32>
    %c1_198 = arith.constant 1 : index
    %c0_199 = arith.constant 0 : index
    %c0_200 = arith.constant 0 : index
    %c0_201 = arith.constant 0 : index
    %248 = vector.load %arg5[%c1_198, %c0_199, %c0_200, %c0_201] : memref<2x4x32x8xf32, #tpu.memory_space<vmem>>, vector<1x1x32x8xf32>
    %249 = vector.shape_cast %248 : vector<1x1x32x8xf32> to vector<32x8xf32>
    %cst_202 = arith.constant dense<0.000000e+00> : vector<16x8xf32>
    %250 = tpu.matmul %246, %249, %cst_202 {dimension_numbers = #tpu.dot_dimension_numbers<[1], [0], [0], [1], [0, 0, 1, 1], [], []>} : vector<16x32xf32>, vector<32x8xf32>, vector<16x8xf32> -> vector<16x8xf32>
    %c1_203 = arith.constant 1 : index
    %c0_204 = arith.constant 0 : index
    %c0_205 = arith.constant 0 : index
    %c0_206 = arith.constant 0 : index
    %251 = vector.load %arg6[%c1_203, %c0_204, %c0_205, %c0_206] : memref<2x4x1x8xf32, #tpu.memory_space<vmem>>, vector<1x1x1x8xf32>
    %252 = vector.shape_cast %251 : vector<1x1x1x8xf32> to vector<1x8xf32>
    %253 = vector.broadcast %252 : vector<1x8xf32> to vector<16x8xf32>
    %254 = arith.addf %250, %253 : vector<16x8xf32>
    %c1_207 = arith.constant 1 : index
    %c0_208 = arith.constant 0 : index
    %c0_209 = arith.constant 0 : index
    %c0_210 = arith.constant 0 : index
    %255 = vector.load %arg7[%c1_207, %c0_208, %c0_209, %c0_210] : memref<2x4x32x8xf32, #tpu.memory_space<vmem>>, vector<1x1x32x8xf32>
    %256 = vector.shape_cast %255 : vector<1x1x32x8xf32> to vector<32x8xf32>
    %cst_211 = arith.constant dense<0.000000e+00> : vector<16x8xf32>
    %257 = tpu.matmul %246, %256, %cst_211 {dimension_numbers = #tpu.dot_dimension_numbers<[1], [0], [0], [1], [0, 0, 1, 1], [], []>} : vector<16x32xf32>, vector<32x8xf32>, vector<16x8xf32> -> vector<16x8xf32>
    %c1_212 = arith.constant 1 : index
    %c0_213 = arith.constant 0 : index
    %c0_214 = arith.constant 0 : index
    %c0_215 = arith.constant 0 : index
    %258 = vector.load %arg8[%c1_212, %c0_213, %c0_214, %c0_215] : memref<2x4x1x8xf32, #tpu.memory_space<vmem>>, vector<1x1x1x8xf32>
    %259 = vector.shape_cast %258 : vector<1x1x1x8xf32> to vector<1x8xf32>
    %260 = vector.broadcast %259 : vector<1x8xf32> to vector<16x8xf32>
    %261 = arith.addf %257, %260 : vector<16x8xf32>
    %c1_216 = arith.constant 1 : index
    %c0_217 = arith.constant 0 : index
    %c0_218 = arith.constant 0 : index
    %c0_219 = arith.constant 0 : index
    %262 = vector.load %arg9[%c1_216, %c0_217, %c0_218, %c0_219] : memref<2x4x32x8xf32, #tpu.memory_space<vmem>>, vector<1x1x32x8xf32>
    %263 = vector.shape_cast %262 : vector<1x1x32x8xf32> to vector<32x8xf32>
    %cst_220 = arith.constant dense<0.000000e+00> : vector<16x8xf32>
    %264 = tpu.matmul %246, %263, %cst_220 {dimension_numbers = #tpu.dot_dimension_numbers<[1], [0], [0], [1], [0, 0, 1, 1], [], []>} : vector<16x32xf32>, vector<32x8xf32>, vector<16x8xf32> -> vector<16x8xf32>
    %c1_221 = arith.constant 1 : index
    %c0_222 = arith.constant 0 : index
    %c0_223 = arith.constant 0 : index
    %c0_224 = arith.constant 0 : index
    %265 = vector.load %arg10[%c1_221, %c0_222, %c0_223, %c0_224] : memref<2x4x1x8xf32, #tpu.memory_space<vmem>>, vector<1x1x1x8xf32>
    %266 = vector.shape_cast %265 : vector<1x1x1x8xf32> to vector<1x8xf32>
    %267 = vector.broadcast %266 : vector<1x8xf32> to vector<16x8xf32>
    %268 = arith.addf %264, %267 : vector<16x8xf32>
    %269 = tpu.transpose %261, [1, 0] : vector<16x8xf32> -> vector<8x16xf32>
    %cst_225 = arith.constant dense<0.000000e+00> : vector<16x16xf32>
    %270 = tpu.matmul %254, %269, %cst_225 {dimension_numbers = #tpu.dot_dimension_numbers<[1], [0], [0], [1], [0, 0, 1, 1], [], []>} : vector<16x8xf32>, vector<8x16xf32>, vector<16x16xf32> -> vector<16x16xf32>
    %cst_226 = arith.constant 0.353553385 : f32
    %271 = vector.broadcast %cst_226 : f32 to vector<16x16xf32>
    %272 = arith.mulf %270, %271 : vector<16x16xf32>
    %273 = arith.addf %272, %11 : vector<16x16xf32>
    %cst_227 = arith.constant dense<0xFF800000> : vector<16xf32>
    %274 = vector.multi_reduction <maximumf>, %273, %cst_227 [1] : vector<16x16xf32> to vector<16xf32>
    %275 = vector.shape_cast %274 : vector<16xf32> to vector<16x1xf32>
    %276 = vector.broadcast %275 : vector<16x1xf32> to vector<16x16xf32>
    %277 = arith.subf %273, %276 : vector<16x16xf32>
    %278 = math.exp %277 : vector<16x16xf32>
    %cst_228 = arith.constant dense<0.000000e+00> : vector<16xf32>
    %279 = vector.multi_reduction <add>, %278, %cst_228 [1] : vector<16x16xf32> to vector<16xf32>
    %280 = vector.shape_cast %279 : vector<16xf32> to vector<16x1xf32>
    %281 = tpu.reciprocal %280 {approx = true} : vector<16x1xf32> -> vector<16x1xf32>
    %282 = vector.broadcast %281 : vector<16x1xf32> to vector<16x16xf32>
    %283 = arith.mulf %278, %282 : vector<16x16xf32>
    %cst_229 = arith.constant dense<0.000000e+00> : vector<16x8xf32>
    %284 = tpu.matmul %283, %268, %cst_229 {dimension_numbers = #tpu.dot_dimension_numbers<[1], [0], [0], [1], [0, 0, 1, 1], [], []>} : vector<16x16xf32>, vector<16x8xf32>, vector<16x8xf32> -> vector<16x8xf32>
    %c1_230 = arith.constant 1 : index
    %c0_231 = arith.constant 0 : index
    %c0_232 = arith.constant 0 : index
    %c0_233 = arith.constant 0 : index
    %285 = vector.load %arg11[%c1_230, %c0_231, %c0_232, %c0_233] : memref<2x4x8x32xf32, #tpu.memory_space<vmem>>, vector<1x1x8x32xf32>
    %286 = vector.shape_cast %285 : vector<1x1x8x32xf32> to vector<8x32xf32>
    %cst_234 = arith.constant dense<0.000000e+00> : vector<16x32xf32>
    %287 = tpu.matmul %284, %286, %cst_234 {dimension_numbers = #tpu.dot_dimension_numbers<[1], [0], [0], [1], [0, 0, 1, 1], [], []>} : vector<16x8xf32>, vector<8x32xf32>, vector<16x32xf32> -> vector<16x32xf32>
    %288 = arith.addf %247, %287 : vector<16x32xf32>
    %c1_235 = arith.constant 1 : index
    %c1_236 = arith.constant 1 : index
    %c0_237 = arith.constant 0 : index
    %c0_238 = arith.constant 0 : index
    %289 = vector.load %arg5[%c1_235, %c1_236, %c0_237, %c0_238] : memref<2x4x32x8xf32, #tpu.memory_space<vmem>>, vector<1x1x32x8xf32>
    %290 = vector.shape_cast %289 : vector<1x1x32x8xf32> to vector<32x8xf32>
    %cst_239 = arith.constant dense<0.000000e+00> : vector<16x8xf32>
    %291 = tpu.matmul %246, %290, %cst_239 {dimension_numbers = #tpu.dot_dimension_numbers<[1], [0], [0], [1], [0, 0, 1, 1], [], []>} : vector<16x32xf32>, vector<32x8xf32>, vector<16x8xf32> -> vector<16x8xf32>
    %c1_240 = arith.constant 1 : index
    %c1_241 = arith.constant 1 : index
    %c0_242 = arith.constant 0 : index
    %c0_243 = arith.constant 0 : index
    %292 = vector.load %arg6[%c1_240, %c1_241, %c0_242, %c0_243] : memref<2x4x1x8xf32, #tpu.memory_space<vmem>>, vector<1x1x1x8xf32>
    %293 = vector.shape_cast %292 : vector<1x1x1x8xf32> to vector<1x8xf32>
    %294 = vector.broadcast %293 : vector<1x8xf32> to vector<16x8xf32>
    %295 = arith.addf %291, %294 : vector<16x8xf32>
    %c1_244 = arith.constant 1 : index
    %c1_245 = arith.constant 1 : index
    %c0_246 = arith.constant 0 : index
    %c0_247 = arith.constant 0 : index
    %296 = vector.load %arg7[%c1_244, %c1_245, %c0_246, %c0_247] : memref<2x4x32x8xf32, #tpu.memory_space<vmem>>, vector<1x1x32x8xf32>
    %297 = vector.shape_cast %296 : vector<1x1x32x8xf32> to vector<32x8xf32>
    %cst_248 = arith.constant dense<0.000000e+00> : vector<16x8xf32>
    %298 = tpu.matmul %246, %297, %cst_248 {dimension_numbers = #tpu.dot_dimension_numbers<[1], [0], [0], [1], [0, 0, 1, 1], [], []>} : vector<16x32xf32>, vector<32x8xf32>, vector<16x8xf32> -> vector<16x8xf32>
    %c1_249 = arith.constant 1 : index
    %c1_250 = arith.constant 1 : index
    %c0_251 = arith.constant 0 : index
    %c0_252 = arith.constant 0 : index
    %299 = vector.load %arg8[%c1_249, %c1_250, %c0_251, %c0_252] : memref<2x4x1x8xf32, #tpu.memory_space<vmem>>, vector<1x1x1x8xf32>
    %300 = vector.shape_cast %299 : vector<1x1x1x8xf32> to vector<1x8xf32>
    %301 = vector.broadcast %300 : vector<1x8xf32> to vector<16x8xf32>
    %302 = arith.addf %298, %301 : vector<16x8xf32>
    %c1_253 = arith.constant 1 : index
    %c1_254 = arith.constant 1 : index
    %c0_255 = arith.constant 0 : index
    %c0_256 = arith.constant 0 : index
    %303 = vector.load %arg9[%c1_253, %c1_254, %c0_255, %c0_256] : memref<2x4x32x8xf32, #tpu.memory_space<vmem>>, vector<1x1x32x8xf32>
    %304 = vector.shape_cast %303 : vector<1x1x32x8xf32> to vector<32x8xf32>
    %cst_257 = arith.constant dense<0.000000e+00> : vector<16x8xf32>
    %305 = tpu.matmul %246, %304, %cst_257 {dimension_numbers = #tpu.dot_dimension_numbers<[1], [0], [0], [1], [0, 0, 1, 1], [], []>} : vector<16x32xf32>, vector<32x8xf32>, vector<16x8xf32> -> vector<16x8xf32>
    %c1_258 = arith.constant 1 : index
    %c1_259 = arith.constant 1 : index
    %c0_260 = arith.constant 0 : index
    %c0_261 = arith.constant 0 : index
    %306 = vector.load %arg10[%c1_258, %c1_259, %c0_260, %c0_261] : memref<2x4x1x8xf32, #tpu.memory_space<vmem>>, vector<1x1x1x8xf32>
    %307 = vector.shape_cast %306 : vector<1x1x1x8xf32> to vector<1x8xf32>
    %308 = vector.broadcast %307 : vector<1x8xf32> to vector<16x8xf32>
    %309 = arith.addf %305, %308 : vector<16x8xf32>
    %310 = tpu.transpose %302, [1, 0] : vector<16x8xf32> -> vector<8x16xf32>
    %cst_262 = arith.constant dense<0.000000e+00> : vector<16x16xf32>
    %311 = tpu.matmul %295, %310, %cst_262 {dimension_numbers = #tpu.dot_dimension_numbers<[1], [0], [0], [1], [0, 0, 1, 1], [], []>} : vector<16x8xf32>, vector<8x16xf32>, vector<16x16xf32> -> vector<16x16xf32>
    %cst_263 = arith.constant 0.353553385 : f32
    %312 = vector.broadcast %cst_263 : f32 to vector<16x16xf32>
    %313 = arith.mulf %311, %312 : vector<16x16xf32>
    %314 = arith.addf %313, %11 : vector<16x16xf32>
    %cst_264 = arith.constant dense<0xFF800000> : vector<16xf32>
    %315 = vector.multi_reduction <maximumf>, %314, %cst_264 [1] : vector<16x16xf32> to vector<16xf32>
    %316 = vector.shape_cast %315 : vector<16xf32> to vector<16x1xf32>
    %317 = vector.broadcast %316 : vector<16x1xf32> to vector<16x16xf32>
    %318 = arith.subf %314, %317 : vector<16x16xf32>
    %319 = math.exp %318 : vector<16x16xf32>
    %cst_265 = arith.constant dense<0.000000e+00> : vector<16xf32>
    %320 = vector.multi_reduction <add>, %319, %cst_265 [1] : vector<16x16xf32> to vector<16xf32>
    %321 = vector.shape_cast %320 : vector<16xf32> to vector<16x1xf32>
    %322 = tpu.reciprocal %321 {approx = true} : vector<16x1xf32> -> vector<16x1xf32>
    %323 = vector.broadcast %322 : vector<16x1xf32> to vector<16x16xf32>
    %324 = arith.mulf %319, %323 : vector<16x16xf32>
    %cst_266 = arith.constant dense<0.000000e+00> : vector<16x8xf32>
    %325 = tpu.matmul %324, %309, %cst_266 {dimension_numbers = #tpu.dot_dimension_numbers<[1], [0], [0], [1], [0, 0, 1, 1], [], []>} : vector<16x16xf32>, vector<16x8xf32>, vector<16x8xf32> -> vector<16x8xf32>
    %c1_267 = arith.constant 1 : index
    %c1_268 = arith.constant 1 : index
    %c0_269 = arith.constant 0 : index
    %c0_270 = arith.constant 0 : index
    %326 = vector.load %arg11[%c1_267, %c1_268, %c0_269, %c0_270] : memref<2x4x8x32xf32, #tpu.memory_space<vmem>>, vector<1x1x8x32xf32>
    %327 = vector.shape_cast %326 : vector<1x1x8x32xf32> to vector<8x32xf32>
    %cst_271 = arith.constant dense<0.000000e+00> : vector<16x32xf32>
    %328 = tpu.matmul %325, %327, %cst_271 {dimension_numbers = #tpu.dot_dimension_numbers<[1], [0], [0], [1], [0, 0, 1, 1], [], []>} : vector<16x8xf32>, vector<8x32xf32>, vector<16x32xf32> -> vector<16x32xf32>
    %329 = arith.addf %288, %328 : vector<16x32xf32>
    %c1_272 = arith.constant 1 : index
    %c2_273 = arith.constant 2 : index
    %c0_274 = arith.constant 0 : index
    %c0_275 = arith.constant 0 : index
    %330 = vector.load %arg5[%c1_272, %c2_273, %c0_274, %c0_275] : memref<2x4x32x8xf32, #tpu.memory_space<vmem>>, vector<1x1x32x8xf32>
    %331 = vector.shape_cast %330 : vector<1x1x32x8xf32> to vector<32x8xf32>
    %cst_276 = arith.constant dense<0.000000e+00> : vector<16x8xf32>
    %332 = tpu.matmul %246, %331, %cst_276 {dimension_numbers = #tpu.dot_dimension_numbers<[1], [0], [0], [1], [0, 0, 1, 1], [], []>} : vector<16x32xf32>, vector<32x8xf32>, vector<16x8xf32> -> vector<16x8xf32>
    %c1_277 = arith.constant 1 : index
    %c2_278 = arith.constant 2 : index
    %c0_279 = arith.constant 0 : index
    %c0_280 = arith.constant 0 : index
    %333 = vector.load %arg6[%c1_277, %c2_278, %c0_279, %c0_280] : memref<2x4x1x8xf32, #tpu.memory_space<vmem>>, vector<1x1x1x8xf32>
    %334 = vector.shape_cast %333 : vector<1x1x1x8xf32> to vector<1x8xf32>
    %335 = vector.broadcast %334 : vector<1x8xf32> to vector<16x8xf32>
    %336 = arith.addf %332, %335 : vector<16x8xf32>
    %c1_281 = arith.constant 1 : index
    %c2_282 = arith.constant 2 : index
    %c0_283 = arith.constant 0 : index
    %c0_284 = arith.constant 0 : index
    %337 = vector.load %arg7[%c1_281, %c2_282, %c0_283, %c0_284] : memref<2x4x32x8xf32, #tpu.memory_space<vmem>>, vector<1x1x32x8xf32>
    %338 = vector.shape_cast %337 : vector<1x1x32x8xf32> to vector<32x8xf32>
    %cst_285 = arith.constant dense<0.000000e+00> : vector<16x8xf32>
    %339 = tpu.matmul %246, %338, %cst_285 {dimension_numbers = #tpu.dot_dimension_numbers<[1], [0], [0], [1], [0, 0, 1, 1], [], []>} : vector<16x32xf32>, vector<32x8xf32>, vector<16x8xf32> -> vector<16x8xf32>
    %c1_286 = arith.constant 1 : index
    %c2_287 = arith.constant 2 : index
    %c0_288 = arith.constant 0 : index
    %c0_289 = arith.constant 0 : index
    %340 = vector.load %arg8[%c1_286, %c2_287, %c0_288, %c0_289] : memref<2x4x1x8xf32, #tpu.memory_space<vmem>>, vector<1x1x1x8xf32>
    %341 = vector.shape_cast %340 : vector<1x1x1x8xf32> to vector<1x8xf32>
    %342 = vector.broadcast %341 : vector<1x8xf32> to vector<16x8xf32>
    %343 = arith.addf %339, %342 : vector<16x8xf32>
    %c1_290 = arith.constant 1 : index
    %c2_291 = arith.constant 2 : index
    %c0_292 = arith.constant 0 : index
    %c0_293 = arith.constant 0 : index
    %344 = vector.load %arg9[%c1_290, %c2_291, %c0_292, %c0_293] : memref<2x4x32x8xf32, #tpu.memory_space<vmem>>, vector<1x1x32x8xf32>
    %345 = vector.shape_cast %344 : vector<1x1x32x8xf32> to vector<32x8xf32>
    %cst_294 = arith.constant dense<0.000000e+00> : vector<16x8xf32>
    %346 = tpu.matmul %246, %345, %cst_294 {dimension_numbers = #tpu.dot_dimension_numbers<[1], [0], [0], [1], [0, 0, 1, 1], [], []>} : vector<16x32xf32>, vector<32x8xf32>, vector<16x8xf32> -> vector<16x8xf32>
    %c1_295 = arith.constant 1 : index
    %c2_296 = arith.constant 2 : index
    %c0_297 = arith.constant 0 : index
    %c0_298 = arith.constant 0 : index
    %347 = vector.load %arg10[%c1_295, %c2_296, %c0_297, %c0_298] : memref<2x4x1x8xf32, #tpu.memory_space<vmem>>, vector<1x1x1x8xf32>
    %348 = vector.shape_cast %347 : vector<1x1x1x8xf32> to vector<1x8xf32>
    %349 = vector.broadcast %348 : vector<1x8xf32> to vector<16x8xf32>
    %350 = arith.addf %346, %349 : vector<16x8xf32>
    %351 = tpu.transpose %343, [1, 0] : vector<16x8xf32> -> vector<8x16xf32>
    %cst_299 = arith.constant dense<0.000000e+00> : vector<16x16xf32>
    %352 = tpu.matmul %336, %351, %cst_299 {dimension_numbers = #tpu.dot_dimension_numbers<[1], [0], [0], [1], [0, 0, 1, 1], [], []>} : vector<16x8xf32>, vector<8x16xf32>, vector<16x16xf32> -> vector<16x16xf32>
    %cst_300 = arith.constant 0.353553385 : f32
    %353 = vector.broadcast %cst_300 : f32 to vector<16x16xf32>
    %354 = arith.mulf %352, %353 : vector<16x16xf32>
    %355 = arith.addf %354, %11 : vector<16x16xf32>
    %cst_301 = arith.constant dense<0xFF800000> : vector<16xf32>
    %356 = vector.multi_reduction <maximumf>, %355, %cst_301 [1] : vector<16x16xf32> to vector<16xf32>
    %357 = vector.shape_cast %356 : vector<16xf32> to vector<16x1xf32>
    %358 = vector.broadcast %357 : vector<16x1xf32> to vector<16x16xf32>
    %359 = arith.subf %355, %358 : vector<16x16xf32>
    %360 = math.exp %359 : vector<16x16xf32>
    %cst_302 = arith.constant dense<0.000000e+00> : vector<16xf32>
    %361 = vector.multi_reduction <add>, %360, %cst_302 [1] : vector<16x16xf32> to vector<16xf32>
    %362 = vector.shape_cast %361 : vector<16xf32> to vector<16x1xf32>
    %363 = tpu.reciprocal %362 {approx = true} : vector<16x1xf32> -> vector<16x1xf32>
    %364 = vector.broadcast %363 : vector<16x1xf32> to vector<16x16xf32>
    %365 = arith.mulf %360, %364 : vector<16x16xf32>
    %cst_303 = arith.constant dense<0.000000e+00> : vector<16x8xf32>
    %366 = tpu.matmul %365, %350, %cst_303 {dimension_numbers = #tpu.dot_dimension_numbers<[1], [0], [0], [1], [0, 0, 1, 1], [], []>} : vector<16x16xf32>, vector<16x8xf32>, vector<16x8xf32> -> vector<16x8xf32>
    %c1_304 = arith.constant 1 : index
    %c2_305 = arith.constant 2 : index
    %c0_306 = arith.constant 0 : index
    %c0_307 = arith.constant 0 : index
    %367 = vector.load %arg11[%c1_304, %c2_305, %c0_306, %c0_307] : memref<2x4x8x32xf32, #tpu.memory_space<vmem>>, vector<1x1x8x32xf32>
    %368 = vector.shape_cast %367 : vector<1x1x8x32xf32> to vector<8x32xf32>
    %cst_308 = arith.constant dense<0.000000e+00> : vector<16x32xf32>
    %369 = tpu.matmul %366, %368, %cst_308 {dimension_numbers = #tpu.dot_dimension_numbers<[1], [0], [0], [1], [0, 0, 1, 1], [], []>} : vector<16x8xf32>, vector<8x32xf32>, vector<16x32xf32> -> vector<16x32xf32>
    %370 = arith.addf %329, %369 : vector<16x32xf32>
    %c1_309 = arith.constant 1 : index
    %c3_310 = arith.constant 3 : index
    %c0_311 = arith.constant 0 : index
    %c0_312 = arith.constant 0 : index
    %371 = vector.load %arg5[%c1_309, %c3_310, %c0_311, %c0_312] : memref<2x4x32x8xf32, #tpu.memory_space<vmem>>, vector<1x1x32x8xf32>
    %372 = vector.shape_cast %371 : vector<1x1x32x8xf32> to vector<32x8xf32>
    %cst_313 = arith.constant dense<0.000000e+00> : vector<16x8xf32>
    %373 = tpu.matmul %246, %372, %cst_313 {dimension_numbers = #tpu.dot_dimension_numbers<[1], [0], [0], [1], [0, 0, 1, 1], [], []>} : vector<16x32xf32>, vector<32x8xf32>, vector<16x8xf32> -> vector<16x8xf32>
    %c1_314 = arith.constant 1 : index
    %c3_315 = arith.constant 3 : index
    %c0_316 = arith.constant 0 : index
    %c0_317 = arith.constant 0 : index
    %374 = vector.load %arg6[%c1_314, %c3_315, %c0_316, %c0_317] : memref<2x4x1x8xf32, #tpu.memory_space<vmem>>, vector<1x1x1x8xf32>
    %375 = vector.shape_cast %374 : vector<1x1x1x8xf32> to vector<1x8xf32>
    %376 = vector.broadcast %375 : vector<1x8xf32> to vector<16x8xf32>
    %377 = arith.addf %373, %376 : vector<16x8xf32>
    %c1_318 = arith.constant 1 : index
    %c3_319 = arith.constant 3 : index
    %c0_320 = arith.constant 0 : index
    %c0_321 = arith.constant 0 : index
    %378 = vector.load %arg7[%c1_318, %c3_319, %c0_320, %c0_321] : memref<2x4x32x8xf32, #tpu.memory_space<vmem>>, vector<1x1x32x8xf32>
    %379 = vector.shape_cast %378 : vector<1x1x32x8xf32> to vector<32x8xf32>
    %cst_322 = arith.constant dense<0.000000e+00> : vector<16x8xf32>
    %380 = tpu.matmul %246, %379, %cst_322 {dimension_numbers = #tpu.dot_dimension_numbers<[1], [0], [0], [1], [0, 0, 1, 1], [], []>} : vector<16x32xf32>, vector<32x8xf32>, vector<16x8xf32> -> vector<16x8xf32>
    %c1_323 = arith.constant 1 : index
    %c3_324 = arith.constant 3 : index
    %c0_325 = arith.constant 0 : index
    %c0_326 = arith.constant 0 : index
    %381 = vector.load %arg8[%c1_323, %c3_324, %c0_325, %c0_326] : memref<2x4x1x8xf32, #tpu.memory_space<vmem>>, vector<1x1x1x8xf32>
    %382 = vector.shape_cast %381 : vector<1x1x1x8xf32> to vector<1x8xf32>
    %383 = vector.broadcast %382 : vector<1x8xf32> to vector<16x8xf32>
    %384 = arith.addf %380, %383 : vector<16x8xf32>
    %c1_327 = arith.constant 1 : index
    %c3_328 = arith.constant 3 : index
    %c0_329 = arith.constant 0 : index
    %c0_330 = arith.constant 0 : index
    %385 = vector.load %arg9[%c1_327, %c3_328, %c0_329, %c0_330] : memref<2x4x32x8xf32, #tpu.memory_space<vmem>>, vector<1x1x32x8xf32>
    %386 = vector.shape_cast %385 : vector<1x1x32x8xf32> to vector<32x8xf32>
    %cst_331 = arith.constant dense<0.000000e+00> : vector<16x8xf32>
    %387 = tpu.matmul %246, %386, %cst_331 {dimension_numbers = #tpu.dot_dimension_numbers<[1], [0], [0], [1], [0, 0, 1, 1], [], []>} : vector<16x32xf32>, vector<32x8xf32>, vector<16x8xf32> -> vector<16x8xf32>
    %c1_332 = arith.constant 1 : index
    %c3_333 = arith.constant 3 : index
    %c0_334 = arith.constant 0 : index
    %c0_335 = arith.constant 0 : index
    %388 = vector.load %arg10[%c1_332, %c3_333, %c0_334, %c0_335] : memref<2x4x1x8xf32, #tpu.memory_space<vmem>>, vector<1x1x1x8xf32>
    %389 = vector.shape_cast %388 : vector<1x1x1x8xf32> to vector<1x8xf32>
    %390 = vector.broadcast %389 : vector<1x8xf32> to vector<16x8xf32>
    %391 = arith.addf %387, %390 : vector<16x8xf32>
    %392 = tpu.transpose %384, [1, 0] : vector<16x8xf32> -> vector<8x16xf32>
    %cst_336 = arith.constant dense<0.000000e+00> : vector<16x16xf32>
    %393 = tpu.matmul %377, %392, %cst_336 {dimension_numbers = #tpu.dot_dimension_numbers<[1], [0], [0], [1], [0, 0, 1, 1], [], []>} : vector<16x8xf32>, vector<8x16xf32>, vector<16x16xf32> -> vector<16x16xf32>
    %cst_337 = arith.constant 0.353553385 : f32
    %394 = vector.broadcast %cst_337 : f32 to vector<16x16xf32>
    %395 = arith.mulf %393, %394 : vector<16x16xf32>
    %396 = arith.addf %395, %11 : vector<16x16xf32>
    %cst_338 = arith.constant dense<0xFF800000> : vector<16xf32>
    %397 = vector.multi_reduction <maximumf>, %396, %cst_338 [1] : vector<16x16xf32> to vector<16xf32>
    %398 = vector.shape_cast %397 : vector<16xf32> to vector<16x1xf32>
    %399 = vector.broadcast %398 : vector<16x1xf32> to vector<16x16xf32>
    %400 = arith.subf %396, %399 : vector<16x16xf32>
    %401 = math.exp %400 : vector<16x16xf32>
    %cst_339 = arith.constant dense<0.000000e+00> : vector<16xf32>
    %402 = vector.multi_reduction <add>, %401, %cst_339 [1] : vector<16x16xf32> to vector<16xf32>
    %403 = vector.shape_cast %402 : vector<16xf32> to vector<16x1xf32>
    %404 = tpu.reciprocal %403 {approx = true} : vector<16x1xf32> -> vector<16x1xf32>
    %405 = vector.broadcast %404 : vector<16x1xf32> to vector<16x16xf32>
    %406 = arith.mulf %401, %405 : vector<16x16xf32>
    %cst_340 = arith.constant dense<0.000000e+00> : vector<16x8xf32>
    %407 = tpu.matmul %406, %391, %cst_340 {dimension_numbers = #tpu.dot_dimension_numbers<[1], [0], [0], [1], [0, 0, 1, 1], [], []>} : vector<16x16xf32>, vector<16x8xf32>, vector<16x8xf32> -> vector<16x8xf32>
    %c1_341 = arith.constant 1 : index
    %c3_342 = arith.constant 3 : index
    %c0_343 = arith.constant 0 : index
    %c0_344 = arith.constant 0 : index
    %408 = vector.load %arg11[%c1_341, %c3_342, %c0_343, %c0_344] : memref<2x4x8x32xf32, #tpu.memory_space<vmem>>, vector<1x1x8x32xf32>
    %409 = vector.shape_cast %408 : vector<1x1x8x32xf32> to vector<8x32xf32>
    %cst_345 = arith.constant dense<0.000000e+00> : vector<16x32xf32>
    %410 = tpu.matmul %407, %409, %cst_345 {dimension_numbers = #tpu.dot_dimension_numbers<[1], [0], [0], [1], [0, 0, 1, 1], [], []>} : vector<16x8xf32>, vector<8x32xf32>, vector<16x32xf32> -> vector<16x32xf32>
    %411 = arith.addf %370, %410 : vector<16x32xf32>
    %c1_346 = arith.constant 1 : index
    %c0_347 = arith.constant 0 : index
    %c0_348 = arith.constant 0 : index
    %412 = vector.load %arg12[%c1_346, %c0_347, %c0_348] : memref<2x1x32xf32, #tpu.memory_space<vmem>>, vector<1x1x32xf32>
    %413 = vector.shape_cast %412 : vector<1x1x32xf32> to vector<1x32xf32>
    %414 = vector.broadcast %413 : vector<1x32xf32> to vector<16x32xf32>
    %415 = arith.addf %411, %414 : vector<16x32xf32>
    %416 = arith.addf %246, %415 : vector<16x32xf32>
    %c1_349 = arith.constant 1 : index
    %c0_350 = arith.constant 0 : index
    %c0_351 = arith.constant 0 : index
    %417 = vector.load %arg13[%c1_349, %c0_350, %c0_351] : memref<2x1x32xf32, #tpu.memory_space<vmem>>, vector<1x1x32xf32>
    %418 = vector.shape_cast %417 : vector<1x1x32xf32> to vector<1x32xf32>
    %c1_352 = arith.constant 1 : index
    %c0_353 = arith.constant 0 : index
    %c0_354 = arith.constant 0 : index
    %419 = vector.load %arg14[%c1_352, %c0_353, %c0_354] : memref<2x1x32xf32, #tpu.memory_space<vmem>>, vector<1x1x32xf32>
    %420 = vector.shape_cast %419 : vector<1x1x32xf32> to vector<1x32xf32>
    %cst_355 = arith.constant dense<0.000000e+00> : vector<16xf32>
    %421 = vector.multi_reduction <add>, %416, %cst_355 [1] : vector<16x32xf32> to vector<16xf32>
    %422 = vector.shape_cast %421 : vector<16xf32> to vector<16x1xf32>
    %cst_356 = arith.constant 3.200000e+01 : f32
    %423 = vector.broadcast %cst_356 : f32 to vector<16x1xf32>
    %424 = arith.divf %422, %423 : vector<16x1xf32>
    %425 = vector.broadcast %424 : vector<16x1xf32> to vector<16x32xf32>
    %426 = arith.subf %416, %425 : vector<16x32xf32>
    %427 = arith.mulf %426, %426 : vector<16x32xf32>
    %cst_357 = arith.constant dense<0.000000e+00> : vector<16xf32>
    %428 = vector.multi_reduction <add>, %427, %cst_357 [1] : vector<16x32xf32> to vector<16xf32>
    %429 = vector.shape_cast %428 : vector<16xf32> to vector<16x1xf32>
    %cst_358 = arith.constant 3.200000e+01 : f32
    %430 = vector.broadcast %cst_358 : f32 to vector<16x1xf32>
    %431 = arith.divf %429, %430 : vector<16x1xf32>
    %cst_359 = arith.constant 9.99999974E-6 : f32
    %432 = vector.broadcast %cst_359 : f32 to vector<16x1xf32>
    %433 = arith.addf %431, %432 : vector<16x1xf32>
    %434 = math.rsqrt %433 : vector<16x1xf32>
    %435 = vector.broadcast %434 : vector<16x1xf32> to vector<16x32xf32>
    %436 = arith.mulf %426, %435 : vector<16x32xf32>
    %437 = vector.broadcast %418 : vector<1x32xf32> to vector<16x32xf32>
    %438 = arith.mulf %436, %437 : vector<16x32xf32>
    %439 = vector.broadcast %420 : vector<1x32xf32> to vector<16x32xf32>
    %440 = arith.addf %438, %439 : vector<16x32xf32>
    %c1_360 = arith.constant 1 : index
    %c0_361 = arith.constant 0 : index
    %c0_362 = arith.constant 0 : index
    %441 = vector.load %arg15[%c1_360, %c0_361, %c0_362] : memref<2x32x64xf32, #tpu.memory_space<vmem>>, vector<1x32x64xf32>
    %442 = vector.shape_cast %441 : vector<1x32x64xf32> to vector<32x64xf32>
    %cst_363 = arith.constant dense<0.000000e+00> : vector<16x64xf32>
    %443 = tpu.matmul %440, %442, %cst_363 {dimension_numbers = #tpu.dot_dimension_numbers<[1], [0], [0], [1], [0, 0, 1, 1], [], []>} : vector<16x32xf32>, vector<32x64xf32>, vector<16x64xf32> -> vector<16x64xf32>
    %c1_364 = arith.constant 1 : index
    %c0_365 = arith.constant 0 : index
    %c0_366 = arith.constant 0 : index
    %444 = vector.load %arg16[%c1_364, %c0_365, %c0_366] : memref<2x1x64xf32, #tpu.memory_space<vmem>>, vector<1x1x64xf32>
    %445 = vector.shape_cast %444 : vector<1x1x64xf32> to vector<1x64xf32>
    %446 = vector.broadcast %445 : vector<1x64xf32> to vector<16x64xf32>
    %447 = arith.addf %443, %446 : vector<16x64xf32>
    %cst_367 = arith.constant 0.000000e+00 : f32
    %448 = vector.broadcast %cst_367 : f32 to vector<16x64xf32>
    %449 = arith.maximumf %447, %448 : vector<16x64xf32>
    %c1_368 = arith.constant 1 : index
    %c0_369 = arith.constant 0 : index
    %c0_370 = arith.constant 0 : index
    %450 = vector.load %arg17[%c1_368, %c0_369, %c0_370] : memref<2x64x32xf32, #tpu.memory_space<vmem>>, vector<1x64x32xf32>
    %451 = vector.shape_cast %450 : vector<1x64x32xf32> to vector<64x32xf32>
    %cst_371 = arith.constant dense<0.000000e+00> : vector<16x32xf32>
    %452 = tpu.matmul %449, %451, %cst_371 {dimension_numbers = #tpu.dot_dimension_numbers<[1], [0], [0], [1], [0, 0, 1, 1], [], []>} : vector<16x64xf32>, vector<64x32xf32>, vector<16x32xf32> -> vector<16x32xf32>
    %c1_372 = arith.constant 1 : index
    %c0_373 = arith.constant 0 : index
    %c0_374 = arith.constant 0 : index
    %453 = vector.load %arg18[%c1_372, %c0_373, %c0_374] : memref<2x1x32xf32, #tpu.memory_space<vmem>>, vector<1x1x32xf32>
    %454 = vector.shape_cast %453 : vector<1x1x32xf32> to vector<1x32xf32>
    %455 = vector.broadcast %454 : vector<1x32xf32> to vector<16x32xf32>
    %456 = arith.addf %452, %455 : vector<16x32xf32>
    %457 = arith.addf %440, %456 : vector<16x32xf32>
    %c1_375 = arith.constant 1 : index
    %c0_376 = arith.constant 0 : index
    %c0_377 = arith.constant 0 : index
    %458 = vector.load %arg19[%c1_375, %c0_376, %c0_377] : memref<2x1x32xf32, #tpu.memory_space<vmem>>, vector<1x1x32xf32>
    %459 = vector.shape_cast %458 : vector<1x1x32xf32> to vector<1x32xf32>
    %c1_378 = arith.constant 1 : index
    %c0_379 = arith.constant 0 : index
    %c0_380 = arith.constant 0 : index
    %460 = vector.load %arg20[%c1_378, %c0_379, %c0_380] : memref<2x1x32xf32, #tpu.memory_space<vmem>>, vector<1x1x32xf32>
    %461 = vector.shape_cast %460 : vector<1x1x32xf32> to vector<1x32xf32>
    %cst_381 = arith.constant dense<0.000000e+00> : vector<16xf32>
    %462 = vector.multi_reduction <add>, %457, %cst_381 [1] : vector<16x32xf32> to vector<16xf32>
    %463 = vector.shape_cast %462 : vector<16xf32> to vector<16x1xf32>
    %cst_382 = arith.constant 3.200000e+01 : f32
    %464 = vector.broadcast %cst_382 : f32 to vector<16x1xf32>
    %465 = arith.divf %463, %464 : vector<16x1xf32>
    %466 = vector.broadcast %465 : vector<16x1xf32> to vector<16x32xf32>
    %467 = arith.subf %457, %466 : vector<16x32xf32>
    %468 = arith.mulf %467, %467 : vector<16x32xf32>
    %cst_383 = arith.constant dense<0.000000e+00> : vector<16xf32>
    %469 = vector.multi_reduction <add>, %468, %cst_383 [1] : vector<16x32xf32> to vector<16xf32>
    %470 = vector.shape_cast %469 : vector<16xf32> to vector<16x1xf32>
    %cst_384 = arith.constant 3.200000e+01 : f32
    %471 = vector.broadcast %cst_384 : f32 to vector<16x1xf32>
    %472 = arith.divf %470, %471 : vector<16x1xf32>
    %cst_385 = arith.constant 9.99999974E-6 : f32
    %473 = vector.broadcast %cst_385 : f32 to vector<16x1xf32>
    %474 = arith.addf %472, %473 : vector<16x1xf32>
    %475 = math.rsqrt %474 : vector<16x1xf32>
    %476 = vector.broadcast %475 : vector<16x1xf32> to vector<16x32xf32>
    %477 = arith.mulf %467, %476 : vector<16x32xf32>
    %478 = vector.broadcast %459 : vector<1x32xf32> to vector<16x32xf32>
    %479 = arith.mulf %477, %478 : vector<16x32xf32>
    %480 = vector.broadcast %461 : vector<1x32xf32> to vector<16x32xf32>
    %481 = arith.addf %479, %480 : vector<16x32xf32>
    %c0_386 = arith.constant 0 : index
    %c0_387 = arith.constant 0 : index
    %482 = vector.load %arg21[%c0_386, %c0_387] : memref<32x8xf32, #tpu.memory_space<vmem>>, vector<32x8xf32>
    %cst_388 = arith.constant dense<0.000000e+00> : vector<16x8xf32>
    %483 = tpu.matmul %481, %482, %cst_388 {dimension_numbers = #tpu.dot_dimension_numbers<[1], [0], [0], [1], [0, 0, 1, 1], [], []>} : vector<16x32xf32>, vector<32x8xf32>, vector<16x8xf32> -> vector<16x8xf32>
    %c0_389 = arith.constant 0 : index
    %c0_390 = arith.constant 0 : index
    %484 = vector.load %arg22[%c0_389, %c0_390] : memref<1x8xf32, #tpu.memory_space<vmem>>, vector<1x8xf32>
    %485 = vector.broadcast %484 : vector<1x8xf32> to vector<16x8xf32>
    %486 = arith.addf %483, %485 : vector<16x8xf32>
    %cst_391 = arith.constant 0.000000e+00 : f32
    %487 = vector.broadcast %cst_391 : f32 to vector<16x8xf32>
    %488 = arith.subf %487, %486 : vector<16x8xf32>
    %489 = math.exp %488 : vector<16x8xf32>
    %cst_392 = arith.constant 1.000000e+00 : f32
    %490 = vector.broadcast %cst_392 : f32 to vector<16x8xf32>
    %491 = arith.addf %490, %489 : vector<16x8xf32>
    %cst_393 = arith.constant 1.000000e+00 : f32
    %492 = vector.broadcast %cst_393 : f32 to vector<16x8xf32>
    %493 = arith.divf %492, %491 : vector<16x8xf32>
    %494 = vector.shape_cast %493 : vector<16x8xf32> to vector<8x2x8xf32>
    %c0_394 = arith.constant 0 : index
    %c0_395 = arith.constant 0 : index
    %c0_396 = arith.constant 0 : index
    %495 = vector.load %arg23[%c0_394, %c0_395, %c0_396] : memref<8x2x8xf32, #tpu.memory_space<vmem>>, vector<8x2x8xf32>
    tpu.vector_store %arg23[%c0_394, %c0_395, %c0_396], %494 {strides = array<i32>} : memref<8x2x8xf32, #tpu.memory_space<vmem>>, vector<8x2x8xf32>,
    return
  }
}

</mosaic_0001>

<llo_original>
// kernel: time_series_transformer_forward.1
$region0: #{time_series_transformer_forward.1}
  #allocation0 [shape = 'u32[]', space=smem, size = 0x4, offset = 0x4, fixed_abs, tag = 'smem constant byte address 0x4 - core index']
  #allocation1 [shape = 'u32[144,128]{1,0:T(1,128)}', space=vmem, size = 0x12000, scoped, tag = 'internal scratch']
  %s0 = inlined_call_operand.vmem [shape: f32[8,2,8], index: 0, kind: input, shape index: {}]
  %s1 = inlined_call_operand.vmem [shape: f32[16,16], index: 1, kind: input, shape index: {}]
  %s2 = inlined_call_operand.vmem [shape: f32[16,32], index: 2, kind: input, shape index: {}]
  %s3 = inlined_call_operand.vmem [shape: f32[8,32], index: 3, kind: input, shape index: {}]
  %s4 = inlined_call_operand.vmem [shape: f32[1,32], index: 4, kind: input, shape index: {}]
  %s5 = inlined_call_operand.vmem [shape: f32[2,4,32,8], index: 5, kind: input, shape index: {}]
  %s6 = inlined_call_operand.vmem [shape: f32[2,4,1,8], index: 6, kind: input, shape index: {}]
  %s7 = inlined_call_operand.vmem [shape: f32[2,4,32,8], index: 7, kind: input, shape index: {}]
  %s8 = inlined_call_operand.vmem [shape: f32[2,4,1,8], index: 8, kind: input, shape index: {}]
  %s9 = inlined_call_operand.vmem [shape: f32[2,4,32,8], index: 9, kind: input, shape index: {}]
  %s10 = inlined_call_operand.vmem [shape: f32[2,4,1,8], index: 10, kind: input, shape index: {}]
  %s11 = inlined_call_operand.vmem [shape: f32[2,4,8,32], index: 11, kind: input, shape index: {}]
  %s12 = inlined_call_operand.vmem [shape: f32[2,1,32], index: 12, kind: input, shape index: {}]
  %s13 = inlined_call_operand.vmem [shape: f32[2,1,32], index: 13, kind: input, shape index: {}]
  %s14 = inlined_call_operand.vmem [shape: f32[2,1,32], index: 14, kind: input, shape index: {}]
  %s15 = inlined_call_operand.vmem [shape: f32[2,32,64], index: 15, kind: input, shape index: {}]
  %s16 = inlined_call_operand.vmem [shape: f32[2,1,64], index: 16, kind: input, shape index: {}]
  %s17 = inlined_call_operand.vmem [shape: f32[2,64,32], index: 17, kind: input, shape index: {}]
  %s18 = inlined_call_operand.vmem [shape: f32[2,1,32], index: 18, kind: input, shape index: {}]
  %s19 = inlined_call_operand.vmem [shape: f32[2,1,32], index: 19, kind: input, shape index: {}]
  %s20 = inlined_call_operand.vmem [shape: f32[2,1,32], index: 20, kind: input, shape index: {}]
  %s21 = inlined_call_operand.vmem [shape: f32[32,8], index: 21, kind: input, shape index: {}]
  %s22 = inlined_call_operand.vmem [shape: f32[1,8], index: 22, kind: input, shape index: {}]
  %s23 = inlined_call_operand.hbm [shape: f32[8,2,8], index: 23, kind: output, shape index: {}]
  %s24 = sld [smem:[#allocation0]]
  $region102: #{time_series_transformer_forward.1} parent=0
    _
  %s26 = ssub.s32 1, %s24
  %s27 = scalar_select 0, %s26, %s24
  $region1: #{time_series_transformer_forward.1} parent=0
    #allocation2 [shape = 'u8[8192]{0}', space=vmem, size = 0x2000, scoped, tag = 'output window, operand 0, single buffered']
    #allocation3 [shape = 's32[1]{0}', space=sflag, size = 0x4, scoped, tag = 'scoped memory for time_series_transformer_forward.1']
    %28 = vsyncpa [#allocation3], 0
    // Predicated region
    $region2: #{time_series_transformer_forward.1} parent=1 // pred_check
      _
    $region3: #{time_series_transformer_forward.1} parent=1 // pred_check_branch
      %30 = sbr.rel (0) target = $region5
    $region4: #{time_series_transformer_forward.1} parent=1 // pred_region
      _
    $region5: #{time_series_transformer_forward.1} parent=1 // pred_fallthru
      _
    // Predicated region
    $region6: #{time_series_transformer_forward.1} parent=1 // pred_check
      _
    $region7: #{time_series_transformer_forward.1} parent=1 // pred_check_branch
      %32 = sbr.rel (0) target = $region9
    $region8: #{time_series_transformer_forward.1} parent=1 // pred_region
      _
    $region9: #{time_series_transformer_forward.1} parent=1 // pred_fallthru
      _
    // Predicated region
    $region10: #{time_series_transformer_forward.1} parent=1 // pred_check
      _
    $region11: #{time_series_transformer_forward.1} parent=1 // pred_check_branch
      %34 = sbr.rel (0) target = $region13
    $region12: #{time_series_transformer_forward.1} parent=1 // pred_region
      _
    $region13: #{time_series_transformer_forward.1} parent=1 // pred_fallthru
      _
    // Predicated region
    $region14: #{time_series_transformer_forward.1} parent=1 // pred_check
      _
    $region15: #{time_series_transformer_forward.1} parent=1 // pred_check_branch
      %36 = sbr.rel (0) target = $region17
    $region16: #{time_series_transformer_forward.1} parent=1 // pred_region
      _
    $region17: #{time_series_transformer_forward.1} parent=1 // pred_fallthru
      _
    // Predicated region
    $region18: #{time_series_transformer_forward.1} parent=1 // pred_check
      _
    $region19: #{time_series_transformer_forward.1} parent=1 // pred_check_branch
      %38 = sbr.rel (0) target = $region21
    $region20: #{time_series_transformer_forward.1} parent=1 // pred_region
      _
    $region21: #{time_series_transformer_forward.1} parent=1 // pred_fallthru
      _
    // Predicated region
    $region22: #{time_series_transformer_forward.1} parent=1 // pred_check
      _
    $region23: #{time_series_transformer_forward.1} parent=1 // pred_check_branch
      %40 = sbr.rel (0) target = $region25
    $region24: #{time_series_transformer_forward.1} parent=1 // pred_region
      _
    $region25: #{time_series_transformer_forward.1} parent=1 // pred_fallthru
      _
    // Predicated region
    $region26: #{time_series_transformer_forward.1} parent=1 // pred_check
      _
    $region27: #{time_series_transformer_forward.1} parent=1 // pred_check_branch
      %42 = sbr.rel (0) target = $region29
    $region28: #{time_series_transformer_forward.1} parent=1 // pred_region
      _
    $region29: #{time_series_transformer_forward.1} parent=1 // pred_fallthru
      _
    // Predicated region
    $region30: #{time_series_transformer_forward.1} parent=1 // pred_check
      _
    $region31: #{time_series_transformer_forward.1} parent=1 // pred_check_branch
      %44 = sbr.rel (0) target = $region33
    $region32: #{time_series_transformer_forward.1} parent=1 // pred_region
      _
    $region33: #{time_series_transformer_forward.1} parent=1 // pred_fallthru
      _
    // Predicated region
    $region34: #{time_series_transformer_forward.1} parent=1 // pred_check
      _
    $region35: #{time_series_transformer_forward.1} parent=1 // pred_check_branch
      %46 = sbr.rel (0) target = $region37
    $region36: #{time_series_transformer_forward.1} parent=1 // pred_region
      _
    $region37: #{time_series_transformer_forward.1} parent=1 // pred_fallthru
      _
    // Predicated region
    $region38: #{time_series_transformer_forward.1} parent=1 // pred_check
      _
    $region39: #{time_series_transformer_forward.1} parent=1 // pred_check_branch
      %48 = sbr.rel (0) target = $region41
    $region40: #{time_series_transformer_forward.1} parent=1 // pred_region
      _
    $region41: #{time_series_transformer_forward.1} parent=1 // pred_fallthru
      _
    // Predicated region
    $region42: #{time_series_transformer_forward.1} parent=1 // pred_check
      _
    $region43: #{time_series_transformer_forward.1} parent=1 // pred_check_branch
      %50 = sbr.rel (0) target = $region45
    $region44: #{time_series_transformer_forward.1} parent=1 // pred_region
      _
    $region45: #{time_series_transformer_forward.1} parent=1 // pred_fallthru
      _
    // Predicated region
    $region46: #{time_series_transformer_forward.1} parent=1 // pred_check
      _
    $region47: #{time_series_transformer_forward.1} parent=1 // pred_check_branch
      %52 = sbr.rel (0) target = $region49
    $region48: #{time_series_transformer_forward.1} parent=1 // pred_region
      _
    $region49: #{time_series_transformer_forward.1} parent=1 // pred_fallthru
      _
    // Predicated region
    $region50: #{time_series_transformer_forward.1} parent=1 // pred_check
      _
    $region51: #{time_series_transformer_forward.1} parent=1 // pred_check_branch
      %54 = sbr.rel (0) target = $region53
    $region52: #{time_series_transformer_forward.1} parent=1 // pred_region
      _
    $region53: #{time_series_transformer_forward.1} parent=1 // pred_fallthru
      _
    // Predicated region
    $region54: #{time_series_transformer_forward.1} parent=1 // pred_check
      _
    $region55: #{time_series_transformer_forward.1} parent=1 // pred_check_branch
      %56 = sbr.rel (0) target = $region57
    $region56: #{time_series_transformer_forward.1} parent=1 // pred_region
      _
    $region57: #{time_series_transformer_forward.1} parent=1 // pred_fallthru
      _
    // Predicated region
    $region58: #{time_series_transformer_forward.1} parent=1 // pred_check
      _
    $region59: #{time_series_transformer_forward.1} parent=1 // pred_check_branch
      %58 = sbr.rel (0) target = $region61
    $region60: #{time_series_transformer_forward.1} parent=1 // pred_region
      _
    $region61: #{time_series_transformer_forward.1} parent=1 // pred_fallthru
      _
    // Predicated region
    $region62: #{time_series_transformer_forward.1} parent=1 // pred_check
      _
    $region63: #{time_series_transformer_forward.1} parent=1 // pred_check_branch
      %60 = sbr.rel (0) target = $region65
    $region64: #{time_series_transformer_forward.1} parent=1 // pred_region
      _
    $region65: #{time_series_transformer_forward.1} parent=1 // pred_fallthru
      _
    // Predicated region
    $region66: #{time_series_transformer_forward.1} parent=1 // pred_check
      _
    $region67: #{time_series_transformer_forward.1} parent=1 // pred_check_branch
      %62 = sbr.rel (0) target = $region69
    $region68: #{time_series_transformer_forward.1} parent=1 // pred_region
      _
    $region69: #{time_series_transformer_forward.1} parent=1 // pred_fallthru
      _
    // Predicated region
    $region70: #{time_series_transformer_forward.1} parent=1 // pred_check
      _
    $region71: #{time_series_transformer_forward.1} parent=1 // pred_check_branch
      %64 = sbr.rel (0) target = $region73
    $region72: #{time_series_transformer_forward.1} parent=1 // pred_region
      _
    $region73: #{time_series_transformer_forward.1} parent=1 // pred_fallthru
      _
    // Predicated region
    $region74: #{time_series_transformer_forward.1} parent=1 // pred_check
      _
    $region75: #{time_series_transformer_forward.1} parent=1 // pred_check_branch
      %66 = sbr.rel (0) target = $region77
    $region76: #{time_series_transformer_forward.1} parent=1 // pred_region
      _
    $region77: #{time_series_transformer_forward.1} parent=1 // pred_fallthru
      _
    // Predicated region
    $region78: #{time_series_transformer_forward.1} parent=1 // pred_check
      _
    $region79: #{time_series_transformer_forward.1} parent=1 // pred_check_branch
      %68 = sbr.rel (0) target = $region81
    $region80: #{time_series_transformer_forward.1} parent=1 // pred_region
      _
    $region81: #{time_series_transformer_forward.1} parent=1 // pred_fallthru
      _
    // Predicated region
    $region82: #{time_series_transformer_forward.1} parent=1 // pred_check
      _
    $region83: #{time_series_transformer_forward.1} parent=1 // pred_check_branch
      %70 = sbr.rel (0) target = $region85
    $region84: #{time_series_transformer_forward.1} parent=1 // pred_region
      _
    $region85: #{time_series_transformer_forward.1} parent=1 // pred_fallthru
      _
    // Predicated region
    $region86: #{time_series_transformer_forward.1} parent=1 // pred_check
      _
    $region87: #{time_series_transformer_forward.1} parent=1 // pred_check_branch
      %72 = sbr.rel (0) target = $region89
    $region88: #{time_series_transformer_forward.1} parent=1 // pred_region
      _
    $region89: #{time_series_transformer_forward.1} parent=1 // pred_fallthru
      _
    // Predicated region
    $region90: #{time_series_transformer_forward.1} parent=1 // pred_check
      _
    $region91: #{time_series_transformer_forward.1} parent=1 // pred_check_branch
      %74 = sbr.rel (0) target = $region93
    $region92: #{time_series_transformer_forward.1} parent=1 // pred_region
      _
    $region93: #{time_series_transformer_forward.1} parent=1 // pred_fallthru
      _
    %v75 = vld [vmem:[%s0] sm:$0x3]
    %v76 = vld [vmem:[%s0 + $0x2] sm:$0x3]
    %v77 = vld [vmem:[%s0 + $0x4] sm:$0x3]
    %v78 = vld [vmem:[%s0 + $0x6] sm:$0x3]
    %v79 = vld [vmem:[%s0 + $0x8] sm:$0x3]
    %v80 = vld [vmem:[%s0 + $0xa] sm:$0x3]
    %v81 = vld [vmem:[%s0 + $0xc] sm:$0x3]
    %v82 = vld [vmem:[%s0 + $0xe] sm:$0x3]
    %v83 = vld [vmem:[%s3] sm:$0xff]
    %v84 = vld [vmem:[%s4] sm:$0x1]
    %v86 = vlaneseq
    %v87 = vshrl.u32 %v86, 7
    %v88 = vsub.s32 0, %v87
    %v89 = vrot.slane %v84, %v88
    %v99 = vcombine.low %v75, %v76
    %v100 = vcombine.low %v77, %v78
    %v102 = vunpack.c.l.s4 1983009808
    %v103 = vunpack.c.0.s8 %v102
    %v104 = vlaneseq
    %v105 = vshrl.u32 %v104, 7
    %v106 = vsub.s32 %v103, %v105
    %v107 = vrot.slane %v99, %v106
    %v109 = vunpack.c.l.s4 1983009808
    %v110 = vunpack.c.0.s8 %v109
    %v111 = vlaneseq
    %v112 = vshrl.u32 %v111, 7
    %v113 = vsub.s32 %v110, %v112
    %v114 = vrot.slane %v100, %v113
    %v115 = vcombine.low %v107, %v114
    %v116 = vcombine.low %v79, %v80
    %v117 = vcombine.low %v81, %v82
    %v119 = vunpack.c.l.s4 1983009808
    %v120 = vunpack.c.0.s8 %v119
    %v121 = vlaneseq
    %v122 = vshrl.u32 %v121, 7
    %v123 = vsub.s32 %v120, %v122
    %v124 = vrot.slane %v116, %v123
    %v126 = vunpack.c.l.s4 1983009808
    %v127 = vunpack.c.0.s8 %v126
    %v128 = vlaneseq
    %v129 = vshrl.u32 %v128, 7
    %v130 = vsub.s32 %v127, %v129
    %v131 = vrot.slane %v117, %v130
    %v132 = vcombine.low %v124, %v131
    %vm133 = vcmask 64512
    %v134 = vsel %vm133, %v115, 0
    %v136 = vsel %vm133, %v132, 0
    %138 = vmatprep.subr.mxu0 0.0
    %139 = vmatpush1.msra.mxu0 %v83
    %140 = vmatprep.subr.mxu0 0.0
    %141 = vmatpush1.msra.mxu0 0.0
    %142 = vmatprep.subr.mxu0 0.0
    %143 = vmatpush1.msra.mxu0 0.0
    %144 = vmatprep.subr.mxu0 0.0
    %145 = vmatpush1.msra.mxu0 0.0
    %146 = vmatprep.subr.mxu0 0.0
    %147 = vmatpush1.msra.mxu0 0.0
    %148 = vmatprep.subr.mxu0 0.0
    %149 = vmatpush1.msra.mxu0 0.0
    %150 = vmatprep.subr.mxu0 0.0
    %151 = vmatpush1.msra.mxu0 0.0
    %152 = vmatprep.subr.mxu0 0.0
    %153 = vmatpush1.msra.mxu0 0.0
    %154 = vmatprep.subr.mxu0 0.0
    %155 = vmatpush1.msra.mxu0 0.0
    %156 = vmatprep.subr.mxu0 0.0
    %157 = vmatpush1.msra.mxu0 0.0
    %158 = vmatprep.subr.mxu0 0.0
    %159 = vmatpush1.msra.mxu0 0.0
    %160 = vmatprep.subr.mxu0 0.0
    %161 = vmatpush1.msra.mxu0 0.0
    %162 = vmatprep.subr.mxu0 0.0
    %163 = vmatpush1.msra.mxu0 0.0
    %164 = vmatprep.subr.mxu0 0.0
    %165 = vmatpush1.msra.mxu0 0.0
    %166 = vmatprep.subr.mxu0 0.0
    %167 = vmatpush1.msra.mxu0 0.0
    %168 = vmatprep.subr.mxu0 0.0
    %169 = vmatpush1.msra.mxu0 0.0
    %170 = vmatprep.subr.mxu0 0.0
    %171 = vmatpush1.msra.mxu0 0.0
    %172 = vmatprep.subr.mxu0 0.0
    %173 = vmatpush1.msra.mxu0 0.0
    %174 = vmatprep.subr.mxu0 0.0
    %175 = vmatpush1.msra.mxu0 0.0
    %176 = vmatprep.subr.mxu0 0.0
    %177 = vmatpush1.msra.mxu0 0.0
    %178 = vmatprep.subr.mxu0 0.0
    %179 = vmatpush1.msra.mxu0 0.0
    %180 = vmatprep.subr.mxu0 0.0
    %181 = vmatpush1.msra.mxu0 0.0
    %182 = vmatprep.subr.mxu0 0.0
    %183 = vmatpush1.msra.mxu0 0.0
    %184 = vmatprep.subr.mxu0 0.0
    %185 = vmatpush1.msra.mxu0 0.0
    %186 = vmatprep.subr.mxu0 0.0
    %187 = vmatpush1.msra.mxu0 0.0
    %188 = vmatprep.subr.mxu0 0.0
    %189 = vmatpush1.msra.mxu0 0.0
    %190 = vmatprep.subr.mxu0 0.0
    %191 = vmatpush1.msra.mxu0 0.0
    %192 = vmatprep.subr.mxu0 0.0
    %193 = vmatpush1.msra.mxu0 0.0
    %194 = vmatprep.subr.mxu0 0.0
    %195 = vmatpush1.msra.mxu0 0.0
    %196 = vmatprep.subr.mxu0 0.0
    %197 = vmatpush1.msra.mxu0 0.0
    %198 = vmatprep.subr.mxu0 0.0
    %199 = vmatpush1.msra.mxu0 0.0
    %200 = vmatprep.subr.mxu0 0.0
    %201 = vmatpush1.msra.mxu0 0.0
    %202 = vmatprep.mubr.f32.mxu0 0.0
    %203 = vmatmul.mubr.f32.gmra.mrb[0].mxu0 %v134
    %v204 = vpop.f32.mrb[0].mxu0
    %v205 = vadd.f32 %v89, %v204
    %v206 = vpop.f32.mrb[0].mxu0
    %207 = vmatprep.mubr.f32.mxu0 0.0
    %208 = vmatmul.mubr.f32.gmra.mrb[0].mxu0 %v136
    %v209 = vpop.f32.mrb[0].mxu0
    %v210 = vadd.f32 %v89, %v209
    %v211 = vpop.f32.mrb[0].mxu0
    %212 = vdwg.mxu0
    %v213 = vmul.f32 %v205, 5.656854
    %v214 = vmul.f32 %v210, 5.656854
    %v215 = vld [vmem:[%s2] sm:$0xff]
    %v216 = vld [vmem:[%s2 + $0x8] sm:$0xff]
    %v217 = vadd.f32 %v213, %v215
    %v218 = vadd.f32 %v214, %v216
    %v219 = vld [vmem:[%s1] sm:$0xff]
    %v220 = vld [vmem:[%s1 + $0x8] sm:$0xff]
    %v221 = vld [vmem:[%s5] sm:$0xff]
    %v222 = vld [vmem:[%s5 + $0x8] sm:$0xff]
    %v223 = vld [vmem:[%s5 + $0x10] sm:$0xff]
    %v224 = vld [vmem:[%s5 + $0x18] sm:$0xff]
    %v225 = vld [vmem:[%s6] sm:$0x1]
    %v227 = vlaneseq
    %v228 = vshrl.u32 %v227, 7
    %v229 = vsub.s32 0, %v228
    %v230 = vrot.slane %v225, %v229
    %vm232 = vcmask 261120
    %v234 = vsel %vm232, %v217, 0
    %v237 = vsel %vm232, %v218, 0
    %239 = vmatprep.subr.mxu0 0.0
    %240 = vmatpush1.msra.mxu0 %v221
    %241 = vmatprep.subr.mxu0 0.0
    %242 = vmatpush1.msra.mxu0 %v222
    %243 = vmatprep.subr.mxu0 0.0
    %244 = vmatpush1.msra.mxu0 %v223
    %245 = vmatprep.subr.mxu0 0.0
    %246 = vmatpush1.msra.mxu0 %v224
    %247 = vmatprep.subr.mxu0 0.0
    %248 = vmatpush1.msra.mxu0 0.0
    %249 = vmatprep.subr.mxu0 0.0
    %250 = vmatpush1.msra.mxu0 0.0
    %251 = vmatprep.subr.mxu0 0.0
    %252 = vmatpush1.msra.mxu0 0.0
    %253 = vmatprep.subr.mxu0 0.0
    %254 = vmatpush1.msra.mxu0 0.0
    %255 = vmatprep.subr.mxu0 0.0
    %256 = vmatpush1.msra.mxu0 0.0
    %257 = vmatprep.subr.mxu0 0.0
    %258 = vmatpush1.msra.mxu0 0.0
    %259 = vmatprep.subr.mxu0 0.0
    %260 = vmatpush1.msra.mxu0 0.0
    %261 = vmatprep.subr.mxu0 0.0
    %262 = vmatpush1.msra.mxu0 0.0
    %263 = vmatprep.subr.mxu0 0.0
    %264 = vmatpush1.msra.mxu0 0.0
    %265 = vmatprep.subr.mxu0 0.0
    %266 = vmatpush1.msra.mxu0 0.0
    %267 = vmatprep.subr.mxu0 0.0
    %268 = vmatpush1.msra.mxu0 0.0
    %269 = vmatprep.subr.mxu0 0.0
    %270 = vmatpush1.msra.mxu0 0.0
    %271 = vmatprep.subr.mxu0 0.0
    %272 = vmatpush1.msra.mxu0 0.0
    %273 = vmatprep.subr.mxu0 0.0
    %274 = vmatpush1.msra.mxu0 0.0
    %275 = vmatprep.subr.mxu0 0.0
    %276 = vmatpush1.msra.mxu0 0.0
    %277 = vmatprep.subr.mxu0 0.0
    %278 = vmatpush1.msra.mxu0 0.0
    %279 = vmatprep.subr.mxu0 0.0
    %280 = vmatpush1.msra.mxu0 0.0
    %281 = vmatprep.subr.mxu0 0.0
    %282 = vmatpush1.msra.mxu0 0.0
    %283 = vmatprep.subr.mxu0 0.0
    %284 = vmatpush1.msra.mxu0 0.0
    %285 = vmatprep.subr.mxu0 0.0
    %286 = vmatpush1.msra.mxu0 0.0
    %287 = vmatprep.subr.mxu0 0.0
    %288 = vmatpush1.msra.mxu0 0.0
    %289 = vmatprep.subr.mxu0 0.0
    %290 = vmatpush1.msra.mxu0 0.0
    %291 = vmatprep.subr.mxu0 0.0
    %292 = vmatpush1.msra.mxu0 0.0
    %293 = vmatprep.subr.mxu0 0.0
    %294 = vmatpush1.msra.mxu0 0.0
    %295 = vmatprep.subr.mxu0 0.0
    %296 = vmatpush1.msra.mxu0 0.0
    %297 = vmatprep.subr.mxu0 0.0
    %298 = vmatpush1.msra.mxu0 0.0
    %299 = vmatprep.subr.mxu0 0.0
    %300 = vmatpush1.msra.mxu0 0.0
    %301 = vmatprep.subr.mxu0 0.0
    %302 = vmatpush1.msra.mxu0 0.0
    %303 = vmatprep.mubr.f32.mxu0 0.0
    %304 = vmatmul.mubr.f32.gmra.mrb[0].mxu0 %v234
    %v305 = vpop.f32.mrb[0].mxu0
    %v306 = vadd.f32 %v230, %v305
    %v307 = vpop.f32.mrb[0].mxu0
    %308 = vmatprep.mubr.f32.mxu0 0.0
    %309 = vmatmul.mubr.f32.gmra.mrb[0].mxu0 %v237
    %v310 = vpop.f32.mrb[0].mxu0
    %v311 = vadd.f32 %v230, %v310
    %v312 = vpop.f32.mrb[0].mxu0
    %313 = vdwg.mxu0
    %v314 = vld [vmem:[%s7] sm:$0xff]
    %v315 = vld [vmem:[%s7 + $0x8] sm:$0xff]
    %v316 = vld [vmem:[%s7 + $0x10] sm:$0xff]
    %v317 = vld [vmem:[%s7 + $0x18] sm:$0xff]
    %v318 = vld [vmem:[%s8] sm:$0x1]
    %v320 = vlaneseq
    %v321 = vshrl.u32 %v320, 7
    %v322 = vsub.s32 0, %v321
    %v323 = vrot.slane %v318, %v322
    %325 = vmatprep.subr.mxu0 0.0
    %326 = vmatpush1.msra.mxu0 %v314
    %327 = vmatprep.subr.mxu0 0.0
    %328 = vmatpush1.msra.mxu0 %v315
    %329 = vmatprep.subr.mxu0 0.0
    %330 = vmatpush1.msra.mxu0 %v316
    %331 = vmatprep.subr.mxu0 0.0
    %332 = vmatpush1.msra.mxu0 %v317
    %333 = vmatprep.subr.mxu0 0.0
    %334 = vmatpush1.msra.mxu0 0.0
    %335 = vmatprep.subr.mxu0 0.0
    %336 = vmatpush1.msra.mxu0 0.0
    %337 = vmatprep.subr.mxu0 0.0
    %338 = vmatpush1.msra.mxu0 0.0
    %339 = vmatprep.subr.mxu0 0.0
    %340 = vmatpush1.msra.mxu0 0.0
    %341 = vmatprep.subr.mxu0 0.0
    %342 = vmatpush1.msra.mxu0 0.0
    %343 = vmatprep.subr.mxu0 0.0
    %344 = vmatpush1.msra.mxu0 0.0
    %345 = vmatprep.subr.mxu0 0.0
    %346 = vmatpush1.msra.mxu0 0.0
    %347 = vmatprep.subr.mxu0 0.0
    %348 = vmatpush1.msra.mxu0 0.0
    %349 = vmatprep.subr.mxu0 0.0
    %350 = vmatpush1.msra.mxu0 0.0
    %351 = vmatprep.subr.mxu0 0.0
    %352 = vmatpush1.msra.mxu0 0.0
    %353 = vmatprep.subr.mxu0 0.0
    %354 = vmatpush1.msra.mxu0 0.0
    %355 = vmatprep.subr.mxu0 0.0
    %356 = vmatpush1.msra.mxu0 0.0
    %357 = vmatprep.subr.mxu0 0.0
    %358 = vmatpush1.msra.mxu0 0.0
    %359 = vmatprep.subr.mxu0 0.0
    %360 = vmatpush1.msra.mxu0 0.0
    %361 = vmatprep.subr.mxu0 0.0
    %362 = vmatpush1.msra.mxu0 0.0
    %363 = vmatprep.subr.mxu0 0.0
    %364 = vmatpush1.msra.mxu0 0.0
    %365 = vmatprep.subr.mxu0 0.0
    %366 = vmatpush1.msra.mxu0 0.0
    %367 = vmatprep.subr.mxu0 0.0
    %368 = vmatpush1.msra.mxu0 0.0
    %369 = vmatprep.subr.mxu0 0.0
    %370 = vmatpush1.msra.mxu0 0.0
    %371 = vmatprep.subr.mxu0 0.0
    %372 = vmatpush1.msra.mxu0 0.0
    %373 = vmatprep.subr.mxu0 0.0
    %374 = vmatpush1.msra.mxu0 0.0
    %375 = vmatprep.subr.mxu0 0.0
    %376 = vmatpush1.msra.mxu0 0.0
    %377 = vmatprep.subr.mxu0 0.0
    %378 = vmatpush1.msra.mxu0 0.0
    %379 = vmatprep.subr.mxu0 0.0
    %380 = vmatpush1.msra.mxu0 0.0
    %381 = vmatprep.subr.mxu0 0.0
    %382 = vmatpush1.msra.mxu0 0.0
    %383 = vmatprep.subr.mxu0 0.0
    %384 = vmatpush1.msra.mxu0 0.0
    %385 = vmatprep.subr.mxu0 0.0
    %386 = vmatpush1.msra.mxu0 0.0
    %387 = vmatprep.subr.mxu0 0.0
    %388 = vmatpush1.msra.mxu0 0.0
    %389 = vmatprep.mubr.f32.mxu0 0.0
    %390 = vmatmul.mubr.f32.gmra.mrb[0].mxu0 %v234
    %v391 = vpop.f32.mrb[0].mxu0
    %v392 = vadd.f32 %v323, %v391
    %v393 = vpop.f32.mrb[0].mxu0
    %394 = vmatprep.mubr.f32.mxu0 0.0
    %395 = vmatmul.mubr.f32.gmra.mrb[0].mxu0 %v237
    %v396 = vpop.f32.mrb[0].mxu0
    %v397 = vadd.f32 %v323, %v396
    %v398 = vpop.f32.mrb[0].mxu0
    %399 = vdwg.mxu0
    %v400 = vld [vmem:[%s9] sm:$0xff]
    %v401 = vld [vmem:[%s9 + $0x8] sm:$0xff]
    %v402 = vld [vmem:[%s9 + $0x10] sm:$0xff]
    %v403 = vld [vmem:[%s9 + $0x18] sm:$0xff]
    %v404 = vld [vmem:[%s10] sm:$0x1]
    %v406 = vlaneseq
    %v407 = vshrl.u32 %v406, 7
    %v408 = vsub.s32 0, %v407
    %v409 = vrot.slane %v404, %v408
    %411 = vmatprep.subr.mxu0 0.0
    %412 = vmatpush1.msra.mxu0 %v400
    %413 = vmatprep.subr.mxu0 0.0
    %414 = vmatpush1.msra.mxu0 %v401
    %415 = vmatprep.subr.mxu0 0.0
    %416 = vmatpush1.msra.mxu0 %v402
    %417 = vmatprep.subr.mxu0 0.0
    %418 = vmatpush1.msra.mxu0 %v403
    %419 = vmatprep.subr.mxu0 0.0
    %420 = vmatpush1.msra.mxu0 0.0
    %421 = vmatprep.subr.mxu0 0.0
    %422 = vmatpush1.msra.mxu0 0.0
    %423 = vmatprep.subr.mxu0 0.0
    %424 = vmatpush1.msra.mxu0 0.0
    %425 = vmatprep.subr.mxu0 0.0
    %426 = vmatpush1.msra.mxu0 0.0
    %427 = vmatprep.subr.mxu0 0.0
    %428 = vmatpush1.msra.mxu0 0.0
    %429 = vmatprep.subr.mxu0 0.0
    %430 = vmatpush1.msra.mxu0 0.0
    %431 = vmatprep.subr.mxu0 0.0
    %432 = vmatpush1.msra.mxu0 0.0
    %433 = vmatprep.subr.mxu0 0.0
    %434 = vmatpush1.msra.mxu0 0.0
    %435 = vmatprep.subr.mxu0 0.0
    %436 = vmatpush1.msra.mxu0 0.0
    %437 = vmatprep.subr.mxu0 0.0
    %438 = vmatpush1.msra.mxu0 0.0
    %439 = vmatprep.subr.mxu0 0.0
    %440 = vmatpush1.msra.mxu0 0.0
    %441 = vmatprep.subr.mxu0 0.0
    %442 = vmatpush1.msra.mxu0 0.0
    %443 = vmatprep.subr.mxu0 0.0
    %444 = vmatpush1.msra.mxu0 0.0
    %445 = vmatprep.subr.mxu0 0.0
    %446 = vmatpush1.msra.mxu0 0.0
    %447 = vmatprep.subr.mxu0 0.0
    %448 = vmatpush1.msra.mxu0 0.0
    %449 = vmatprep.subr.mxu0 0.0
    %450 = vmatpush1.msra.mxu0 0.0
    %451 = vmatprep.subr.mxu0 0.0
    %452 = vmatpush1.msra.mxu0 0.0
    %453 = vmatprep.subr.mxu0 0.0
    %454 = vmatpush1.msra.mxu0 0.0
    %455 = vmatprep.subr.mxu0 0.0
    %456 = vmatpush1.msra.mxu0 0.0
    %457 = vmatprep.subr.mxu0 0.0
    %458 = vmatpush1.msra.mxu0 0.0
    %459 = vmatprep.subr.mxu0 0.0
    %460 = vmatpush1.msra.mxu0 0.0
    %461 = vmatprep.subr.mxu0 0.0
    %462 = vmatpush1.msra.mxu0 0.0
    %463 = vmatprep.subr.mxu0 0.0
    %464 = vmatpush1.msra.mxu0 0.0
    %465 = vmatprep.subr.mxu0 0.0
    %466 = vmatpush1.msra.mxu0 0.0
    %467 = vmatprep.subr.mxu0 0.0
    %468 = vmatpush1.msra.mxu0 0.0
    %469 = vmatprep.subr.mxu0 0.0
    %470 = vmatpush1.msra.mxu0 0.0
    %471 = vmatprep.subr.mxu0 0.0
    %472 = vmatpush1.msra.mxu0 0.0
    %473 = vmatprep.subr.mxu0 0.0
    %474 = vmatpush1.msra.mxu0 0.0
    %475 = vmatprep.mubr.f32.mxu0 0.0
    %476 = vmatmul.mubr.f32.gmra.mrb[0].mxu0 %v234
    %v477 = vpop.f32.mrb[0].mxu0
    %v478 = vadd.f32 %v409, %v477
    %v479 = vpop.f32.mrb[0].mxu0
    %480 = vmatprep.mubr.f32.mxu0 0.0
    %481 = vmatmul.mubr.f32.gmra.mrb[0].mxu0 %v237
    %v482 = vpop.f32.mrb[0].mxu0
    %v483 = vadd.f32 %v409, %v482
    %v484 = vpop.f32.mrb[0].mxu0
    %485 = vdwg.mxu0
    %v487 = vsel %vm133, %v306, 0
    %v490 = vsel %vm133, %v311, 0
    %v493 = vsel %vm133, %v392, 0
    %v496 = vsel %vm133, %v397, 0
    %498 = vmatprep.subr.mxu0 0.0
    %499 = vmatpush1.xpose.msra.mxu0 %v493
    %500 = vmatprep.subr.mxu0 0.0
    %501 = vmatpush1.xpose.msra.mxu0 %v496
    %502 = vmatprep.subr.mxu0 0.0
    %503 = vmatpush1.xpose.msra.mxu0 0.0
    %504 = vmatprep.subr.mxu0 0.0
    %505 = vmatpush1.xpose.msra.mxu0 0.0
    %506 = vmatprep.subr.mxu0 0.0
    %507 = vmatpush1.xpose.msra.mxu0 0.0
    %508 = vmatprep.subr.mxu0 0.0
    %509 = vmatpush1.xpose.msra.mxu0 0.0
    %510 = vmatprep.subr.mxu0 0.0
    %511 = vmatpush1.xpose.msra.mxu0 0.0
    %512 = vmatprep.subr.mxu0 0.0
    %513 = vmatpush1.xpose.msra.mxu0 0.0
    %514 = vmatprep.subr.mxu0 0.0
    %515 = vmatpush1.xpose.msra.mxu0 0.0
    %516 = vmatprep.subr.mxu0 0.0
    %517 = vmatpush1.xpose.msra.mxu0 0.0
    %518 = vmatprep.subr.mxu0 0.0
    %519 = vmatpush1.xpose.msra.mxu0 0.0
    %520 = vmatprep.subr.mxu0 0.0
    %521 = vmatpush1.xpose.msra.mxu0 0.0
    %522 = vmatprep.subr.mxu0 0.0
    %523 = vmatpush1.xpose.msra.mxu0 0.0
    %524 = vmatprep.subr.mxu0 0.0
    %525 = vmatpush1.xpose.msra.mxu0 0.0
    %526 = vmatprep.subr.mxu0 0.0
    %527 = vmatpush1.xpose.msra.mxu0 0.0
    %528 = vmatprep.subr.mxu0 0.0
    %529 = vmatpush1.xpose.msra.mxu0 0.0
    %530 = vmatprep.subr.mxu0 0.0
    %531 = vmatpush1.xpose.msra.mxu0 0.0
    %532 = vmatprep.subr.mxu0 0.0
    %533 = vmatpush1.xpose.msra.mxu0 0.0
    %534 = vmatprep.subr.mxu0 0.0
    %535 = vmatpush1.xpose.msra.mxu0 0.0
    %536 = vmatprep.subr.mxu0 0.0
    %537 = vmatpush1.xpose.msra.mxu0 0.0
    %538 = vmatprep.subr.mxu0 0.0
    %539 = vmatpush1.xpose.msra.mxu0 0.0
    %540 = vmatprep.subr.mxu0 0.0
    %541 = vmatpush1.xpose.msra.mxu0 0.0
    %542 = vmatprep.subr.mxu0 0.0
    %543 = vmatpush1.xpose.msra.mxu0 0.0
    %544 = vmatprep.subr.mxu0 0.0
    %545 = vmatpush1.xpose.msra.mxu0 0.0
    %546 = vmatprep.subr.mxu0 0.0
    %547 = vmatpush1.xpose.msra.mxu0 0.0
    %548 = vmatprep.subr.mxu0 0.0
    %549 = vmatpush1.xpose.msra.mxu0 0.0
    %550 = vmatprep.subr.mxu0 0.0
    %551 = vmatpush1.xpose.msra.mxu0 0.0
    %552 = vmatprep.subr.mxu0 0.0
    %553 = vmatpush1.xpose.msra.mxu0 0.0
    %554 = vmatprep.subr.mxu0 0.0
    %555 = vmatpush1.xpose.msra.mxu0 0.0
    %556 = vmatprep.subr.mxu0 0.0
    %557 = vmatpush1.xpose.msra.mxu0 0.0
    %558 = vmatprep.subr.mxu0 0.0
    %559 = vmatpush1.xpose.msra.mxu0 0.0
    %560 = vmatprep.subr.mxu0 0.0
    %561 = vmatpush1.xpose.msra.mxu0 0.0
    %562 = vmatprep.mubr.f32.mxu0 0.0
    %563 = vmatmul.mubr.f32.gmra.mrb[0].mxu0 %v487
    %v564 = vpop.f32.mrb[0].mxu0
    %v565 = vadd.f32 0.0, %v564
    %v566 = vpop.f32.mrb[0].mxu0
    %567 = vmatprep.mubr.f32.mxu0 0.0
    %568 = vmatmul.mubr.f32.gmra.mrb[0].mxu0 %v490
    %v569 = vpop.f32.mrb[0].mxu0
    %v570 = vadd.f32 0.0, %v569
    %v571 = vpop.f32.mrb[0].mxu0
    %572 = vdwg.mxu0
    %v573 = vmul.f32 %v565, 0.35355338
    %v574 = vmul.f32 %v570, 0.35355338
    %v575 = vadd.f32 %v573, %v219
    %v576 = vadd.f32 %v574, %v220
    %vm577 = vcmask 130048
    %v578 = vsel %vm577, %v575, -inf
    %579 = vmax.xlane.f32.xlu0 %v578
    %v580 = vpop.xlane.xlu0 %579
    %v581 = vsel %vm577, %v576, -inf
    %582 = vmax.xlane.f32.xlu0 %v581
    %v583 = vpop.xlane.xlu0 %582
    %v584 = vsub.f32 %v575, %v580
    %v585 = vsub.f32 %v576, %v583
    %v586 = vmul.f32 %v584, 1.442695
    %v587 = vpow.pop %v586
    %v588 = vmul.f32 %v585, 1.442695
    %v589 = vpow.pop %v588
    %v590 = vsel %vm577, %v587, 0.0
    %591 = vadd.xlane.f32.xlu0 %v590
    %v592 = vpop.xlane.xlu0 %591
    %v593 = vsel %vm577, %v589, 0.0
    %594 = vadd.xlane.f32.xlu0 %v593
    %v595 = vpop.xlane.xlu0 %594
    %v596 = vrcp.pop %v592
    %v597 = vrcp.pop %v595
    %v598 = vmul.f32 %v587, %v596
    %v599 = vmul.f32 %v589, %v597
    %v601 = vsel %vm577, %v598, 0
    %v604 = vsel %vm577, %v599, 0
    %606 = vmatprep.subr.mxu0 0.0
    %607 = vmatpush1.msra.mxu0 %v478
    %608 = vmatprep.subr.mxu0 0.0
    %609 = vmatpush1.msra.mxu0 %v483
    %610 = vmatprep.subr.mxu0 0.0
    %611 = vmatpush1.msra.mxu0 0.0
    %612 = vmatprep.subr.mxu0 0.0
    %613 = vmatpush1.msra.mxu0 0.0
    %614 = vmatprep.subr.mxu0 0.0
    %615 = vmatpush1.msra.mxu0 0.0
    %616 = vmatprep.subr.mxu0 0.0
    %617 = vmatpush1.msra.mxu0 0.0
    %618 = vmatprep.subr.mxu0 0.0
    %619 = vmatpush1.msra.mxu0 0.0
    %620 = vmatprep.subr.mxu0 0.0
    %621 = vmatpush1.msra.mxu0 0.0
    %622 = vmatprep.subr.mxu0 0.0
    %623 = vmatpush1.msra.mxu0 0.0
    %624 = vmatprep.subr.mxu0 0.0
    %625 = vmatpush1.msra.mxu0 0.0
    %626 = vmatprep.subr.mxu0 0.0
    %627 = vmatpush1.msra.mxu0 0.0
    %628 = vmatprep.subr.mxu0 0.0
    %629 = vmatpush1.msra.mxu0 0.0
    %630 = vmatprep.subr.mxu0 0.0
    %631 = vmatpush1.msra.mxu0 0.0
    %632 = vmatprep.subr.mxu0 0.0
    %633 = vmatpush1.msra.mxu0 0.0
    %634 = vmatprep.subr.mxu0 0.0
    %635 = vmatpush1.msra.mxu0 0.0
    %636 = vmatprep.subr.mxu0 0.0
    %637 = vmatpush1.msra.mxu0 0.0
    %638 = vmatprep.subr.mxu0 0.0
    %639 = vmatpush1.msra.mxu0 0.0
    %640 = vmatprep.subr.mxu0 0.0
    %641 = vmatpush1.msra.mxu0 0.0
    %642 = vmatprep.subr.mxu0 0.0
    %643 = vmatpush1.msra.mxu0 0.0
    %644 = vmatprep.subr.mxu0 0.0
    %645 = vmatpush1.msra.mxu0 0.0
    %646 = vmatprep.subr.mxu0 0.0
    %647 = vmatpush1.msra.mxu0 0.0
    %648 = vmatprep.subr.mxu0 0.0
    %649 = vmatpush1.msra.mxu0 0.0
    %650 = vmatprep.subr.mxu0 0.0
    %651 = vmatpush1.msra.mxu0 0.0
    %652 = vmatprep.subr.mxu0 0.0
    %653 = vmatpush1.msra.mxu0 0.0
    %654 = vmatprep.subr.mxu0 0.0
    %655 = vmatpush1.msra.mxu0 0.0
    %656 = vmatprep.subr.mxu0 0.0
    %657 = vmatpush1.msra.mxu0 0.0
    %658 = vmatprep.subr.mxu0 0.0
    %659 = vmatpush1.msra.mxu0 0.0
    %660 = vmatprep.subr.mxu0 0.0
    %661 = vmatpush1.msra.mxu0 0.0
    %662 = vmatprep.subr.mxu0 0.0
    %663 = vmatpush1.msra.mxu0 0.0
    %664 = vmatprep.subr.mxu0 0.0
    %665 = vmatpush1.msra.mxu0 0.0
    %666 = vmatprep.subr.mxu0 0.0
    %667 = vmatpush1.msra.mxu0 0.0
    %668 = vmatprep.subr.mxu0 0.0
    %669 = vmatpush1.msra.mxu0 0.0
    %670 = vmatprep.mubr.f32.mxu0 0.0
    %671 = vmatmul.mubr.f32.gmra.mrb[0].mxu0 %v601
    %v672 = vpop.f32.mrb[0].mxu0
    %v673 = vadd.f32 0.0, %v672
    %v674 = vpop.f32.mrb[0].mxu0
    %675 = vmatprep.mubr.f32.mxu0 0.0
    %676 = vmatmul.mubr.f32.gmra.mrb[0].mxu0 %v604
    %v677 = vpop.f32.mrb[0].mxu0
    %v678 = vadd.f32 0.0, %v677
    %v679 = vpop.f32.mrb[0].mxu0
    %680 = vdwg.mxu0
    %v681 = vld [vmem:[%s11] sm:$0xff]
    %s682 = scalar_lea.vmem %s5, 32
    %v683 = vld [vmem:[%s682] sm:$0xff]
    %v684 = vld [vmem:[%s682 + $0x8] sm:$0xff]
    %v685 = vld [vmem:[%s682 + $0x10] sm:$0xff]
    %v686 = vld [vmem:[%s682 + $0x18] sm:$0xff]
    %s687 = scalar_lea.vmem %s6, 1
    %v688 = vld [vmem:[%s687] sm:$0x1]
    %v690 = vlaneseq
    %v691 = vshrl.u32 %v690, 7
    %v692 = vsub.s32 0, %v691
    %v693 = vrot.slane %v688, %v692
    %695 = vmatprep.subr.mxu0 0.0
    %696 = vmatpush1.msra.mxu0 %v683
    %697 = vmatprep.subr.mxu0 0.0
    %698 = vmatpush1.msra.mxu0 %v684
    %699 = vmatprep.subr.mxu0 0.0
    %700 = vmatpush1.msra.mxu0 %v685
    %701 = vmatprep.subr.mxu0 0.0
    %702 = vmatpush1.msra.mxu0 %v686
    %703 = vmatprep.subr.mxu0 0.0
    %704 = vmatpush1.msra.mxu0 0.0
    %705 = vmatprep.subr.mxu0 0.0
    %706 = vmatpush1.msra.mxu0 0.0
    %707 = vmatprep.subr.mxu0 0.0
    %708 = vmatpush1.msra.mxu0 0.0
    %709 = vmatprep.subr.mxu0 0.0
    %710 = vmatpush1.msra.mxu0 0.0
    %711 = vmatprep.subr.mxu0 0.0
    %712 = vmatpush1.msra.mxu0 0.0
    %713 = vmatprep.subr.mxu0 0.0
    %714 = vmatpush1.msra.mxu0 0.0
    %715 = vmatprep.subr.mxu0 0.0
    %716 = vmatpush1.msra.mxu0 0.0
    %717 = vmatprep.subr.mxu0 0.0
    %718 = vmatpush1.msra.mxu0 0.0
    %719 = vmatprep.subr.mxu0 0.0
    %720 = vmatpush1.msra.mxu0 0.0
    %721 = vmatprep.subr.mxu0 0.0
    %722 = vmatpush1.msra.mxu0 0.0
    %723 = vmatprep.subr.mxu0 0.0
    %724 = vmatpush1.msra.mxu0 0.0
    %725 = vmatprep.subr.mxu0 0.0
    %726 = vmatpush1.msra.mxu0 0.0
    %727 = vmatprep.subr.mxu0 0.0
    %728 = vmatpush1.msra.mxu0 0.0
    %729 = vmatprep.subr.mxu0 0.0
    %730 = vmatpush1.msra.mxu0 0.0
    %731 = vmatprep.subr.mxu0 0.0
    %732 = vmatpush1.msra.mxu0 0.0
    %733 = vmatprep.subr.mxu0 0.0
    %734 = vmatpush1.msra.mxu0 0.0
    %735 = vmatprep.subr.mxu0 0.0
    %736 = vmatpush1.msra.mxu0 0.0
    %737 = vmatprep.subr.mxu0 0.0
    %738 = vmatpush1.msra.mxu0 0.0
    %739 = vmatprep.subr.mxu0 0.0
    %740 = vmatpush1.msra.mxu0 0.0
    %741 = vmatprep.subr.mxu0 0.0
    %742 = vmatpush1.msra.mxu0 0.0
    %743 = vmatprep.subr.mxu0 0.0
    %744 = vmatpush1.msra.mxu0 0.0
    %745 = vmatprep.subr.mxu0 0.0
    %746 = vmatpush1.msra.mxu0 0.0
    %747 = vmatprep.subr.mxu0 0.0
    %748 = vmatpush1.msra.mxu0 0.0
    %749 = vmatprep.subr.mxu0 0.0
    %750 = vmatpush1.msra.mxu0 0.0
    %751 = vmatprep.subr.mxu0 0.0
    %752 = vmatpush1.msra.mxu0 0.0
    %753 = vmatprep.subr.mxu0 0.0
    %754 = vmatpush1.msra.mxu0 0.0
    %755 = vmatprep.subr.mxu0 0.0
    %756 = vmatpush1.msra.mxu0 0.0
    %757 = vmatprep.subr.mxu0 0.0
    %758 = vmatpush1.msra.mxu0 0.0
    %759 = vmatprep.mubr.f32.mxu0 0.0
    %760 = vmatmul.mubr.f32.gmra.mrb[0].mxu0 %v234
    %v761 = vpop.f32.mrb[0].mxu0
    %v762 = vadd.f32 %v693, %v761
    %v763 = vpop.f32.mrb[0].mxu0
    %764 = vmatprep.mubr.f32.mxu0 0.0
    %765 = vmatmul.mubr.f32.gmra.mrb[0].mxu0 %v237
    %v766 = vpop.f32.mrb[0].mxu0
    %v767 = vadd.f32 %v693, %v766
    %v768 = vpop.f32.mrb[0].mxu0
    %769 = vdwg.mxu0
    %s770 = scalar_lea.vmem %s7, 32
    %v771 = vld [vmem:[%s770] sm:$0xff]
    %v772 = vld [vmem:[%s770 + $0x8] sm:$0xff]
    %v773 = vld [vmem:[%s770 + $0x10] sm:$0xff]
    %v774 = vld [vmem:[%s770 + $0x18] sm:$0xff]
    %s775 = scalar_lea.vmem %s8, 1
    %v776 = vld [vmem:[%s775] sm:$0x1]
    %v778 = vlaneseq
    %v779 = vshrl.u32 %v778, 7
    %v780 = vsub.s32 0, %v779
    %v781 = vrot.slane %v776, %v780
    %783 = vmatprep.subr.mxu0 0.0
    %784 = vmatpush1.msra.mxu0 %v771
    %785 = vmatprep.subr.mxu0 0.0
    %786 = vmatpush1.msra.mxu0 %v772
    %787 = vmatprep.subr.mxu0 0.0
    %788 = vmatpush1.msra.mxu0 %v773
    %789 = vmatprep.subr.mxu0 0.0
    %790 = vmatpush1.msra.mxu0 %v774
    %791 = vmatprep.subr.mxu0 0.0
    %792 = vmatpush1.msra.mxu0 0.0
    %793 = vmatprep.subr.mxu0 0.0
    %794 = vmatpush1.msra.mxu0 0.0
    %795 = vmatprep.subr.mxu0 0.0
    %796 = vmatpush1.msra.mxu0 0.0
    %797 = vmatprep.subr.mxu0 0.0
    %798 = vmatpush1.msra.mxu0 0.0
    %799 = vmatprep.subr.mxu0 0.0
    %800 = vmatpush1.msra.mxu0 0.0
    %801 = vmatprep.subr.mxu0 0.0
    %802 = vmatpush1.msra.mxu0 0.0
    %803 = vmatprep.subr.mxu0 0.0
    %804 = vmatpush1.msra.mxu0 0.0
    %805 = vmatprep.subr.mxu0 0.0
    %806 = vmatpush1.msra.mxu0 0.0
    %807 = vmatprep.subr.mxu0 0.0
    %808 = vmatpush1.msra.mxu0 0.0
    %809 = vmatprep.subr.mxu0 0.0
    %810 = vmatpush1.msra.mxu0 0.0
    %811 = vmatprep.subr.mxu0 0.0
    %812 = vmatpush1.msra.mxu0 0.0
    %813 = vmatprep.subr.mxu0 0.0
    %814 = vmatpush1.msra.mxu0 0.0
    %815 = vmatprep.subr.mxu0 0.0
    %816 = vmatpush1.msra.mxu0 0.0
    %817 = vmatprep.subr.mxu0 0.0
    %818 = vmatpush1.msra.mxu0 0.0
    %819 = vmatprep.subr.mxu0 0.0
    %820 = vmatpush1.msra.mxu0 0.0
    %821 = vmatprep.subr.mxu0 0.0
    %822 = vmatpush1.msra.mxu0 0.0
    %823 = vmatprep.subr.mxu0 0.0
    %824 = vmatpush1.msra.mxu0 0.0
    %825 = vmatprep.subr.mxu0 0.0
    %826 = vmatpush1.msra.mxu0 0.0
    %827 = vmatprep.subr.mxu0 0.0
    %828 = vmatpush1.msra.mxu0 0.0
    %829 = vmatprep.subr.mxu0 0.0
    %830 = vmatpush1.msra.mxu0 0.0
    %831 = vmatprep.subr.mxu0 0.0
    %832 = vmatpush1.msra.mxu0 0.0
    %833 = vmatprep.subr.mxu0 0.0
    %834 = vmatpush1.msra.mxu0 0.0
    %835 = vmatprep.subr.mxu0 0.0
    %836 = vmatpush1.msra.mxu0 0.0
    %837 = vmatprep.subr.mxu0 0.0
    %838 = vmatpush1.msra.mxu0 0.0
    %839 = vmatprep.subr.mxu0 0.0
    %840 = vmatpush1.msra.mxu0 0.0
    %841 = vmatprep.subr.mxu0 0.0
    %842 = vmatpush1.msra.mxu0 0.0
    %843 = vmatprep.subr.mxu0 0.0
    %844 = vmatpush1.msra.mxu0 0.0
    %845 = vmatprep.subr.mxu0 0.0
    %846 = vmatpush1.msra.mxu0 0.0
    %847 = vmatprep.mubr.f32.mxu0 0.0
    %848 = vmatmul.mubr.f32.gmra.mrb[0].mxu0 %v234
    %v849 = vpop.f32.mrb[0].mxu0
    %v850 = vadd.f32 %v781, %v849
    %v851 = vpop.f32.mrb[0].mxu0
    %852 = vmatprep.mubr.f32.mxu0 0.0
    %853 = vmatmul.mubr.f32.gmra.mrb[0].mxu0 %v237
    %v854 = vpop.f32.mrb[0].mxu0
    %v855 = vadd.f32 %v781, %v854
    %v856 = vpop.f32.mrb[0].mxu0
    %857 = vdwg.mxu0
    %s858 = scalar_lea.vmem %s9, 32
    %v859 = vld [vmem:[%s858] sm:$0xff]
    %v860 = vld [vmem:[%s858 + $0x8] sm:$0xff]
    %v861 = vld [vmem:[%s858 + $0x10] sm:$0xff]
    %v862 = vld [vmem:[%s858 + $0x18] sm:$0xff]
    %s863 = scalar_lea.vmem %s10, 1
    %v864 = vld [vmem:[%s863] sm:$0x1]
    %v866 = vlaneseq
    %v867 = vshrl.u32 %v866, 7
    %v868 = vsub.s32 0, %v867
    %v869 = vrot.slane %v864, %v868
    %871 = vmatprep.subr.mxu0 0.0
    %872 = vmatpush1.msra.mxu0 %v859
    %873 = vmatprep.subr.mxu0 0.0
    %874 = vmatpush1.msra.mxu0 %v860
    %875 = vmatprep.subr.mxu0 0.0
    %876 = vmatpush1.msra.mxu0 %v861
    %877 = vmatprep.subr.mxu0 0.0
    %878 = vmatpush1.msra.mxu0 %v862
    %879 = vmatprep.subr.mxu0 0.0
    %880 = vmatpush1.msra.mxu0 0.0
    %881 = vmatprep.subr.mxu0 0.0
    %882 = vmatpush1.msra.mxu0 0.0
    %883 = vmatprep.subr.mxu0 0.0
    %884 = vmatpush1.msra.mxu0 0.0
    %885 = vmatprep.subr.mxu0 0.0
    %886 = vmatpush1.msra.mxu0 0.0
    %887 = vmatprep.subr.mxu0 0.0
    %888 = vmatpush1.msra.mxu0 0.0
    %889 = vmatprep.subr.mxu0 0.0
    %890 = vmatpush1.msra.mxu0 0.0
    %891 = vmatprep.subr.mxu0 0.0
    %892 = vmatpush1.msra.mxu0 0.0
    %893 = vmatprep.subr.mxu0 0.0
    %894 = vmatpush1.msra.mxu0 0.0
    %895 = vmatprep.subr.mxu0 0.0
    %896 = vmatpush1.msra.mxu0 0.0
    %897 = vmatprep.subr.mxu0 0.0
    %898 = vmatpush1.msra.mxu0 0.0
    %899 = vmatprep.subr.mxu0 0.0
    %900 = vmatpush1.msra.mxu0 0.0
    %901 = vmatprep.subr.mxu0 0.0
    %902 = vmatpush1.msra.mxu0 0.0
    %903 = vmatprep.subr.mxu0 0.0
    %904 = vmatpush1.msra.mxu0 0.0
    %905 = vmatprep.subr.mxu0 0.0
    %906 = vmatpush1.msra.mxu0 0.0
    %907 = vmatprep.subr.mxu0 0.0
    %908 = vmatpush1.msra.mxu0 0.0
    %909 = vmatprep.subr.mxu0 0.0
    %910 = vmatpush1.msra.mxu0 0.0
    %911 = vmatprep.subr.mxu0 0.0
    %912 = vmatpush1.msra.mxu0 0.0
    %913 = vmatprep.subr.mxu0 0.0
    %914 = vmatpush1.msra.mxu0 0.0
    %915 = vmatprep.subr.mxu0 0.0
    %916 = vmatpush1.msra.mxu0 0.0
    %917 = vmatprep.subr.mxu0 0.0
    %918 = vmatpush1.msra.mxu0 0.0
    %919 = vmatprep.subr.mxu0 0.0
    %920 = vmatpush1.msra.mxu0 0.0
    %921 = vmatprep.subr.mxu0 0.0
    %922 = vmatpush1.msra.mxu0 0.0
    %923 = vmatprep.subr.mxu0 0.0
    %924 = vmatpush1.msra.mxu0 0.0
    %925 = vmatprep.subr.mxu0 0.0
    %926 = vmatpush1.msra.mxu0 0.0
    %927 = vmatprep.subr.mxu0 0.0
    %928 = vmatpush1.msra.mxu0 0.0
    %929 = vmatprep.subr.mxu0 0.0
    %930 = vmatpush1.msra.mxu0 0.0
    %931 = vmatprep.subr.mxu0 0.0
    %932 = vmatpush1.msra.mxu0 0.0
    %933 = vmatprep.subr.mxu0 0.0
    %934 = vmatpush1.msra.mxu0 0.0
    %935 = vmatprep.mubr.f32.mxu0 0.0
    %936 = vmatmul.mubr.f32.gmra.mrb[0].mxu0 %v234
    %v937 = vpop.f32.mrb[0].mxu0
    %v938 = vadd.f32 %v869, %v937
    %v939 = vpop.f32.mrb[0].mxu0
    %940 = vmatprep.mubr.f32.mxu0 0.0
    %941 = vmatmul.mubr.f32.gmra.mrb[0].mxu0 %v237
    %v942 = vpop.f32.mrb[0].mxu0
    %v943 = vadd.f32 %v869, %v942
    %v944 = vpop.f32.mrb[0].mxu0
    %945 = vdwg.mxu0
    %v947 = vsel %vm133, %v762, 0
    %v950 = vsel %vm133, %v767, 0
    %v953 = vsel %vm133, %v850, 0
    %v956 = vsel %vm133, %v855, 0
    %958 = vmatprep.subr.mxu0 0.0
    %959 = vmatpush1.xpose.msra.mxu0 %v953
    %960 = vmatprep.subr.mxu0 0.0
    %961 = vmatpush1.xpose.msra.mxu0 %v956
    %962 = vmatprep.subr.mxu0 0.0
    %963 = vmatpush1.xpose.msra.mxu0 0.0
    %964 = vmatprep.subr.mxu0 0.0
    %965 = vmatpush1.xpose.msra.mxu0 0.0
    %966 = vmatprep.subr.mxu0 0.0
    %967 = vmatpush1.xpose.msra.mxu0 0.0
    %968 = vmatprep.subr.mxu0 0.0
    %969 = vmatpush1.xpose.msra.mxu0 0.0
    %970 = vmatprep.subr.mxu0 0.0
    %971 = vmatpush1.xpose.msra.mxu0 0.0
    %972 = vmatprep.subr.mxu0 0.0
    %973 = vmatpush1.xpose.msra.mxu0 0.0
    %974 = vmatprep.subr.mxu0 0.0
    %975 = vmatpush1.xpose.msra.mxu0 0.0
    %976 = vmatprep.subr.mxu0 0.0
    %977 = vmatpush1.xpose.msra.mxu0 0.0
    %978 = vmatprep.subr.mxu0 0.0
    %979 = vmatpush1.xpose.msra.mxu0 0.0
    %980 = vmatprep.subr.mxu0 0.0
    %981 = vmatpush1.xpose.msra.mxu0 0.0
    %982 = vmatprep.subr.mxu0 0.0
    %983 = vmatpush1.xpose.msra.mxu0 0.0
    %984 = vmatprep.subr.mxu0 0.0
    %985 = vmatpush1.xpose.msra.mxu0 0.0
    %986 = vmatprep.subr.mxu0 0.0
    %987 = vmatpush1.xpose.msra.mxu0 0.0
    %988 = vmatprep.subr.mxu0 0.0
    %989 = vmatpush1.xpose.msra.mxu0 0.0
    %990 = vmatprep.subr.mxu0 0.0
    %991 = vmatpush1.xpose.msra.mxu0 0.0
    %992 = vmatprep.subr.mxu0 0.0
    %993 = vmatpush1.xpose.msra.mxu0 0.0
    %994 = vmatprep.subr.mxu0 0.0
    %995 = vmatpush1.xpose.msra.mxu0 0.0
    %996 = vmatprep.subr.mxu0 0.0
    %997 = vmatpush1.xpose.msra.mxu0 0.0
    %998 = vmatprep.subr.mxu0 0.0
    %999 = vmatpush1.xpose.msra.mxu0 0.0
    %1000 = vmatprep.subr.mxu0 0.0
    %1001 = vmatpush1.xpose.msra.mxu0 0.0
    %1002 = vmatprep.subr.mxu0 0.0
    %1003 = vmatpush1.xpose.msra.mxu0 0.0
    %1004 = vmatprep.subr.mxu0 0.0
    %1005 = vmatpush1.xpose.msra.mxu0 0.0
    %1006 = vmatprep.subr.mxu0 0.0
    %1007 = vmatpush1.xpose.msra.mxu0 0.0
    %1008 = vmatprep.subr.mxu0 0.0
    %1009 = vmatpush1.xpose.msra.mxu0 0.0
    %1010 = vmatprep.subr.mxu0 0.0
    %1011 = vmatpush1.xpose.msra.mxu0 0.0
    %1012 = vmatprep.subr.mxu0 0.0
    %1013 = vmatpush1.xpose.msra.mxu0 0.0
    %1014 = vmatprep.subr.mxu0 0.0
    %1015 = vmatpush1.xpose.msra.mxu0 0.0
    %1016 = vmatprep.subr.mxu0 0.0
    %1017 = vmatpush1.xpose.msra.mxu0 0.0
    %1018 = vmatprep.subr.mxu0 0.0
    %1019 = vmatpush1.xpose.msra.mxu0 0.0
    %1020 = vmatprep.subr.mxu0 0.0
    %1021 = vmatpush1.xpose.msra.mxu0 0.0
    %1022 = vmatprep.mubr.f32.mxu0 0.0
    %1023 = vmatmul.mubr.f32.gmra.mrb[0].mxu0 %v947
    %v1024 = vpop.f32.mrb[0].mxu0
    %v1025 = vadd.f32 0.0, %v1024
    %v1026 = vpop.f32.mrb[0].mxu0
    %1027 = vmatprep.mubr.f32.mxu0 0.0
    %1028 = vmatmul.mubr.f32.gmra.mrb[0].mxu0 %v950
    %v1029 = vpop.f32.mrb[0].mxu0
    %v1030 = vadd.f32 0.0, %v1029
    %v1031 = vpop.f32.mrb[0].mxu0
    %1032 = vdwg.mxu0
    %v1033 = vmul.f32 %v1025, 0.35355338
    %v1034 = vmul.f32 %v1030, 0.35355338
    %v1035 = vadd.f32 %v1033, %v219
    %v1036 = vadd.f32 %v1034, %v220
    %v1037 = vsel %vm577, %v1035, -inf
    %1038 = vmax.xlane.f32.xlu0 %v1037
    %v1039 = vpop.xlane.xlu0 %1038
    %v1040 = vsel %vm577, %v1036, -inf
    %1041 = vmax.xlane.f32.xlu0 %v1040
    %v1042 = vpop.xlane.xlu0 %1041
    %v1043 = vsub.f32 %v1035, %v1039
    %v1044 = vsub.f32 %v1036, %v1042
    %v1045 = vmul.f32 %v1043, 1.442695
    %v1046 = vpow.pop %v1045
    %v1047 = vmul.f32 %v1044, 1.442695
    %v1048 = vpow.pop %v1047
    %v1049 = vsel %vm577, %v1046, 0.0
    %1050 = vadd.xlane.f32.xlu0 %v1049
    %v1051 = vpop.xlane.xlu0 %1050
    %v1052 = vsel %vm577, %v1048, 0.0
    %1053 = vadd.xlane.f32.xlu0 %v1052
    %v1054 = vpop.xlane.xlu0 %1053
    %v1055 = vrcp.pop %v1051
    %v1056 = vrcp.pop %v1054
    %v1057 = vmul.f32 %v1046, %v1055
    %v1058 = vmul.f32 %v1048, %v1056
    %v1060 = vsel %vm577, %v1057, 0
    %v1063 = vsel %vm577, %v1058, 0
    %1065 = vmatprep.subr.mxu0 0.0
    %1066 = vmatpush1.msra.mxu0 %v938
    %1067 = vmatprep.subr.mxu0 0.0
    %1068 = vmatpush1.msra.mxu0 %v943
    %1069 = vmatprep.subr.mxu0 0.0
    %1070 = vmatpush1.msra.mxu0 0.0
    %1071 = vmatprep.subr.mxu0 0.0
    %1072 = vmatpush1.msra.mxu0 0.0
    %1073 = vmatprep.subr.mxu0 0.0
    %1074 = vmatpush1.msra.mxu0 0.0
    %1075 = vmatprep.subr.mxu0 0.0
    %1076 = vmatpush1.msra.mxu0 0.0
    %1077 = vmatprep.subr.mxu0 0.0
    %1078 = vmatpush1.msra.mxu0 0.0
    %1079 = vmatprep.subr.mxu0 0.0
    %1080 = vmatpush1.msra.mxu0 0.0
    %1081 = vmatprep.subr.mxu0 0.0
    %1082 = vmatpush1.msra.mxu0 0.0
    %1083 = vmatprep.subr.mxu0 0.0
    %1084 = vmatpush1.msra.mxu0 0.0
    %1085 = vmatprep.subr.mxu0 0.0
    %1086 = vmatpush1.msra.mxu0 0.0
    %1087 = vmatprep.subr.mxu0 0.0
    %1088 = vmatpush1.msra.mxu0 0.0
    %1089 = vmatprep.subr.mxu0 0.0
    %1090 = vmatpush1.msra.mxu0 0.0
    %1091 = vmatprep.subr.mxu0 0.0
    %1092 = vmatpush1.msra.mxu0 0.0
    %1093 = vmatprep.subr.mxu0 0.0
    %1094 = vmatpush1.msra.mxu0 0.0
    %1095 = vmatprep.subr.mxu0 0.0
    %1096 = vmatpush1.msra.mxu0 0.0
    %1097 = vmatprep.subr.mxu0 0.0
    %1098 = vmatpush1.msra.mxu0 0.0
    %1099 = vmatprep.subr.mxu0 0.0
    %1100 = vmatpush1.msra.mxu0 0.0
    %1101 = vmatprep.subr.mxu0 0.0
    %1102 = vmatpush1.msra.mxu0 0.0
    %1103 = vmatprep.subr.mxu0 0.0
    %1104 = vmatpush1.msra.mxu0 0.0
    %1105 = vmatprep.subr.mxu0 0.0
    %1106 = vmatpush1.msra.mxu0 0.0
    %1107 = vmatprep.subr.mxu0 0.0
    %1108 = vmatpush1.msra.mxu0 0.0
    %1109 = vmatprep.subr.mxu0 0.0
    %1110 = vmatpush1.msra.mxu0 0.0
    %1111 = vmatprep.subr.mxu0 0.0
    %1112 = vmatpush1.msra.mxu0 0.0
    %1113 = vmatprep.subr.mxu0 0.0
    %1114 = vmatpush1.msra.mxu0 0.0
    %1115 = vmatprep.subr.mxu0 0.0
    %1116 = vmatpush1.msra.mxu0 0.0
    %1117 = vmatprep.subr.mxu0 0.0
    %1118 = vmatpush1.msra.mxu0 0.0
    %1119 = vmatprep.subr.mxu0 0.0
    %1120 = vmatpush1.msra.mxu0 0.0
    %1121 = vmatprep.subr.mxu0 0.0
    %1122 = vmatpush1.msra.mxu0 0.0
    %1123 = vmatprep.subr.mxu0 0.0
    %1124 = vmatpush1.msra.mxu0 0.0
    %1125 = vmatprep.subr.mxu0 0.0
    %1126 = vmatpush1.msra.mxu0 0.0
    %1127 = vmatprep.subr.mxu0 0.0
    %1128 = vmatpush1.msra.mxu0 0.0
    %1129 = vmatprep.mubr.f32.mxu0 0.0
    %1130 = vmatmul.mubr.f32.gmra.mrb[0].mxu0 %v1060
    %v1131 = vpop.f32.mrb[0].mxu0
    %v1132 = vadd.f32 0.0, %v1131
    %v1133 = vpop.f32.mrb[0].mxu0
    %1134 = vmatprep.mubr.f32.mxu0 0.0
    %1135 = vmatmul.mubr.f32.gmra.mrb[0].mxu0 %v1063
    %v1136 = vpop.f32.mrb[0].mxu0
    %v1137 = vadd.f32 0.0, %v1136
    %v1138 = vpop.f32.mrb[0].mxu0
    %1139 = vdwg.mxu0
    %s1140 = scalar_lea.vmem %s11, 8
    %v1141 = vld [vmem:[%s1140] sm:$0xff]
    %v1143 = vsel %vm133, %v1132, 0
    %v1146 = vsel %vm133, %v1137, 0
    %1148 = vmatprep.subr.mxu0 0.0
    %1149 = vmatpush1.msra.mxu0 %v1141
    %1150 = vmatprep.subr.mxu0 0.0
    %1151 = vmatpush1.msra.mxu0 0.0
    %1152 = vmatprep.subr.mxu0 0.0
    %1153 = vmatpush1.msra.mxu0 0.0
    %1154 = vmatprep.subr.mxu0 0.0
    %1155 = vmatpush1.msra.mxu0 0.0
    %1156 = vmatprep.subr.mxu0 0.0
    %1157 = vmatpush1.msra.mxu0 0.0
    %1158 = vmatprep.subr.mxu0 0.0
    %1159 = vmatpush1.msra.mxu0 0.0
    %1160 = vmatprep.subr.mxu0 0.0
    %1161 = vmatpush1.msra.mxu0 0.0
    %1162 = vmatprep.subr.mxu0 0.0
    %1163 = vmatpush1.msra.mxu0 0.0
    %1164 = vmatprep.subr.mxu0 0.0
    %1165 = vmatpush1.msra.mxu0 0.0
    %1166 = vmatprep.subr.mxu0 0.0
    %1167 = vmatpush1.msra.mxu0 0.0
    %1168 = vmatprep.subr.mxu0 0.0
    %1169 = vmatpush1.msra.mxu0 0.0
    %1170 = vmatprep.subr.mxu0 0.0
    %1171 = vmatpush1.msra.mxu0 0.0
    %1172 = vmatprep.subr.mxu0 0.0
    %1173 = vmatpush1.msra.mxu0 0.0
    %1174 = vmatprep.subr.mxu0 0.0
    %1175 = vmatpush1.msra.mxu0 0.0
    %1176 = vmatprep.subr.mxu0 0.0
    %1177 = vmatpush1.msra.mxu0 0.0
    %1178 = vmatprep.subr.mxu0 0.0
    %1179 = vmatpush1.msra.mxu0 0.0
    %1180 = vmatprep.subr.mxu0 0.0
    %1181 = vmatpush1.msra.mxu0 0.0
    %1182 = vmatprep.subr.mxu0 0.0
    %1183 = vmatpush1.msra.mxu0 0.0
    %1184 = vmatprep.subr.mxu0 0.0
    %1185 = vmatpush1.msra.mxu0 0.0
    %1186 = vmatprep.subr.mxu0 0.0
    %1187 = vmatpush1.msra.mxu0 0.0
    %1188 = vmatprep.subr.mxu0 0.0
    %1189 = vmatpush1.msra.mxu0 0.0
    %1190 = vmatprep.subr.mxu0 0.0
    %1191 = vmatpush1.msra.mxu0 0.0
    %1192 = vmatprep.subr.mxu0 0.0
    %1193 = vmatpush1.msra.mxu0 0.0
    %1194 = vmatprep.subr.mxu0 0.0
    %1195 = vmatpush1.msra.mxu0 0.0
    %1196 = vmatprep.subr.mxu0 0.0
    %1197 = vmatpush1.msra.mxu0 0.0
    %1198 = vmatprep.subr.mxu0 0.0
    %1199 = vmatpush1.msra.mxu0 0.0
    %1200 = vmatprep.subr.mxu0 0.0
    %1201 = vmatpush1.msra.mxu0 0.0
    %1202 = vmatprep.subr.mxu0 0.0
    %1203 = vmatpush1.msra.mxu0 0.0
    %1204 = vmatprep.subr.mxu0 0.0
    %1205 = vmatpush1.msra.mxu0 0.0
    %1206 = vmatprep.subr.mxu0 0.0
    %1207 = vmatpush1.msra.mxu0 0.0
    %1208 = vmatprep.subr.mxu0 0.0
    %1209 = vmatpush1.msra.mxu0 0.0
    %1210 = vmatprep.subr.mxu0 0.0
    %1211 = vmatpush1.msra.mxu0 0.0
    %1212 = vmatprep.mubr.f32.mxu0 0.0
    %1213 = vmatmul.mubr.f32.gmra.mrb[0].mxu0 %v1143
    %v1214 = vpop.f32.mrb[0].mxu0
    %v1215 = vadd.f32 0.0, %v1214
    %v1216 = vpop.f32.mrb[0].mxu0
    %1217 = vmatprep.mubr.f32.mxu0 0.0
    %1218 = vmatmul.mubr.f32.gmra.mrb[0].mxu0 %v1146
    %v1219 = vpop.f32.mrb[0].mxu0
    %v1220 = vadd.f32 0.0, %v1219
    %v1221 = vpop.f32.mrb[0].mxu0
    %1222 = vdwg.mxu0
    %v1224 = vsel %vm133, %v673, 0
    %v1227 = vsel %vm133, %v678, 0
    %1229 = vmatprep.subr.mxu0 0.0
    %1230 = vmatpush1.msra.mxu0 %v681
    %1231 = vmatprep.subr.mxu0 0.0
    %1232 = vmatpush1.msra.mxu0 0.0
    %1233 = vmatprep.subr.mxu0 0.0
    %1234 = vmatpush1.msra.mxu0 0.0
    %1235 = vmatprep.subr.mxu0 0.0
    %1236 = vmatpush1.msra.mxu0 0.0
    %1237 = vmatprep.subr.mxu0 0.0
    %1238 = vmatpush1.msra.mxu0 0.0
    %1239 = vmatprep.subr.mxu0 0.0
    %1240 = vmatpush1.msra.mxu0 0.0
    %1241 = vmatprep.subr.mxu0 0.0
    %1242 = vmatpush1.msra.mxu0 0.0
    %1243 = vmatprep.subr.mxu0 0.0
    %1244 = vmatpush1.msra.mxu0 0.0
    %1245 = vmatprep.subr.mxu0 0.0
    %1246 = vmatpush1.msra.mxu0 0.0
    %1247 = vmatprep.subr.mxu0 0.0
    %1248 = vmatpush1.msra.mxu0 0.0
    %1249 = vmatprep.subr.mxu0 0.0
    %1250 = vmatpush1.msra.mxu0 0.0
    %1251 = vmatprep.subr.mxu0 0.0
    %1252 = vmatpush1.msra.mxu0 0.0
    %1253 = vmatprep.subr.mxu0 0.0
    %1254 = vmatpush1.msra.mxu0 0.0
    %1255 = vmatprep.subr.mxu0 0.0
    %1256 = vmatpush1.msra.mxu0 0.0
    %1257 = vmatprep.subr.mxu0 0.0
    %1258 = vmatpush1.msra.mxu0 0.0
    %1259 = vmatprep.subr.mxu0 0.0
    %1260 = vmatpush1.msra.mxu0 0.0
    %1261 = vmatprep.subr.mxu0 0.0
    %1262 = vmatpush1.msra.mxu0 0.0
    %1263 = vmatprep.subr.mxu0 0.0
    %1264 = vmatpush1.msra.mxu0 0.0
    %1265 = vmatprep.subr.mxu0 0.0
    %1266 = vmatpush1.msra.mxu0 0.0
    %1267 = vmatprep.subr.mxu0 0.0
    %1268 = vmatpush1.msra.mxu0 0.0
    %1269 = vmatprep.subr.mxu0 0.0
    %1270 = vmatpush1.msra.mxu0 0.0
    %1271 = vmatprep.subr.mxu0 0.0
    %1272 = vmatpush1.msra.mxu0 0.0
    %1273 = vmatprep.subr.mxu0 0.0
    %1274 = vmatpush1.msra.mxu0 0.0
    %1275 = vmatprep.subr.mxu0 0.0
    %1276 = vmatpush1.msra.mxu0 0.0
    %1277 = vmatprep.subr.mxu0 0.0
    %1278 = vmatpush1.msra.mxu0 0.0
    %1279 = vmatprep.subr.mxu0 0.0
    %1280 = vmatpush1.msra.mxu0 0.0
    %1281 = vmatprep.subr.mxu0 0.0
    %1282 = vmatpush1.msra.mxu0 0.0
    %1283 = vmatprep.subr.mxu0 0.0
    %1284 = vmatpush1.msra.mxu0 0.0
    %1285 = vmatprep.subr.mxu0 0.0
    %1286 = vmatpush1.msra.mxu0 0.0
    %1287 = vmatprep.subr.mxu0 0.0
    %1288 = vmatpush1.msra.mxu0 0.0
    %1289 = vmatprep.subr.mxu0 0.0
    %1290 = vmatpush1.msra.mxu0 0.0
    %1291 = vmatprep.subr.mxu0 0.0
    %1292 = vmatpush1.msra.mxu0 0.0
    %1293 = vmatprep.mubr.f32.mxu0 0.0
    %1294 = vmatmul.mubr.f32.gmra.mrb[0].mxu0 %v1224
    %v1295 = vpop.f32.mrb[0].mxu0
    %v1296 = vadd.f32 %v1215, %v1295
    %v1297 = vpop.f32.mrb[0].mxu0
    %1298 = vmatprep.mubr.f32.mxu0 0.0
    %1299 = vmatmul.mubr.f32.gmra.mrb[0].mxu0 %v1227
    %v1300 = vpop.f32.mrb[0].mxu0
    %v1301 = vadd.f32 %v1220, %v1300
    %v1302 = vpop.f32.mrb[0].mxu0
    %1303 = vdwg.mxu0
    %s1304 = scalar_lea.vmem %s5, 64
    %v1305 = vld [vmem:[%s1304] sm:$0xff]
    %v1306 = vld [vmem:[%s1304 + $0x8] sm:$0xff]
    %v1307 = vld [vmem:[%s1304 + $0x10] sm:$0xff]
    %v1308 = vld [vmem:[%s1304 + $0x18] sm:$0xff]
    %s1309 = scalar_lea.vmem %s6, 2
    %v1310 = vld [vmem:[%s1309] sm:$0x1]
    %v1312 = vlaneseq
    %v1313 = vshrl.u32 %v1312, 7
    %v1314 = vsub.s32 0, %v1313
    %v1315 = vrot.slane %v1310, %v1314
    %1317 = vmatprep.subr.mxu0 0.0
    %1318 = vmatpush1.msra.mxu0 %v1305
    %1319 = vmatprep.subr.mxu0 0.0
    %1320 = vmatpush1.msra.mxu0 %v1306
    %1321 = vmatprep.subr.mxu0 0.0
    %1322 = vmatpush1.msra.mxu0 %v1307
    %1323 = vmatprep.subr.mxu0 0.0
    %1324 = vmatpush1.msra.mxu0 %v1308
    %1325 = vmatprep.subr.mxu0 0.0
    %1326 = vmatpush1.msra.mxu0 0.0
    %1327 = vmatprep.subr.mxu0 0.0
    %1328 = vmatpush1.msra.mxu0 0.0
    %1329 = vmatprep.subr.mxu0 0.0
    %1330 = vmatpush1.msra.mxu0 0.0
    %1331 = vmatprep.subr.mxu0 0.0
    %1332 = vmatpush1.msra.mxu0 0.0
    %1333 = vmatprep.subr.mxu0 0.0
    %1334 = vmatpush1.msra.mxu0 0.0
    %1335 = vmatprep.subr.mxu0 0.0
    %1336 = vmatpush1.msra.mxu0 0.0
    %1337 = vmatprep.subr.mxu0 0.0
    %1338 = vmatpush1.msra.mxu0 0.0
    %1339 = vmatprep.subr.mxu0 0.0
    %1340 = vmatpush1.msra.mxu0 0.0
    %1341 = vmatprep.subr.mxu0 0.0
    %1342 = vmatpush1.msra.mxu0 0.0
    %1343 = vmatprep.subr.mxu0 0.0
    %1344 = vmatpush1.msra.mxu0 0.0
    %1345 = vmatprep.subr.mxu0 0.0
    %1346 = vmatpush1.msra.mxu0 0.0
    %1347 = vmatprep.subr.mxu0 0.0
    %1348 = vmatpush1.msra.mxu0 0.0
    %1349 = vmatprep.subr.mxu0 0.0
    %1350 = vmatpush1.msra.mxu0 0.0
    %1351 = vmatprep.subr.mxu0 0.0
    %1352 = vmatpush1.msra.mxu0 0.0
    %1353 = vmatprep.subr.mxu0 0.0
    %1354 = vmatpush1.msra.mxu0 0.0
    %1355 = vmatprep.subr.mxu0 0.0
    %1356 = vmatpush1.msra.mxu0 0.0
    %1357 = vmatprep.subr.mxu0 0.0
    %1358 = vmatpush1.msra.mxu0 0.0
    %1359 = vmatprep.subr.mxu0 0.0
    %1360 = vmatpush1.msra.mxu0 0.0
    %1361 = vmatprep.subr.mxu0 0.0
    %1362 = vmatpush1.msra.mxu0 0.0
    %1363 = vmatprep.subr.mxu0 0.0
    %1364 = vmatpush1.msra.mxu0 0.0
    %1365 = vmatprep.subr.mxu0 0.0
    %1366 = vmatpush1.msra.mxu0 0.0
    %1367 = vmatprep.subr.mxu0 0.0
    %1368 = vmatpush1.msra.mxu0 0.0
    %1369 = vmatprep.subr.mxu0 0.0
    %1370 = vmatpush1.msra.mxu0 0.0
    %1371 = vmatprep.subr.mxu0 0.0
    %1372 = vmatpush1.msra.mxu0 0.0
    %1373 = vmatprep.subr.mxu0 0.0
    %1374 = vmatpush1.msra.mxu0 0.0
    %1375 = vmatprep.subr.mxu0 0.0
    %1376 = vmatpush1.msra.mxu0 0.0
    %1377 = vmatprep.subr.mxu0 0.0
    %1378 = vmatpush1.msra.mxu0 0.0
    %1379 = vmatprep.subr.mxu0 0.0
    %1380 = vmatpush1.msra.mxu0 0.0
    %1381 = vmatprep.mubr.f32.mxu0 0.0
    %1382 = vmatmul.mubr.f32.gmra.mrb[0].mxu0 %v234
    %v1383 = vpop.f32.mrb[0].mxu0
    %v1384 = vadd.f32 %v1315, %v1383
    %v1385 = vpop.f32.mrb[0].mxu0
    %1386 = vmatprep.mubr.f32.mxu0 0.0
    %1387 = vmatmul.mubr.f32.gmra.mrb[0].mxu0 %v237
    %v1388 = vpop.f32.mrb[0].mxu0
    %v1389 = vadd.f32 %v1315, %v1388
    %v1390 = vpop.f32.mrb[0].mxu0
    %1391 = vdwg.mxu0
    %s1392 = scalar_lea.vmem %s7, 64
    %v1393 = vld [vmem:[%s1392] sm:$0xff]
    %v1394 = vld [vmem:[%s1392 + $0x8] sm:$0xff]
    %v1395 = vld [vmem:[%s1392 + $0x10] sm:$0xff]
    %v1396 = vld [vmem:[%s1392 + $0x18] sm:$0xff]
    %s1397 = scalar_lea.vmem %s8, 2
    %v1398 = vld [vmem:[%s1397] sm:$0x1]
    %v1400 = vlaneseq
    %v1401 = vshrl.u32 %v1400, 7
    %v1402 = vsub.s32 0, %v1401
    %v1403 = vrot.slane %v1398, %v1402
    %1405 = vmatprep.subr.mxu0 0.0
    %1406 = vmatpush1.msra.mxu0 %v1393
    %1407 = vmatprep.subr.mxu0 0.0
    %1408 = vmatpush1.msra.mxu0 %v1394
    %1409 = vmatprep.subr.mxu0 0.0
    %1410 = vmatpush1.msra.mxu0 %v1395
    %1411 = vmatprep.subr.mxu0 0.0
    %1412 = vmatpush1.msra.mxu0 %v1396
    %1413 = vmatprep.subr.mxu0 0.0
    %1414 = vmatpush1.msra.mxu0 0.0
    %1415 = vmatprep.subr.mxu0 0.0
    %1416 = vmatpush1.msra.mxu0 0.0
    %1417 = vmatprep.subr.mxu0 0.0
    %1418 = vmatpush1.msra.mxu0 0.0
    %1419 = vmatprep.subr.mxu0 0.0
    %1420 = vmatpush1.msra.mxu0 0.0
    %1421 = vmatprep.subr.mxu0 0.0
    %1422 = vmatpush1.msra.mxu0 0.0
    %1423 = vmatprep.subr.mxu0 0.0
    %1424 = vmatpush1.msra.mxu0 0.0
    %1425 = vmatprep.subr.mxu0 0.0
    %1426 = vmatpush1.msra.mxu0 0.0
    %1427 = vmatprep.subr.mxu0 0.0
    %1428 = vmatpush1.msra.mxu0 0.0
    %1429 = vmatprep.subr.mxu0 0.0
    %1430 = vmatpush1.msra.mxu0 0.0
    %1431 = vmatprep.subr.mxu0 0.0
    %1432 = vmatpush1.msra.mxu0 0.0
    %1433 = vmatprep.subr.mxu0 0.0
    %1434 = vmatpush1.msra.mxu0 0.0
    %1435 = vmatprep.subr.mxu0 0.0
    %1436 = vmatpush1.msra.mxu0 0.0
    %1437 = vmatprep.subr.mxu0 0.0
    %1438 = vmatpush1.msra.mxu0 0.0
    %1439 = vmatprep.subr.mxu0 0.0
    %1440 = vmatpush1.msra.mxu0 0.0
    %1441 = vmatprep.subr.mxu0 0.0
    %1442 = vmatpush1.msra.mxu0 0.0
    %1443 = vmatprep.subr.mxu0 0.0
    %1444 = vmatpush1.msra.mxu0 0.0
    %1445 = vmatprep.subr.mxu0 0.0
    %1446 = vmatpush1.msra.mxu0 0.0
    %1447 = vmatprep.subr.mxu0 0.0
    %1448 = vmatpush1.msra.mxu0 0.0
    %1449 = vmatprep.subr.mxu0 0.0
    %1450 = vmatpush1.msra.mxu0 0.0
    %1451 = vmatprep.subr.mxu0 0.0
    %1452 = vmatpush1.msra.mxu0 0.0
    %1453 = vmatprep.subr.mxu0 0.0
    %1454 = vmatpush1.msra.mxu0 0.0
    %1455 = vmatprep.subr.mxu0 0.0
    %1456 = vmatpush1.msra.mxu0 0.0
    %1457 = vmatprep.subr.mxu0 0.0
    %1458 = vmatpush1.msra.mxu0 0.0
    %1459 = vmatprep.subr.mxu0 0.0
    %1460 = vmatpush1.msra.mxu0 0.0
    %1461 = vmatprep.subr.mxu0 0.0
    %1462 = vmatpush1.msra.mxu0 0.0
    %1463 = vmatprep.subr.mxu0 0.0
    %1464 = vmatpush1.msra.mxu0 0.0
    %1465 = vmatprep.subr.mxu0 0.0
    %1466 = vmatpush1.msra.mxu0 0.0
    %1467 = vmatprep.subr.mxu0 0.0
    %1468 = vmatpush1.msra.mxu0 0.0
    %1469 = vmatprep.mubr.f32.mxu0 0.0
    %1470 = vmatmul.mubr.f32.gmra.mrb[0].mxu0 %v234
    %v1471 = vpop.f32.mrb[0].mxu0
    %v1472 = vadd.f32 %v1403, %v1471
    %v1473 = vpop.f32.mrb[0].mxu0
    %1474 = vmatprep.mubr.f32.mxu0 0.0
    %1475 = vmatmul.mubr.f32.gmra.mrb[0].mxu0 %v237
    %v1476 = vpop.f32.mrb[0].mxu0
    %v1477 = vadd.f32 %v1403, %v1476
    %v1478 = vpop.f32.mrb[0].mxu0
    %1479 = vdwg.mxu0
    %s1480 = scalar_lea.vmem %s9, 64
    %v1481 = vld [vmem:[%s1480] sm:$0xff]
    %v1482 = vld [vmem:[%s1480 + $0x8] sm:$0xff]
    %v1483 = vld [vmem:[%s1480 + $0x10] sm:$0xff]
    %v1484 = vld [vmem:[%s1480 + $0x18] sm:$0xff]
    %s1485 = scalar_lea.vmem %s10, 2
    %v1486 = vld [vmem:[%s1485] sm:$0x1]
    %v1488 = vlaneseq
    %v1489 = vshrl.u32 %v1488, 7
    %v1490 = vsub.s32 0, %v1489
    %v1491 = vrot.slane %v1486, %v1490
    %1493 = vmatprep.subr.mxu0 0.0
    %1494 = vmatpush1.msra.mxu0 %v1481
    %1495 = vmatprep.subr.mxu0 0.0
    %1496 = vmatpush1.msra.mxu0 %v1482
    %1497 = vmatprep.subr.mxu0 0.0
    %1498 = vmatpush1.msra.mxu0 %v1483
    %1499 = vmatprep.subr.mxu0 0.0
    %1500 = vmatpush1.msra.mxu0 %v1484
    %1501 = vmatprep.subr.mxu0 0.0
    %1502 = vmatpush1.msra.mxu0 0.0
    %1503 = vmatprep.subr.mxu0 0.0
    %1504 = vmatpush1.msra.mxu0 0.0
    %1505 = vmatprep.subr.mxu0 0.0
    %1506 = vmatpush1.msra.mxu0 0.0
    %1507 = vmatprep.subr.mxu0 0.0
    %1508 = vmatpush1.msra.mxu0 0.0
    %1509 = vmatprep.subr.mxu0 0.0
    %1510 = vmatpush1.msra.mxu0 0.0
    %1511 = vmatprep.subr.mxu0 0.0
    %1512 = vmatpush1.msra.mxu0 0.0
    %1513 = vmatprep.subr.mxu0 0.0
    %1514 = vmatpush1.msra.mxu0 0.0
    %1515 = vmatprep.subr.mxu0 0.0
    %1516 = vmatpush1.msra.mxu0 0.0
    %1517 = vmatprep.subr.mxu0 0.0
    %1518 = vmatpush1.msra.mxu0 0.0
    %1519 = vmatprep.subr.mxu0 0.0
    %1520 = vmatpush1.msra.mxu0 0.0
    %1521 = vmatprep.subr.mxu0 0.0
    %1522 = vmatpush1.msra.mxu0 0.0
    %1523 = vmatprep.subr.mxu0 0.0
    %1524 = vmatpush1.msra.mxu0 0.0
    %1525 = vmatprep.subr.mxu0 0.0
    %1526 = vmatpush1.msra.mxu0 0.0
    %1527 = vmatprep.subr.mxu0 0.0
    %1528 = vmatpush1.msra.mxu0 0.0
    %1529 = vmatprep.subr.mxu0 0.0
    %1530 = vmatpush1.msra.mxu0 0.0
    %1531 = vmatprep.subr.mxu0 0.0
    %1532 = vmatpush1.msra.mxu0 0.0
    %1533 = vmatprep.subr.mxu0 0.0
    %1534 = vmatpush1.msra.mxu0 0.0
    %1535 = vmatprep.subr.mxu0 0.0
    %1536 = vmatpush1.msra.mxu0 0.0
    %1537 = vmatprep.subr.mxu0 0.0
    %1538 = vmatpush1.msra.mxu0 0.0
    %1539 = vmatprep.subr.mxu0 0.0
    %1540 = vmatpush1.msra.mxu0 0.0
    %1541 = vmatprep.subr.mxu0 0.0
    %1542 = vmatpush1.msra.mxu0 0.0
    %1543 = vmatprep.subr.mxu0 0.0
    %1544 = vmatpush1.msra.mxu0 0.0
    %1545 = vmatprep.subr.mxu0 0.0
    %1546 = vmatpush1.msra.mxu0 0.0
    %1547 = vmatprep.subr.mxu0 0.0
    %1548 = vmatpush1.msra.mxu0 0.0
    %1549 = vmatprep.subr.mxu0 0.0
    %1550 = vmatpush1.msra.mxu0 0.0
    %1551 = vmatprep.subr.mxu0 0.0
    %1552 = vmatpush1.msra.mxu0 0.0
    %1553 = vmatprep.subr.mxu0 0.0
    %1554 = vmatpush1.msra.mxu0 0.0
    %1555 = vmatprep.subr.mxu0 0.0
    %1556 = vmatpush1.msra.mxu0 0.0
    %1557 = vmatprep.mubr.f32.mxu0 0.0
    %1558 = vmatmul.mubr.f32.gmra.mrb[0].mxu0 %v234
    %v1559 = vpop.f32.mrb[0].mxu0
    %v1560 = vadd.f32 %v1491, %v1559
    %v1561 = vpop.f32.mrb[0].mxu0
    %1562 = vmatprep.mubr.f32.mxu0 0.0
    %1563 = vmatmul.mubr.f32.gmra.mrb[0].mxu0 %v237
    %v1564 = vpop.f32.mrb[0].mxu0
    %v1565 = vadd.f32 %v1491, %v1564
    %v1566 = vpop.f32.mrb[0].mxu0
    %1567 = vdwg.mxu0
    %v1569 = vsel %vm133, %v1384, 0
    %v1572 = vsel %vm133, %v1389, 0
    %v1575 = vsel %vm133, %v1472, 0
    %v1578 = vsel %vm133, %v1477, 0
    %1580 = vmatprep.subr.mxu0 0.0
    %1581 = vmatpush1.xpose.msra.mxu0 %v1575
    %1582 = vmatprep.subr.mxu0 0.0
    %1583 = vmatpush1.xpose.msra.mxu0 %v1578
    %1584 = vmatprep.subr.mxu0 0.0
    %1585 = vmatpush1.xpose.msra.mxu0 0.0
    %1586 = vmatprep.subr.mxu0 0.0
    %1587 = vmatpush1.xpose.msra.mxu0 0.0
    %1588 = vmatprep.subr.mxu0 0.0
    %1589 = vmatpush1.xpose.msra.mxu0 0.0
    %1590 = vmatprep.subr.mxu0 0.0
    %1591 = vmatpush1.xpose.msra.mxu0 0.0
    %1592 = vmatprep.subr.mxu0 0.0
    %1593 = vmatpush1.xpose.msra.mxu0 0.0
    %1594 = vmatprep.subr.mxu0 0.0
    %1595 = vmatpush1.xpose.msra.mxu0 0.0
    %1596 = vmatprep.subr.mxu0 0.0
    %1597 = vmatpush1.xpose.msra.mxu0 0.0
    %1598 = vmatprep.subr.mxu0 0.0
    %1599 = vmatpush1.xpose.msra.mxu0 0.0
    %1600 = vmatprep.subr.mxu0 0.0
    %1601 = vmatpush1.xpose.msra.mxu0 0.0
    %1602 = vmatprep.subr.mxu0 0.0
    %1603 = vmatpush1.xpose.msra.mxu0 0.0
    %1604 = vmatprep.subr.mxu0 0.0
    %1605 = vmatpush1.xpose.msra.mxu0 0.0
    %1606 = vmatprep.subr.mxu0 0.0
    %1607 = vmatpush1.xpose.msra.mxu0 0.0
    %1608 = vmatprep.subr.mxu0 0.0
    %1609 = vmatpush1.xpose.msra.mxu0 0.0
    %1610 = vmatprep.subr.mxu0 0.0
    %1611 = vmatpush1.xpose.msra.mxu0 0.0
    %1612 = vmatprep.subr.mxu0 0.0
    %1613 = vmatpush1.xpose.msra.mxu0 0.0
    %1614 = vmatprep.subr.mxu0 0.0
    %1615 = vmatpush1.xpose.msra.mxu0 0.0
    %1616 = vmatprep.subr.mxu0 0.0
    %1617 = vmatpush1.xpose.msra.mxu0 0.0
    %1618 = vmatprep.subr.mxu0 0.0
    %1619 = vmatpush1.xpose.msra.mxu0 0.0
    %1620 = vmatprep.subr.mxu0 0.0
    %1621 = vmatpush1.xpose.msra.mxu0 0.0
    %1622 = vmatprep.subr.mxu0 0.0
    %1623 = vmatpush1.xpose.msra.mxu0 0.0
    %1624 = vmatprep.subr.mxu0 0.0
    %1625 = vmatpush1.xpose.msra.mxu0 0.0
    %1626 = vmatprep.subr.mxu0 0.0
    %1627 = vmatpush1.xpose.msra.mxu0 0.0
    %1628 = vmatprep.subr.mxu0 0.0
    %1629 = vmatpush1.xpose.msra.mxu0 0.0
    %1630 = vmatprep.subr.mxu0 0.0
    %1631 = vmatpush1.xpose.msra.mxu0 0.0
    %1632 = vmatprep.subr.mxu0 0.0
    %1633 = vmatpush1.xpose.msra.mxu0 0.0
    %1634 = vmatprep.subr.mxu0 0.0
    %1635 = vmatpush1.xpose.msra.mxu0 0.0
    %1636 = vmatprep.subr.mxu0 0.0
    %1637 = vmatpush1.xpose.msra.mxu0 0.0
    %1638 = vmatprep.subr.mxu0 0.0
    %1639 = vmatpush1.xpose.msra.mxu0 0.0
    %1640 = vmatprep.subr.mxu0 0.0
    %1641 = vmatpush1.xpose.msra.mxu0 0.0
    %1642 = vmatprep.subr.mxu0 0.0
    %1643 = vmatpush1.xpose.msra.mxu0 0.0
    %1644 = vmatprep.mubr.f32.mxu0 0.0
    %1645 = vmatmul.mubr.f32.gmra.mrb[0].mxu0 %v1569
    %v1646 = vpop.f32.mrb[0].mxu0
    %v1647 = vadd.f32 0.0, %v1646
    %v1648 = vpop.f32.mrb[0].mxu0
    %1649 = vmatprep.mubr.f32.mxu0 0.0
    %1650 = vmatmul.mubr.f32.gmra.mrb[0].mxu0 %v1572
    %v1651 = vpop.f32.mrb[0].mxu0
    %v1652 = vadd.f32 0.0, %v1651
    %v1653 = vpop.f32.mrb[0].mxu0
    %1654 = vdwg.mxu0
    %v1655 = vmul.f32 %v1647, 0.35355338
    %v1656 = vmul.f32 %v1652, 0.35355338
    %v1657 = vadd.f32 %v1655, %v219
    %v1658 = vadd.f32 %v1656, %v220
    %v1659 = vsel %vm577, %v1657, -inf
    %1660 = vmax.xlane.f32.xlu0 %v1659
    %v1661 = vpop.xlane.xlu0 %1660
    %v1662 = vsel %vm577, %v1658, -inf
    %1663 = vmax.xlane.f32.xlu0 %v1662
    %v1664 = vpop.xlane.xlu0 %1663
    %v1665 = vsub.f32 %v1657, %v1661
    %v1666 = vsub.f32 %v1658, %v1664
    %v1667 = vmul.f32 %v1665, 1.442695
    %v1668 = vpow.pop %v1667
    %v1669 = vmul.f32 %v1666, 1.442695
    %v1670 = vpow.pop %v1669
    %v1671 = vsel %vm577, %v1668, 0.0
    %1672 = vadd.xlane.f32.xlu0 %v1671
    %v1673 = vpop.xlane.xlu0 %1672
    %v1674 = vsel %vm577, %v1670, 0.0
    %1675 = vadd.xlane.f32.xlu0 %v1674
    %v1676 = vpop.xlane.xlu0 %1675
    %v1677 = vrcp.pop %v1673
    %v1678 = vrcp.pop %v1676
    %v1679 = vmul.f32 %v1668, %v1677
    %v1680 = vmul.f32 %v1670, %v1678
    %v1682 = vsel %vm577, %v1679, 0
    %v1685 = vsel %vm577, %v1680, 0
    %1687 = vmatprep.subr.mxu0 0.0
    %1688 = vmatpush1.msra.mxu0 %v1560
    %1689 = vmatprep.subr.mxu0 0.0
    %1690 = vmatpush1.msra.mxu0 %v1565
    %1691 = vmatprep.subr.mxu0 0.0
    %1692 = vmatpush1.msra.mxu0 0.0
    %1693 = vmatprep.subr.mxu0 0.0
    %1694 = vmatpush1.msra.mxu0 0.0
    %1695 = vmatprep.subr.mxu0 0.0
    %1696 = vmatpush1.msra.mxu0 0.0
    %1697 = vmatprep.subr.mxu0 0.0
    %1698 = vmatpush1.msra.mxu0 0.0
    %1699 = vmatprep.subr.mxu0 0.0
    %1700 = vmatpush1.msra.mxu0 0.0
    %1701 = vmatprep.subr.mxu0 0.0
    %1702 = vmatpush1.msra.mxu0 0.0
    %1703 = vmatprep.subr.mxu0 0.0
    %1704 = vmatpush1.msra.mxu0 0.0
    %1705 = vmatprep.subr.mxu0 0.0
    %1706 = vmatpush1.msra.mxu0 0.0
    %1707 = vmatprep.subr.mxu0 0.0
    %1708 = vmatpush1.msra.mxu0 0.0
    %1709 = vmatprep.subr.mxu0 0.0
    %1710 = vmatpush1.msra.mxu0 0.0
    %1711 = vmatprep.subr.mxu0 0.0
    %1712 = vmatpush1.msra.mxu0 0.0
    %1713 = vmatprep.subr.mxu0 0.0
    %1714 = vmatpush1.msra.mxu0 0.0
    %1715 = vmatprep.subr.mxu0 0.0
    %1716 = vmatpush1.msra.mxu0 0.0
    %1717 = vmatprep.subr.mxu0 0.0
    %1718 = vmatpush1.msra.mxu0 0.0
    %1719 = vmatprep.subr.mxu0 0.0
    %1720 = vmatpush1.msra.mxu0 0.0
    %1721 = vmatprep.subr.mxu0 0.0
    %1722 = vmatpush1.msra.mxu0 0.0
    %1723 = vmatprep.subr.mxu0 0.0
    %1724 = vmatpush1.msra.mxu0 0.0
    %1725 = vmatprep.subr.mxu0 0.0
    %1726 = vmatpush1.msra.mxu0 0.0
    %1727 = vmatprep.subr.mxu0 0.0
    %1728 = vmatpush1.msra.mxu0 0.0
    %1729 = vmatprep.subr.mxu0 0.0
    %1730 = vmatpush1.msra.mxu0 0.0
    %1731 = vmatprep.subr.mxu0 0.0
    %1732 = vmatpush1.msra.mxu0 0.0
    %1733 = vmatprep.subr.mxu0 0.0
    %1734 = vmatpush1.msra.mxu0 0.0
    %1735 = vmatprep.subr.mxu0 0.0
    %1736 = vmatpush1.msra.mxu0 0.0
    %1737 = vmatprep.subr.mxu0 0.0
    %1738 = vmatpush1.msra.mxu0 0.0
    %1739 = vmatprep.subr.mxu0 0.0
    %1740 = vmatpush1.msra.mxu0 0.0
    %1741 = vmatprep.subr.mxu0 0.0
    %1742 = vmatpush1.msra.mxu0 0.0
    %1743 = vmatprep.subr.mxu0 0.0
    %1744 = vmatpush1.msra.mxu0 0.0
    %1745 = vmatprep.subr.mxu0 0.0
    %1746 = vmatpush1.msra.mxu0 0.0
    %1747 = vmatprep.subr.mxu0 0.0
    %1748 = vmatpush1.msra.mxu0 0.0
    %1749 = vmatprep.subr.mxu0 0.0
    %1750 = vmatpush1.msra.mxu0 0.0
    %1751 = vmatprep.mubr.f32.mxu0 0.0
    %1752 = vmatmul.mubr.f32.gmra.mrb[0].mxu0 %v1682
    %v1753 = vpop.f32.mrb[0].mxu0
    %v1754 = vadd.f32 0.0, %v1753
    %v1755 = vpop.f32.mrb[0].mxu0
    %1756 = vmatprep.mubr.f32.mxu0 0.0
    %1757 = vmatmul.mubr.f32.gmra.mrb[0].mxu0 %v1685
    %v1758 = vpop.f32.mrb[0].mxu0
    %v1759 = vadd.f32 0.0, %v1758
    %v1760 = vpop.f32.mrb[0].mxu0
    %1761 = vdwg.mxu0
    %s1762 = scalar_lea.vmem %s11, 16
    %v1763 = vld [vmem:[%s1762] sm:$0xff]
    %v1765 = vsel %vm133, %v1754, 0
    %v1768 = vsel %vm133, %v1759, 0
    %1770 = vmatprep.subr.mxu0 0.0
    %1771 = vmatpush1.msra.mxu0 %v1763
    %1772 = vmatprep.subr.mxu0 0.0
    %1773 = vmatpush1.msra.mxu0 0.0
    %1774 = vmatprep.subr.mxu0 0.0
    %1775 = vmatpush1.msra.mxu0 0.0
    %1776 = vmatprep.subr.mxu0 0.0
    %1777 = vmatpush1.msra.mxu0 0.0
    %1778 = vmatprep.subr.mxu0 0.0
    %1779 = vmatpush1.msra.mxu0 0.0
    %1780 = vmatprep.subr.mxu0 0.0
    %1781 = vmatpush1.msra.mxu0 0.0
    %1782 = vmatprep.subr.mxu0 0.0
    %1783 = vmatpush1.msra.mxu0 0.0
    %1784 = vmatprep.subr.mxu0 0.0
    %1785 = vmatpush1.msra.mxu0 0.0
    %1786 = vmatprep.subr.mxu0 0.0
    %1787 = vmatpush1.msra.mxu0 0.0
    %1788 = vmatprep.subr.mxu0 0.0
    %1789 = vmatpush1.msra.mxu0 0.0
    %1790 = vmatprep.subr.mxu0 0.0
    %1791 = vmatpush1.msra.mxu0 0.0
    %1792 = vmatprep.subr.mxu0 0.0
    %1793 = vmatpush1.msra.mxu0 0.0
    %1794 = vmatprep.subr.mxu0 0.0
    %1795 = vmatpush1.msra.mxu0 0.0
    %1796 = vmatprep.subr.mxu0 0.0
    %1797 = vmatpush1.msra.mxu0 0.0
    %1798 = vmatprep.subr.mxu0 0.0
    %1799 = vmatpush1.msra.mxu0 0.0
    %1800 = vmatprep.subr.mxu0 0.0
    %1801 = vmatpush1.msra.mxu0 0.0
    %1802 = vmatprep.subr.mxu0 0.0
    %1803 = vmatpush1.msra.mxu0 0.0
    %1804 = vmatprep.subr.mxu0 0.0
    %1805 = vmatpush1.msra.mxu0 0.0
    %1806 = vmatprep.subr.mxu0 0.0
    %1807 = vmatpush1.msra.mxu0 0.0
    %1808 = vmatprep.subr.mxu0 0.0
    %1809 = vmatpush1.msra.mxu0 0.0
    %1810 = vmatprep.subr.mxu0 0.0
    %1811 = vmatpush1.msra.mxu0 0.0
    %1812 = vmatprep.subr.mxu0 0.0
    %1813 = vmatpush1.msra.mxu0 0.0
    %1814 = vmatprep.subr.mxu0 0.0
    %1815 = vmatpush1.msra.mxu0 0.0
    %1816 = vmatprep.subr.mxu0 0.0
    %1817 = vmatpush1.msra.mxu0 0.0
    %1818 = vmatprep.subr.mxu0 0.0
    %1819 = vmatpush1.msra.mxu0 0.0
    %1820 = vmatprep.subr.mxu0 0.0
    %1821 = vmatpush1.msra.mxu0 0.0
    %1822 = vmatprep.subr.mxu0 0.0
    %1823 = vmatpush1.msra.mxu0 0.0
    %1824 = vmatprep.subr.mxu0 0.0
    %1825 = vmatpush1.msra.mxu0 0.0
    %1826 = vmatprep.subr.mxu0 0.0
    %1827 = vmatpush1.msra.mxu0 0.0
    %1828 = vmatprep.subr.mxu0 0.0
    %1829 = vmatpush1.msra.mxu0 0.0
    %1830 = vmatprep.subr.mxu0 0.0
    %1831 = vmatpush1.msra.mxu0 0.0
    %1832 = vmatprep.subr.mxu0 0.0
    %1833 = vmatpush1.msra.mxu0 0.0
    %1834 = vmatprep.mubr.f32.mxu0 0.0
    %1835 = vmatmul.mubr.f32.gmra.mrb[0].mxu0 %v1765
    %v1836 = vpop.f32.mrb[0].mxu0
    %v1837 = vadd.f32 0.0, %v1836
    %v1838 = vpop.f32.mrb[0].mxu0
    %1839 = vmatprep.mubr.f32.mxu0 0.0
    %1840 = vmatmul.mubr.f32.gmra.mrb[0].mxu0 %v1768
    %v1841 = vpop.f32.mrb[0].mxu0
    %v1842 = vadd.f32 0.0, %v1841
    %v1843 = vpop.f32.mrb[0].mxu0
    %1844 = vdwg.mxu0
    %v1845 = vadd.f32 %v1296, %v1837
    %v1846 = vadd.f32 %v1301, %v1842
    %s1847 = scalar_lea.vmem %s5, 96
    %v1848 = vld [vmem:[%s1847] sm:$0xff]
    %v1849 = vld [vmem:[%s1847 + $0x8] sm:$0xff]
    %v1850 = vld [vmem:[%s1847 + $0x10] sm:$0xff]
    %v1851 = vld [vmem:[%s1847 + $0x18] sm:$0xff]
    %s1852 = scalar_lea.vmem %s6, 3
    %v1853 = vld [vmem:[%s1852] sm:$0x1]
    %v1855 = vlaneseq
    %v1856 = vshrl.u32 %v1855, 7
    %v1857 = vsub.s32 0, %v1856
    %v1858 = vrot.slane %v1853, %v1857
    %1860 = vmatprep.subr.mxu0 0.0
    %1861 = vmatpush1.msra.mxu0 %v1848
    %1862 = vmatprep.subr.mxu0 0.0
    %1863 = vmatpush1.msra.mxu0 %v1849
    %1864 = vmatprep.subr.mxu0 0.0
    %1865 = vmatpush1.msra.mxu0 %v1850
    %1866 = vmatprep.subr.mxu0 0.0
    %1867 = vmatpush1.msra.mxu0 %v1851
    %1868 = vmatprep.subr.mxu0 0.0
    %1869 = vmatpush1.msra.mxu0 0.0
    %1870 = vmatprep.subr.mxu0 0.0
    %1871 = vmatpush1.msra.mxu0 0.0
    %1872 = vmatprep.subr.mxu0 0.0
    %1873 = vmatpush1.msra.mxu0 0.0
    %1874 = vmatprep.subr.mxu0 0.0
    %1875 = vmatpush1.msra.mxu0 0.0
    %1876 = vmatprep.subr.mxu0 0.0
    %1877 = vmatpush1.msra.mxu0 0.0
    %1878 = vmatprep.subr.mxu0 0.0
    %1879 = vmatpush1.msra.mxu0 0.0
    %1880 = vmatprep.subr.mxu0 0.0
    %1881 = vmatpush1.msra.mxu0 0.0
    %1882 = vmatprep.subr.mxu0 0.0
    %1883 = vmatpush1.msra.mxu0 0.0
    %1884 = vmatprep.subr.mxu0 0.0
    %1885 = vmatpush1.msra.mxu0 0.0
    %1886 = vmatprep.subr.mxu0 0.0
    %1887 = vmatpush1.msra.mxu0 0.0
    %1888 = vmatprep.subr.mxu0 0.0
    %1889 = vmatpush1.msra.mxu0 0.0
    %1890 = vmatprep.subr.mxu0 0.0
    %1891 = vmatpush1.msra.mxu0 0.0
    %1892 = vmatprep.subr.mxu0 0.0
    %1893 = vmatpush1.msra.mxu0 0.0
    %1894 = vmatprep.subr.mxu0 0.0
    %1895 = vmatpush1.msra.mxu0 0.0
    %1896 = vmatprep.subr.mxu0 0.0
    %1897 = vmatpush1.msra.mxu0 0.0
    %1898 = vmatprep.subr.mxu0 0.0
    %1899 = vmatpush1.msra.mxu0 0.0
    %1900 = vmatprep.subr.mxu0 0.0
    %1901 = vmatpush1.msra.mxu0 0.0
    %1902 = vmatprep.subr.mxu0 0.0
    %1903 = vmatpush1.msra.mxu0 0.0
    %1904 = vmatprep.subr.mxu0 0.0
    %1905 = vmatpush1.msra.mxu0 0.0
    %1906 = vmatprep.subr.mxu0 0.0
    %1907 = vmatpush1.msra.mxu0 0.0
    %1908 = vmatprep.subr.mxu0 0.0
    %1909 = vmatpush1.msra.mxu0 0.0
    %1910 = vmatprep.subr.mxu0 0.0
    %1911 = vmatpush1.msra.mxu0 0.0
    %1912 = vmatprep.subr.mxu0 0.0
    %1913 = vmatpush1.msra.mxu0 0.0
    %1914 = vmatprep.subr.mxu0 0.0
    %1915 = vmatpush1.msra.mxu0 0.0
    %1916 = vmatprep.subr.mxu0 0.0
    %1917 = vmatpush1.msra.mxu0 0.0
    %1918 = vmatprep.subr.mxu0 0.0
    %1919 = vmatpush1.msra.mxu0 0.0
    %1920 = vmatprep.subr.mxu0 0.0
    %1921 = vmatpush1.msra.mxu0 0.0
    %1922 = vmatprep.subr.mxu0 0.0
    %1923 = vmatpush1.msra.mxu0 0.0
    %1924 = vmatprep.mubr.f32.mxu0 0.0
    %1925 = vmatmul.mubr.f32.gmra.mrb[0].mxu0 %v234
    %v1926 = vpop.f32.mrb[0].mxu0
    %v1927 = vadd.f32 %v1858, %v1926
    %v1928 = vpop.f32.mrb[0].mxu0
    %1929 = vmatprep.mubr.f32.mxu0 0.0
    %1930 = vmatmul.mubr.f32.gmra.mrb[0].mxu0 %v237
    %v1931 = vpop.f32.mrb[0].mxu0
    %v1932 = vadd.f32 %v1858, %v1931
    %v1933 = vpop.f32.mrb[0].mxu0
    %1934 = vdwg.mxu0
    %s1935 = scalar_lea.vmem %s7, 96
    %v1936 = vld [vmem:[%s1935] sm:$0xff]
    %v1937 = vld [vmem:[%s1935 + $0x8] sm:$0xff]
    %v1938 = vld [vmem:[%s1935 + $0x10] sm:$0xff]
    %v1939 = vld [vmem:[%s1935 + $0x18] sm:$0xff]
    %s1940 = scalar_lea.vmem %s8, 3
    %v1941 = vld [vmem:[%s1940] sm:$0x1]
    %v1943 = vlaneseq
    %v1944 = vshrl.u32 %v1943, 7
    %v1945 = vsub.s32 0, %v1944
    %v1946 = vrot.slane %v1941, %v1945
    %1948 = vmatprep.subr.mxu0 0.0
    %1949 = vmatpush1.msra.mxu0 %v1936
    %1950 = vmatprep.subr.mxu0 0.0
    %1951 = vmatpush1.msra.mxu0 %v1937
    %1952 = vmatprep.subr.mxu0 0.0
    %1953 = vmatpush1.msra.mxu0 %v1938
    %1954 = vmatprep.subr.mxu0 0.0
    %1955 = vmatpush1.msra.mxu0 %v1939
    %1956 = vmatprep.subr.mxu0 0.0
    %1957 = vmatpush1.msra.mxu0 0.0
    %1958 = vmatprep.subr.mxu0 0.0
    %1959 = vmatpush1.msra.mxu0 0.0
    %1960 = vmatprep.subr.mxu0 0.0
    %1961 = vmatpush1.msra.mxu0 0.0
    %1962 = vmatprep.subr.mxu0 0.0
    %1963 = vmatpush1.msra.mxu0 0.0
    %1964 = vmatprep.subr.mxu0 0.0
    %1965 = vmatpush1.msra.mxu0 0.0
    %1966 = vmatprep.subr.mxu0 0.0
    %1967 = vmatpush1.msra.mxu0 0.0
    %1968 = vmatprep.subr.mxu0 0.0
    %1969 = vmatpush1.msra.mxu0 0.0
    %1970 = vmatprep.subr.mxu0 0.0
    %1971 = vmatpush1.msra.mxu0 0.0
    %1972 = vmatprep.subr.mxu0 0.0
    %1973 = vmatpush1.msra.mxu0 0.0
    %1974 = vmatprep.subr.mxu0 0.0
    %1975 = vmatpush1.msra.mxu0 0.0
    %1976 = vmatprep.subr.mxu0 0.0
    %1977 = vmatpush1.msra.mxu0 0.0
    %1978 = vmatprep.subr.mxu0 0.0
    %1979 = vmatpush1.msra.mxu0 0.0
    %1980 = vmatprep.subr.mxu0 0.0
    %1981 = vmatpush1.msra.mxu0 0.0
    %1982 = vmatprep.subr.mxu0 0.0
    %1983 = vmatpush1.msra.mxu0 0.0
    %1984 = vmatprep.subr.mxu0 0.0
    %1985 = vmatpush1.msra.mxu0 0.0
    %1986 = vmatprep.subr.mxu0 0.0
    %1987 = vmatpush1.msra.mxu0 0.0
    %1988 = vmatprep.subr.mxu0 0.0
    %1989 = vmatpush1.msra.mxu0 0.0
    %1990 = vmatprep.subr.mxu0 0.0
    %1991 = vmatpush1.msra.mxu0 0.0
    %1992 = vmatprep.subr.mxu0 0.0
    %1993 = vmatpush1.msra.mxu0 0.0
    %1994 = vmatprep.subr.mxu0 0.0
    %1995 = vmatpush1.msra.mxu0 0.0
    %1996 = vmatprep.subr.mxu0 0.0
    %1997 = vmatpush1.msra.mxu0 0.0
    %1998 = vmatprep.subr.mxu0 0.0
    %1999 = vmatpush1.msra.mxu0 0.0
    %2000 = vmatprep.subr.mxu0 0.0
    %2001 = vmatpush1.msra.mxu0 0.0
    %2002 = vmatprep.subr.mxu0 0.0
    %2003 = vmatpush1.msra.mxu0 0.0
    %2004 = vmatprep.subr.mxu0 0.0
    %2005 = vmatpush1.msra.mxu0 0.0
    %2006 = vmatprep.subr.mxu0 0.0
    %2007 = vmatpush1.msra.mxu0 0.0
    %2008 = vmatprep.subr.mxu0 0.0
    %2009 = vmatpush1.msra.mxu0 0.0
    %2010 = vmatprep.subr.mxu0 0.0
    %2011 = vmatpush1.msra.mxu0 0.0
    %2012 = vmatprep.mubr.f32.mxu0 0.0
    %2013 = vmatmul.mubr.f32.gmra.mrb[0].mxu0 %v234
    %v2014 = vpop.f32.mrb[0].mxu0
    %v2015 = vadd.f32 %v1946, %v2014
    %v2016 = vpop.f32.mrb[0].mxu0
    %2017 = vmatprep.mubr.f32.mxu0 0.0
    %2018 = vmatmul.mubr.f32.gmra.mrb[0].mxu0 %v237
    %v2019 = vpop.f32.mrb[0].mxu0
    %v2020 = vadd.f32 %v1946, %v2019
    %v2021 = vpop.f32.mrb[0].mxu0
    %2022 = vdwg.mxu0
    %s2023 = scalar_lea.vmem %s9, 96
    %v2024 = vld [vmem:[%s2023] sm:$0xff]
    %v2025 = vld [vmem:[%s2023 + $0x8] sm:$0xff]
    %v2026 = vld [vmem:[%s2023 + $0x10] sm:$0xff]
    %v2027 = vld [vmem:[%s2023 + $0x18] sm:$0xff]
    %s2028 = scalar_lea.vmem %s10, 3
    %v2029 = vld [vmem:[%s2028] sm:$0x1]
    %v2031 = vlaneseq
    %v2032 = vshrl.u32 %v2031, 7
    %v2033 = vsub.s32 0, %v2032
    %v2034 = vrot.slane %v2029, %v2033
    %2036 = vmatprep.subr.mxu0 0.0
    %2037 = vmatpush1.msra.mxu0 %v2024
    %2038 = vmatprep.subr.mxu0 0.0
    %2039 = vmatpush1.msra.mxu0 %v2025
    %2040 = vmatprep.subr.mxu0 0.0
    %2041 = vmatpush1.msra.mxu0 %v2026
    %2042 = vmatprep.subr.mxu0 0.0
    %2043 = vmatpush1.msra.mxu0 %v2027
    %2044 = vmatprep.subr.mxu0 0.0
    %2045 = vmatpush1.msra.mxu0 0.0
    %2046 = vmatprep.subr.mxu0 0.0
    %2047 = vmatpush1.msra.mxu0 0.0
    %2048 = vmatprep.subr.mxu0 0.0
    %2049 = vmatpush1.msra.mxu0 0.0
    %2050 = vmatprep.subr.mxu0 0.0
    %2051 = vmatpush1.msra.mxu0 0.0
    %2052 = vmatprep.subr.mxu0 0.0
    %2053 = vmatpush1.msra.mxu0 0.0
    %2054 = vmatprep.subr.mxu0 0.0
    %2055 = vmatpush1.msra.mxu0 0.0
    %2056 = vmatprep.subr.mxu0 0.0
    %2057 = vmatpush1.msra.mxu0 0.0
    %2058 = vmatprep.subr.mxu0 0.0
    %2059 = vmatpush1.msra.mxu0 0.0
    %2060 = vmatprep.subr.mxu0 0.0
    %2061 = vmatpush1.msra.mxu0 0.0
    %2062 = vmatprep.subr.mxu0 0.0
    %2063 = vmatpush1.msra.mxu0 0.0
    %2064 = vmatprep.subr.mxu0 0.0
    %2065 = vmatpush1.msra.mxu0 0.0
    %2066 = vmatprep.subr.mxu0 0.0
    %2067 = vmatpush1.msra.mxu0 0.0
    %2068 = vmatprep.subr.mxu0 0.0
    %2069 = vmatpush1.msra.mxu0 0.0
    %2070 = vmatprep.subr.mxu0 0.0
    %2071 = vmatpush1.msra.mxu0 0.0
    %2072 = vmatprep.subr.mxu0 0.0
    %2073 = vmatpush1.msra.mxu0 0.0
    %2074 = vmatprep.subr.mxu0 0.0
    %2075 = vmatpush1.msra.mxu0 0.0
    %2076 = vmatprep.subr.mxu0 0.0
    %2077 = vmatpush1.msra.mxu0 0.0
    %2078 = vmatprep.subr.mxu0 0.0
    %2079 = vmatpush1.msra.mxu0 0.0
    %2080 = vmatprep.subr.mxu0 0.0
    %2081 = vmatpush1.msra.mxu0 0.0
    %2082 = vmatprep.subr.mxu0 0.0
    %2083 = vmatpush1.msra.mxu0 0.0
    %2084 = vmatprep.subr.mxu0 0.0
    %2085 = vmatpush1.msra.mxu0 0.0
    %2086 = vmatprep.subr.mxu0 0.0
    %2087 = vmatpush1.msra.mxu0 0.0
    %2088 = vmatprep.subr.mxu0 0.0
    %2089 = vmatpush1.msra.mxu0 0.0
    %2090 = vmatprep.subr.mxu0 0.0
    %2091 = vmatpush1.msra.mxu0 0.0
    %2092 = vmatprep.subr.mxu0 0.0
    %2093 = vmatpush1.msra.mxu0 0.0
    %2094 = vmatprep.subr.mxu0 0.0
    %2095 = vmatpush1.msra.mxu0 0.0
    %2096 = vmatprep.subr.mxu0 0.0
    %2097 = vmatpush1.msra.mxu0 0.0
    %2098 = vmatprep.subr.mxu0 0.0
    %2099 = vmatpush1.msra.mxu0 0.0
    %2100 = vmatprep.mubr.f32.mxu0 0.0
    %2101 = vmatmul.mubr.f32.gmra.mrb[0].mxu0 %v234
    %v2102 = vpop.f32.mrb[0].mxu0
    %v2103 = vadd.f32 %v2034, %v2102
    %v2104 = vpop.f32.mrb[0].mxu0
    %2105 = vmatprep.mubr.f32.mxu0 0.0
    %2106 = vmatmul.mubr.f32.gmra.mrb[0].mxu0 %v237
    %v2107 = vpop.f32.mrb[0].mxu0
    %v2108 = vadd.f32 %v2034, %v2107
    %v2109 = vpop.f32.mrb[0].mxu0
    %2110 = vdwg.mxu0
    %v2112 = vsel %vm133, %v1927, 0
    %v2115 = vsel %vm133, %v1932, 0
    %v2118 = vsel %vm133, %v2015, 0
    %v2121 = vsel %vm133, %v2020, 0
    %2123 = vmatprep.subr.mxu0 0.0
    %2124 = vmatpush1.xpose.msra.mxu0 %v2118
    %2125 = vmatprep.subr.mxu0 0.0
    %2126 = vmatpush1.xpose.msra.mxu0 %v2121
    %2127 = vmatprep.subr.mxu0 0.0
    %2128 = vmatpush1.xpose.msra.mxu0 0.0
    %2129 = vmatprep.subr.mxu0 0.0
    %2130 = vmatpush1.xpose.msra.mxu0 0.0
    %2131 = vmatprep.subr.mxu0 0.0
    %2132 = vmatpush1.xpose.msra.mxu0 0.0
    %2133 = vmatprep.subr.mxu0 0.0
    %2134 = vmatpush1.xpose.msra.mxu0 0.0
    %2135 = vmatprep.subr.mxu0 0.0
    %2136 = vmatpush1.xpose.msra.mxu0 0.0
    %2137 = vmatprep.subr.mxu0 0.0
    %2138 = vmatpush1.xpose.msra.mxu0 0.0
    %2139 = vmatprep.subr.mxu0 0.0
    %2140 = vmatpush1.xpose.msra.mxu0 0.0
    %2141 = vmatprep.subr.mxu0 0.0
    %2142 = vmatpush1.xpose.msra.mxu0 0.0
    %2143 = vmatprep.subr.mxu0 0.0
    %2144 = vmatpush1.xpose.msra.mxu0 0.0
    %2145 = vmatprep.subr.mxu0 0.0
    %2146 = vmatpush1.xpose.msra.mxu0 0.0
    %2147 = vmatprep.subr.mxu0 0.0
    %2148 = vmatpush1.xpose.msra.mxu0 0.0
    %2149 = vmatprep.subr.mxu0 0.0
    %2150 = vmatpush1.xpose.msra.mxu0 0.0
    %2151 = vmatprep.subr.mxu0 0.0
    %2152 = vmatpush1.xpose.msra.mxu0 0.0
    %2153 = vmatprep.subr.mxu0 0.0
    %2154 = vmatpush1.xpose.msra.mxu0 0.0
    %2155 = vmatprep.subr.mxu0 0.0
    %2156 = vmatpush1.xpose.msra.mxu0 0.0
    %2157 = vmatprep.subr.mxu0 0.0
    %2158 = vmatpush1.xpose.msra.mxu0 0.0
    %2159 = vmatprep.subr.mxu0 0.0
    %2160 = vmatpush1.xpose.msra.mxu0 0.0
    %2161 = vmatprep.subr.mxu0 0.0
    %2162 = vmatpush1.xpose.msra.mxu0 0.0
    %2163 = vmatprep.subr.mxu0 0.0
    %2164 = vmatpush1.xpose.msra.mxu0 0.0
    %2165 = vmatprep.subr.mxu0 0.0
    %2166 = vmatpush1.xpose.msra.mxu0 0.0
    %2167 = vmatprep.subr.mxu0 0.0
    %2168 = vmatpush1.xpose.msra.mxu0 0.0
    %2169 = vmatprep.subr.mxu0 0.0
    %2170 = vmatpush1.xpose.msra.mxu0 0.0
    %2171 = vmatprep.subr.mxu0 0.0
    %2172 = vmatpush1.xpose.msra.mxu0 0.0
    %2173 = vmatprep.subr.mxu0 0.0
    %2174 = vmatpush1.xpose.msra.mxu0 0.0
    %2175 = vmatprep.subr.mxu0 0.0
    %2176 = vmatpush1.xpose.msra.mxu0 0.0
    %2177 = vmatprep.subr.mxu0 0.0
    %2178 = vmatpush1.xpose.msra.mxu0 0.0
    %2179 = vmatprep.subr.mxu0 0.0
    %2180 = vmatpush1.xpose.msra.mxu0 0.0
    %2181 = vmatprep.subr.mxu0 0.0
    %2182 = vmatpush1.xpose.msra.mxu0 0.0
    %2183 = vmatprep.subr.mxu0 0.0
    %2184 = vmatpush1.xpose.msra.mxu0 0.0
    %2185 = vmatprep.subr.mxu0 0.0
    %2186 = vmatpush1.xpose.msra.mxu0 0.0
    %2187 = vmatprep.mubr.f32.mxu0 0.0
    %2188 = vmatmul.mubr.f32.gmra.mrb[0].mxu0 %v2112
    %v2189 = vpop.f32.mrb[0].mxu0
    %v2190 = vadd.f32 0.0, %v2189
    %v2191 = vpop.f32.mrb[0].mxu0
    %2192 = vmatprep.mubr.f32.mxu0 0.0
    %2193 = vmatmul.mubr.f32.gmra.mrb[0].mxu0 %v2115
    %v2194 = vpop.f32.mrb[0].mxu0
    %v2195 = vadd.f32 0.0, %v2194
    %v2196 = vpop.f32.mrb[0].mxu0
    %2197 = vdwg.mxu0
    %v2198 = vmul.f32 %v2190, 0.35355338
    %v2199 = vmul.f32 %v2195, 0.35355338
    %v2200 = vadd.f32 %v2198, %v219
    %v2201 = vadd.f32 %v2199, %v220
    %v2202 = vsel %vm577, %v2200, -inf
    %2203 = vmax.xlane.f32.xlu0 %v2202
    %v2204 = vpop.xlane.xlu0 %2203
    %v2205 = vsel %vm577, %v2201, -inf
    %2206 = vmax.xlane.f32.xlu0 %v2205
    %v2207 = vpop.xlane.xlu0 %2206
    %v2208 = vsub.f32 %v2200, %v2204
    %v2209 = vsub.f32 %v2201, %v2207
    %v2210 = vmul.f32 %v2208, 1.442695
    %v2211 = vpow.pop %v2210
    %v2212 = vmul.f32 %v2209, 1.442695
    %v2213 = vpow.pop %v2212
    %v2214 = vsel %vm577, %v2211, 0.0
    %2215 = vadd.xlane.f32.xlu0 %v2214
    %v2216 = vpop.xlane.xlu0 %2215
    %v2217 = vsel %vm577, %v2213, 0.0
    %2218 = vadd.xlane.f32.xlu0 %v2217
    %v2219 = vpop.xlane.xlu0 %2218
    %v2220 = vrcp.pop %v2216
    %v2221 = vrcp.pop %v2219
    %v2222 = vmul.f32 %v2211, %v2220
    %v2223 = vmul.f32 %v2213, %v2221
    %v2225 = vsel %vm577, %v2222, 0
    %v2228 = vsel %vm577, %v2223, 0
    %2230 = vmatprep.subr.mxu0 0.0
    %2231 = vmatpush1.msra.mxu0 %v2103
    %2232 = vmatprep.subr.mxu0 0.0
    %2233 = vmatpush1.msra.mxu0 %v2108
    %2234 = vmatprep.subr.mxu0 0.0
    %2235 = vmatpush1.msra.mxu0 0.0
    %2236 = vmatprep.subr.mxu0 0.0
    %2237 = vmatpush1.msra.mxu0 0.0
    %2238 = vmatprep.subr.mxu0 0.0
    %2239 = vmatpush1.msra.mxu0 0.0
    %2240 = vmatprep.subr.mxu0 0.0
    %2241 = vmatpush1.msra.mxu0 0.0
    %2242 = vmatprep.subr.mxu0 0.0
    %2243 = vmatpush1.msra.mxu0 0.0
    %2244 = vmatprep.subr.mxu0 0.0
    %2245 = vmatpush1.msra.mxu0 0.0
    %2246 = vmatprep.subr.mxu0 0.0
    %2247 = vmatpush1.msra.mxu0 0.0
    %2248 = vmatprep.subr.mxu0 0.0
    %2249 = vmatpush1.msra.mxu0 0.0
    %2250 = vmatprep.subr.mxu0 0.0
    %2251 = vmatpush1.msra.mxu0 0.0
    %2252 = vmatprep.subr.mxu0 0.0
    %2253 = vmatpush1.msra.mxu0 0.0
    %2254 = vmatprep.subr.mxu0 0.0
    %2255 = vmatpush1.msra.mxu0 0.0
    %2256 = vmatprep.subr.mxu0 0.0
    %2257 = vmatpush1.msra.mxu0 0.0
    %2258 = vmatprep.subr.mxu0 0.0
    %2259 = vmatpush1.msra.mxu0 0.0
    %2260 = vmatprep.subr.mxu0 0.0
    %2261 = vmatpush1.msra.mxu0 0.0
    %2262 = vmatprep.subr.mxu0 0.0
    %2263 = vmatpush1.msra.mxu0 0.0
    %2264 = vmatprep.subr.mxu0 0.0
    %2265 = vmatpush1.msra.mxu0 0.0
    %2266 = vmatprep.subr.mxu0 0.0
    %2267 = vmatpush1.msra.mxu0 0.0
    %2268 = vmatprep.subr.mxu0 0.0
    %2269 = vmatpush1.msra.mxu0 0.0
    %2270 = vmatprep.subr.mxu0 0.0
    %2271 = vmatpush1.msra.mxu0 0.0
    %2272 = vmatprep.subr.mxu0 0.0
    %2273 = vmatpush1.msra.mxu0 0.0
    %2274 = vmatprep.subr.mxu0 0.0
    %2275 = vmatpush1.msra.mxu0 0.0
    %2276 = vmatprep.subr.mxu0 0.0
    %2277 = vmatpush1.msra.mxu0 0.0
    %2278 = vmatprep.subr.mxu0 0.0
    %2279 = vmatpush1.msra.mxu0 0.0
    %2280 = vmatprep.subr.mxu0 0.0
    %2281 = vmatpush1.msra.mxu0 0.0
    %2282 = vmatprep.subr.mxu0 0.0
    %2283 = vmatpush1.msra.mxu0 0.0
    %2284 = vmatprep.subr.mxu0 0.0
    %2285 = vmatpush1.msra.mxu0 0.0
    %2286 = vmatprep.subr.mxu0 0.0
    %2287 = vmatpush1.msra.mxu0 0.0
    %2288 = vmatprep.subr.mxu0 0.0
    %2289 = vmatpush1.msra.mxu0 0.0
    %2290 = vmatprep.subr.mxu0 0.0
    %2291 = vmatpush1.msra.mxu0 0.0
    %2292 = vmatprep.subr.mxu0 0.0
    %2293 = vmatpush1.msra.mxu0 0.0
    %2294 = vmatprep.mubr.f32.mxu0 0.0
    %2295 = vmatmul.mubr.f32.gmra.mrb[0].mxu0 %v2225
    %v2296 = vpop.f32.mrb[0].mxu0
    %v2297 = vadd.f32 0.0, %v2296
    %v2298 = vpop.f32.mrb[0].mxu0
    %2299 = vmatprep.mubr.f32.mxu0 0.0
    %2300 = vmatmul.mubr.f32.gmra.mrb[0].mxu0 %v2228
    %v2301 = vpop.f32.mrb[0].mxu0
    %v2302 = vadd.f32 0.0, %v2301
    %v2303 = vpop.f32.mrb[0].mxu0
    %2304 = vdwg.mxu0
    %s2305 = scalar_lea.vmem %s11, 24
    %v2306 = vld [vmem:[%s2305] sm:$0xff]
    %v2308 = vsel %vm133, %v2297, 0
    %v2311 = vsel %vm133, %v2302, 0
    %2313 = vmatprep.subr.mxu0 0.0
    %2314 = vmatpush1.msra.mxu0 %v2306
    %2315 = vmatprep.subr.mxu0 0.0
    %2316 = vmatpush1.msra.mxu0 0.0
    %2317 = vmatprep.subr.mxu0 0.0
    %2318 = vmatpush1.msra.mxu0 0.0
    %2319 = vmatprep.subr.mxu0 0.0
    %2320 = vmatpush1.msra.mxu0 0.0
    %2321 = vmatprep.subr.mxu0 0.0
    %2322 = vmatpush1.msra.mxu0 0.0
    %2323 = vmatprep.subr.mxu0 0.0
    %2324 = vmatpush1.msra.mxu0 0.0
    %2325 = vmatprep.subr.mxu0 0.0
    %2326 = vmatpush1.msra.mxu0 0.0
    %2327 = vmatprep.subr.mxu0 0.0
    %2328 = vmatpush1.msra.mxu0 0.0
    %2329 = vmatprep.subr.mxu0 0.0
    %2330 = vmatpush1.msra.mxu0 0.0
    %2331 = vmatprep.subr.mxu0 0.0
    %2332 = vmatpush1.msra.mxu0 0.0
    %2333 = vmatprep.subr.mxu0 0.0
    %2334 = vmatpush1.msra.mxu0 0.0
    %2335 = vmatprep.subr.mxu0 0.0
    %2336 = vmatpush1.msra.mxu0 0.0
    %2337 = vmatprep.subr.mxu0 0.0
    %2338 = vmatpush1.msra.mxu0 0.0
    %2339 = vmatprep.subr.mxu0 0.0
    %2340 = vmatpush1.msra.mxu0 0.0
    %2341 = vmatprep.subr.mxu0 0.0
    %2342 = vmatpush1.msra.mxu0 0.0
    %2343 = vmatprep.subr.mxu0 0.0
    %2344 = vmatpush1.msra.mxu0 0.0
    %2345 = vmatprep.subr.mxu0 0.0
    %2346 = vmatpush1.msra.mxu0 0.0
    %2347 = vmatprep.subr.mxu0 0.0
    %2348 = vmatpush1.msra.mxu0 0.0
    %2349 = vmatprep.subr.mxu0 0.0
    %2350 = vmatpush1.msra.mxu0 0.0
    %2351 = vmatprep.subr.mxu0 0.0
    %2352 = vmatpush1.msra.mxu0 0.0
    %2353 = vmatprep.subr.mxu0 0.0
    %2354 = vmatpush1.msra.mxu0 0.0
    %2355 = vmatprep.subr.mxu0 0.0
    %2356 = vmatpush1.msra.mxu0 0.0
    %2357 = vmatprep.subr.mxu0 0.0
    %2358 = vmatpush1.msra.mxu0 0.0
    %2359 = vmatprep.subr.mxu0 0.0
    %2360 = vmatpush1.msra.mxu0 0.0
    %2361 = vmatprep.subr.mxu0 0.0
    %2362 = vmatpush1.msra.mxu0 0.0
    %2363 = vmatprep.subr.mxu0 0.0
    %2364 = vmatpush1.msra.mxu0 0.0
    %2365 = vmatprep.subr.mxu0 0.0
    %2366 = vmatpush1.msra.mxu0 0.0
    %2367 = vmatprep.subr.mxu0 0.0
    %2368 = vmatpush1.msra.mxu0 0.0
    %2369 = vmatprep.subr.mxu0 0.0
    %2370 = vmatpush1.msra.mxu0 0.0
    %2371 = vmatprep.subr.mxu0 0.0
    %2372 = vmatpush1.msra.mxu0 0.0
    %2373 = vmatprep.subr.mxu0 0.0
    %2374 = vmatpush1.msra.mxu0 0.0
    %2375 = vmatprep.subr.mxu0 0.0
    %2376 = vmatpush1.msra.mxu0 0.0
    %2377 = vmatprep.mubr.f32.mxu0 0.0
    %2378 = vmatmul.mubr.f32.gmra.mrb[0].mxu0 %v2308
    %v2379 = vpop.f32.mrb[0].mxu0
    %v2380 = vadd.f32 0.0, %v2379
    %v2381 = vpop.f32.mrb[0].mxu0
    %2382 = vmatprep.mubr.f32.mxu0 0.0
    %2383 = vmatmul.mubr.f32.gmra.mrb[0].mxu0 %v2311
    %v2384 = vpop.f32.mrb[0].mxu0
    %v2385 = vadd.f32 0.0, %v2384
    %v2386 = vpop.f32.mrb[0].mxu0
    %2387 = vdwg.mxu0
    %v2388 = vadd.f32 %v1845, %v2380
    %v2389 = vadd.f32 %v1846, %v2385
    %v2390 = vld [vmem:[%s12] sm:$0x1]
    %v2392 = vlaneseq
    %v2393 = vshrl.u32 %v2392, 7
    %v2394 = vsub.s32 0, %v2393
    %v2395 = vrot.slane %v2390, %v2394
    %v2397 = vadd.f32 %v2388, %v2395
    %v2398 = vadd.f32 %v2389, %v2395
    %v2399 = vadd.f32 %v217, %v2397
    %v2400 = vadd.f32 %v218, %v2398
    %v2401 = vld [vmem:[%s13] sm:$0x1]
    %v2402 = vld [vmem:[%s14] sm:$0x1]
    %v2403 = vsel %vm232, %v2399, 0.0
    %2404 = vadd.xlane.f32.xlu0 %v2403
    %v2405 = vpop.xlane.xlu0 %2404
    %v2406 = vsel %vm232, %v2400, 0.0
    %2407 = vadd.xlane.f32.xlu0 %v2406
    %v2408 = vpop.xlane.xlu0 %2407
    %v2409 = vrcp.pop 32.0
    %v2410 = vmul.f32 %v2405, %v2409
    %v2411 = vmul.f32 %v2408, %v2409
    %v2412 = vsub.f32 %v2399, %v2410
    %v2413 = vsub.f32 %v2400, %v2411
    %v2414 = vmul.f32 %v2412, %v2412
    %v2415 = vmul.f32 %v2413, %v2413
    %v2416 = vsel %vm232, %v2414, 0.0
    %2417 = vadd.xlane.f32.xlu0 %v2416
    %v2418 = vpop.xlane.xlu0 %2417
    %v2419 = vsel %vm232, %v2415, 0.0
    %2420 = vadd.xlane.f32.xlu0 %v2419
    %v2421 = vpop.xlane.xlu0 %2420
    %v2422 = vmul.f32 %v2418, %v2409
    %v2423 = vmul.f32 %v2421, %v2409
    %v2424 = vadd.f32 %v2422, 1e-05
    %v2425 = vadd.f32 %v2423, 1e-05
    %v2426 = vrsqrt.pop %v2424
    %v2427 = vrsqrt.pop %v2425
    %v2428 = vmul.f32 %v2412, %v2426
    %v2429 = vmul.f32 %v2413, %v2427
    %v2431 = vlaneseq
    %v2432 = vshrl.u32 %v2431, 7
    %v2433 = vsub.s32 0, %v2432
    %v2434 = vrot.slane %v2401, %v2433
    %v2436 = vmul.f32 %v2428, %v2434
    %v2437 = vmul.f32 %v2429, %v2434
    %v2439 = vlaneseq
    %v2440 = vshrl.u32 %v2439, 7
    %v2441 = vsub.s32 0, %v2440
    %v2442 = vrot.slane %v2402, %v2441
    %v2444 = vadd.f32 %v2436, %v2442
    %v2445 = vadd.f32 %v2437, %v2442
    %v2446 = vld [vmem:[%s15] sm:$0xff]
    %v2447 = vld [vmem:[%s15 + $0x8] sm:$0xff]
    %v2448 = vld [vmem:[%s15 + $0x10] sm:$0xff]
    %v2449 = vld [vmem:[%s15 + $0x18] sm:$0xff]
    %v2450 = vld [vmem:[%s16] sm:$0x1]
    %v2452 = vlaneseq
    %v2453 = vshrl.u32 %v2452, 7
    %v2454 = vsub.s32 0, %v2453
    %v2455 = vrot.slane %v2450, %v2454
    %v2458 = vsel %vm232, %v2444, 0
    %v2461 = vsel %vm232, %v2445, 0
    %2463 = vmatprep.subr.mxu0 0.0
    %2464 = vmatpush1.msra.mxu0 %v2446
    %2465 = vmatprep.subr.mxu0 0.0
    %2466 = vmatpush1.msra.mxu0 %v2447
    %2467 = vmatprep.subr.mxu0 0.0
    %2468 = vmatpush1.msra.mxu0 %v2448
    %2469 = vmatprep.subr.mxu0 0.0
    %2470 = vmatpush1.msra.mxu0 %v2449
    %2471 = vmatprep.subr.mxu0 0.0
    %2472 = vmatpush1.msra.mxu0 0.0
    %2473 = vmatprep.subr.mxu0 0.0
    %2474 = vmatpush1.msra.mxu0 0.0
    %2475 = vmatprep.subr.mxu0 0.0
    %2476 = vmatpush1.msra.mxu0 0.0
    %2477 = vmatprep.subr.mxu0 0.0
    %2478 = vmatpush1.msra.mxu0 0.0
    %2479 = vmatprep.subr.mxu0 0.0
    %2480 = vmatpush1.msra.mxu0 0.0
    %2481 = vmatprep.subr.mxu0 0.0
    %2482 = vmatpush1.msra.mxu0 0.0
    %2483 = vmatprep.subr.mxu0 0.0
    %2484 = vmatpush1.msra.mxu0 0.0
    %2485 = vmatprep.subr.mxu0 0.0
    %2486 = vmatpush1.msra.mxu0 0.0
    %2487 = vmatprep.subr.mxu0 0.0
    %2488 = vmatpush1.msra.mxu0 0.0
    %2489 = vmatprep.subr.mxu0 0.0
    %2490 = vmatpush1.msra.mxu0 0.0
    %2491 = vmatprep.subr.mxu0 0.0
    %2492 = vmatpush1.msra.mxu0 0.0
    %2493 = vmatprep.subr.mxu0 0.0
    %2494 = vmatpush1.msra.mxu0 0.0
    %2495 = vmatprep.subr.mxu0 0.0
    %2496 = vmatpush1.msra.mxu0 0.0
    %2497 = vmatprep.subr.mxu0 0.0
    %2498 = vmatpush1.msra.mxu0 0.0
    %2499 = vmatprep.subr.mxu0 0.0
    %2500 = vmatpush1.msra.mxu0 0.0
    %2501 = vmatprep.subr.mxu0 0.0
    %2502 = vmatpush1.msra.mxu0 0.0
    %2503 = vmatprep.subr.mxu0 0.0
    %2504 = vmatpush1.msra.mxu0 0.0
    %2505 = vmatprep.subr.mxu0 0.0
    %2506 = vmatpush1.msra.mxu0 0.0
    %2507 = vmatprep.subr.mxu0 0.0
    %2508 = vmatpush1.msra.mxu0 0.0
    %2509 = vmatprep.subr.mxu0 0.0
    %2510 = vmatpush1.msra.mxu0 0.0
    %2511 = vmatprep.subr.mxu0 0.0
    %2512 = vmatpush1.msra.mxu0 0.0
    %2513 = vmatprep.subr.mxu0 0.0
    %2514 = vmatpush1.msra.mxu0 0.0
    %2515 = vmatprep.subr.mxu0 0.0
    %2516 = vmatpush1.msra.mxu0 0.0
    %2517 = vmatprep.subr.mxu0 0.0
    %2518 = vmatpush1.msra.mxu0 0.0
    %2519 = vmatprep.subr.mxu0 0.0
    %2520 = vmatpush1.msra.mxu0 0.0
    %2521 = vmatprep.subr.mxu0 0.0
    %2522 = vmatpush1.msra.mxu0 0.0
    %2523 = vmatprep.subr.mxu0 0.0
    %2524 = vmatpush1.msra.mxu0 0.0
    %2525 = vmatprep.subr.mxu0 0.0
    %2526 = vmatpush1.msra.mxu0 0.0
    %2527 = vmatprep.mubr.f32.mxu0 0.0
    %2528 = vmatmul.mubr.f32.gmra.mrb[0].mxu0 %v2458
    %v2529 = vpop.f32.mrb[0].mxu0
    %v2530 = vadd.f32 %v2455, %v2529
    %v2531 = vpop.f32.mrb[0].mxu0
    %2532 = vmatprep.mubr.f32.mxu0 0.0
    %2533 = vmatmul.mubr.f32.gmra.mrb[0].mxu0 %v2461
    %v2534 = vpop.f32.mrb[0].mxu0
    %v2535 = vadd.f32 %v2455, %v2534
    %v2536 = vpop.f32.mrb[0].mxu0
    %2537 = vdwg.mxu0
    %v2538 = vmax.f32 %v2530, 0.0
    %v2539 = vmax.f32 %v2535, 0.0
    %v2540 = vld [vmem:[%s17] sm:$0xff]
    %v2541 = vld [vmem:[%s17 + $0x8] sm:$0xff]
    %v2542 = vld [vmem:[%s17 + $0x10] sm:$0xff]
    %v2543 = vld [vmem:[%s17 + $0x18] sm:$0xff]
    %v2544 = vld [vmem:[%s17 + $0x20] sm:$0xff]
    %v2545 = vld [vmem:[%s17 + $0x28] sm:$0xff]
    %v2546 = vld [vmem:[%s17 + $0x30] sm:$0xff]
    %v2547 = vld [vmem:[%s17 + $0x38] sm:$0xff]
    %v2548 = vld [vmem:[%s18] sm:$0x1]
    %v2550 = vlaneseq
    %v2551 = vshrl.u32 %v2550, 7
    %v2552 = vsub.s32 0, %v2551
    %v2553 = vrot.slane %v2548, %v2552
    %vm2555 = vcmask 523264
    %v2557 = vsel %vm2555, %v2538, 0
    %v2560 = vsel %vm2555, %v2539, 0
    %2562 = vmatprep.subr.mxu0 0.0
    %2563 = vmatpush1.msra.mxu0 %v2540
    %2564 = vmatprep.subr.mxu0 0.0
    %2565 = vmatpush1.msra.mxu0 %v2541
    %2566 = vmatprep.subr.mxu0 0.0
    %2567 = vmatpush1.msra.mxu0 %v2542
    %2568 = vmatprep.subr.mxu0 0.0
    %2569 = vmatpush1.msra.mxu0 %v2543
    %2570 = vmatprep.subr.mxu0 0.0
    %2571 = vmatpush1.msra.mxu0 %v2544
    %2572 = vmatprep.subr.mxu0 0.0
    %2573 = vmatpush1.msra.mxu0 %v2545
    %2574 = vmatprep.subr.mxu0 0.0
    %2575 = vmatpush1.msra.mxu0 %v2546
    %2576 = vmatprep.subr.mxu0 0.0
    %2577 = vmatpush1.msra.mxu0 %v2547
    %2578 = vmatprep.subr.mxu0 0.0
    %2579 = vmatpush1.msra.mxu0 0.0
    %2580 = vmatprep.subr.mxu0 0.0
    %2581 = vmatpush1.msra.mxu0 0.0
    %2582 = vmatprep.subr.mxu0 0.0
    %2583 = vmatpush1.msra.mxu0 0.0
    %2584 = vmatprep.subr.mxu0 0.0
    %2585 = vmatpush1.msra.mxu0 0.0
    %2586 = vmatprep.subr.mxu0 0.0
    %2587 = vmatpush1.msra.mxu0 0.0
    %2588 = vmatprep.subr.mxu0 0.0
    %2589 = vmatpush1.msra.mxu0 0.0
    %2590 = vmatprep.subr.mxu0 0.0
    %2591 = vmatpush1.msra.mxu0 0.0
    %2592 = vmatprep.subr.mxu0 0.0
    %2593 = vmatpush1.msra.mxu0 0.0
    %2594 = vmatprep.subr.mxu0 0.0
    %2595 = vmatpush1.msra.mxu0 0.0
    %2596 = vmatprep.subr.mxu0 0.0
    %2597 = vmatpush1.msra.mxu0 0.0
    %2598 = vmatprep.subr.mxu0 0.0
    %2599 = vmatpush1.msra.mxu0 0.0
    %2600 = vmatprep.subr.mxu0 0.0
    %2601 = vmatpush1.msra.mxu0 0.0
    %2602 = vmatprep.subr.mxu0 0.0
    %2603 = vmatpush1.msra.mxu0 0.0
    %2604 = vmatprep.subr.mxu0 0.0
    %2605 = vmatpush1.msra.mxu0 0.0
    %2606 = vmatprep.subr.mxu0 0.0
    %2607 = vmatpush1.msra.mxu0 0.0
    %2608 = vmatprep.subr.mxu0 0.0
    %2609 = vmatpush1.msra.mxu0 0.0
    %2610 = vmatprep.subr.mxu0 0.0
    %2611 = vmatpush1.msra.mxu0 0.0
    %2612 = vmatprep.subr.mxu0 0.0
    %2613 = vmatpush1.msra.mxu0 0.0
    %2614 = vmatprep.subr.mxu0 0.0
    %2615 = vmatpush1.msra.mxu0 0.0
    %2616 = vmatprep.subr.mxu0 0.0
    %2617 = vmatpush1.msra.mxu0 0.0
    %2618 = vmatprep.subr.mxu0 0.0
    %2619 = vmatpush1.msra.mxu0 0.0
    %2620 = vmatprep.subr.mxu0 0.0
    %2621 = vmatpush1.msra.mxu0 0.0
    %2622 = vmatprep.subr.mxu0 0.0
    %2623 = vmatpush1.msra.mxu0 0.0
    %2624 = vmatprep.subr.mxu0 0.0
    %2625 = vmatpush1.msra.mxu0 0.0
    %2626 = vmatprep.mubr.f32.mxu0 0.0
    %2627 = vmatmul.mubr.f32.gmra.mrb[0].mxu0 %v2557
    %v2628 = vpop.f32.mrb[0].mxu0
    %v2629 = vadd.f32 %v2553, %v2628
    %v2630 = vpop.f32.mrb[0].mxu0
    %2631 = vmatprep.mubr.f32.mxu0 0.0
    %2632 = vmatmul.mubr.f32.gmra.mrb[0].mxu0 %v2560
    %v2633 = vpop.f32.mrb[0].mxu0
    %v2634 = vadd.f32 %v2553, %v2633
    %v2635 = vpop.f32.mrb[0].mxu0
    %2636 = vdwg.mxu0
    %v2637 = vadd.f32 %v2444, %v2629
    %v2638 = vadd.f32 %v2445, %v2634
    %v2639 = vld [vmem:[%s19] sm:$0x1]
    %v2640 = vld [vmem:[%s20] sm:$0x1]
    %v2641 = vsel %vm232, %v2637, 0.0
    %2642 = vadd.xlane.f32.xlu0 %v2641
    %v2643 = vpop.xlane.xlu0 %2642
    %v2644 = vsel %vm232, %v2638, 0.0
    %2645 = vadd.xlane.f32.xlu0 %v2644
    %v2646 = vpop.xlane.xlu0 %2645
    %v2647 = vmul.f32 %v2643, %v2409
    %v2648 = vmul.f32 %v2646, %v2409
    %v2649 = vsub.f32 %v2637, %v2647
    %v2650 = vsub.f32 %v2638, %v2648
    %v2651 = vmul.f32 %v2649, %v2649
    %v2652 = vmul.f32 %v2650, %v2650
    %v2653 = vsel %vm232, %v2651, 0.0
    %2654 = vadd.xlane.f32.xlu0 %v2653
    %v2655 = vpop.xlane.xlu0 %2654
    %v2656 = vsel %vm232, %v2652, 0.0
    %2657 = vadd.xlane.f32.xlu0 %v2656
    %v2658 = vpop.xlane.xlu0 %2657
    %v2659 = vmul.f32 %v2655, %v2409
    %v2660 = vmul.f32 %v2658, %v2409
    %v2661 = vadd.f32 %v2659, 1e-05
    %v2662 = vadd.f32 %v2660, 1e-05
    %v2663 = vrsqrt.pop %v2661
    %v2664 = vrsqrt.pop %v2662
    %v2665 = vmul.f32 %v2649, %v2663
    %v2666 = vmul.f32 %v2650, %v2664
    %v2668 = vlaneseq
    %v2669 = vshrl.u32 %v2668, 7
    %v2670 = vsub.s32 0, %v2669
    %v2671 = vrot.slane %v2639, %v2670
    %v2673 = vmul.f32 %v2665, %v2671
    %v2674 = vmul.f32 %v2666, %v2671
    %v2676 = vlaneseq
    %v2677 = vshrl.u32 %v2676, 7
    %v2678 = vsub.s32 0, %v2677
    %v2679 = vrot.slane %v2640, %v2678
    %v2681 = vadd.f32 %v2673, %v2679
    %v2682 = vadd.f32 %v2674, %v2679
    %s2683 = scalar_lea.vmem %s5, 128
    %v2684 = vld [vmem:[%s2683] sm:$0xff]
    %v2685 = vld [vmem:[%s2683 + $0x8] sm:$0xff]
    %v2686 = vld [vmem:[%s2683 + $0x10] sm:$0xff]
    %v2687 = vld [vmem:[%s2683 + $0x18] sm:$0xff]
    %s2688 = scalar_lea.vmem %s6, 4
    %v2689 = vld [vmem:[%s2688] sm:$0x1]
    %v2691 = vlaneseq
    %v2692 = vshrl.u32 %v2691, 7
    %v2693 = vsub.s32 0, %v2692
    %v2694 = vrot.slane %v2689, %v2693
    %v2697 = vsel %vm232, %v2681, 0
    %v2700 = vsel %vm232, %v2682, 0
    %2702 = vmatprep.subr.mxu0 0.0
    %2703 = vmatpush1.msra.mxu0 %v2684
    %2704 = vmatprep.subr.mxu0 0.0
    %2705 = vmatpush1.msra.mxu0 %v2685
    %2706 = vmatprep.subr.mxu0 0.0
    %2707 = vmatpush1.msra.mxu0 %v2686
    %2708 = vmatprep.subr.mxu0 0.0
    %2709 = vmatpush1.msra.mxu0 %v2687
    %2710 = vmatprep.subr.mxu0 0.0
    %2711 = vmatpush1.msra.mxu0 0.0
    %2712 = vmatprep.subr.mxu0 0.0
    %2713 = vmatpush1.msra.mxu0 0.0
    %2714 = vmatprep.subr.mxu0 0.0
    %2715 = vmatpush1.msra.mxu0 0.0
    %2716 = vmatprep.subr.mxu0 0.0
    %2717 = vmatpush1.msra.mxu0 0.0
    %2718 = vmatprep.subr.mxu0 0.0
    %2719 = vmatpush1.msra.mxu0 0.0
    %2720 = vmatprep.subr.mxu0 0.0
    %2721 = vmatpush1.msra.mxu0 0.0
    %2722 = vmatprep.subr.mxu0 0.0
    %2723 = vmatpush1.msra.mxu0 0.0
    %2724 = vmatprep.subr.mxu0 0.0
    %2725 = vmatpush1.msra.mxu0 0.0
    %2726 = vmatprep.subr.mxu0 0.0
    %2727 = vmatpush1.msra.mxu0 0.0
    %2728 = vmatprep.subr.mxu0 0.0
    %2729 = vmatpush1.msra.mxu0 0.0
    %2730 = vmatprep.subr.mxu0 0.0
    %2731 = vmatpush1.msra.mxu0 0.0
    %2732 = vmatprep.subr.mxu0 0.0
    %2733 = vmatpush1.msra.mxu0 0.0
    %2734 = vmatprep.subr.mxu0 0.0
    %2735 = vmatpush1.msra.mxu0 0.0
    %2736 = vmatprep.subr.mxu0 0.0
    %2737 = vmatpush1.msra.mxu0 0.0
    %2738 = vmatprep.subr.mxu0 0.0
    %2739 = vmatpush1.msra.mxu0 0.0
    %2740 = vmatprep.subr.mxu0 0.0
    %2741 = vmatpush1.msra.mxu0 0.0
    %2742 = vmatprep.subr.mxu0 0.0
    %2743 = vmatpush1.msra.mxu0 0.0
    %2744 = vmatprep.subr.mxu0 0.0
    %2745 = vmatpush1.msra.mxu0 0.0
    %2746 = vmatprep.subr.mxu0 0.0
    %2747 = vmatpush1.msra.mxu0 0.0
    %2748 = vmatprep.subr.mxu0 0.0
    %2749 = vmatpush1.msra.mxu0 0.0
    %2750 = vmatprep.subr.mxu0 0.0
    %2751 = vmatpush1.msra.mxu0 0.0
    %2752 = vmatprep.subr.mxu0 0.0
    %2753 = vmatpush1.msra.mxu0 0.0
    %2754 = vmatprep.subr.mxu0 0.0
    %2755 = vmatpush1.msra.mxu0 0.0
    %2756 = vmatprep.subr.mxu0 0.0
    %2757 = vmatpush1.msra.mxu0 0.0
    %2758 = vmatprep.subr.mxu0 0.0
    %2759 = vmatpush1.msra.mxu0 0.0
    %2760 = vmatprep.subr.mxu0 0.0
    %2761 = vmatpush1.msra.mxu0 0.0
    %2762 = vmatprep.subr.mxu0 0.0
    %2763 = vmatpush1.msra.mxu0 0.0
    %2764 = vmatprep.subr.mxu0 0.0
    %2765 = vmatpush1.msra.mxu0 0.0
    %2766 = vmatprep.mubr.f32.mxu0 0.0
    %2767 = vmatmul.mubr.f32.gmra.mrb[0].mxu0 %v2697
    %v2768 = vpop.f32.mrb[0].mxu0
    %v2769 = vadd.f32 %v2694, %v2768
    %v2770 = vpop.f32.mrb[0].mxu0
    %2771 = vmatprep.mubr.f32.mxu0 0.0
    %2772 = vmatmul.mubr.f32.gmra.mrb[0].mxu0 %v2700
    %v2773 = vpop.f32.mrb[0].mxu0
    %v2774 = vadd.f32 %v2694, %v2773
    %v2775 = vpop.f32.mrb[0].mxu0
    %2776 = vdwg.mxu0
    %s2777 = scalar_lea.vmem %s7, 128
    %v2778 = vld [vmem:[%s2777] sm:$0xff]
    %v2779 = vld [vmem:[%s2777 + $0x8] sm:$0xff]
    %v2780 = vld [vmem:[%s2777 + $0x10] sm:$0xff]
    %v2781 = vld [vmem:[%s2777 + $0x18] sm:$0xff]
    %s2782 = scalar_lea.vmem %s8, 4
    %v2783 = vld [vmem:[%s2782] sm:$0x1]
    %v2785 = vlaneseq
    %v2786 = vshrl.u32 %v2785, 7
    %v2787 = vsub.s32 0, %v2786
    %v2788 = vrot.slane %v2783, %v2787
    %2790 = vmatprep.subr.mxu0 0.0
    %2791 = vmatpush1.msra.mxu0 %v2778
    %2792 = vmatprep.subr.mxu0 0.0
    %2793 = vmatpush1.msra.mxu0 %v2779
    %2794 = vmatprep.subr.mxu0 0.0
    %2795 = vmatpush1.msra.mxu0 %v2780
    %2796 = vmatprep.subr.mxu0 0.0
    %2797 = vmatpush1.msra.mxu0 %v2781
    %2798 = vmatprep.subr.mxu0 0.0
    %2799 = vmatpush1.msra.mxu0 0.0
    %2800 = vmatprep.subr.mxu0 0.0
    %2801 = vmatpush1.msra.mxu0 0.0
    %2802 = vmatprep.subr.mxu0 0.0
    %2803 = vmatpush1.msra.mxu0 0.0
    %2804 = vmatprep.subr.mxu0 0.0
    %2805 = vmatpush1.msra.mxu0 0.0
    %2806 = vmatprep.subr.mxu0 0.0
    %2807 = vmatpush1.msra.mxu0 0.0
    %2808 = vmatprep.subr.mxu0 0.0
    %2809 = vmatpush1.msra.mxu0 0.0
    %2810 = vmatprep.subr.mxu0 0.0
    %2811 = vmatpush1.msra.mxu0 0.0
    %2812 = vmatprep.subr.mxu0 0.0
    %2813 = vmatpush1.msra.mxu0 0.0
    %2814 = vmatprep.subr.mxu0 0.0
    %2815 = vmatpush1.msra.mxu0 0.0
    %2816 = vmatprep.subr.mxu0 0.0
    %2817 = vmatpush1.msra.mxu0 0.0
    %2818 = vmatprep.subr.mxu0 0.0
    %2819 = vmatpush1.msra.mxu0 0.0
    %2820 = vmatprep.subr.mxu0 0.0
    %2821 = vmatpush1.msra.mxu0 0.0
    %2822 = vmatprep.subr.mxu0 0.0
    %2823 = vmatpush1.msra.mxu0 0.0
    %2824 = vmatprep.subr.mxu0 0.0
    %2825 = vmatpush1.msra.mxu0 0.0
    %2826 = vmatprep.subr.mxu0 0.0
    %2827 = vmatpush1.msra.mxu0 0.0
    %2828 = vmatprep.subr.mxu0 0.0
    %2829 = vmatpush1.msra.mxu0 0.0
    %2830 = vmatprep.subr.mxu0 0.0
    %2831 = vmatpush1.msra.mxu0 0.0
    %2832 = vmatprep.subr.mxu0 0.0
    %2833 = vmatpush1.msra.mxu0 0.0
    %2834 = vmatprep.subr.mxu0 0.0
    %2835 = vmatpush1.msra.mxu0 0.0
    %2836 = vmatprep.subr.mxu0 0.0
    %2837 = vmatpush1.msra.mxu0 0.0
    %2838 = vmatprep.subr.mxu0 0.0
    %2839 = vmatpush1.msra.mxu0 0.0
    %2840 = vmatprep.subr.mxu0 0.0
    %2841 = vmatpush1.msra.mxu0 0.0
    %2842 = vmatprep.subr.mxu0 0.0
    %2843 = vmatpush1.msra.mxu0 0.0
    %2844 = vmatprep.subr.mxu0 0.0
    %2845 = vmatpush1.msra.mxu0 0.0
    %2846 = vmatprep.subr.mxu0 0.0
    %2847 = vmatpush1.msra.mxu0 0.0
    %2848 = vmatprep.subr.mxu0 0.0
    %2849 = vmatpush1.msra.mxu0 0.0
    %2850 = vmatprep.subr.mxu0 0.0
    %2851 = vmatpush1.msra.mxu0 0.0
    %2852 = vmatprep.subr.mxu0 0.0
    %2853 = vmatpush1.msra.mxu0 0.0
    %2854 = vmatprep.mubr.f32.mxu0 0.0
    %2855 = vmatmul.mubr.f32.gmra.mrb[0].mxu0 %v2697
    %v2856 = vpop.f32.mrb[0].mxu0
    %v2857 = vadd.f32 %v2788, %v2856
    %v2858 = vpop.f32.mrb[0].mxu0
    %2859 = vmatprep.mubr.f32.mxu0 0.0
    %2860 = vmatmul.mubr.f32.gmra.mrb[0].mxu0 %v2700
    %v2861 = vpop.f32.mrb[0].mxu0
    %v2862 = vadd.f32 %v2788, %v2861
    %v2863 = vpop.f32.mrb[0].mxu0
    %2864 = vdwg.mxu0
    %s2865 = scalar_lea.vmem %s9, 128
    %v2866 = vld [vmem:[%s2865] sm:$0xff]
    %v2867 = vld [vmem:[%s2865 + $0x8] sm:$0xff]
    %v2868 = vld [vmem:[%s2865 + $0x10] sm:$0xff]
    %v2869 = vld [vmem:[%s2865 + $0x18] sm:$0xff]
    %s2870 = scalar_lea.vmem %s10, 4
    %v2871 = vld [vmem:[%s2870] sm:$0x1]
    %v2873 = vlaneseq
    %v2874 = vshrl.u32 %v2873, 7
    %v2875 = vsub.s32 0, %v2874
    %v2876 = vrot.slane %v2871, %v2875
    %2878 = vmatprep.subr.mxu0 0.0
    %2879 = vmatpush1.msra.mxu0 %v2866
    %2880 = vmatprep.subr.mxu0 0.0
    %2881 = vmatpush1.msra.mxu0 %v2867
    %2882 = vmatprep.subr.mxu0 0.0
    %2883 = vmatpush1.msra.mxu0 %v2868
    %2884 = vmatprep.subr.mxu0 0.0
    %2885 = vmatpush1.msra.mxu0 %v2869
    %2886 = vmatprep.subr.mxu0 0.0
    %2887 = vmatpush1.msra.mxu0 0.0
    %2888 = vmatprep.subr.mxu0 0.0
    %2889 = vmatpush1.msra.mxu0 0.0
    %2890 = vmatprep.subr.mxu0 0.0
    %2891 = vmatpush1.msra.mxu0 0.0
    %2892 = vmatprep.subr.mxu0 0.0
    %2893 = vmatpush1.msra.mxu0 0.0
    %2894 = vmatprep.subr.mxu0 0.0
    %2895 = vmatpush1.msra.mxu0 0.0
    %2896 = vmatprep.subr.mxu0 0.0
    %2897 = vmatpush1.msra.mxu0 0.0
    %2898 = vmatprep.subr.mxu0 0.0
    %2899 = vmatpush1.msra.mxu0 0.0
    %2900 = vmatprep.subr.mxu0 0.0
    %2901 = vmatpush1.msra.mxu0 0.0
    %2902 = vmatprep.subr.mxu0 0.0
    %2903 = vmatpush1.msra.mxu0 0.0
    %2904 = vmatprep.subr.mxu0 0.0
    %2905 = vmatpush1.msra.mxu0 0.0
    %2906 = vmatprep.subr.mxu0 0.0
    %2907 = vmatpush1.msra.mxu0 0.0
    %2908 = vmatprep.subr.mxu0 0.0
    %2909 = vmatpush1.msra.mxu0 0.0
    %2910 = vmatprep.subr.mxu0 0.0
    %2911 = vmatpush1.msra.mxu0 0.0
    %2912 = vmatprep.subr.mxu0 0.0
    %2913 = vmatpush1.msra.mxu0 0.0
    %2914 = vmatprep.subr.mxu0 0.0
    %2915 = vmatpush1.msra.mxu0 0.0
    %2916 = vmatprep.subr.mxu0 0.0
    %2917 = vmatpush1.msra.mxu0 0.0
    %2918 = vmatprep.subr.mxu0 0.0
    %2919 = vmatpush1.msra.mxu0 0.0
    %2920 = vmatprep.subr.mxu0 0.0
    %2921 = vmatpush1.msra.mxu0 0.0
    %2922 = vmatprep.subr.mxu0 0.0
    %2923 = vmatpush1.msra.mxu0 0.0
    %2924 = vmatprep.subr.mxu0 0.0
    %2925 = vmatpush1.msra.mxu0 0.0
    %2926 = vmatprep.subr.mxu0 0.0
    %2927 = vmatpush1.msra.mxu0 0.0
    %2928 = vmatprep.subr.mxu0 0.0
    %2929 = vmatpush1.msra.mxu0 0.0
    %2930 = vmatprep.subr.mxu0 0.0
    %2931 = vmatpush1.msra.mxu0 0.0
    %2932 = vmatprep.subr.mxu0 0.0
    %2933 = vmatpush1.msra.mxu0 0.0
    %2934 = vmatprep.subr.mxu0 0.0
    %2935 = vmatpush1.msra.mxu0 0.0
    %2936 = vmatprep.subr.mxu0 0.0
    %2937 = vmatpush1.msra.mxu0 0.0
    %2938 = vmatprep.subr.mxu0 0.0
    %2939 = vmatpush1.msra.mxu0 0.0
    %2940 = vmatprep.subr.mxu0 0.0
    %2941 = vmatpush1.msra.mxu0 0.0
    %2942 = vmatprep.mubr.f32.mxu0 0.0
    %2943 = vmatmul.mubr.f32.gmra.mrb[0].mxu0 %v2697
    %v2944 = vpop.f32.mrb[0].mxu0
    %v2945 = vadd.f32 %v2876, %v2944
    %v2946 = vpop.f32.mrb[0].mxu0
    %2947 = vmatprep.mubr.f32.mxu0 0.0
    %2948 = vmatmul.mubr.f32.gmra.mrb[0].mxu0 %v2700
    %v2949 = vpop.f32.mrb[0].mxu0
    %v2950 = vadd.f32 %v2876, %v2949
    %v2951 = vpop.f32.mrb[0].mxu0
    %2952 = vdwg.mxu0
    %v2954 = vsel %vm133, %v2769, 0
    %v2957 = vsel %vm133, %v2774, 0
    %v2960 = vsel %vm133, %v2857, 0
    %v2963 = vsel %vm133, %v2862, 0
    %2965 = vmatprep.subr.mxu0 0.0
    %2966 = vmatpush1.xpose.msra.mxu0 %v2960
    %2967 = vmatprep.subr.mxu0 0.0
    %2968 = vmatpush1.xpose.msra.mxu0 %v2963
    %2969 = vmatprep.subr.mxu0 0.0
    %2970 = vmatpush1.xpose.msra.mxu0 0.0
    %2971 = vmatprep.subr.mxu0 0.0
    %2972 = vmatpush1.xpose.msra.mxu0 0.0
    %2973 = vmatprep.subr.mxu0 0.0
    %2974 = vmatpush1.xpose.msra.mxu0 0.0
    %2975 = vmatprep.subr.mxu0 0.0
    %2976 = vmatpush1.xpose.msra.mxu0 0.0
    %2977 = vmatprep.subr.mxu0 0.0
    %2978 = vmatpush1.xpose.msra.mxu0 0.0
    %2979 = vmatprep.subr.mxu0 0.0
    %2980 = vmatpush1.xpose.msra.mxu0 0.0
    %2981 = vmatprep.subr.mxu0 0.0
    %2982 = vmatpush1.xpose.msra.mxu0 0.0
    %2983 = vmatprep.subr.mxu0 0.0
    %2984 = vmatpush1.xpose.msra.mxu0 0.0
    %2985 = vmatprep.subr.mxu0 0.0
    %2986 = vmatpush1.xpose.msra.mxu0 0.0
    %2987 = vmatprep.subr.mxu0 0.0
    %2988 = vmatpush1.xpose.msra.mxu0 0.0
    %2989 = vmatprep.subr.mxu0 0.0
    %2990 = vmatpush1.xpose.msra.mxu0 0.0
    %2991 = vmatprep.subr.mxu0 0.0
    %2992 = vmatpush1.xpose.msra.mxu0 0.0
    %2993 = vmatprep.subr.mxu0 0.0
    %2994 = vmatpush1.xpose.msra.mxu0 0.0
    %2995 = vmatprep.subr.mxu0 0.0
    %2996 = vmatpush1.xpose.msra.mxu0 0.0
    %2997 = vmatprep.subr.mxu0 0.0
    %2998 = vmatpush1.xpose.msra.mxu0 0.0
    %2999 = vmatprep.subr.mxu0 0.0
    %3000 = vmatpush1.xpose.msra.mxu0 0.0
    %3001 = vmatprep.subr.mxu0 0.0
    %3002 = vmatpush1.xpose.msra.mxu0 0.0
    %3003 = vmatprep.subr.mxu0 0.0
    %3004 = vmatpush1.xpose.msra.mxu0 0.0
    %3005 = vmatprep.subr.mxu0 0.0
    %3006 = vmatpush1.xpose.msra.mxu0 0.0
    %3007 = vmatprep.subr.mxu0 0.0
    %3008 = vmatpush1.xpose.msra.mxu0 0.0
    %3009 = vmatprep.subr.mxu0 0.0
    %3010 = vmatpush1.xpose.msra.mxu0 0.0
    %3011 = vmatprep.subr.mxu0 0.0
    %3012 = vmatpush1.xpose.msra.mxu0 0.0
    %3013 = vmatprep.subr.mxu0 0.0
    %3014 = vmatpush1.xpose.msra.mxu0 0.0
    %3015 = vmatprep.subr.mxu0 0.0
    %3016 = vmatpush1.xpose.msra.mxu0 0.0
    %3017 = vmatprep.subr.mxu0 0.0
    %3018 = vmatpush1.xpose.msra.mxu0 0.0
    %3019 = vmatprep.subr.mxu0 0.0
    %3020 = vmatpush1.xpose.msra.mxu0 0.0
    %3021 = vmatprep.subr.mxu0 0.0
    %3022 = vmatpush1.xpose.msra.mxu0 0.0
    %3023 = vmatprep.subr.mxu0 0.0
    %3024 = vmatpush1.xpose.msra.mxu0 0.0
    %3025 = vmatprep.subr.mxu0 0.0
    %3026 = vmatpush1.xpose.msra.mxu0 0.0
    %3027 = vmatprep.subr.mxu0 0.0
    %3028 = vmatpush1.xpose.msra.mxu0 0.0
    %3029 = vmatprep.mubr.f32.mxu0 0.0
    %3030 = vmatmul.mubr.f32.gmra.mrb[0].mxu0 %v2954
    %v3031 = vpop.f32.mrb[0].mxu0
    %v3032 = vadd.f32 0.0, %v3031
    %v3033 = vpop.f32.mrb[0].mxu0
    %3034 = vmatprep.mubr.f32.mxu0 0.0
    %3035 = vmatmul.mubr.f32.gmra.mrb[0].mxu0 %v2957
    %v3036 = vpop.f32.mrb[0].mxu0
    %v3037 = vadd.f32 0.0, %v3036
    %v3038 = vpop.f32.mrb[0].mxu0
    %3039 = vdwg.mxu0
    %v3040 = vmul.f32 %v3032, 0.35355338
    %v3041 = vmul.f32 %v3037, 0.35355338
    %v3042 = vadd.f32 %v3040, %v219
    %v3043 = vadd.f32 %v3041, %v220
    %v3044 = vsel %vm577, %v3042, -inf
    %3045 = vmax.xlane.f32.xlu0 %v3044
    %v3046 = vpop.xlane.xlu0 %3045
    %v3047 = vsel %vm577, %v3043, -inf
    %3048 = vmax.xlane.f32.xlu0 %v3047
    %v3049 = vpop.xlane.xlu0 %3048
    %v3050 = vsub.f32 %v3042, %v3046
    %v3051 = vsub.f32 %v3043, %v3049
    %v3052 = vmul.f32 %v3050, 1.442695
    %v3053 = vpow.pop %v3052
    %v3054 = vmul.f32 %v3051, 1.442695
    %v3055 = vpow.pop %v3054
    %v3056 = vsel %vm577, %v3053, 0.0
    %3057 = vadd.xlane.f32.xlu0 %v3056
    %v3058 = vpop.xlane.xlu0 %3057
    %v3059 = vsel %vm577, %v3055, 0.0
    %3060 = vadd.xlane.f32.xlu0 %v3059
    %v3061 = vpop.xlane.xlu0 %3060
    %v3062 = vrcp.pop %v3058
    %v3063 = vrcp.pop %v3061
    %v3064 = vmul.f32 %v3053, %v3062
    %v3065 = vmul.f32 %v3055, %v3063
    %v3067 = vsel %vm577, %v3064, 0
    %v3070 = vsel %vm577, %v3065, 0
    %3072 = vmatprep.subr.mxu0 0.0
    %3073 = vmatpush1.msra.mxu0 %v2945
    %3074 = vmatprep.subr.mxu0 0.0
    %3075 = vmatpush1.msra.mxu0 %v2950
    %3076 = vmatprep.subr.mxu0 0.0
    %3077 = vmatpush1.msra.mxu0 0.0
    %3078 = vmatprep.subr.mxu0 0.0
    %3079 = vmatpush1.msra.mxu0 0.0
    %3080 = vmatprep.subr.mxu0 0.0
    %3081 = vmatpush1.msra.mxu0 0.0
    %3082 = vmatprep.subr.mxu0 0.0
    %3083 = vmatpush1.msra.mxu0 0.0
    %3084 = vmatprep.subr.mxu0 0.0
    %3085 = vmatpush1.msra.mxu0 0.0
    %3086 = vmatprep.subr.mxu0 0.0
    %3087 = vmatpush1.msra.mxu0 0.0
    %3088 = vmatprep.subr.mxu0 0.0
    %3089 = vmatpush1.msra.mxu0 0.0
    %3090 = vmatprep.subr.mxu0 0.0
    %3091 = vmatpush1.msra.mxu0 0.0
    %3092 = vmatprep.subr.mxu0 0.0
    %3093 = vmatpush1.msra.mxu0 0.0
    %3094 = vmatprep.subr.mxu0 0.0
    %3095 = vmatpush1.msra.mxu0 0.0
    %3096 = vmatprep.subr.mxu0 0.0
    %3097 = vmatpush1.msra.mxu0 0.0
    %3098 = vmatprep.subr.mxu0 0.0
    %3099 = vmatpush1.msra.mxu0 0.0
    %3100 = vmatprep.subr.mxu0 0.0
    %3101 = vmatpush1.msra.mxu0 0.0
    %3102 = vmatprep.subr.mxu0 0.0
    %3103 = vmatpush1.msra.mxu0 0.0
    %3104 = vmatprep.subr.mxu0 0.0
    %3105 = vmatpush1.msra.mxu0 0.0
    %3106 = vmatprep.subr.mxu0 0.0
    %3107 = vmatpush1.msra.mxu0 0.0
    %3108 = vmatprep.subr.mxu0 0.0
    %3109 = vmatpush1.msra.mxu0 0.0
    %3110 = vmatprep.subr.mxu0 0.0
    %3111 = vmatpush1.msra.mxu0 0.0
    %3112 = vmatprep.subr.mxu0 0.0
    %3113 = vmatpush1.msra.mxu0 0.0
    %3114 = vmatprep.subr.mxu0 0.0
    %3115 = vmatpush1.msra.mxu0 0.0
    %3116 = vmatprep.subr.mxu0 0.0
    %3117 = vmatpush1.msra.mxu0 0.0
    %3118 = vmatprep.subr.mxu0 0.0
    %3119 = vmatpush1.msra.mxu0 0.0
    %3120 = vmatprep.subr.mxu0 0.0
    %3121 = vmatpush1.msra.mxu0 0.0
    %3122 = vmatprep.subr.mxu0 0.0
    %3123 = vmatpush1.msra.mxu0 0.0
    %3124 = vmatprep.subr.mxu0 0.0
    %3125 = vmatpush1.msra.mxu0 0.0
    %3126 = vmatprep.subr.mxu0 0.0
    %3127 = vmatpush1.msra.mxu0 0.0
    %3128 = vmatprep.subr.mxu0 0.0
    %3129 = vmatpush1.msra.mxu0 0.0
    %3130 = vmatprep.subr.mxu0 0.0
    %3131 = vmatpush1.msra.mxu0 0.0
    %3132 = vmatprep.subr.mxu0 0.0
    %3133 = vmatpush1.msra.mxu0 0.0
    %3134 = vmatprep.subr.mxu0 0.0
    %3135 = vmatpush1.msra.mxu0 0.0
    %3136 = vmatprep.mubr.f32.mxu0 0.0
    %3137 = vmatmul.mubr.f32.gmra.mrb[0].mxu0 %v3067
    %v3138 = vpop.f32.mrb[0].mxu0
    %v3139 = vadd.f32 0.0, %v3138
    %v3140 = vpop.f32.mrb[0].mxu0
    %3141 = vmatprep.mubr.f32.mxu0 0.0
    %3142 = vmatmul.mubr.f32.gmra.mrb[0].mxu0 %v3070
    %v3143 = vpop.f32.mrb[0].mxu0
    %v3144 = vadd.f32 0.0, %v3143
    %v3145 = vpop.f32.mrb[0].mxu0
    %3146 = vdwg.mxu0
    %s3147 = scalar_lea.vmem %s11, 32
    %v3148 = vld [vmem:[%s3147] sm:$0xff]
    %s3149 = scalar_lea.vmem %s5, 160
    %v3150 = vld [vmem:[%s3149] sm:$0xff]
    %v3151 = vld [vmem:[%s3149 + $0x8] sm:$0xff]
    %v3152 = vld [vmem:[%s3149 + $0x10] sm:$0xff]
    %v3153 = vld [vmem:[%s3149 + $0x18] sm:$0xff]
    %s3154 = scalar_lea.vmem %s6, 5
    %v3155 = vld [vmem:[%s3154] sm:$0x1]
    %v3157 = vlaneseq
    %v3158 = vshrl.u32 %v3157, 7
    %v3159 = vsub.s32 0, %v3158
    %v3160 = vrot.slane %v3155, %v3159
    %3162 = vmatprep.subr.mxu0 0.0
    %3163 = vmatpush1.msra.mxu0 %v3150
    %3164 = vmatprep.subr.mxu0 0.0
    %3165 = vmatpush1.msra.mxu0 %v3151
    %3166 = vmatprep.subr.mxu0 0.0
    %3167 = vmatpush1.msra.mxu0 %v3152
    %3168 = vmatprep.subr.mxu0 0.0
    %3169 = vmatpush1.msra.mxu0 %v3153
    %3170 = vmatprep.subr.mxu0 0.0
    %3171 = vmatpush1.msra.mxu0 0.0
    %3172 = vmatprep.subr.mxu0 0.0
    %3173 = vmatpush1.msra.mxu0 0.0
    %3174 = vmatprep.subr.mxu0 0.0
    %3175 = vmatpush1.msra.mxu0 0.0
    %3176 = vmatprep.subr.mxu0 0.0
    %3177 = vmatpush1.msra.mxu0 0.0
    %3178 = vmatprep.subr.mxu0 0.0
    %3179 = vmatpush1.msra.mxu0 0.0
    %3180 = vmatprep.subr.mxu0 0.0
    %3181 = vmatpush1.msra.mxu0 0.0
    %3182 = vmatprep.subr.mxu0 0.0
    %3183 = vmatpush1.msra.mxu0 0.0
    %3184 = vmatprep.subr.mxu0 0.0
    %3185 = vmatpush1.msra.mxu0 0.0
    %3186 = vmatprep.subr.mxu0 0.0
    %3187 = vmatpush1.msra.mxu0 0.0
    %3188 = vmatprep.subr.mxu0 0.0
    %3189 = vmatpush1.msra.mxu0 0.0
    %3190 = vmatprep.subr.mxu0 0.0
    %3191 = vmatpush1.msra.mxu0 0.0
    %3192 = vmatprep.subr.mxu0 0.0
    %3193 = vmatpush1.msra.mxu0 0.0
    %3194 = vmatprep.subr.mxu0 0.0
    %3195 = vmatpush1.msra.mxu0 0.0
    %3196 = vmatprep.subr.mxu0 0.0
    %3197 = vmatpush1.msra.mxu0 0.0
    %3198 = vmatprep.subr.mxu0 0.0
    %3199 = vmatpush1.msra.mxu0 0.0
    %3200 = vmatprep.subr.mxu0 0.0
    %3201 = vmatpush1.msra.mxu0 0.0
    %3202 = vmatprep.subr.mxu0 0.0
    %3203 = vmatpush1.msra.mxu0 0.0
    %3204 = vmatprep.subr.mxu0 0.0
    %3205 = vmatpush1.msra.mxu0 0.0
    %3206 = vmatprep.subr.mxu0 0.0
    %3207 = vmatpush1.msra.mxu0 0.0
    %3208 = vmatprep.subr.mxu0 0.0
    %3209 = vmatpush1.msra.mxu0 0.0
    %3210 = vmatprep.subr.mxu0 0.0
    %3211 = vmatpush1.msra.mxu0 0.0
    %3212 = vmatprep.subr.mxu0 0.0
    %3213 = vmatpush1.msra.mxu0 0.0
    %3214 = vmatprep.subr.mxu0 0.0
    %3215 = vmatpush1.msra.mxu0 0.0
    %3216 = vmatprep.subr.mxu0 0.0
    %3217 = vmatpush1.msra.mxu0 0.0
    %3218 = vmatprep.subr.mxu0 0.0
    %3219 = vmatpush1.msra.mxu0 0.0
    %3220 = vmatprep.subr.mxu0 0.0
    %3221 = vmatpush1.msra.mxu0 0.0
    %3222 = vmatprep.subr.mxu0 0.0
    %3223 = vmatpush1.msra.mxu0 0.0
    %3224 = vmatprep.subr.mxu0 0.0
    %3225 = vmatpush1.msra.mxu0 0.0
    %3226 = vmatprep.mubr.f32.mxu0 0.0
    %3227 = vmatmul.mubr.f32.gmra.mrb[0].mxu0 %v2697
    %v3228 = vpop.f32.mrb[0].mxu0
    %v3229 = vadd.f32 %v3160, %v3228
    %v3230 = vpop.f32.mrb[0].mxu0
    %3231 = vmatprep.mubr.f32.mxu0 0.0
    %3232 = vmatmul.mubr.f32.gmra.mrb[0].mxu0 %v2700
    %v3233 = vpop.f32.mrb[0].mxu0
    %v3234 = vadd.f32 %v3160, %v3233
    %v3235 = vpop.f32.mrb[0].mxu0
    %3236 = vdwg.mxu0
    %s3237 = scalar_lea.vmem %s7, 160
    %v3238 = vld [vmem:[%s3237] sm:$0xff]
    %v3239 = vld [vmem:[%s3237 + $0x8] sm:$0xff]
    %v3240 = vld [vmem:[%s3237 + $0x10] sm:$0xff]
    %v3241 = vld [vmem:[%s3237 + $0x18] sm:$0xff]
    %s3242 = scalar_lea.vmem %s8, 5
    %v3243 = vld [vmem:[%s3242] sm:$0x1]
    %v3245 = vlaneseq
    %v3246 = vshrl.u32 %v3245, 7
    %v3247 = vsub.s32 0, %v3246
    %v3248 = vrot.slane %v3243, %v3247
    %3250 = vmatprep.subr.mxu0 0.0
    %3251 = vmatpush1.msra.mxu0 %v3238
    %3252 = vmatprep.subr.mxu0 0.0
    %3253 = vmatpush1.msra.mxu0 %v3239
    %3254 = vmatprep.subr.mxu0 0.0
    %3255 = vmatpush1.msra.mxu0 %v3240
    %3256 = vmatprep.subr.mxu0 0.0
    %3257 = vmatpush1.msra.mxu0 %v3241
    %3258 = vmatprep.subr.mxu0 0.0
    %3259 = vmatpush1.msra.mxu0 0.0
    %3260 = vmatprep.subr.mxu0 0.0
    %3261 = vmatpush1.msra.mxu0 0.0
    %3262 = vmatprep.subr.mxu0 0.0
    %3263 = vmatpush1.msra.mxu0 0.0
    %3264 = vmatprep.subr.mxu0 0.0
    %3265 = vmatpush1.msra.mxu0 0.0
    %3266 = vmatprep.subr.mxu0 0.0
    %3267 = vmatpush1.msra.mxu0 0.0
    %3268 = vmatprep.subr.mxu0 0.0
    %3269 = vmatpush1.msra.mxu0 0.0
    %3270 = vmatprep.subr.mxu0 0.0
    %3271 = vmatpush1.msra.mxu0 0.0
    %3272 = vmatprep.subr.mxu0 0.0
    %3273 = vmatpush1.msra.mxu0 0.0
    %3274 = vmatprep.subr.mxu0 0.0
    %3275 = vmatpush1.msra.mxu0 0.0
    %3276 = vmatprep.subr.mxu0 0.0
    %3277 = vmatpush1.msra.mxu0 0.0
    %3278 = vmatprep.subr.mxu0 0.0
    %3279 = vmatpush1.msra.mxu0 0.0
    %3280 = vmatprep.subr.mxu0 0.0
    %3281 = vmatpush1.msra.mxu0 0.0
    %3282 = vmatprep.subr.mxu0 0.0
    %3283 = vmatpush1.msra.mxu0 0.0
    %3284 = vmatprep.subr.mxu0 0.0
    %3285 = vmatpush1.msra.mxu0 0.0
    %3286 = vmatprep.subr.mxu0 0.0
    %3287 = vmatpush1.msra.mxu0 0.0
    %3288 = vmatprep.subr.mxu0 0.0
    %3289 = vmatpush1.msra.mxu0 0.0
    %3290 = vmatprep.subr.mxu0 0.0
    %3291 = vmatpush1.msra.mxu0 0.0
    %3292 = vmatprep.subr.mxu0 0.0
    %3293 = vmatpush1.msra.mxu0 0.0
    %3294 = vmatprep.subr.mxu0 0.0
    %3295 = vmatpush1.msra.mxu0 0.0
    %3296 = vmatprep.subr.mxu0 0.0
    %3297 = vmatpush1.msra.mxu0 0.0
    %3298 = vmatprep.subr.mxu0 0.0
    %3299 = vmatpush1.msra.mxu0 0.0
    %3300 = vmatprep.subr.mxu0 0.0
    %3301 = vmatpush1.msra.mxu0 0.0
    %3302 = vmatprep.subr.mxu0 0.0
    %3303 = vmatpush1.msra.mxu0 0.0
    %3304 = vmatprep.subr.mxu0 0.0
    %3305 = vmatpush1.msra.mxu0 0.0
    %3306 = vmatprep.subr.mxu0 0.0
    %3307 = vmatpush1.msra.mxu0 0.0
    %3308 = vmatprep.subr.mxu0 0.0
    %3309 = vmatpush1.msra.mxu0 0.0
    %3310 = vmatprep.subr.mxu0 0.0
    %3311 = vmatpush1.msra.mxu0 0.0
    %3312 = vmatprep.subr.mxu0 0.0
    %3313 = vmatpush1.msra.mxu0 0.0
    %3314 = vmatprep.mubr.f32.mxu0 0.0
    %3315 = vmatmul.mubr.f32.gmra.mrb[0].mxu0 %v2697
    %v3316 = vpop.f32.mrb[0].mxu0
    %v3317 = vadd.f32 %v3248, %v3316
    %v3318 = vpop.f32.mrb[0].mxu0
    %3319 = vmatprep.mubr.f32.mxu0 0.0
    %3320 = vmatmul.mubr.f32.gmra.mrb[0].mxu0 %v2700
    %v3321 = vpop.f32.mrb[0].mxu0
    %v3322 = vadd.f32 %v3248, %v3321
    %v3323 = vpop.f32.mrb[0].mxu0
    %3324 = vdwg.mxu0
    %s3325 = scalar_lea.vmem %s9, 160
    %v3326 = vld [vmem:[%s3325] sm:$0xff]
    %v3327 = vld [vmem:[%s3325 + $0x8] sm:$0xff]
    %v3328 = vld [vmem:[%s3325 + $0x10] sm:$0xff]
    %v3329 = vld [vmem:[%s3325 + $0x18] sm:$0xff]
    %s3330 = scalar_lea.vmem %s10, 5
    %v3331 = vld [vmem:[%s3330] sm:$0x1]
    %v3333 = vlaneseq
    %v3334 = vshrl.u32 %v3333, 7
    %v3335 = vsub.s32 0, %v3334
    %v3336 = vrot.slane %v3331, %v3335
    %3338 = vmatprep.subr.mxu0 0.0
    %3339 = vmatpush1.msra.mxu0 %v3326
    %3340 = vmatprep.subr.mxu0 0.0
    %3341 = vmatpush1.msra.mxu0 %v3327
    %3342 = vmatprep.subr.mxu0 0.0
    %3343 = vmatpush1.msra.mxu0 %v3328
    %3344 = vmatprep.subr.mxu0 0.0
    %3345 = vmatpush1.msra.mxu0 %v3329
    %3346 = vmatprep.subr.mxu0 0.0
    %3347 = vmatpush1.msra.mxu0 0.0
    %3348 = vmatprep.subr.mxu0 0.0
    %3349 = vmatpush1.msra.mxu0 0.0
    %3350 = vmatprep.subr.mxu0 0.0
    %3351 = vmatpush1.msra.mxu0 0.0
    %3352 = vmatprep.subr.mxu0 0.0
    %3353 = vmatpush1.msra.mxu0 0.0
    %3354 = vmatprep.subr.mxu0 0.0
    %3355 = vmatpush1.msra.mxu0 0.0
    %3356 = vmatprep.subr.mxu0 0.0
    %3357 = vmatpush1.msra.mxu0 0.0
    %3358 = vmatprep.subr.mxu0 0.0
    %3359 = vmatpush1.msra.mxu0 0.0
    %3360 = vmatprep.subr.mxu0 0.0
    %3361 = vmatpush1.msra.mxu0 0.0
    %3362 = vmatprep.subr.mxu0 0.0
    %3363 = vmatpush1.msra.mxu0 0.0
    %3364 = vmatprep.subr.mxu0 0.0
    %3365 = vmatpush1.msra.mxu0 0.0
    %3366 = vmatprep.subr.mxu0 0.0
    %3367 = vmatpush1.msra.mxu0 0.0
    %3368 = vmatprep.subr.mxu0 0.0
    %3369 = vmatpush1.msra.mxu0 0.0
    %3370 = vmatprep.subr.mxu0 0.0
    %3371 = vmatpush1.msra.mxu0 0.0
    %3372 = vmatprep.subr.mxu0 0.0
    %3373 = vmatpush1.msra.mxu0 0.0
    %3374 = vmatprep.subr.mxu0 0.0
    %3375 = vmatpush1.msra.mxu0 0.0
    %3376 = vmatprep.subr.mxu0 0.0
    %3377 = vmatpush1.msra.mxu0 0.0
    %3378 = vmatprep.subr.mxu0 0.0
    %3379 = vmatpush1.msra.mxu0 0.0
    %3380 = vmatprep.subr.mxu0 0.0
    %3381 = vmatpush1.msra.mxu0 0.0
    %3382 = vmatprep.subr.mxu0 0.0
    %3383 = vmatpush1.msra.mxu0 0.0
    %3384 = vmatprep.subr.mxu0 0.0
    %3385 = vmatpush1.msra.mxu0 0.0
    %3386 = vmatprep.subr.mxu0 0.0
    %3387 = vmatpush1.msra.mxu0 0.0
    %3388 = vmatprep.subr.mxu0 0.0
    %3389 = vmatpush1.msra.mxu0 0.0
    %3390 = vmatprep.subr.mxu0 0.0
    %3391 = vmatpush1.msra.mxu0 0.0
    %3392 = vmatprep.subr.mxu0 0.0
    %3393 = vmatpush1.msra.mxu0 0.0
    %3394 = vmatprep.subr.mxu0 0.0
    %3395 = vmatpush1.msra.mxu0 0.0
    %3396 = vmatprep.subr.mxu0 0.0
    %3397 = vmatpush1.msra.mxu0 0.0
    %3398 = vmatprep.subr.mxu0 0.0
    %3399 = vmatpush1.msra.mxu0 0.0
    %3400 = vmatprep.subr.mxu0 0.0
    %3401 = vmatpush1.msra.mxu0 0.0
    %3402 = vmatprep.mubr.f32.mxu0 0.0
    %3403 = vmatmul.mubr.f32.gmra.mrb[0].mxu0 %v2697
    %v3404 = vpop.f32.mrb[0].mxu0
    %v3405 = vadd.f32 %v3336, %v3404
    %v3406 = vpop.f32.mrb[0].mxu0
    %3407 = vmatprep.mubr.f32.mxu0 0.0
    %3408 = vmatmul.mubr.f32.gmra.mrb[0].mxu0 %v2700
    %v3409 = vpop.f32.mrb[0].mxu0
    %v3410 = vadd.f32 %v3336, %v3409
    %v3411 = vpop.f32.mrb[0].mxu0
    %3412 = vdwg.mxu0
    %v3414 = vsel %vm133, %v3229, 0
    %v3417 = vsel %vm133, %v3234, 0
    %v3420 = vsel %vm133, %v3317, 0
    %v3423 = vsel %vm133, %v3322, 0
    %3425 = vmatprep.subr.mxu0 0.0
    %3426 = vmatpush1.xpose.msra.mxu0 %v3420
    %3427 = vmatprep.subr.mxu0 0.0
    %3428 = vmatpush1.xpose.msra.mxu0 %v3423
    %3429 = vmatprep.subr.mxu0 0.0
    %3430 = vmatpush1.xpose.msra.mxu0 0.0
    %3431 = vmatprep.subr.mxu0 0.0
    %3432 = vmatpush1.xpose.msra.mxu0 0.0
    %3433 = vmatprep.subr.mxu0 0.0
    %3434 = vmatpush1.xpose.msra.mxu0 0.0
    %3435 = vmatprep.subr.mxu0 0.0
    %3436 = vmatpush1.xpose.msra.mxu0 0.0
    %3437 = vmatprep.subr.mxu0 0.0
    %3438 = vmatpush1.xpose.msra.mxu0 0.0
    %3439 = vmatprep.subr.mxu0 0.0
    %3440 = vmatpush1.xpose.msra.mxu0 0.0
    %3441 = vmatprep.subr.mxu0 0.0
    %3442 = vmatpush1.xpose.msra.mxu0 0.0
    %3443 = vmatprep.subr.mxu0 0.0
    %3444 = vmatpush1.xpose.msra.mxu0 0.0
    %3445 = vmatprep.subr.mxu0 0.0
    %3446 = vmatpush1.xpose.msra.mxu0 0.0
    %3447 = vmatprep.subr.mxu0 0.0
    %3448 = vmatpush1.xpose.msra.mxu0 0.0
    %3449 = vmatprep.subr.mxu0 0.0
    %3450 = vmatpush1.xpose.msra.mxu0 0.0
    %3451 = vmatprep.subr.mxu0 0.0
    %3452 = vmatpush1.xpose.msra.mxu0 0.0
    %3453 = vmatprep.subr.mxu0 0.0
    %3454 = vmatpush1.xpose.msra.mxu0 0.0
    %3455 = vmatprep.subr.mxu0 0.0
    %3456 = vmatpush1.xpose.msra.mxu0 0.0
    %3457 = vmatprep.subr.mxu0 0.0
    %3458 = vmatpush1.xpose.msra.mxu0 0.0
    %3459 = vmatprep.subr.mxu0 0.0
    %3460 = vmatpush1.xpose.msra.mxu0 0.0
    %3461 = vmatprep.subr.mxu0 0.0
    %3462 = vmatpush1.xpose.msra.mxu0 0.0
    %3463 = vmatprep.subr.mxu0 0.0
    %3464 = vmatpush1.xpose.msra.mxu0 0.0
    %3465 = vmatprep.subr.mxu0 0.0
    %3466 = vmatpush1.xpose.msra.mxu0 0.0
    %3467 = vmatprep.subr.mxu0 0.0
    %3468 = vmatpush1.xpose.msra.mxu0 0.0
    %3469 = vmatprep.subr.mxu0 0.0
    %3470 = vmatpush1.xpose.msra.mxu0 0.0
    %3471 = vmatprep.subr.mxu0 0.0
    %3472 = vmatpush1.xpose.msra.mxu0 0.0
    %3473 = vmatprep.subr.mxu0 0.0
    %3474 = vmatpush1.xpose.msra.mxu0 0.0
    %3475 = vmatprep.subr.mxu0 0.0
    %3476 = vmatpush1.xpose.msra.mxu0 0.0
    %3477 = vmatprep.subr.mxu0 0.0
    %3478 = vmatpush1.xpose.msra.mxu0 0.0
    %3479 = vmatprep.subr.mxu0 0.0
    %3480 = vmatpush1.xpose.msra.mxu0 0.0
    %3481 = vmatprep.subr.mxu0 0.0
    %3482 = vmatpush1.xpose.msra.mxu0 0.0
    %3483 = vmatprep.subr.mxu0 0.0
    %3484 = vmatpush1.xpose.msra.mxu0 0.0
    %3485 = vmatprep.subr.mxu0 0.0
    %3486 = vmatpush1.xpose.msra.mxu0 0.0
    %3487 = vmatprep.subr.mxu0 0.0
    %3488 = vmatpush1.xpose.msra.mxu0 0.0
    %3489 = vmatprep.mubr.f32.mxu0 0.0
    %3490 = vmatmul.mubr.f32.gmra.mrb[0].mxu0 %v3414
    %v3491 = vpop.f32.mrb[0].mxu0
    %v3492 = vadd.f32 0.0, %v3491
    %v3493 = vpop.f32.mrb[0].mxu0
    %3494 = vmatprep.mubr.f32.mxu0 0.0
    %3495 = vmatmul.mubr.f32.gmra.mrb[0].mxu0 %v3417
    %v3496 = vpop.f32.mrb[0].mxu0
    %v3497 = vadd.f32 0.0, %v3496
    %v3498 = vpop.f32.mrb[0].mxu0
    %3499 = vdwg.mxu0
    %v3500 = vmul.f32 %v3492, 0.35355338
    %v3501 = vmul.f32 %v3497, 0.35355338
    %v3502 = vadd.f32 %v3500, %v219
    %v3503 = vadd.f32 %v3501, %v220
    %v3504 = vsel %vm577, %v3502, -inf
    %3505 = vmax.xlane.f32.xlu0 %v3504
    %v3506 = vpop.xlane.xlu0 %3505
    %v3507 = vsel %vm577, %v3503, -inf
    %3508 = vmax.xlane.f32.xlu0 %v3507
    %v3509 = vpop.xlane.xlu0 %3508
    %v3510 = vsub.f32 %v3502, %v3506
    %v3511 = vsub.f32 %v3503, %v3509
    %v3512 = vmul.f32 %v3510, 1.442695
    %v3513 = vpow.pop %v3512
    %v3514 = vmul.f32 %v3511, 1.442695
    %v3515 = vpow.pop %v3514
    %v3516 = vsel %vm577, %v3513, 0.0
    %3517 = vadd.xlane.f32.xlu0 %v3516
    %v3518 = vpop.xlane.xlu0 %3517
    %v3519 = vsel %vm577, %v3515, 0.0
    %3520 = vadd.xlane.f32.xlu0 %v3519
    %v3521 = vpop.xlane.xlu0 %3520
    %v3522 = vrcp.pop %v3518
    %v3523 = vrcp.pop %v3521
    %v3524 = vmul.f32 %v3513, %v3522
    %v3525 = vmul.f32 %v3515, %v3523
    %v3527 = vsel %vm577, %v3524, 0
    %v3530 = vsel %vm577, %v3525, 0
    %3532 = vmatprep.subr.mxu0 0.0
    %3533 = vmatpush1.msra.mxu0 %v3405
    %3534 = vmatprep.subr.mxu0 0.0
    %3535 = vmatpush1.msra.mxu0 %v3410
    %3536 = vmatprep.subr.mxu0 0.0
    %3537 = vmatpush1.msra.mxu0 0.0
    %3538 = vmatprep.subr.mxu0 0.0
    %3539 = vmatpush1.msra.mxu0 0.0
    %3540 = vmatprep.subr.mxu0 0.0
    %3541 = vmatpush1.msra.mxu0 0.0
    %3542 = vmatprep.subr.mxu0 0.0
    %3543 = vmatpush1.msra.mxu0 0.0
    %3544 = vmatprep.subr.mxu0 0.0
    %3545 = vmatpush1.msra.mxu0 0.0
    %3546 = vmatprep.subr.mxu0 0.0
    %3547 = vmatpush1.msra.mxu0 0.0
    %3548 = vmatprep.subr.mxu0 0.0
    %3549 = vmatpush1.msra.mxu0 0.0
    %3550 = vmatprep.subr.mxu0 0.0
    %3551 = vmatpush1.msra.mxu0 0.0
    %3552 = vmatprep.subr.mxu0 0.0
    %3553 = vmatpush1.msra.mxu0 0.0
    %3554 = vmatprep.subr.mxu0 0.0
    %3555 = vmatpush1.msra.mxu0 0.0
    %3556 = vmatprep.subr.mxu0 0.0
    %3557 = vmatpush1.msra.mxu0 0.0
    %3558 = vmatprep.subr.mxu0 0.0
    %3559 = vmatpush1.msra.mxu0 0.0
    %3560 = vmatprep.subr.mxu0 0.0
    %3561 = vmatpush1.msra.mxu0 0.0
    %3562 = vmatprep.subr.mxu0 0.0
    %3563 = vmatpush1.msra.mxu0 0.0
    %3564 = vmatprep.subr.mxu0 0.0
    %3565 = vmatpush1.msra.mxu0 0.0
    %3566 = vmatprep.subr.mxu0 0.0
    %3567 = vmatpush1.msra.mxu0 0.0
    %3568 = vmatprep.subr.mxu0 0.0
    %3569 = vmatpush1.msra.mxu0 0.0
    %3570 = vmatprep.subr.mxu0 0.0
    %3571 = vmatpush1.msra.mxu0 0.0
    %3572 = vmatprep.subr.mxu0 0.0
    %3573 = vmatpush1.msra.mxu0 0.0
    %3574 = vmatprep.subr.mxu0 0.0
    %3575 = vmatpush1.msra.mxu0 0.0
    %3576 = vmatprep.subr.mxu0 0.0
    %3577 = vmatpush1.msra.mxu0 0.0
    %3578 = vmatprep.subr.mxu0 0.0
    %3579 = vmatpush1.msra.mxu0 0.0
    %3580 = vmatprep.subr.mxu0 0.0
    %3581 = vmatpush1.msra.mxu0 0.0
    %3582 = vmatprep.subr.mxu0 0.0
    %3583 = vmatpush1.msra.mxu0 0.0
    %3584 = vmatprep.subr.mxu0 0.0
    %3585 = vmatpush1.msra.mxu0 0.0
    %3586 = vmatprep.subr.mxu0 0.0
    %3587 = vmatpush1.msra.mxu0 0.0
    %3588 = vmatprep.subr.mxu0 0.0
    %3589 = vmatpush1.msra.mxu0 0.0
    %3590 = vmatprep.subr.mxu0 0.0
    %3591 = vmatpush1.msra.mxu0 0.0
    %3592 = vmatprep.subr.mxu0 0.0
    %3593 = vmatpush1.msra.mxu0 0.0
    %3594 = vmatprep.subr.mxu0 0.0
    %3595 = vmatpush1.msra.mxu0 0.0
    %3596 = vmatprep.mubr.f32.mxu0 0.0
    %3597 = vmatmul.mubr.f32.gmra.mrb[0].mxu0 %v3527
    %v3598 = vpop.f32.mrb[0].mxu0
    %v3599 = vadd.f32 0.0, %v3598
    %v3600 = vpop.f32.mrb[0].mxu0
    %3601 = vmatprep.mubr.f32.mxu0 0.0
    %3602 = vmatmul.mubr.f32.gmra.mrb[0].mxu0 %v3530
    %v3603 = vpop.f32.mrb[0].mxu0
    %v3604 = vadd.f32 0.0, %v3603
    %v3605 = vpop.f32.mrb[0].mxu0
    %3606 = vdwg.mxu0
    %s3607 = scalar_lea.vmem %s11, 40
    %v3608 = vld [vmem:[%s3607] sm:$0xff]
    %v3610 = vsel %vm133, %v3599, 0
    %v3613 = vsel %vm133, %v3604, 0
    %3615 = vmatprep.subr.mxu0 0.0
    %3616 = vmatpush1.msra.mxu0 %v3608
    %3617 = vmatprep.subr.mxu0 0.0
    %3618 = vmatpush1.msra.mxu0 0.0
    %3619 = vmatprep.subr.mxu0 0.0
    %3620 = vmatpush1.msra.mxu0 0.0
    %3621 = vmatprep.subr.mxu0 0.0
    %3622 = vmatpush1.msra.mxu0 0.0
    %3623 = vmatprep.subr.mxu0 0.0
    %3624 = vmatpush1.msra.mxu0 0.0
    %3625 = vmatprep.subr.mxu0 0.0
    %3626 = vmatpush1.msra.mxu0 0.0
    %3627 = vmatprep.subr.mxu0 0.0
    %3628 = vmatpush1.msra.mxu0 0.0
    %3629 = vmatprep.subr.mxu0 0.0
    %3630 = vmatpush1.msra.mxu0 0.0
    %3631 = vmatprep.subr.mxu0 0.0
    %3632 = vmatpush1.msra.mxu0 0.0
    %3633 = vmatprep.subr.mxu0 0.0
    %3634 = vmatpush1.msra.mxu0 0.0
    %3635 = vmatprep.subr.mxu0 0.0
    %3636 = vmatpush1.msra.mxu0 0.0
    %3637 = vmatprep.subr.mxu0 0.0
    %3638 = vmatpush1.msra.mxu0 0.0
    %3639 = vmatprep.subr.mxu0 0.0
    %3640 = vmatpush1.msra.mxu0 0.0
    %3641 = vmatprep.subr.mxu0 0.0
    %3642 = vmatpush1.msra.mxu0 0.0
    %3643 = vmatprep.subr.mxu0 0.0
    %3644 = vmatpush1.msra.mxu0 0.0
    %3645 = vmatprep.subr.mxu0 0.0
    %3646 = vmatpush1.msra.mxu0 0.0
    %3647 = vmatprep.subr.mxu0 0.0
    %3648 = vmatpush1.msra.mxu0 0.0
    %3649 = vmatprep.subr.mxu0 0.0
    %3650 = vmatpush1.msra.mxu0 0.0
    %3651 = vmatprep.subr.mxu0 0.0
    %3652 = vmatpush1.msra.mxu0 0.0
    %3653 = vmatprep.subr.mxu0 0.0
    %3654 = vmatpush1.msra.mxu0 0.0
    %3655 = vmatprep.subr.mxu0 0.0
    %3656 = vmatpush1.msra.mxu0 0.0
    %3657 = vmatprep.subr.mxu0 0.0
    %3658 = vmatpush1.msra.mxu0 0.0
    %3659 = vmatprep.subr.mxu0 0.0
    %3660 = vmatpush1.msra.mxu0 0.0
    %3661 = vmatprep.subr.mxu0 0.0
    %3662 = vmatpush1.msra.mxu0 0.0
    %3663 = vmatprep.subr.mxu0 0.0
    %3664 = vmatpush1.msra.mxu0 0.0
    %3665 = vmatprep.subr.mxu0 0.0
    %3666 = vmatpush1.msra.mxu0 0.0
    %3667 = vmatprep.subr.mxu0 0.0
    %3668 = vmatpush1.msra.mxu0 0.0
    %3669 = vmatprep.subr.mxu0 0.0
    %3670 = vmatpush1.msra.mxu0 0.0
    %3671 = vmatprep.subr.mxu0 0.0
    %3672 = vmatpush1.msra.mxu0 0.0
    %3673 = vmatprep.subr.mxu0 0.0
    %3674 = vmatpush1.msra.mxu0 0.0
    %3675 = vmatprep.subr.mxu0 0.0
    %3676 = vmatpush1.msra.mxu0 0.0
    %3677 = vmatprep.subr.mxu0 0.0
    %3678 = vmatpush1.msra.mxu0 0.0
    %3679 = vmatprep.mubr.f32.mxu0 0.0
    %3680 = vmatmul.mubr.f32.gmra.mrb[0].mxu0 %v3610
    %v3681 = vpop.f32.mrb[0].mxu0
    %v3682 = vadd.f32 0.0, %v3681
    %v3683 = vpop.f32.mrb[0].mxu0
    %3684 = vmatprep.mubr.f32.mxu0 0.0
    %3685 = vmatmul.mubr.f32.gmra.mrb[0].mxu0 %v3613
    %v3686 = vpop.f32.mrb[0].mxu0
    %v3687 = vadd.f32 0.0, %v3686
    %v3688 = vpop.f32.mrb[0].mxu0
    %3689 = vdwg.mxu0
    %v3691 = vsel %vm133, %v3139, 0
    %v3694 = vsel %vm133, %v3144, 0
    %3696 = vmatprep.subr.mxu0 0.0
    %3697 = vmatpush1.msra.mxu0 %v3148
    %3698 = vmatprep.subr.mxu0 0.0
    %3699 = vmatpush1.msra.mxu0 0.0
    %3700 = vmatprep.subr.mxu0 0.0
    %3701 = vmatpush1.msra.mxu0 0.0
    %3702 = vmatprep.subr.mxu0 0.0
    %3703 = vmatpush1.msra.mxu0 0.0
    %3704 = vmatprep.subr.mxu0 0.0
    %3705 = vmatpush1.msra.mxu0 0.0
    %3706 = vmatprep.subr.mxu0 0.0
    %3707 = vmatpush1.msra.mxu0 0.0
    %3708 = vmatprep.subr.mxu0 0.0
    %3709 = vmatpush1.msra.mxu0 0.0
    %3710 = vmatprep.subr.mxu0 0.0
    %3711 = vmatpush1.msra.mxu0 0.0
    %3712 = vmatprep.subr.mxu0 0.0
    %3713 = vmatpush1.msra.mxu0 0.0
    %3714 = vmatprep.subr.mxu0 0.0
    %3715 = vmatpush1.msra.mxu0 0.0
    %3716 = vmatprep.subr.mxu0 0.0
    %3717 = vmatpush1.msra.mxu0 0.0
    %3718 = vmatprep.subr.mxu0 0.0
    %3719 = vmatpush1.msra.mxu0 0.0
    %3720 = vmatprep.subr.mxu0 0.0
    %3721 = vmatpush1.msra.mxu0 0.0
    %3722 = vmatprep.subr.mxu0 0.0
    %3723 = vmatpush1.msra.mxu0 0.0
    %3724 = vmatprep.subr.mxu0 0.0
    %3725 = vmatpush1.msra.mxu0 0.0
    %3726 = vmatprep.subr.mxu0 0.0
    %3727 = vmatpush1.msra.mxu0 0.0
    %3728 = vmatprep.subr.mxu0 0.0
    %3729 = vmatpush1.msra.mxu0 0.0
    %3730 = vmatprep.subr.mxu0 0.0
    %3731 = vmatpush1.msra.mxu0 0.0
    %3732 = vmatprep.subr.mxu0 0.0
    %3733 = vmatpush1.msra.mxu0 0.0
    %3734 = vmatprep.subr.mxu0 0.0
    %3735 = vmatpush1.msra.mxu0 0.0
    %3736 = vmatprep.subr.mxu0 0.0
    %3737 = vmatpush1.msra.mxu0 0.0
    %3738 = vmatprep.subr.mxu0 0.0
    %3739 = vmatpush1.msra.mxu0 0.0
    %3740 = vmatprep.subr.mxu0 0.0
    %3741 = vmatpush1.msra.mxu0 0.0
    %3742 = vmatprep.subr.mxu0 0.0
    %3743 = vmatpush1.msra.mxu0 0.0
    %3744 = vmatprep.subr.mxu0 0.0
    %3745 = vmatpush1.msra.mxu0 0.0
    %3746 = vmatprep.subr.mxu0 0.0
    %3747 = vmatpush1.msra.mxu0 0.0
    %3748 = vmatprep.subr.mxu0 0.0
    %3749 = vmatpush1.msra.mxu0 0.0
    %3750 = vmatprep.subr.mxu0 0.0
    %3751 = vmatpush1.msra.mxu0 0.0
    %3752 = vmatprep.subr.mxu0 0.0
    %3753 = vmatpush1.msra.mxu0 0.0
    %3754 = vmatprep.subr.mxu0 0.0
    %3755 = vmatpush1.msra.mxu0 0.0
    %3756 = vmatprep.subr.mxu0 0.0
    %3757 = vmatpush1.msra.mxu0 0.0
    %3758 = vmatprep.subr.mxu0 0.0
    %3759 = vmatpush1.msra.mxu0 0.0
    %3760 = vmatprep.mubr.f32.mxu0 0.0
    %3761 = vmatmul.mubr.f32.gmra.mrb[0].mxu0 %v3691
    %v3762 = vpop.f32.mrb[0].mxu0
    %v3763 = vadd.f32 %v3682, %v3762
    %v3764 = vpop.f32.mrb[0].mxu0
    %3765 = vmatprep.mubr.f32.mxu0 0.0
    %3766 = vmatmul.mubr.f32.gmra.mrb[0].mxu0 %v3694
    %v3767 = vpop.f32.mrb[0].mxu0
    %v3768 = vadd.f32 %v3687, %v3767
    %v3769 = vpop.f32.mrb[0].mxu0
    %3770 = vdwg.mxu0
    %s3771 = scalar_lea.vmem %s5, 192
    %v3772 = vld [vmem:[%s3771] sm:$0xff]
    %v3773 = vld [vmem:[%s3771 + $0x8] sm:$0xff]
    %v3774 = vld [vmem:[%s3771 + $0x10] sm:$0xff]
    %v3775 = vld [vmem:[%s3771 + $0x18] sm:$0xff]
    %s3776 = scalar_lea.vmem %s6, 6
    %v3777 = vld [vmem:[%s3776] sm:$0x1]
    %v3779 = vlaneseq
    %v3780 = vshrl.u32 %v3779, 7
    %v3781 = vsub.s32 0, %v3780
    %v3782 = vrot.slane %v3777, %v3781
    %3784 = vmatprep.subr.mxu0 0.0
    %3785 = vmatpush1.msra.mxu0 %v3772
    %3786 = vmatprep.subr.mxu0 0.0
    %3787 = vmatpush1.msra.mxu0 %v3773
    %3788 = vmatprep.subr.mxu0 0.0
    %3789 = vmatpush1.msra.mxu0 %v3774
    %3790 = vmatprep.subr.mxu0 0.0
    %3791 = vmatpush1.msra.mxu0 %v3775
    %3792 = vmatprep.subr.mxu0 0.0
    %3793 = vmatpush1.msra.mxu0 0.0
    %3794 = vmatprep.subr.mxu0 0.0
    %3795 = vmatpush1.msra.mxu0 0.0
    %3796 = vmatprep.subr.mxu0 0.0
    %3797 = vmatpush1.msra.mxu0 0.0
    %3798 = vmatprep.subr.mxu0 0.0
    %3799 = vmatpush1.msra.mxu0 0.0
    %3800 = vmatprep.subr.mxu0 0.0
    %3801 = vmatpush1.msra.mxu0 0.0
    %3802 = vmatprep.subr.mxu0 0.0
    %3803 = vmatpush1.msra.mxu0 0.0
    %3804 = vmatprep.subr.mxu0 0.0
    %3805 = vmatpush1.msra.mxu0 0.0
    %3806 = vmatprep.subr.mxu0 0.0
    %3807 = vmatpush1.msra.mxu0 0.0
    %3808 = vmatprep.subr.mxu0 0.0
    %3809 = vmatpush1.msra.mxu0 0.0
    %3810 = vmatprep.subr.mxu0 0.0
    %3811 = vmatpush1.msra.mxu0 0.0
    %3812 = vmatprep.subr.mxu0 0.0
    %3813 = vmatpush1.msra.mxu0 0.0
    %3814 = vmatprep.subr.mxu0 0.0
    %3815 = vmatpush1.msra.mxu0 0.0
    %3816 = vmatprep.subr.mxu0 0.0
    %3817 = vmatpush1.msra.mxu0 0.0
    %3818 = vmatprep.subr.mxu0 0.0
    %3819 = vmatpush1.msra.mxu0 0.0
    %3820 = vmatprep.subr.mxu0 0.0
    %3821 = vmatpush1.msra.mxu0 0.0
    %3822 = vmatprep.subr.mxu0 0.0
    %3823 = vmatpush1.msra.mxu0 0.0
    %3824 = vmatprep.subr.mxu0 0.0
    %3825 = vmatpush1.msra.mxu0 0.0
    %3826 = vmatprep.subr.mxu0 0.0
    %3827 = vmatpush1.msra.mxu0 0.0
    %3828 = vmatprep.subr.mxu0 0.0
    %3829 = vmatpush1.msra.mxu0 0.0
    %3830 = vmatprep.subr.mxu0 0.0
    %3831 = vmatpush1.msra.mxu0 0.0
    %3832 = vmatprep.subr.mxu0 0.0
    %3833 = vmatpush1.msra.mxu0 0.0
    %3834 = vmatprep.subr.mxu0 0.0
    %3835 = vmatpush1.msra.mxu0 0.0
    %3836 = vmatprep.subr.mxu0 0.0
    %3837 = vmatpush1.msra.mxu0 0.0
    %3838 = vmatprep.subr.mxu0 0.0
    %3839 = vmatpush1.msra.mxu0 0.0
    %3840 = vmatprep.subr.mxu0 0.0
    %3841 = vmatpush1.msra.mxu0 0.0
    %3842 = vmatprep.subr.mxu0 0.0
    %3843 = vmatpush1.msra.mxu0 0.0
    %3844 = vmatprep.subr.mxu0 0.0
    %3845 = vmatpush1.msra.mxu0 0.0
    %3846 = vmatprep.subr.mxu0 0.0
    %3847 = vmatpush1.msra.mxu0 0.0
    %3848 = vmatprep.mubr.f32.mxu0 0.0
    %3849 = vmatmul.mubr.f32.gmra.mrb[0].mxu0 %v2697
    %v3850 = vpop.f32.mrb[0].mxu0
    %v3851 = vadd.f32 %v3782, %v3850
    %v3852 = vpop.f32.mrb[0].mxu0
    %3853 = vmatprep.mubr.f32.mxu0 0.0
    %3854 = vmatmul.mubr.f32.gmra.mrb[0].mxu0 %v2700
    %v3855 = vpop.f32.mrb[0].mxu0
    %v3856 = vadd.f32 %v3782, %v3855
    %v3857 = vpop.f32.mrb[0].mxu0
    %3858 = vdwg.mxu0
    %s3859 = scalar_lea.vmem %s7, 192
    %v3860 = vld [vmem:[%s3859] sm:$0xff]
    %v3861 = vld [vmem:[%s3859 + $0x8] sm:$0xff]
    %v3862 = vld [vmem:[%s3859 + $0x10] sm:$0xff]
    %v3863 = vld [vmem:[%s3859 + $0x18] sm:$0xff]
    %s3864 = scalar_lea.vmem %s8, 6
    %v3865 = vld [vmem:[%s3864] sm:$0x1]
    %v3867 = vlaneseq
    %v3868 = vshrl.u32 %v3867, 7
    %v3869 = vsub.s32 0, %v3868
    %v3870 = vrot.slane %v3865, %v3869
    %3872 = vmatprep.subr.mxu0 0.0
    %3873 = vmatpush1.msra.mxu0 %v3860
    %3874 = vmatprep.subr.mxu0 0.0
    %3875 = vmatpush1.msra.mxu0 %v3861
    %3876 = vmatprep.subr.mxu0 0.0
    %3877 = vmatpush1.msra.mxu0 %v3862
    %3878 = vmatprep.subr.mxu0 0.0
    %3879 = vmatpush1.msra.mxu0 %v3863
    %3880 = vmatprep.subr.mxu0 0.0
    %3881 = vmatpush1.msra.mxu0 0.0
    %3882 = vmatprep.subr.mxu0 0.0
    %3883 = vmatpush1.msra.mxu0 0.0
    %3884 = vmatprep.subr.mxu0 0.0
    %3885 = vmatpush1.msra.mxu0 0.0
    %3886 = vmatprep.subr.mxu0 0.0
    %3887 = vmatpush1.msra.mxu0 0.0
    %3888 = vmatprep.subr.mxu0 0.0
    %3889 = vmatpush1.msra.mxu0 0.0
    %3890 = vmatprep.subr.mxu0 0.0
    %3891 = vmatpush1.msra.mxu0 0.0
    %3892 = vmatprep.subr.mxu0 0.0
    %3893 = vmatpush1.msra.mxu0 0.0
    %3894 = vmatprep.subr.mxu0 0.0
    %3895 = vmatpush1.msra.mxu0 0.0
    %3896 = vmatprep.subr.mxu0 0.0
    %3897 = vmatpush1.msra.mxu0 0.0
    %3898 = vmatprep.subr.mxu0 0.0
    %3899 = vmatpush1.msra.mxu0 0.0
    %3900 = vmatprep.subr.mxu0 0.0
    %3901 = vmatpush1.msra.mxu0 0.0
    %3902 = vmatprep.subr.mxu0 0.0
    %3903 = vmatpush1.msra.mxu0 0.0
    %3904 = vmatprep.subr.mxu0 0.0
    %3905 = vmatpush1.msra.mxu0 0.0
    %3906 = vmatprep.subr.mxu0 0.0
    %3907 = vmatpush1.msra.mxu0 0.0
    %3908 = vmatprep.subr.mxu0 0.0
    %3909 = vmatpush1.msra.mxu0 0.0
    %3910 = vmatprep.subr.mxu0 0.0
    %3911 = vmatpush1.msra.mxu0 0.0
    %3912 = vmatprep.subr.mxu0 0.0
    %3913 = vmatpush1.msra.mxu0 0.0
    %3914 = vmatprep.subr.mxu0 0.0
    %3915 = vmatpush1.msra.mxu0 0.0
    %3916 = vmatprep.subr.mxu0 0.0
    %3917 = vmatpush1.msra.mxu0 0.0
    %3918 = vmatprep.subr.mxu0 0.0
    %3919 = vmatpush1.msra.mxu0 0.0
    %3920 = vmatprep.subr.mxu0 0.0
    %3921 = vmatpush1.msra.mxu0 0.0
    %3922 = vmatprep.subr.mxu0 0.0
    %3923 = vmatpush1.msra.mxu0 0.0
    %3924 = vmatprep.subr.mxu0 0.0
    %3925 = vmatpush1.msra.mxu0 0.0
    %3926 = vmatprep.subr.mxu0 0.0
    %3927 = vmatpush1.msra.mxu0 0.0
    %3928 = vmatprep.subr.mxu0 0.0
    %3929 = vmatpush1.msra.mxu0 0.0
    %3930 = vmatprep.subr.mxu0 0.0
    %3931 = vmatpush1.msra.mxu0 0.0
    %3932 = vmatprep.subr.mxu0 0.0
    %3933 = vmatpush1.msra.mxu0 0.0
    %3934 = vmatprep.subr.mxu0 0.0
    %3935 = vmatpush1.msra.mxu0 0.0
    %3936 = vmatprep.mubr.f32.mxu0 0.0
    %3937 = vmatmul.mubr.f32.gmra.mrb[0].mxu0 %v2697
    %v3938 = vpop.f32.mrb[0].mxu0
    %v3939 = vadd.f32 %v3870, %v3938
    %v3940 = vpop.f32.mrb[0].mxu0
    %3941 = vmatprep.mubr.f32.mxu0 0.0
    %3942 = vmatmul.mubr.f32.gmra.mrb[0].mxu0 %v2700
    %v3943 = vpop.f32.mrb[0].mxu0
    %v3944 = vadd.f32 %v3870, %v3943
    %v3945 = vpop.f32.mrb[0].mxu0
    %3946 = vdwg.mxu0
    %s3947 = scalar_lea.vmem %s9, 192
    %v3948 = vld [vmem:[%s3947] sm:$0xff]
    %v3949 = vld [vmem:[%s3947 + $0x8] sm:$0xff]
    %v3950 = vld [vmem:[%s3947 + $0x10] sm:$0xff]
    %v3951 = vld [vmem:[%s3947 + $0x18] sm:$0xff]
    %s3952 = scalar_lea.vmem %s10, 6
    %v3953 = vld [vmem:[%s3952] sm:$0x1]
    %v3955 = vlaneseq
    %v3956 = vshrl.u32 %v3955, 7
    %v3957 = vsub.s32 0, %v3956
    %v3958 = vrot.slane %v3953, %v3957
    %3960 = vmatprep.subr.mxu0 0.0
    %3961 = vmatpush1.msra.mxu0 %v3948
    %3962 = vmatprep.subr.mxu0 0.0
    %3963 = vmatpush1.msra.mxu0 %v3949
    %3964 = vmatprep.subr.mxu0 0.0
    %3965 = vmatpush1.msra.mxu0 %v3950
    %3966 = vmatprep.subr.mxu0 0.0
    %3967 = vmatpush1.msra.mxu0 %v3951
    %3968 = vmatprep.subr.mxu0 0.0
    %3969 = vmatpush1.msra.mxu0 0.0
    %3970 = vmatprep.subr.mxu0 0.0
    %3971 = vmatpush1.msra.mxu0 0.0
    %3972 = vmatprep.subr.mxu0 0.0
    %3973 = vmatpush1.msra.mxu0 0.0
    %3974 = vmatprep.subr.mxu0 0.0
    %3975 = vmatpush1.msra.mxu0 0.0
    %3976 = vmatprep.subr.mxu0 0.0
    %3977 = vmatpush1.msra.mxu0 0.0
    %3978 = vmatprep.subr.mxu0 0.0
    %3979 = vmatpush1.msra.mxu0 0.0
    %3980 = vmatprep.subr.mxu0 0.0
    %3981 = vmatpush1.msra.mxu0 0.0
    %3982 = vmatprep.subr.mxu0 0.0
    %3983 = vmatpush1.msra.mxu0 0.0
    %3984 = vmatprep.subr.mxu0 0.0
    %3985 = vmatpush1.msra.mxu0 0.0
    %3986 = vmatprep.subr.mxu0 0.0
    %3987 = vmatpush1.msra.mxu0 0.0
    %3988 = vmatprep.subr.mxu0 0.0
    %3989 = vmatpush1.msra.mxu0 0.0
    %3990 = vmatprep.subr.mxu0 0.0
    %3991 = vmatpush1.msra.mxu0 0.0
    %3992 = vmatprep.subr.mxu0 0.0
    %3993 = vmatpush1.msra.mxu0 0.0
    %3994 = vmatprep.subr.mxu0 0.0
    %3995 = vmatpush1.msra.mxu0 0.0
    %3996 = vmatprep.subr.mxu0 0.0
    %3997 = vmatpush1.msra.mxu0 0.0
    %3998 = vmatprep.subr.mxu0 0.0
    %3999 = vmatpush1.msra.mxu0 0.0
    %4000 = vmatprep.subr.mxu0 0.0
    %4001 = vmatpush1.msra.mxu0 0.0
    %4002 = vmatprep.subr.mxu0 0.0
    %4003 = vmatpush1.msra.mxu0 0.0
    %4004 = vmatprep.subr.mxu0 0.0
    %4005 = vmatpush1.msra.mxu0 0.0
    %4006 = vmatprep.subr.mxu0 0.0
    %4007 = vmatpush1.msra.mxu0 0.0
    %4008 = vmatprep.subr.mxu0 0.0
    %4009 = vmatpush1.msra.mxu0 0.0
    %4010 = vmatprep.subr.mxu0 0.0
    %4011 = vmatpush1.msra.mxu0 0.0
    %4012 = vmatprep.subr.mxu0 0.0
    %4013 = vmatpush1.msra.mxu0 0.0
    %4014 = vmatprep.subr.mxu0 0.0
    %4015 = vmatpush1.msra.mxu0 0.0
    %4016 = vmatprep.subr.mxu0 0.0
    %4017 = vmatpush1.msra.mxu0 0.0
    %4018 = vmatprep.subr.mxu0 0.0
    %4019 = vmatpush1.msra.mxu0 0.0
    %4020 = vmatprep.subr.mxu0 0.0
    %4021 = vmatpush1.msra.mxu0 0.0
    %4022 = vmatprep.subr.mxu0 0.0
    %4023 = vmatpush1.msra.mxu0 0.0
    %4024 = vmatprep.mubr.f32.mxu0 0.0
    %4025 = vmatmul.mubr.f32.gmra.mrb[0].mxu0 %v2697
    %v4026 = vpop.f32.mrb[0].mxu0
    %v4027 = vadd.f32 %v3958, %v4026
    %v4028 = vpop.f32.mrb[0].mxu0
    %4029 = vmatprep.mubr.f32.mxu0 0.0
    %4030 = vmatmul.mubr.f32.gmra.mrb[0].mxu0 %v2700
    %v4031 = vpop.f32.mrb[0].mxu0
    %v4032 = vadd.f32 %v3958, %v4031
    %v4033 = vpop.f32.mrb[0].mxu0
    %4034 = vdwg.mxu0
    %v4036 = vsel %vm133, %v3851, 0
    %v4039 = vsel %vm133, %v3856, 0
    %v4042 = vsel %vm133, %v3939, 0
    %v4045 = vsel %vm133, %v3944, 0
    %4047 = vmatprep.subr.mxu0 0.0
    %4048 = vmatpush1.xpose.msra.mxu0 %v4042
    %4049 = vmatprep.subr.mxu0 0.0
    %4050 = vmatpush1.xpose.msra.mxu0 %v4045
    %4051 = vmatprep.subr.mxu0 0.0
    %4052 = vmatpush1.xpose.msra.mxu0 0.0
    %4053 = vmatprep.subr.mxu0 0.0
    %4054 = vmatpush1.xpose.msra.mxu0 0.0
    %4055 = vmatprep.subr.mxu0 0.0
    %4056 = vmatpush1.xpose.msra.mxu0 0.0
    %4057 = vmatprep.subr.mxu0 0.0
    %4058 = vmatpush1.xpose.msra.mxu0 0.0
    %4059 = vmatprep.subr.mxu0 0.0
    %4060 = vmatpush1.xpose.msra.mxu0 0.0
    %4061 = vmatprep.subr.mxu0 0.0
    %4062 = vmatpush1.xpose.msra.mxu0 0.0
    %4063 = vmatprep.subr.mxu0 0.0
    %4064 = vmatpush1.xpose.msra.mxu0 0.0
    %4065 = vmatprep.subr.mxu0 0.0
    %4066 = vmatpush1.xpose.msra.mxu0 0.0
    %4067 = vmatprep.subr.mxu0 0.0
    %4068 = vmatpush1.xpose.msra.mxu0 0.0
    %4069 = vmatprep.subr.mxu0 0.0
    %4070 = vmatpush1.xpose.msra.mxu0 0.0
    %4071 = vmatprep.subr.mxu0 0.0
    %4072 = vmatpush1.xpose.msra.mxu0 0.0
    %4073 = vmatprep.subr.mxu0 0.0
    %4074 = vmatpush1.xpose.msra.mxu0 0.0
    %4075 = vmatprep.subr.mxu0 0.0
    %4076 = vmatpush1.xpose.msra.mxu0 0.0
    %4077 = vmatprep.subr.mxu0 0.0
    %4078 = vmatpush1.xpose.msra.mxu0 0.0
    %4079 = vmatprep.subr.mxu0 0.0
    %4080 = vmatpush1.xpose.msra.mxu0 0.0
    %4081 = vmatprep.subr.mxu0 0.0
    %4082 = vmatpush1.xpose.msra.mxu0 0.0
    %4083 = vmatprep.subr.mxu0 0.0
    %4084 = vmatpush1.xpose.msra.mxu0 0.0
    %4085 = vmatprep.subr.mxu0 0.0
    %4086 = vmatpush1.xpose.msra.mxu0 0.0
    %4087 = vmatprep.subr.mxu0 0.0
    %4088 = vmatpush1.xpose.msra.mxu0 0.0
    %4089 = vmatprep.subr.mxu0 0.0
    %4090 = vmatpush1.xpose.msra.mxu0 0.0
    %4091 = vmatprep.subr.mxu0 0.0
    %4092 = vmatpush1.xpose.msra.mxu0 0.0
    %4093 = vmatprep.subr.mxu0 0.0
    %4094 = vmatpush1.xpose.msra.mxu0 0.0
    %4095 = vmatprep.subr.mxu0 0.0
    %4096 = vmatpush1.xpose.msra.mxu0 0.0
    %4097 = vmatprep.subr.mxu0 0.0
    %4098 = vmatpush1.xpose.msra.mxu0 0.0
    %4099 = vmatprep.subr.mxu0 0.0
    %4100 = vmatpush1.xpose.msra.mxu0 0.0
    %4101 = vmatprep.subr.mxu0 0.0
    %4102 = vmatpush1.xpose.msra.mxu0 0.0
    %4103 = vmatprep.subr.mxu0 0.0
    %4104 = vmatpush1.xpose.msra.mxu0 0.0
    %4105 = vmatprep.subr.mxu0 0.0
    %4106 = vmatpush1.xpose.msra.mxu0 0.0
    %4107 = vmatprep.subr.mxu0 0.0
    %4108 = vmatpush1.xpose.msra.mxu0 0.0
    %4109 = vmatprep.subr.mxu0 0.0
    %4110 = vmatpush1.xpose.msra.mxu0 0.0
    %4111 = vmatprep.mubr.f32.mxu0 0.0
    %4112 = vmatmul.mubr.f32.gmra.mrb[0].mxu0 %v4036
    %v4113 = vpop.f32.mrb[0].mxu0
    %v4114 = vadd.f32 0.0, %v4113
    %v4115 = vpop.f32.mrb[0].mxu0
    %4116 = vmatprep.mubr.f32.mxu0 0.0
    %4117 = vmatmul.mubr.f32.gmra.mrb[0].mxu0 %v4039
    %v4118 = vpop.f32.mrb[0].mxu0
    %v4119 = vadd.f32 0.0, %v4118
    %v4120 = vpop.f32.mrb[0].mxu0
    %4121 = vdwg.mxu0
    %v4122 = vmul.f32 %v4114, 0.35355338
    %v4123 = vmul.f32 %v4119, 0.35355338
    %v4124 = vadd.f32 %v4122, %v219
    %v4125 = vadd.f32 %v4123, %v220
    %v4126 = vsel %vm577, %v4124, -inf
    %4127 = vmax.xlane.f32.xlu0 %v4126
    %v4128 = vpop.xlane.xlu0 %4127
    %v4129 = vsel %vm577, %v4125, -inf
    %4130 = vmax.xlane.f32.xlu0 %v4129
    %v4131 = vpop.xlane.xlu0 %4130
    %v4132 = vsub.f32 %v4124, %v4128
    %v4133 = vsub.f32 %v4125, %v4131
    %v4134 = vmul.f32 %v4132, 1.442695
    %v4135 = vpow.pop %v4134
    %v4136 = vmul.f32 %v4133, 1.442695
    %v4137 = vpow.pop %v4136
    %v4138 = vsel %vm577, %v4135, 0.0
    %4139 = vadd.xlane.f32.xlu0 %v4138
    %v4140 = vpop.xlane.xlu0 %4139
    %v4141 = vsel %vm577, %v4137, 0.0
    %4142 = vadd.xlane.f32.xlu0 %v4141
    %v4143 = vpop.xlane.xlu0 %4142
    %v4144 = vrcp.pop %v4140
    %v4145 = vrcp.pop %v4143
    %v4146 = vmul.f32 %v4135, %v4144
    %v4147 = vmul.f32 %v4137, %v4145
    %v4149 = vsel %vm577, %v4146, 0
    %v4152 = vsel %vm577, %v4147, 0
    %4154 = vmatprep.subr.mxu0 0.0
    %4155 = vmatpush1.msra.mxu0 %v4027
    %4156 = vmatprep.subr.mxu0 0.0
    %4157 = vmatpush1.msra.mxu0 %v4032
    %4158 = vmatprep.subr.mxu0 0.0
    %4159 = vmatpush1.msra.mxu0 0.0
    %4160 = vmatprep.subr.mxu0 0.0
    %4161 = vmatpush1.msra.mxu0 0.0
    %4162 = vmatprep.subr.mxu0 0.0
    %4163 = vmatpush1.msra.mxu0 0.0
    %4164 = vmatprep.subr.mxu0 0.0
    %4165 = vmatpush1.msra.mxu0 0.0
    %4166 = vmatprep.subr.mxu0 0.0
    %4167 = vmatpush1.msra.mxu0 0.0
    %4168 = vmatprep.subr.mxu0 0.0
    %4169 = vmatpush1.msra.mxu0 0.0
    %4170 = vmatprep.subr.mxu0 0.0
    %4171 = vmatpush1.msra.mxu0 0.0
    %4172 = vmatprep.subr.mxu0 0.0
    %4173 = vmatpush1.msra.mxu0 0.0
    %4174 = vmatprep.subr.mxu0 0.0
    %4175 = vmatpush1.msra.mxu0 0.0
    %4176 = vmatprep.subr.mxu0 0.0
    %4177 = vmatpush1.msra.mxu0 0.0
    %4178 = vmatprep.subr.mxu0 0.0
    %4179 = vmatpush1.msra.mxu0 0.0
    %4180 = vmatprep.subr.mxu0 0.0
    %4181 = vmatpush1.msra.mxu0 0.0
    %4182 = vmatprep.subr.mxu0 0.0
    %4183 = vmatpush1.msra.mxu0 0.0
    %4184 = vmatprep.subr.mxu0 0.0
    %4185 = vmatpush1.msra.mxu0 0.0
    %4186 = vmatprep.subr.mxu0 0.0
    %4187 = vmatpush1.msra.mxu0 0.0
    %4188 = vmatprep.subr.mxu0 0.0
    %4189 = vmatpush1.msra.mxu0 0.0
    %4190 = vmatprep.subr.mxu0 0.0
    %4191 = vmatpush1.msra.mxu0 0.0
    %4192 = vmatprep.subr.mxu0 0.0
    %4193 = vmatpush1.msra.mxu0 0.0
    %4194 = vmatprep.subr.mxu0 0.0
    %4195 = vmatpush1.msra.mxu0 0.0
    %4196 = vmatprep.subr.mxu0 0.0
    %4197 = vmatpush1.msra.mxu0 0.0
    %4198 = vmatprep.subr.mxu0 0.0
    %4199 = vmatpush1.msra.mxu0 0.0
    %4200 = vmatprep.subr.mxu0 0.0
    %4201 = vmatpush1.msra.mxu0 0.0
    %4202 = vmatprep.subr.mxu0 0.0
    %4203 = vmatpush1.msra.mxu0 0.0
    %4204 = vmatprep.subr.mxu0 0.0
    %4205 = vmatpush1.msra.mxu0 0.0
    %4206 = vmatprep.subr.mxu0 0.0
    %4207 = vmatpush1.msra.mxu0 0.0
    %4208 = vmatprep.subr.mxu0 0.0
    %4209 = vmatpush1.msra.mxu0 0.0
    %4210 = vmatprep.subr.mxu0 0.0
    %4211 = vmatpush1.msra.mxu0 0.0
    %4212 = vmatprep.subr.mxu0 0.0
    %4213 = vmatpush1.msra.mxu0 0.0
    %4214 = vmatprep.subr.mxu0 0.0
    %4215 = vmatpush1.msra.mxu0 0.0
    %4216 = vmatprep.subr.mxu0 0.0
    %4217 = vmatpush1.msra.mxu0 0.0
    %4218 = vmatprep.mubr.f32.mxu0 0.0
    %4219 = vmatmul.mubr.f32.gmra.mrb[0].mxu0 %v4149
    %v4220 = vpop.f32.mrb[0].mxu0
    %v4221 = vadd.f32 0.0, %v4220
    %v4222 = vpop.f32.mrb[0].mxu0
    %4223 = vmatprep.mubr.f32.mxu0 0.0
    %4224 = vmatmul.mubr.f32.gmra.mrb[0].mxu0 %v4152
    %v4225 = vpop.f32.mrb[0].mxu0
    %v4226 = vadd.f32 0.0, %v4225
    %v4227 = vpop.f32.mrb[0].mxu0
    %4228 = vdwg.mxu0
    %s4229 = scalar_lea.vmem %s11, 48
    %v4230 = vld [vmem:[%s4229] sm:$0xff]
    %v4232 = vsel %vm133, %v4221, 0
    %v4235 = vsel %vm133, %v4226, 0
    %4237 = vmatprep.subr.mxu0 0.0
    %4238 = vmatpush1.msra.mxu0 %v4230
    %4239 = vmatprep.subr.mxu0 0.0
    %4240 = vmatpush1.msra.mxu0 0.0
    %4241 = vmatprep.subr.mxu0 0.0
    %4242 = vmatpush1.msra.mxu0 0.0
    %4243 = vmatprep.subr.mxu0 0.0
    %4244 = vmatpush1.msra.mxu0 0.0
    %4245 = vmatprep.subr.mxu0 0.0
    %4246 = vmatpush1.msra.mxu0 0.0
    %4247 = vmatprep.subr.mxu0 0.0
    %4248 = vmatpush1.msra.mxu0 0.0
    %4249 = vmatprep.subr.mxu0 0.0
    %4250 = vmatpush1.msra.mxu0 0.0
    %4251 = vmatprep.subr.mxu0 0.0
    %4252 = vmatpush1.msra.mxu0 0.0
    %4253 = vmatprep.subr.mxu0 0.0
    %4254 = vmatpush1.msra.mxu0 0.0
    %4255 = vmatprep.subr.mxu0 0.0
    %4256 = vmatpush1.msra.mxu0 0.0
    %4257 = vmatprep.subr.mxu0 0.0
    %4258 = vmatpush1.msra.mxu0 0.0
    %4259 = vmatprep.subr.mxu0 0.0
    %4260 = vmatpush1.msra.mxu0 0.0
    %4261 = vmatprep.subr.mxu0 0.0
    %4262 = vmatpush1.msra.mxu0 0.0
    %4263 = vmatprep.subr.mxu0 0.0
    %4264 = vmatpush1.msra.mxu0 0.0
    %4265 = vmatprep.subr.mxu0 0.0
    %4266 = vmatpush1.msra.mxu0 0.0
    %4267 = vmatprep.subr.mxu0 0.0
    %4268 = vmatpush1.msra.mxu0 0.0
    %4269 = vmatprep.subr.mxu0 0.0
    %4270 = vmatpush1.msra.mxu0 0.0
    %4271 = vmatprep.subr.mxu0 0.0
    %4272 = vmatpush1.msra.mxu0 0.0
    %4273 = vmatprep.subr.mxu0 0.0
    %4274 = vmatpush1.msra.mxu0 0.0
    %4275 = vmatprep.subr.mxu0 0.0
    %4276 = vmatpush1.msra.mxu0 0.0
    %4277 = vmatprep.subr.mxu0 0.0
    %4278 = vmatpush1.msra.mxu0 0.0
    %4279 = vmatprep.subr.mxu0 0.0
    %4280 = vmatpush1.msra.mxu0 0.0
    %4281 = vmatprep.subr.mxu0 0.0
    %4282 = vmatpush1.msra.mxu0 0.0
    %4283 = vmatprep.subr.mxu0 0.0
    %4284 = vmatpush1.msra.mxu0 0.0
    %4285 = vmatprep.subr.mxu0 0.0
    %4286 = vmatpush1.msra.mxu0 0.0
    %4287 = vmatprep.subr.mxu0 0.0
    %4288 = vmatpush1.msra.mxu0 0.0
    %4289 = vmatprep.subr.mxu0 0.0
    %4290 = vmatpush1.msra.mxu0 0.0
    %4291 = vmatprep.subr.mxu0 0.0
    %4292 = vmatpush1.msra.mxu0 0.0
    %4293 = vmatprep.subr.mxu0 0.0
    %4294 = vmatpush1.msra.mxu0 0.0
    %4295 = vmatprep.subr.mxu0 0.0
    %4296 = vmatpush1.msra.mxu0 0.0
    %4297 = vmatprep.subr.mxu0 0.0
    %4298 = vmatpush1.msra.mxu0 0.0
    %4299 = vmatprep.subr.mxu0 0.0
    %4300 = vmatpush1.msra.mxu0 0.0
    %4301 = vmatprep.mubr.f32.mxu0 0.0
    %4302 = vmatmul.mubr.f32.gmra.mrb[0].mxu0 %v4232
    %v4303 = vpop.f32.mrb[0].mxu0
    %v4304 = vadd.f32 0.0, %v4303
    %v4305 = vpop.f32.mrb[0].mxu0
    %4306 = vmatprep.mubr.f32.mxu0 0.0
    %4307 = vmatmul.mubr.f32.gmra.mrb[0].mxu0 %v4235
    %v4308 = vpop.f32.mrb[0].mxu0
    %v4309 = vadd.f32 0.0, %v4308
    %v4310 = vpop.f32.mrb[0].mxu0
    %4311 = vdwg.mxu0
    %v4312 = vadd.f32 %v3763, %v4304
    %v4313 = vadd.f32 %v3768, %v4309
    %s4314 = scalar_lea.vmem %s5, 224
    %v4315 = vld [vmem:[%s4314] sm:$0xff]
    %v4316 = vld [vmem:[%s4314 + $0x8] sm:$0xff]
    %v4317 = vld [vmem:[%s4314 + $0x10] sm:$0xff]
    %v4318 = vld [vmem:[%s4314 + $0x18] sm:$0xff]
    %s4319 = scalar_lea.vmem %s6, 7
    %v4320 = vld [vmem:[%s4319] sm:$0x1]
    %v4322 = vlaneseq
    %v4323 = vshrl.u32 %v4322, 7
    %v4324 = vsub.s32 0, %v4323
    %v4325 = vrot.slane %v4320, %v4324
    %4327 = vmatprep.subr.mxu0 0.0
    %4328 = vmatpush1.msra.mxu0 %v4315
    %4329 = vmatprep.subr.mxu0 0.0
    %4330 = vmatpush1.msra.mxu0 %v4316
    %4331 = vmatprep.subr.mxu0 0.0
    %4332 = vmatpush1.msra.mxu0 %v4317
    %4333 = vmatprep.subr.mxu0 0.0
    %4334 = vmatpush1.msra.mxu0 %v4318
    %4335 = vmatprep.subr.mxu0 0.0
    %4336 = vmatpush1.msra.mxu0 0.0
    %4337 = vmatprep.subr.mxu0 0.0
    %4338 = vmatpush1.msra.mxu0 0.0
    %4339 = vmatprep.subr.mxu0 0.0
    %4340 = vmatpush1.msra.mxu0 0.0
    %4341 = vmatprep.subr.mxu0 0.0
    %4342 = vmatpush1.msra.mxu0 0.0
    %4343 = vmatprep.subr.mxu0 0.0
    %4344 = vmatpush1.msra.mxu0 0.0
    %4345 = vmatprep.subr.mxu0 0.0
    %4346 = vmatpush1.msra.mxu0 0.0
    %4347 = vmatprep.subr.mxu0 0.0
    %4348 = vmatpush1.msra.mxu0 0.0
    %4349 = vmatprep.subr.mxu0 0.0
    %4350 = vmatpush1.msra.mxu0 0.0
    %4351 = vmatprep.subr.mxu0 0.0
    %4352 = vmatpush1.msra.mxu0 0.0
    %4353 = vmatprep.subr.mxu0 0.0
    %4354 = vmatpush1.msra.mxu0 0.0
    %4355 = vmatprep.subr.mxu0 0.0
    %4356 = vmatpush1.msra.mxu0 0.0
    %4357 = vmatprep.subr.mxu0 0.0
    %4358 = vmatpush1.msra.mxu0 0.0
    %4359 = vmatprep.subr.mxu0 0.0
    %4360 = vmatpush1.msra.mxu0 0.0
    %4361 = vmatprep.subr.mxu0 0.0
    %4362 = vmatpush1.msra.mxu0 0.0
    %4363 = vmatprep.subr.mxu0 0.0
    %4364 = vmatpush1.msra.mxu0 0.0
    %4365 = vmatprep.subr.mxu0 0.0
    %4366 = vmatpush1.msra.mxu0 0.0
    %4367 = vmatprep.subr.mxu0 0.0
    %4368 = vmatpush1.msra.mxu0 0.0
    %4369 = vmatprep.subr.mxu0 0.0
    %4370 = vmatpush1.msra.mxu0 0.0
    %4371 = vmatprep.subr.mxu0 0.0
    %4372 = vmatpush1.msra.mxu0 0.0
    %4373 = vmatprep.subr.mxu0 0.0
    %4374 = vmatpush1.msra.mxu0 0.0
    %4375 = vmatprep.subr.mxu0 0.0
    %4376 = vmatpush1.msra.mxu0 0.0
    %4377 = vmatprep.subr.mxu0 0.0
    %4378 = vmatpush1.msra.mxu0 0.0
    %4379 = vmatprep.subr.mxu0 0.0
    %4380 = vmatpush1.msra.mxu0 0.0
    %4381 = vmatprep.subr.mxu0 0.0
    %4382 = vmatpush1.msra.mxu0 0.0
    %4383 = vmatprep.subr.mxu0 0.0
    %4384 = vmatpush1.msra.mxu0 0.0
    %4385 = vmatprep.subr.mxu0 0.0
    %4386 = vmatpush1.msra.mxu0 0.0
    %4387 = vmatprep.subr.mxu0 0.0
    %4388 = vmatpush1.msra.mxu0 0.0
    %4389 = vmatprep.subr.mxu0 0.0
    %4390 = vmatpush1.msra.mxu0 0.0
    %4391 = vmatprep.mubr.f32.mxu0 0.0
    %4392 = vmatmul.mubr.f32.gmra.mrb[0].mxu0 %v2697
    %v4393 = vpop.f32.mrb[0].mxu0
    %v4394 = vadd.f32 %v4325, %v4393
    %v4395 = vpop.f32.mrb[0].mxu0
    %4396 = vmatprep.mubr.f32.mxu0 0.0
    %4397 = vmatmul.mubr.f32.gmra.mrb[0].mxu0 %v2700
    %v4398 = vpop.f32.mrb[0].mxu0
    %v4399 = vadd.f32 %v4325, %v4398
    %v4400 = vpop.f32.mrb[0].mxu0
    %4401 = vdwg.mxu0
    %s4402 = scalar_lea.vmem %s7, 224
    %v4403 = vld [vmem:[%s4402] sm:$0xff]
    %v4404 = vld [vmem:[%s4402 + $0x8] sm:$0xff]
    %v4405 = vld [vmem:[%s4402 + $0x10] sm:$0xff]
    %v4406 = vld [vmem:[%s4402 + $0x18] sm:$0xff]
    %s4407 = scalar_lea.vmem %s8, 7
    %v4408 = vld [vmem:[%s4407] sm:$0x1]
    %v4410 = vlaneseq
    %v4411 = vshrl.u32 %v4410, 7
    %v4412 = vsub.s32 0, %v4411
    %v4413 = vrot.slane %v4408, %v4412
    %4415 = vmatprep.subr.mxu0 0.0
    %4416 = vmatpush1.msra.mxu0 %v4403
    %4417 = vmatprep.subr.mxu0 0.0
    %4418 = vmatpush1.msra.mxu0 %v4404
    %4419 = vmatprep.subr.mxu0 0.0
    %4420 = vmatpush1.msra.mxu0 %v4405
    %4421 = vmatprep.subr.mxu0 0.0
    %4422 = vmatpush1.msra.mxu0 %v4406
    %4423 = vmatprep.subr.mxu0 0.0
    %4424 = vmatpush1.msra.mxu0 0.0
    %4425 = vmatprep.subr.mxu0 0.0
    %4426 = vmatpush1.msra.mxu0 0.0
    %4427 = vmatprep.subr.mxu0 0.0
    %4428 = vmatpush1.msra.mxu0 0.0
    %4429 = vmatprep.subr.mxu0 0.0
    %4430 = vmatpush1.msra.mxu0 0.0
    %4431 = vmatprep.subr.mxu0 0.0
    %4432 = vmatpush1.msra.mxu0 0.0
    %4433 = vmatprep.subr.mxu0 0.0
    %4434 = vmatpush1.msra.mxu0 0.0
    %4435 = vmatprep.subr.mxu0 0.0
    %4436 = vmatpush1.msra.mxu0 0.0
    %4437 = vmatprep.subr.mxu0 0.0
    %4438 = vmatpush1.msra.mxu0 0.0
    %4439 = vmatprep.subr.mxu0 0.0
    %4440 = vmatpush1.msra.mxu0 0.0
    %4441 = vmatprep.subr.mxu0 0.0
    %4442 = vmatpush1.msra.mxu0 0.0
    %4443 = vmatprep.subr.mxu0 0.0
    %4444 = vmatpush1.msra.mxu0 0.0
    %4445 = vmatprep.subr.mxu0 0.0
    %4446 = vmatpush1.msra.mxu0 0.0
    %4447 = vmatprep.subr.mxu0 0.0
    %4448 = vmatpush1.msra.mxu0 0.0
    %4449 = vmatprep.subr.mxu0 0.0
    %4450 = vmatpush1.msra.mxu0 0.0
    %4451 = vmatprep.subr.mxu0 0.0
    %4452 = vmatpush1.msra.mxu0 0.0
    %4453 = vmatprep.subr.mxu0 0.0
    %4454 = vmatpush1.msra.mxu0 0.0
    %4455 = vmatprep.subr.mxu0 0.0
    %4456 = vmatpush1.msra.mxu0 0.0
    %4457 = vmatprep.subr.mxu0 0.0
    %4458 = vmatpush1.msra.mxu0 0.0
    %4459 = vmatprep.subr.mxu0 0.0
    %4460 = vmatpush1.msra.mxu0 0.0
    %4461 = vmatprep.subr.mxu0 0.0
    %4462 = vmatpush1.msra.mxu0 0.0
    %4463 = vmatprep.subr.mxu0 0.0
    %4464 = vmatpush1.msra.mxu0 0.0
    %4465 = vmatprep.subr.mxu0 0.0
    %4466 = vmatpush1.msra.mxu0 0.0
    %4467 = vmatprep.subr.mxu0 0.0
    %4468 = vmatpush1.msra.mxu0 0.0
    %4469 = vmatprep.subr.mxu0 0.0
    %4470 = vmatpush1.msra.mxu0 0.0
    %4471 = vmatprep.subr.mxu0 0.0
    %4472 = vmatpush1.msra.mxu0 0.0
    %4473 = vmatprep.subr.mxu0 0.0
    %4474 = vmatpush1.msra.mxu0 0.0
    %4475 = vmatprep.subr.mxu0 0.0
    %4476 = vmatpush1.msra.mxu0 0.0
    %4477 = vmatprep.subr.mxu0 0.0
    %4478 = vmatpush1.msra.mxu0 0.0
    %4479 = vmatprep.mubr.f32.mxu0 0.0
    %4480 = vmatmul.mubr.f32.gmra.mrb[0].mxu0 %v2697
    %v4481 = vpop.f32.mrb[0].mxu0
    %v4482 = vadd.f32 %v4413, %v4481
    %v4483 = vpop.f32.mrb[0].mxu0
    %4484 = vmatprep.mubr.f32.mxu0 0.0
    %4485 = vmatmul.mubr.f32.gmra.mrb[0].mxu0 %v2700
    %v4486 = vpop.f32.mrb[0].mxu0
    %v4487 = vadd.f32 %v4413, %v4486
    %v4488 = vpop.f32.mrb[0].mxu0
    %4489 = vdwg.mxu0
    %s4490 = scalar_lea.vmem %s9, 224
    %v4491 = vld [vmem:[%s4490] sm:$0xff]
    %v4492 = vld [vmem:[%s4490 + $0x8] sm:$0xff]
    %v4493 = vld [vmem:[%s4490 + $0x10] sm:$0xff]
    %v4494 = vld [vmem:[%s4490 + $0x18] sm:$0xff]
    %s4495 = scalar_lea.vmem %s10, 7
    %v4496 = vld [vmem:[%s4495] sm:$0x1]
    %v4498 = vlaneseq
    %v4499 = vshrl.u32 %v4498, 7
    %v4500 = vsub.s32 0, %v4499
    %v4501 = vrot.slane %v4496, %v4500
    %4503 = vmatprep.subr.mxu0 0.0
    %4504 = vmatpush1.msra.mxu0 %v4491
    %4505 = vmatprep.subr.mxu0 0.0
    %4506 = vmatpush1.msra.mxu0 %v4492
    %4507 = vmatprep.subr.mxu0 0.0
    %4508 = vmatpush1.msra.mxu0 %v4493
    %4509 = vmatprep.subr.mxu0 0.0
    %4510 = vmatpush1.msra.mxu0 %v4494
    %4511 = vmatprep.subr.mxu0 0.0
    %4512 = vmatpush1.msra.mxu0 0.0
    %4513 = vmatprep.subr.mxu0 0.0
    %4514 = vmatpush1.msra.mxu0 0.0
    %4515 = vmatprep.subr.mxu0 0.0
    %4516 = vmatpush1.msra.mxu0 0.0
    %4517 = vmatprep.subr.mxu0 0.0
    %4518 = vmatpush1.msra.mxu0 0.0
    %4519 = vmatprep.subr.mxu0 0.0
    %4520 = vmatpush1.msra.mxu0 0.0
    %4521 = vmatprep.subr.mxu0 0.0
    %4522 = vmatpush1.msra.mxu0 0.0
    %4523 = vmatprep.subr.mxu0 0.0
    %4524 = vmatpush1.msra.mxu0 0.0
    %4525 = vmatprep.subr.mxu0 0.0
    %4526 = vmatpush1.msra.mxu0 0.0
    %4527 = vmatprep.subr.mxu0 0.0
    %4528 = vmatpush1.msra.mxu0 0.0
    %4529 = vmatprep.subr.mxu0 0.0
    %4530 = vmatpush1.msra.mxu0 0.0
    %4531 = vmatprep.subr.mxu0 0.0
    %4532 = vmatpush1.msra.mxu0 0.0
    %4533 = vmatprep.subr.mxu0 0.0
    %4534 = vmatpush1.msra.mxu0 0.0
    %4535 = vmatprep.subr.mxu0 0.0
    %4536 = vmatpush1.msra.mxu0 0.0
    %4537 = vmatprep.subr.mxu0 0.0
    %4538 = vmatpush1.msra.mxu0 0.0
    %4539 = vmatprep.subr.mxu0 0.0
    %4540 = vmatpush1.msra.mxu0 0.0
    %4541 = vmatprep.subr.mxu0 0.0
    %4542 = vmatpush1.msra.mxu0 0.0
    %4543 = vmatprep.subr.mxu0 0.0
    %4544 = vmatpush1.msra.mxu0 0.0
    %4545 = vmatprep.subr.mxu0 0.0
    %4546 = vmatpush1.msra.mxu0 0.0
    %4547 = vmatprep.subr.mxu0 0.0
    %4548 = vmatpush1.msra.mxu0 0.0
    %4549 = vmatprep.subr.mxu0 0.0
    %4550 = vmatpush1.msra.mxu0 0.0
    %4551 = vmatprep.subr.mxu0 0.0
    %4552 = vmatpush1.msra.mxu0 0.0
    %4553 = vmatprep.subr.mxu0 0.0
    %4554 = vmatpush1.msra.mxu0 0.0
    %4555 = vmatprep.subr.mxu0 0.0
    %4556 = vmatpush1.msra.mxu0 0.0
    %4557 = vmatprep.subr.mxu0 0.0
    %4558 = vmatpush1.msra.mxu0 0.0
    %4559 = vmatprep.subr.mxu0 0.0
    %4560 = vmatpush1.msra.mxu0 0.0
    %4561 = vmatprep.subr.mxu0 0.0
    %4562 = vmatpush1.msra.mxu0 0.0
    %4563 = vmatprep.subr.mxu0 0.0
    %4564 = vmatpush1.msra.mxu0 0.0
    %4565 = vmatprep.subr.mxu0 0.0
    %4566 = vmatpush1.msra.mxu0 0.0
    %4567 = vmatprep.mubr.f32.mxu0 0.0
    %4568 = vmatmul.mubr.f32.gmra.mrb[0].mxu0 %v2697
    %v4569 = vpop.f32.mrb[0].mxu0
    %v4570 = vadd.f32 %v4501, %v4569
    %v4571 = vpop.f32.mrb[0].mxu0
    %4572 = vmatprep.mubr.f32.mxu0 0.0
    %4573 = vmatmul.mubr.f32.gmra.mrb[0].mxu0 %v2700
    %v4574 = vpop.f32.mrb[0].mxu0
    %v4575 = vadd.f32 %v4501, %v4574
    %v4576 = vpop.f32.mrb[0].mxu0
    %4577 = vdwg.mxu0
    %v4579 = vsel %vm133, %v4394, 0
    %v4582 = vsel %vm133, %v4399, 0
    %v4585 = vsel %vm133, %v4482, 0
    %v4588 = vsel %vm133, %v4487, 0
    %4590 = vmatprep.subr.mxu0 0.0
    %4591 = vmatpush1.xpose.msra.mxu0 %v4585
    %4592 = vmatprep.subr.mxu0 0.0
    %4593 = vmatpush1.xpose.msra.mxu0 %v4588
    %4594 = vmatprep.subr.mxu0 0.0
    %4595 = vmatpush1.xpose.msra.mxu0 0.0
    %4596 = vmatprep.subr.mxu0 0.0
    %4597 = vmatpush1.xpose.msra.mxu0 0.0
    %4598 = vmatprep.subr.mxu0 0.0
    %4599 = vmatpush1.xpose.msra.mxu0 0.0
    %4600 = vmatprep.subr.mxu0 0.0
    %4601 = vmatpush1.xpose.msra.mxu0 0.0
    %4602 = vmatprep.subr.mxu0 0.0
    %4603 = vmatpush1.xpose.msra.mxu0 0.0
    %4604 = vmatprep.subr.mxu0 0.0
    %4605 = vmatpush1.xpose.msra.mxu0 0.0
    %4606 = vmatprep.subr.mxu0 0.0
    %4607 = vmatpush1.xpose.msra.mxu0 0.0
    %4608 = vmatprep.subr.mxu0 0.0
    %4609 = vmatpush1.xpose.msra.mxu0 0.0
    %4610 = vmatprep.subr.mxu0 0.0
    %4611 = vmatpush1.xpose.msra.mxu0 0.0
    %4612 = vmatprep.subr.mxu0 0.0
    %4613 = vmatpush1.xpose.msra.mxu0 0.0
    %4614 = vmatprep.subr.mxu0 0.0
    %4615 = vmatpush1.xpose.msra.mxu0 0.0
    %4616 = vmatprep.subr.mxu0 0.0
    %4617 = vmatpush1.xpose.msra.mxu0 0.0
    %4618 = vmatprep.subr.mxu0 0.0
    %4619 = vmatpush1.xpose.msra.mxu0 0.0
    %4620 = vmatprep.subr.mxu0 0.0
    %4621 = vmatpush1.xpose.msra.mxu0 0.0
    %4622 = vmatprep.subr.mxu0 0.0
    %4623 = vmatpush1.xpose.msra.mxu0 0.0
    %4624 = vmatprep.subr.mxu0 0.0
    %4625 = vmatpush1.xpose.msra.mxu0 0.0
    %4626 = vmatprep.subr.mxu0 0.0
    %4627 = vmatpush1.xpose.msra.mxu0 0.0
    %4628 = vmatprep.subr.mxu0 0.0
    %4629 = vmatpush1.xpose.msra.mxu0 0.0
    %4630 = vmatprep.subr.mxu0 0.0
    %4631 = vmatpush1.xpose.msra.mxu0 0.0
    %4632 = vmatprep.subr.mxu0 0.0
    %4633 = vmatpush1.xpose.msra.mxu0 0.0
    %4634 = vmatprep.subr.mxu0 0.0
    %4635 = vmatpush1.xpose.msra.mxu0 0.0
    %4636 = vmatprep.subr.mxu0 0.0
    %4637 = vmatpush1.xpose.msra.mxu0 0.0
    %4638 = vmatprep.subr.mxu0 0.0
    %4639 = vmatpush1.xpose.msra.mxu0 0.0
    %4640 = vmatprep.subr.mxu0 0.0
    %4641 = vmatpush1.xpose.msra.mxu0 0.0
    %4642 = vmatprep.subr.mxu0 0.0
    %4643 = vmatpush1.xpose.msra.mxu0 0.0
    %4644 = vmatprep.subr.mxu0 0.0
    %4645 = vmatpush1.xpose.msra.mxu0 0.0
    %4646 = vmatprep.subr.mxu0 0.0
    %4647 = vmatpush1.xpose.msra.mxu0 0.0
    %4648 = vmatprep.subr.mxu0 0.0
    %4649 = vmatpush1.xpose.msra.mxu0 0.0
    %4650 = vmatprep.subr.mxu0 0.0
    %4651 = vmatpush1.xpose.msra.mxu0 0.0
    %4652 = vmatprep.subr.mxu0 0.0
    %4653 = vmatpush1.xpose.msra.mxu0 0.0
    %4654 = vmatprep.mubr.f32.mxu0 0.0
    %4655 = vmatmul.mubr.f32.gmra.mrb[0].mxu0 %v4579
    %v4656 = vpop.f32.mrb[0].mxu0
    %v4657 = vadd.f32 0.0, %v4656
    %v4658 = vpop.f32.mrb[0].mxu0
    %4659 = vmatprep.mubr.f32.mxu0 0.0
    %4660 = vmatmul.mubr.f32.gmra.mrb[0].mxu0 %v4582
    %v4661 = vpop.f32.mrb[0].mxu0
    %v4662 = vadd.f32 0.0, %v4661
    %v4663 = vpop.f32.mrb[0].mxu0
    %4664 = vdwg.mxu0
    %v4665 = vmul.f32 %v4657, 0.35355338
    %v4666 = vmul.f32 %v4662, 0.35355338
    %v4667 = vadd.f32 %v4665, %v219
    %v4668 = vadd.f32 %v4666, %v220
    %v4669 = vsel %vm577, %v4667, -inf
    %4670 = vmax.xlane.f32.xlu0 %v4669
    %v4671 = vpop.xlane.xlu0 %4670
    %v4672 = vsel %vm577, %v4668, -inf
    %4673 = vmax.xlane.f32.xlu0 %v4672
    %v4674 = vpop.xlane.xlu0 %4673
    %v4675 = vsub.f32 %v4667, %v4671
    %v4676 = vsub.f32 %v4668, %v4674
    %v4677 = vmul.f32 %v4675, 1.442695
    %v4678 = vpow.pop %v4677
    %v4679 = vmul.f32 %v4676, 1.442695
    %v4680 = vpow.pop %v4679
    %v4681 = vsel %vm577, %v4678, 0.0
    %4682 = vadd.xlane.f32.xlu0 %v4681
    %v4683 = vpop.xlane.xlu0 %4682
    %v4684 = vsel %vm577, %v4680, 0.0
    %4685 = vadd.xlane.f32.xlu0 %v4684
    %v4686 = vpop.xlane.xlu0 %4685
    %v4687 = vrcp.pop %v4683
    %v4688 = vrcp.pop %v4686
    %v4689 = vmul.f32 %v4678, %v4687
    %v4690 = vmul.f32 %v4680, %v4688
    %v4692 = vsel %vm577, %v4689, 0
    %v4695 = vsel %vm577, %v4690, 0
    %4697 = vmatprep.subr.mxu0 0.0
    %4698 = vmatpush1.msra.mxu0 %v4570
    %4699 = vmatprep.subr.mxu0 0.0
    %4700 = vmatpush1.msra.mxu0 %v4575
    %4701 = vmatprep.subr.mxu0 0.0
    %4702 = vmatpush1.msra.mxu0 0.0
    %4703 = vmatprep.subr.mxu0 0.0
    %4704 = vmatpush1.msra.mxu0 0.0
    %4705 = vmatprep.subr.mxu0 0.0
    %4706 = vmatpush1.msra.mxu0 0.0
    %4707 = vmatprep.subr.mxu0 0.0
    %4708 = vmatpush1.msra.mxu0 0.0
    %4709 = vmatprep.subr.mxu0 0.0
    %4710 = vmatpush1.msra.mxu0 0.0
    %4711 = vmatprep.subr.mxu0 0.0
    %4712 = vmatpush1.msra.mxu0 0.0
    %4713 = vmatprep.subr.mxu0 0.0
    %4714 = vmatpush1.msra.mxu0 0.0
    %4715 = vmatprep.subr.mxu0 0.0
    %4716 = vmatpush1.msra.mxu0 0.0
    %4717 = vmatprep.subr.mxu0 0.0
    %4718 = vmatpush1.msra.mxu0 0.0
    %4719 = vmatprep.subr.mxu0 0.0
    %4720 = vmatpush1.msra.mxu0 0.0
    %4721 = vmatprep.subr.mxu0 0.0
    %4722 = vmatpush1.msra.mxu0 0.0
    %4723 = vmatprep.subr.mxu0 0.0
    %4724 = vmatpush1.msra.mxu0 0.0
    %4725 = vmatprep.subr.mxu0 0.0
    %4726 = vmatpush1.msra.mxu0 0.0
    %4727 = vmatprep.subr.mxu0 0.0
    %4728 = vmatpush1.msra.mxu0 0.0
    %4729 = vmatprep.subr.mxu0 0.0
    %4730 = vmatpush1.msra.mxu0 0.0
    %4731 = vmatprep.subr.mxu0 0.0
    %4732 = vmatpush1.msra.mxu0 0.0
    %4733 = vmatprep.subr.mxu0 0.0
    %4734 = vmatpush1.msra.mxu0 0.0
    %4735 = vmatprep.subr.mxu0 0.0
    %4736 = vmatpush1.msra.mxu0 0.0
    %4737 = vmatprep.subr.mxu0 0.0
    %4738 = vmatpush1.msra.mxu0 0.0
    %4739 = vmatprep.subr.mxu0 0.0
    %4740 = vmatpush1.msra.mxu0 0.0
    %4741 = vmatprep.subr.mxu0 0.0
    %4742 = vmatpush1.msra.mxu0 0.0
    %4743 = vmatprep.subr.mxu0 0.0
    %4744 = vmatpush1.msra.mxu0 0.0
    %4745 = vmatprep.subr.mxu0 0.0
    %4746 = vmatpush1.msra.mxu0 0.0
    %4747 = vmatprep.subr.mxu0 0.0
    %4748 = vmatpush1.msra.mxu0 0.0
    %4749 = vmatprep.subr.mxu0 0.0
    %4750 = vmatpush1.msra.mxu0 0.0
    %4751 = vmatprep.subr.mxu0 0.0
    %4752 = vmatpush1.msra.mxu0 0.0
    %4753 = vmatprep.subr.mxu0 0.0
    %4754 = vmatpush1.msra.mxu0 0.0
    %4755 = vmatprep.subr.mxu0 0.0
    %4756 = vmatpush1.msra.mxu0 0.0
    %4757 = vmatprep.subr.mxu0 0.0
    %4758 = vmatpush1.msra.mxu0 0.0
    %4759 = vmatprep.subr.mxu0 0.0
    %4760 = vmatpush1.msra.mxu0 0.0
    %4761 = vmatprep.mubr.f32.mxu0 0.0
    %4762 = vmatmul.mubr.f32.gmra.mrb[0].mxu0 %v4692
    %v4763 = vpop.f32.mrb[0].mxu0
    %v4764 = vadd.f32 0.0, %v4763
    %v4765 = vpop.f32.mrb[0].mxu0
    %4766 = vmatprep.mubr.f32.mxu0 0.0
    %4767 = vmatmul.mubr.f32.gmra.mrb[0].mxu0 %v4695
    %v4768 = vpop.f32.mrb[0].mxu0
    %v4769 = vadd.f32 0.0, %v4768
    %v4770 = vpop.f32.mrb[0].mxu0
    %4771 = vdwg.mxu0
    %s4772 = scalar_lea.vmem %s11, 56
    %v4773 = vld [vmem:[%s4772] sm:$0xff]
    %v4775 = vsel %vm133, %v4764, 0
    %v4778 = vsel %vm133, %v4769, 0
    %4780 = vmatprep.subr.mxu0 0.0
    %4781 = vmatpush1.msra.mxu0 %v4773
    %4782 = vmatprep.subr.mxu0 0.0
    %4783 = vmatpush1.msra.mxu0 0.0
    %4784 = vmatprep.subr.mxu0 0.0
    %4785 = vmatpush1.msra.mxu0 0.0
    %4786 = vmatprep.subr.mxu0 0.0
    %4787 = vmatpush1.msra.mxu0 0.0
    %4788 = vmatprep.subr.mxu0 0.0
    %4789 = vmatpush1.msra.mxu0 0.0
    %4790 = vmatprep.subr.mxu0 0.0
    %4791 = vmatpush1.msra.mxu0 0.0
    %4792 = vmatprep.subr.mxu0 0.0
    %4793 = vmatpush1.msra.mxu0 0.0
    %4794 = vmatprep.subr.mxu0 0.0
    %4795 = vmatpush1.msra.mxu0 0.0
    %4796 = vmatprep.subr.mxu0 0.0
    %4797 = vmatpush1.msra.mxu0 0.0
    %4798 = vmatprep.subr.mxu0 0.0
    %4799 = vmatpush1.msra.mxu0 0.0
    %4800 = vmatprep.subr.mxu0 0.0
    %4801 = vmatpush1.msra.mxu0 0.0
    %4802 = vmatprep.subr.mxu0 0.0
    %4803 = vmatpush1.msra.mxu0 0.0
    %4804 = vmatprep.subr.mxu0 0.0
    %4805 = vmatpush1.msra.mxu0 0.0
    %4806 = vmatprep.subr.mxu0 0.0
    %4807 = vmatpush1.msra.mxu0 0.0
    %4808 = vmatprep.subr.mxu0 0.0
    %4809 = vmatpush1.msra.mxu0 0.0
    %4810 = vmatprep.subr.mxu0 0.0
    %4811 = vmatpush1.msra.mxu0 0.0
    %4812 = vmatprep.subr.mxu0 0.0
    %4813 = vmatpush1.msra.mxu0 0.0
    %4814 = vmatprep.subr.mxu0 0.0
    %4815 = vmatpush1.msra.mxu0 0.0
    %4816 = vmatprep.subr.mxu0 0.0
    %4817 = vmatpush1.msra.mxu0 0.0
    %4818 = vmatprep.subr.mxu0 0.0
    %4819 = vmatpush1.msra.mxu0 0.0
    %4820 = vmatprep.subr.mxu0 0.0
    %4821 = vmatpush1.msra.mxu0 0.0
    %4822 = vmatprep.subr.mxu0 0.0
    %4823 = vmatpush1.msra.mxu0 0.0
    %4824 = vmatprep.subr.mxu0 0.0
    %4825 = vmatpush1.msra.mxu0 0.0
    %4826 = vmatprep.subr.mxu0 0.0
    %4827 = vmatpush1.msra.mxu0 0.0
    %4828 = vmatprep.subr.mxu0 0.0
    %4829 = vmatpush1.msra.mxu0 0.0
    %4830 = vmatprep.subr.mxu0 0.0
    %4831 = vmatpush1.msra.mxu0 0.0
    %4832 = vmatprep.subr.mxu0 0.0
    %4833 = vmatpush1.msra.mxu0 0.0
    %4834 = vmatprep.subr.mxu0 0.0
    %4835 = vmatpush1.msra.mxu0 0.0
    %4836 = vmatprep.subr.mxu0 0.0
    %4837 = vmatpush1.msra.mxu0 0.0
    %4838 = vmatprep.subr.mxu0 0.0
    %4839 = vmatpush1.msra.mxu0 0.0
    %4840 = vmatprep.subr.mxu0 0.0
    %4841 = vmatpush1.msra.mxu0 0.0
    %4842 = vmatprep.subr.mxu0 0.0
    %4843 = vmatpush1.msra.mxu0 0.0
    %4844 = vmatprep.mubr.f32.mxu0 0.0
    %4845 = vmatmul.mubr.f32.gmra.mrb[0].mxu0 %v4775
    %v4846 = vpop.f32.mrb[0].mxu0
    %v4847 = vadd.f32 0.0, %v4846
    %v4848 = vpop.f32.mrb[0].mxu0
    %4849 = vmatprep.mubr.f32.mxu0 0.0
    %4850 = vmatmul.mubr.f32.gmra.mrb[0].mxu0 %v4778
    %v4851 = vpop.f32.mrb[0].mxu0
    %v4852 = vadd.f32 0.0, %v4851
    %v4853 = vpop.f32.mrb[0].mxu0
    %4854 = vdwg.mxu0
    %v4855 = vadd.f32 %v4312, %v4847
    %v4856 = vadd.f32 %v4313, %v4852
    %s4857 = scalar_lea.vmem %s12, 1
    %v4858 = vld [vmem:[%s4857] sm:$0x1]
    %v4860 = vlaneseq
    %v4861 = vshrl.u32 %v4860, 7
    %v4862 = vsub.s32 0, %v4861
    %v4863 = vrot.slane %v4858, %v4862
    %v4865 = vadd.f32 %v4855, %v4863
    %v4866 = vadd.f32 %v4856, %v4863
    %v4867 = vadd.f32 %v2681, %v4865
    %v4868 = vadd.f32 %v2682, %v4866
    %s4869 = scalar_lea.vmem %s13, 1
    %v4870 = vld [vmem:[%s4869] sm:$0x1]
    %s4871 = scalar_lea.vmem %s14, 1
    %v4872 = vld [vmem:[%s4871] sm:$0x1]
    %v4873 = vsel %vm232, %v4867, 0.0
    %4874 = vadd.xlane.f32.xlu0 %v4873
    %v4875 = vpop.xlane.xlu0 %4874
    %v4876 = vsel %vm232, %v4868, 0.0
    %4877 = vadd.xlane.f32.xlu0 %v4876
    %v4878 = vpop.xlane.xlu0 %4877
    %v4879 = vmul.f32 %v4875, %v2409
    %v4880 = vmul.f32 %v4878, %v2409
    %v4881 = vsub.f32 %v4867, %v4879
    %v4882 = vsub.f32 %v4868, %v4880
    %v4883 = vmul.f32 %v4881, %v4881
    %v4884 = vmul.f32 %v4882, %v4882
    %v4885 = vsel %vm232, %v4883, 0.0
    %4886 = vadd.xlane.f32.xlu0 %v4885
    %v4887 = vpop.xlane.xlu0 %4886
    %v4888 = vsel %vm232, %v4884, 0.0
    %4889 = vadd.xlane.f32.xlu0 %v4888
    %v4890 = vpop.xlane.xlu0 %4889
    %v4891 = vmul.f32 %v4887, %v2409
    %v4892 = vmul.f32 %v4890, %v2409
    %v4893 = vadd.f32 %v4891, 1e-05
    %v4894 = vadd.f32 %v4892, 1e-05
    %v4895 = vrsqrt.pop %v4893
    %v4896 = vrsqrt.pop %v4894
    %v4897 = vmul.f32 %v4881, %v4895
    %v4898 = vmul.f32 %v4882, %v4896
    %v4900 = vlaneseq
    %v4901 = vshrl.u32 %v4900, 7
    %v4902 = vsub.s32 0, %v4901
    %v4903 = vrot.slane %v4870, %v4902
    %v4905 = vmul.f32 %v4897, %v4903
    %v4906 = vmul.f32 %v4898, %v4903
    %v4908 = vlaneseq
    %v4909 = vshrl.u32 %v4908, 7
    %v4910 = vsub.s32 0, %v4909
    %v4911 = vrot.slane %v4872, %v4910
    %v4913 = vadd.f32 %v4905, %v4911
    %v4914 = vadd.f32 %v4906, %v4911
    %s4915 = scalar_lea.vmem %s15, 32
    %v4916 = vld [vmem:[%s4915] sm:$0xff]
    %v4917 = vld [vmem:[%s4915 + $0x8] sm:$0xff]
    %v4918 = vld [vmem:[%s4915 + $0x10] sm:$0xff]
    %v4919 = vld [vmem:[%s4915 + $0x18] sm:$0xff]
    %s4920 = scalar_lea.vmem %s16, 1
    %v4921 = vld [vmem:[%s4920] sm:$0x1]
    %v4923 = vlaneseq
    %v4924 = vshrl.u32 %v4923, 7
    %v4925 = vsub.s32 0, %v4924
    %v4926 = vrot.slane %v4921, %v4925
    %v4929 = vsel %vm232, %v4913, 0
    %v4932 = vsel %vm232, %v4914, 0
    %4934 = vmatprep.subr.mxu0 0.0
    %4935 = vmatpush1.msra.mxu0 %v4916
    %4936 = vmatprep.subr.mxu0 0.0
    %4937 = vmatpush1.msra.mxu0 %v4917
    %4938 = vmatprep.subr.mxu0 0.0
    %4939 = vmatpush1.msra.mxu0 %v4918
    %4940 = vmatprep.subr.mxu0 0.0
    %4941 = vmatpush1.msra.mxu0 %v4919
    %4942 = vmatprep.subr.mxu0 0.0
    %4943 = vmatpush1.msra.mxu0 0.0
    %4944 = vmatprep.subr.mxu0 0.0
    %4945 = vmatpush1.msra.mxu0 0.0
    %4946 = vmatprep.subr.mxu0 0.0
    %4947 = vmatpush1.msra.mxu0 0.0
    %4948 = vmatprep.subr.mxu0 0.0
    %4949 = vmatpush1.msra.mxu0 0.0
    %4950 = vmatprep.subr.mxu0 0.0
    %4951 = vmatpush1.msra.mxu0 0.0
    %4952 = vmatprep.subr.mxu0 0.0
    %4953 = vmatpush1.msra.mxu0 0.0
    %4954 = vmatprep.subr.mxu0 0.0
    %4955 = vmatpush1.msra.mxu0 0.0
    %4956 = vmatprep.subr.mxu0 0.0
    %4957 = vmatpush1.msra.mxu0 0.0
    %4958 = vmatprep.subr.mxu0 0.0
    %4959 = vmatpush1.msra.mxu0 0.0
    %4960 = vmatprep.subr.mxu0 0.0
    %4961 = vmatpush1.msra.mxu0 0.0
    %4962 = vmatprep.subr.mxu0 0.0
    %4963 = vmatpush1.msra.mxu0 0.0
    %4964 = vmatprep.subr.mxu0 0.0
    %4965 = vmatpush1.msra.mxu0 0.0
    %4966 = vmatprep.subr.mxu0 0.0
    %4967 = vmatpush1.msra.mxu0 0.0
    %4968 = vmatprep.subr.mxu0 0.0
    %4969 = vmatpush1.msra.mxu0 0.0
    %4970 = vmatprep.subr.mxu0 0.0
    %4971 = vmatpush1.msra.mxu0 0.0
    %4972 = vmatprep.subr.mxu0 0.0
    %4973 = vmatpush1.msra.mxu0 0.0
    %4974 = vmatprep.subr.mxu0 0.0
    %4975 = vmatpush1.msra.mxu0 0.0
    %4976 = vmatprep.subr.mxu0 0.0
    %4977 = vmatpush1.msra.mxu0 0.0
    %4978 = vmatprep.subr.mxu0 0.0
    %4979 = vmatpush1.msra.mxu0 0.0
    %4980 = vmatprep.subr.mxu0 0.0
    %4981 = vmatpush1.msra.mxu0 0.0
    %4982 = vmatprep.subr.mxu0 0.0
    %4983 = vmatpush1.msra.mxu0 0.0
    %4984 = vmatprep.subr.mxu0 0.0
    %4985 = vmatpush1.msra.mxu0 0.0
    %4986 = vmatprep.subr.mxu0 0.0
    %4987 = vmatpush1.msra.mxu0 0.0
    %4988 = vmatprep.subr.mxu0 0.0
    %4989 = vmatpush1.msra.mxu0 0.0
    %4990 = vmatprep.subr.mxu0 0.0
    %4991 = vmatpush1.msra.mxu0 0.0
    %4992 = vmatprep.subr.mxu0 0.0
    %4993 = vmatpush1.msra.mxu0 0.0
    %4994 = vmatprep.subr.mxu0 0.0
    %4995 = vmatpush1.msra.mxu0 0.0
    %4996 = vmatprep.subr.mxu0 0.0
    %4997 = vmatpush1.msra.mxu0 0.0
    %4998 = vmatprep.mubr.f32.mxu0 0.0
    %4999 = vmatmul.mubr.f32.gmra.mrb[0].mxu0 %v4929
    %v5000 = vpop.f32.mrb[0].mxu0
    %v5001 = vadd.f32 %v4926, %v5000
    %v5002 = vpop.f32.mrb[0].mxu0
    %5003 = vmatprep.mubr.f32.mxu0 0.0
    %5004 = vmatmul.mubr.f32.gmra.mrb[0].mxu0 %v4932
    %v5005 = vpop.f32.mrb[0].mxu0
    %v5006 = vadd.f32 %v4926, %v5005
    %v5007 = vpop.f32.mrb[0].mxu0
    %5008 = vdwg.mxu0
    %v5009 = vmax.f32 %v5001, 0.0
    %v5010 = vmax.f32 %v5006, 0.0
    %s5011 = scalar_lea.vmem %s17, 64
    %v5012 = vld [vmem:[%s5011] sm:$0xff]
    %v5013 = vld [vmem:[%s5011 + $0x8] sm:$0xff]
    %v5014 = vld [vmem:[%s5011 + $0x10] sm:$0xff]
    %v5015 = vld [vmem:[%s5011 + $0x18] sm:$0xff]
    %v5016 = vld [vmem:[%s5011 + $0x20] sm:$0xff]
    %v5017 = vld [vmem:[%s5011 + $0x28] sm:$0xff]
    %v5018 = vld [vmem:[%s5011 + $0x30] sm:$0xff]
    %v5019 = vld [vmem:[%s5011 + $0x38] sm:$0xff]
    %s5020 = scalar_lea.vmem %s18, 1
    %v5021 = vld [vmem:[%s5020] sm:$0x1]
    %v5023 = vlaneseq
    %v5024 = vshrl.u32 %v5023, 7
    %v5025 = vsub.s32 0, %v5024
    %v5026 = vrot.slane %v5021, %v5025
    %v5029 = vsel %vm2555, %v5009, 0
    %v5032 = vsel %vm2555, %v5010, 0
    %5034 = vmatprep.subr.mxu0 0.0
    %5035 = vmatpush1.msra.mxu0 %v5012
    %5036 = vmatprep.subr.mxu0 0.0
    %5037 = vmatpush1.msra.mxu0 %v5013
    %5038 = vmatprep.subr.mxu0 0.0
    %5039 = vmatpush1.msra.mxu0 %v5014
    %5040 = vmatprep.subr.mxu0 0.0
    %5041 = vmatpush1.msra.mxu0 %v5015
    %5042 = vmatprep.subr.mxu0 0.0
    %5043 = vmatpush1.msra.mxu0 %v5016
    %5044 = vmatprep.subr.mxu0 0.0
    %5045 = vmatpush1.msra.mxu0 %v5017
    %5046 = vmatprep.subr.mxu0 0.0
    %5047 = vmatpush1.msra.mxu0 %v5018
    %5048 = vmatprep.subr.mxu0 0.0
    %5049 = vmatpush1.msra.mxu0 %v5019
    %5050 = vmatprep.subr.mxu0 0.0
    %5051 = vmatpush1.msra.mxu0 0.0
    %5052 = vmatprep.subr.mxu0 0.0
    %5053 = vmatpush1.msra.mxu0 0.0
    %5054 = vmatprep.subr.mxu0 0.0
    %5055 = vmatpush1.msra.mxu0 0.0
    %5056 = vmatprep.subr.mxu0 0.0
    %5057 = vmatpush1.msra.mxu0 0.0
    %5058 = vmatprep.subr.mxu0 0.0
    %5059 = vmatpush1.msra.mxu0 0.0
    %5060 = vmatprep.subr.mxu0 0.0
    %5061 = vmatpush1.msra.mxu0 0.0
    %5062 = vmatprep.subr.mxu0 0.0
    %5063 = vmatpush1.msra.mxu0 0.0
    %5064 = vmatprep.subr.mxu0 0.0
    %5065 = vmatpush1.msra.mxu0 0.0
    %5066 = vmatprep.subr.mxu0 0.0
    %5067 = vmatpush1.msra.mxu0 0.0
    %5068 = vmatprep.subr.mxu0 0.0
    %5069 = vmatpush1.msra.mxu0 0.0
    %5070 = vmatprep.subr.mxu0 0.0
    %5071 = vmatpush1.msra.mxu0 0.0
    %5072 = vmatprep.subr.mxu0 0.0
    %5073 = vmatpush1.msra.mxu0 0.0
    %5074 = vmatprep.subr.mxu0 0.0
    %5075 = vmatpush1.msra.mxu0 0.0
    %5076 = vmatprep.subr.mxu0 0.0
    %5077 = vmatpush1.msra.mxu0 0.0
    %5078 = vmatprep.subr.mxu0 0.0
    %5079 = vmatpush1.msra.mxu0 0.0
    %5080 = vmatprep.subr.mxu0 0.0
    %5081 = vmatpush1.msra.mxu0 0.0
    %5082 = vmatprep.subr.mxu0 0.0
    %5083 = vmatpush1.msra.mxu0 0.0
    %5084 = vmatprep.subr.mxu0 0.0
    %5085 = vmatpush1.msra.mxu0 0.0
    %5086 = vmatprep.subr.mxu0 0.0
    %5087 = vmatpush1.msra.mxu0 0.0
    %5088 = vmatprep.subr.mxu0 0.0
    %5089 = vmatpush1.msra.mxu0 0.0
    %5090 = vmatprep.subr.mxu0 0.0
    %5091 = vmatpush1.msra.mxu0 0.0
    %5092 = vmatprep.subr.mxu0 0.0
    %5093 = vmatpush1.msra.mxu0 0.0
    %5094 = vmatprep.subr.mxu0 0.0
    %5095 = vmatpush1.msra.mxu0 0.0
    %5096 = vmatprep.subr.mxu0 0.0
    %5097 = vmatpush1.msra.mxu0 0.0
    %5098 = vmatprep.mubr.f32.mxu0 0.0
    %5099 = vmatmul.mubr.f32.gmra.mrb[0].mxu0 %v5029
    %v5100 = vpop.f32.mrb[0].mxu0
    %v5101 = vadd.f32 %v5026, %v5100
    %v5102 = vpop.f32.mrb[0].mxu0
    %5103 = vmatprep.mubr.f32.mxu0 0.0
    %5104 = vmatmul.mubr.f32.gmra.mrb[0].mxu0 %v5032
    %v5105 = vpop.f32.mrb[0].mxu0
    %v5106 = vadd.f32 %v5026, %v5105
    %v5107 = vpop.f32.mrb[0].mxu0
    %5108 = vdwg.mxu0
    %v5109 = vadd.f32 %v4913, %v5101
    %v5110 = vadd.f32 %v4914, %v5106
    %s5111 = scalar_lea.vmem %s19, 1
    %v5112 = vld [vmem:[%s5111] sm:$0x1]
    %s5113 = scalar_lea.vmem %s20, 1
    %v5114 = vld [vmem:[%s5113] sm:$0x1]
    %v5115 = vsel %vm232, %v5109, 0.0
    %5116 = vadd.xlane.f32.xlu0 %v5115
    %v5117 = vpop.xlane.xlu0 %5116
    %v5118 = vsel %vm232, %v5110, 0.0
    %5119 = vadd.xlane.f32.xlu0 %v5118
    %v5120 = vpop.xlane.xlu0 %5119
    %v5121 = vmul.f32 %v5117, %v2409
    %v5122 = vmul.f32 %v5120, %v2409
    %v5123 = vsub.f32 %v5109, %v5121
    %v5124 = vsub.f32 %v5110, %v5122
    %v5125 = vmul.f32 %v5123, %v5123
    %v5126 = vmul.f32 %v5124, %v5124
    %v5127 = vsel %vm232, %v5125, 0.0
    %5128 = vadd.xlane.f32.xlu0 %v5127
    %v5129 = vpop.xlane.xlu0 %5128
    %v5130 = vsel %vm232, %v5126, 0.0
    %5131 = vadd.xlane.f32.xlu0 %v5130
    %v5132 = vpop.xlane.xlu0 %5131
    %v5133 = vmul.f32 %v5129, %v2409
    %v5134 = vmul.f32 %v5132, %v2409
    %v5135 = vadd.f32 %v5133, 1e-05
    %v5136 = vadd.f32 %v5134, 1e-05
    %v5137 = vrsqrt.pop %v5135
    %v5138 = vrsqrt.pop %v5136
    %v5139 = vmul.f32 %v5123, %v5137
    %v5140 = vmul.f32 %v5124, %v5138
    %v5142 = vlaneseq
    %v5143 = vshrl.u32 %v5142, 7
    %v5144 = vsub.s32 0, %v5143
    %v5145 = vrot.slane %v5112, %v5144
    %v5147 = vmul.f32 %v5139, %v5145
    %v5148 = vmul.f32 %v5140, %v5145
    %v5150 = vlaneseq
    %v5151 = vshrl.u32 %v5150, 7
    %v5152 = vsub.s32 0, %v5151
    %v5153 = vrot.slane %v5114, %v5152
    %v5155 = vadd.f32 %v5147, %v5153
    %v5156 = vadd.f32 %v5148, %v5153
    %v5157 = vld [vmem:[%s21] sm:$0xff]
    %v5158 = vld [vmem:[%s21 + $0x8] sm:$0xff]
    %v5159 = vld [vmem:[%s21 + $0x10] sm:$0xff]
    %v5160 = vld [vmem:[%s21 + $0x18] sm:$0xff]
    %v5161 = vld [vmem:[%s22] sm:$0x1]
    %v5163 = vlaneseq
    %v5164 = vshrl.u32 %v5163, 7
    %v5165 = vsub.s32 0, %v5164
    %v5166 = vrot.slane %v5161, %v5165
    %v5169 = vsel %vm232, %v5155, 0
    %v5172 = vsel %vm232, %v5156, 0
    %5174 = vmatprep.subr.mxu0 0.0
    %5175 = vmatpush1.msra.mxu0 %v5157
    %5176 = vmatprep.subr.mxu0 0.0
    %5177 = vmatpush1.msra.mxu0 %v5158
    %5178 = vmatprep.subr.mxu0 0.0
    %5179 = vmatpush1.msra.mxu0 %v5159
    %5180 = vmatprep.subr.mxu0 0.0
    %5181 = vmatpush1.msra.mxu0 %v5160
    %5182 = vmatprep.subr.mxu0 0.0
    %5183 = vmatpush1.msra.mxu0 0.0
    %5184 = vmatprep.subr.mxu0 0.0
    %5185 = vmatpush1.msra.mxu0 0.0
    %5186 = vmatprep.subr.mxu0 0.0
    %5187 = vmatpush1.msra.mxu0 0.0
    %5188 = vmatprep.subr.mxu0 0.0
    %5189 = vmatpush1.msra.mxu0 0.0
    %5190 = vmatprep.subr.mxu0 0.0
    %5191 = vmatpush1.msra.mxu0 0.0
    %5192 = vmatprep.subr.mxu0 0.0
    %5193 = vmatpush1.msra.mxu0 0.0
    %5194 = vmatprep.subr.mxu0 0.0
    %5195 = vmatpush1.msra.mxu0 0.0
    %5196 = vmatprep.subr.mxu0 0.0
    %5197 = vmatpush1.msra.mxu0 0.0
    %5198 = vmatprep.subr.mxu0 0.0
    %5199 = vmatpush1.msra.mxu0 0.0
    %5200 = vmatprep.subr.mxu0 0.0
    %5201 = vmatpush1.msra.mxu0 0.0
    %5202 = vmatprep.subr.mxu0 0.0
    %5203 = vmatpush1.msra.mxu0 0.0
    %5204 = vmatprep.subr.mxu0 0.0
    %5205 = vmatpush1.msra.mxu0 0.0
    %5206 = vmatprep.subr.mxu0 0.0
    %5207 = vmatpush1.msra.mxu0 0.0
    %5208 = vmatprep.subr.mxu0 0.0
    %5209 = vmatpush1.msra.mxu0 0.0
    %5210 = vmatprep.subr.mxu0 0.0
    %5211 = vmatpush1.msra.mxu0 0.0
    %5212 = vmatprep.subr.mxu0 0.0
    %5213 = vmatpush1.msra.mxu0 0.0
    %5214 = vmatprep.subr.mxu0 0.0
    %5215 = vmatpush1.msra.mxu0 0.0
    %5216 = vmatprep.subr.mxu0 0.0
    %5217 = vmatpush1.msra.mxu0 0.0
    %5218 = vmatprep.subr.mxu0 0.0
    %5219 = vmatpush1.msra.mxu0 0.0
    %5220 = vmatprep.subr.mxu0 0.0
    %5221 = vmatpush1.msra.mxu0 0.0
    %5222 = vmatprep.subr.mxu0 0.0
    %5223 = vmatpush1.msra.mxu0 0.0
    %5224 = vmatprep.subr.mxu0 0.0
    %5225 = vmatpush1.msra.mxu0 0.0
    %5226 = vmatprep.subr.mxu0 0.0
    %5227 = vmatpush1.msra.mxu0 0.0
    %5228 = vmatprep.subr.mxu0 0.0
    %5229 = vmatpush1.msra.mxu0 0.0
    %5230 = vmatprep.subr.mxu0 0.0
    %5231 = vmatpush1.msra.mxu0 0.0
    %5232 = vmatprep.subr.mxu0 0.0
    %5233 = vmatpush1.msra.mxu0 0.0
    %5234 = vmatprep.subr.mxu0 0.0
    %5235 = vmatpush1.msra.mxu0 0.0
    %5236 = vmatprep.subr.mxu0 0.0
    %5237 = vmatpush1.msra.mxu0 0.0
    %5238 = vmatprep.mubr.f32.mxu0 0.0
    %5239 = vmatmul.mubr.f32.gmra.mrb[0].mxu0 %v5169
    %v5240 = vpop.f32.mrb[0].mxu0
    %v5241 = vadd.f32 %v5166, %v5240
    %v5242 = vpop.f32.mrb[0].mxu0
    %5243 = vmatprep.mubr.f32.mxu0 0.0
    %5244 = vmatmul.mubr.f32.gmra.mrb[0].mxu0 %v5172
    %v5245 = vpop.f32.mrb[0].mxu0
    %v5246 = vadd.f32 %v5166, %v5245
    %v5247 = vpop.f32.mrb[0].mxu0
    %5248 = vdwg.mxu0
    %v5249 = vsub.f32 0.0, %v5241
    %v5250 = vsub.f32 0.0, %v5246
    %v5251 = vmul.f32 %v5249, 1.442695
    %v5252 = vpow.pop %v5251
    %v5253 = vmul.f32 %v5250, 1.442695
    %v5254 = vpow.pop %v5253
    %v5255 = vadd.f32 %v5252, 1.0
    %v5256 = vadd.f32 %v5254, 1.0
    %v5257 = vrcp.pop %v5255
    %v5258 = vmul.f32 1.0, %v5257
    %v5259 = vrcp.pop %v5256
    %v5260 = vmul.f32 1.0, %v5259
    %v5263 = vcombine.high %v5258, %v5258
    %v5265 = vunpack.c.l.s4 1983009808
    %v5266 = vunpack.c.0.s8 %v5265
    %v5267 = vlaneseq
    %v5268 = vshrl.u32 %v5267, 7
    %v5269 = vsub.s32 %v5266, %v5268
    %v5270 = vrot.slane %v5258, %v5269
    %v5272 = vunpack.c.l.s4 1983009808
    %v5273 = vunpack.c.0.s8 %v5272
    %v5274 = vlaneseq
    %v5275 = vshrl.u32 %v5274, 7
    %v5276 = vsub.s32 %v5273, %v5275
    %v5277 = vrot.slane %v5263, %v5276
    %v5278 = vcombine.high %v5270, %v5270
    %v5279 = vcombine.high %v5277, %v5277
    %v5280 = vcombine.high %v5260, %v5260
    %v5282 = vunpack.c.l.s4 1983009808
    %v5283 = vunpack.c.0.s8 %v5282
    %v5284 = vlaneseq
    %v5285 = vshrl.u32 %v5284, 7
    %v5286 = vsub.s32 %v5283, %v5285
    %v5287 = vrot.slane %v5260, %v5286
    %v5289 = vunpack.c.l.s4 1983009808
    %v5290 = vunpack.c.0.s8 %v5289
    %v5291 = vlaneseq
    %v5292 = vshrl.u32 %v5291, 7
    %v5293 = vsub.s32 %v5290, %v5292
    %v5294 = vrot.slane %v5280, %v5293
    %v5295 = vcombine.high %v5287, %v5287
    %v5296 = vcombine.high %v5294, %v5294
    %vm5305 = vcmask 58368
    %5306 = vst.msk [vmem:[#allocation2] sm:$0x3] %vm5305, %v5270
    %5307 = vst.msk [vmem:[#allocation2 + $0x2] sm:$0x3] %vm5305, %v5278
    %5308 = vst.msk [vmem:[#allocation2 + $0x4] sm:$0x3] %vm5305, %v5277
    %5309 = vst.msk [vmem:[#allocation2 + $0x6] sm:$0x3] %vm5305, %v5279
    %5310 = vst.msk [vmem:[#allocation2 + $0x8] sm:$0x3] %vm5305, %v5287
    %5311 = vst.msk [vmem:[#allocation2 + $0xa] sm:$0x3] %vm5305, %v5295
    %5312 = vst.msk [vmem:[#allocation2 + $0xc] sm:$0x3] %vm5305, %v5294
    %5313 = vst.msk [vmem:[#allocation2 + $0xe] sm:$0x3] %vm5305, %v5296
    // Predicated region
    $region94: #{time_series_transformer_forward.1} parent=1 // pred_check
      _
    $region95: #{time_series_transformer_forward.1} parent=1 // pred_check_branch
      %5315 = sbr.rel (0) target = $region97
    $region96: #{time_series_transformer_forward.1} parent=1 // pred_region
      %s5317 = ssub.s32 256, 256
      %5318 = vsyncadd [#allocation3], %s5317
      %s5319 = sshll.u32 [#allocation2], 4
      %s5320 = int_to_ptr.vmem [resolvable:$true] %s5319
      %5325 = dma.vmem_to_hbm [thread:$0]  %s5320, 256, %s23, [#allocation3], 32, 32, 2
    $region97: #{time_series_transformer_forward.1} parent=1 // pred_fallthru
      _
    // Predicated region
    $region98: #{time_series_transformer_forward.1} parent=1 // pred_check
      _
    $region99: #{time_series_transformer_forward.1} parent=1 // pred_check_branch
      %5327 = sbr.rel (0) target = $region101
    $region100: #{time_series_transformer_forward.1} parent=1 // pred_region
      %5328 = dma.done [#allocation3], 256
    $region101: #{time_series_transformer_forward.1} parent=1 // pred_fallthru
      _
    %5329 = vsyncpa [#allocation3], 1

</llo_original>
